<compile_context>
chip_gen: v7x
topology: tpu7x:2x2x1
jax: 0.10.0
libtpu: 0.0.40
codegen_flags: <defaults>
</compile_context>

<pallas_src>
import functools
import math

import jax
import jax.numpy as jnp
import numpy as np
from jax.experimental import pallas as pl
from jax.experimental.pallas import tpu as pltpu

NEG_INF = -1e9   # exp() underflows to exactly 0 in f32 -> matches torch -inf masking
LN_EPS = 1e-5    # PyTorch LayerNorm default


# ----------------------------- tiling helpers -----------------------------

def _round_up(v, m):
    return (v + m - 1) // m * m


def _pick_tile(dim_p, cap):
    """Largest 128-multiple tile <= cap that divides dim_p (dim_p % 128 == 0)."""
    t = min(cap, dim_p)
    t = (t // 128) * 128
    while dim_p % t:
        t -= 128
    return t


def _row_tiles(m, cap):
    """Return (padded_rows, row_tile) with row_tile | padded_rows, 8-aligned."""
    if m >= cap:
        return _round_up(m, cap), cap
    mp = _round_up(m, 8)
    return mp, mp


def _pad_rows(x, mp):
    m = x.shape[0]
    return x if mp == m else jnp.pad(x, ((0, mp - m), (0, 0)))


def _pick_bt(n, width_cols, l, budget=4 << 20, cap=8):
    """Largest divisor of n (<= cap) so one bf16 block (l, bt*width) <= budget."""
    best = 1
    for bt in range(1, min(n, cap) + 1):
        if n % bt == 0 and l * bt * width_cols * 2 <= budget:
            best = bt
    return best


# ----------------------------- linear (tiled matmul) -----------------------------

def _linear_kernel(x_ref, w_ref, b_ref, o_ref, acc_ref, *, activation):
    @pl.when(pl.program_id(2) == 0)
    def _():
        acc_ref[...] = jnp.zeros_like(acc_ref)

    acc_ref[...] += jnp.dot(x_ref[...], w_ref[...],
                            preferred_element_type=jnp.float32)

    @pl.when(pl.program_id(2) == pl.num_programs(2) - 1)
    def _():
        y = acc_ref[...] + b_ref[...]
        if activation == "relu":
            y = jnp.maximum(y, 0.0)
        o_ref[...] = y.astype(o_ref.dtype)


def linear(x, w, b, activation=None, out_dtype=jnp.bfloat16):
    """x: (M, Kp) bf16 (already feature-padded), w: (Kp, Np) bf16, b: (1, Np) f32.

    Returns (M, Np) in out_dtype (padded width kept)."""
    M, K = x.shape
    Kp, Np = w.shape
    assert K == Kp, (K, Kp)
    Mp, tm = _row_tiles(M, 512)
    tk = _pick_tile(Kp, 512)
    tn = _pick_tile(Np, 512)
    xp = _pad_rows(x, Mp)
    out = pl.pallas_call(
        functools.partial(_linear_kernel, activation=activation),
        out_shape=jax.ShapeDtypeStruct((Mp, Np), out_dtype),
        grid=(Mp // tm, Np // tn, Kp // tk),
        in_specs=[
            pl.BlockSpec((tm, tk), lambda i, j, k: (i, k)),
            pl.BlockSpec((tk, tn), lambda i, j, k: (k, j)),
            pl.BlockSpec((1, tn), lambda i, j, k: (0, j)),
        ],
        out_specs=pl.BlockSpec((tm, tn), lambda i, j, k: (i, j)),
        scratch_shapes=[pltpu.VMEM((tm, tn), jnp.float32)],
        compiler_params=pltpu.CompilerParams(
            dimension_semantics=("parallel", "parallel", "arbitrary")),
    )(xp, w, b)
    return out if Mp == M else out[:M]


# ----------------------------- layernorm core (padding-aware) -----------------------------

def _ln_core(h, g, b, true_n):
    """LayerNorm over the first true_n columns; padded columns of h/g/b are zero."""
    inv = 1.0 / true_n
    mu = jnp.sum(h, axis=-1, keepdims=True) * inv
    var = jnp.maximum(jnp.sum(h * h, axis=-1, keepdims=True) * inv - mu * mu, 0.0)
    return (h - mu) * jax.lax.rsqrt(var + LN_EPS) * g + b


# ------------------- fused linear + residual-add + layernorm -------------------

def _linear_addln_kernel(x_ref, w_ref, b_ref, r_ref, g_ref, bb_ref, o_ref,
                         acc_ref, *, true_n):
    @pl.when(pl.program_id(1) == 0)
    def _():
        acc_ref[...] = jnp.zeros_like(acc_ref)

    acc_ref[...] += jnp.dot(x_ref[...], w_ref[...],
                            preferred_element_type=jnp.float32)

    @pl.when(pl.program_id(1) == pl.num_programs(1) - 1)
    def _():
        h = acc_ref[...] + b_ref[...] + r_ref[...].astype(jnp.float32)
        o_ref[...] = _ln_core(h, g_ref[...], bb_ref[...], true_n).astype(o_ref.dtype)


def linear_add_ln(x, w, b, res, gamma, beta, true_n):
    """LayerNorm(res + (x @ w + b)); the whole output width Np is one N tile."""
    M, K = x.shape
    Kp, Np = w.shape
    assert K == Kp
    Mp, tm = _row_tiles(M, 512)
    tk = _pick_tile(Kp, 512)
    xp = _pad_rows(x, Mp)
    rp = _pad_rows(res, Mp)
    out = pl.pallas_call(
        functools.partial(_linear_addln_kernel, true_n=true_n),
        out_shape=jax.ShapeDtypeStruct((Mp, Np), jnp.bfloat16),
        grid=(Mp // tm, Kp // tk),
        in_specs=[
            pl.BlockSpec((tm, tk), lambda i, k: (i, k)),
            pl.BlockSpec((tk, Np), lambda i, k: (k, 0)),
            pl.BlockSpec((1, Np), lambda i, k: (0, 0)),
            pl.BlockSpec((tm, Np), lambda i, k: (i, 0)),
            pl.BlockSpec((1, Np), lambda i, k: (0, 0)),
            pl.BlockSpec((1, Np), lambda i, k: (0, 0)),
        ],
        out_specs=pl.BlockSpec((tm, Np), lambda i, k: (i, 0)),
        scratch_shapes=[pltpu.VMEM((tm, Np), jnp.float32)],
        compiler_params=pltpu.CompilerParams(
            dimension_semantics=("parallel", "arbitrary")),
    )(xp, w, b, rp, gamma, beta)
    return out if Mp == M else out[:M]


# ----------------------------- standalone layernorm (final norms) -----------------------------

def _ln_kernel(x_ref, g_ref, b_ref, o_ref, *, true_n):
    o_ref[...] = _ln_core(x_ref[...].astype(jnp.float32), g_ref[...], b_ref[...],
                          true_n).astype(o_ref.dtype)


def layernorm(x, gamma, beta, true_n):
    M, Ep = x.shape
    Mp, tr = _row_tiles(M, 512)
    xp = _pad_rows(x, Mp)
    out = pl.pallas_call(
        functools.partial(_ln_kernel, true_n=true_n),
        out_shape=jax.ShapeDtypeStruct((Mp, Ep), jnp.bfloat16),
        grid=(Mp // tr,),
        in_specs=[pl.BlockSpec((tr, Ep), lambda i: (i, 0)),
                  pl.BlockSpec((1, Ep), lambda i: (0, 0)),
                  pl.BlockSpec((1, Ep), lambda i: (0, 0))],
        out_specs=pl.BlockSpec((tr, Ep), lambda i: (i, 0)),
        compiler_params=pltpu.CompilerParams(dimension_semantics=("parallel",)),
    )(xp, gamma, beta)
    return out if Mp == M else out[:M]


# ----------------------------- attention kernels -----------------------------

def _mha_heads(q, k, v, bias, nhead, dh, scale, o_ref, ocol, e, ep):
    """All heads of one batch element; writes head outputs directly into o_ref."""
    L = q.shape[0]
    for h in range(nhead):
        sl = slice(h * dh, (h + 1) * dh)
        s = jax.lax.dot_general(q[:, sl], k[:, sl], (((1,), (1,)), ((), ())),
                                preferred_element_type=jnp.float32) * scale
        if bias is not None:
            s = s + bias
        s = s - jnp.max(s, axis=-1, keepdims=True)
        p = jnp.exp(s)
        p = p * pl.reciprocal(jnp.sum(p, axis=-1, keepdims=True), approx=True)
        o = jnp.dot(p.astype(v.dtype), v[:, sl], preferred_element_type=jnp.float32)
        o_ref[:, ocol + h * dh: ocol + (h + 1) * dh] = o.astype(o_ref.dtype)
    if e < ep:  # keep padded feature columns zero (never NaN garbage)
        o_ref[:, ocol + e: ocol + ep] = jnp.zeros((L, ep - e), o_ref.dtype)


def _self_attn_body(qkv_ref, kpm_ref, cm, o_ref, nhead, e, ep, scale, bt):
    dh = e // nhead
    for b in range(bt):
        base = b * 3 * ep
        q = qkv_ref[:, base: base + e]
        k = qkv_ref[:, base + ep: base + ep + e]
        v = qkv_ref[:, base + 2 * ep: base + 2 * ep + e]
        bias = kpm_ref[b]                        # (1, L) additive key-padding mask
        if cm is not None:
            bias = bias + cm
        _mha_heads(q, k, v, bias, nhead, dh, scale, o_ref, b * ep, e, ep)


def _self_attn_kernel(qkv_ref, kpm_ref, o_ref, *, nhead, e, ep, scale, bt):
    _self_attn_body(qkv_ref, kpm_ref, None, o_ref, nhead, e, ep, scale, bt)


def _self_attn_causal_kernel(qkv_ref, kpm_ref, cm_ref, o_ref, *, nhead, e, ep,
                             scale, bt):
    _self_attn_body(qkv_ref, kpm_ref, cm_ref[...], o_ref, nhead, e, ep, scale, bt)


def _cross_attn_kernel(q_ref, kv_ref, o_ref, *, nhead, e, ep, scale, bt):
    dh = e // nhead
    for b in range(bt):
        q = q_ref[:, b * ep: b * ep + e]
        k = kv_ref[:, b * 2 * ep: b * 2 * ep + e]
        v = kv_ref[:, b * 2 * ep + ep: b * 2 * ep + ep + e]
        _mha_heads(q, k, v, None, nhead, dh, scale, o_ref, b * ep, e, ep)


def self_attention(qkv2d, kpm, causal_bias, nhead, e, ep):
    """qkv2d: (L, N*3*ep) bf16 view of (L, N, 3*ep); kpm: (N, 1, L) f32 additive;
    causal_bias: (L, L) f32 additive or None.  Returns (L, N*ep) bf16."""
    L, W = qkv2d.shape
    n = W // (3 * ep)
    bt = _pick_bt(n, 3 * ep, L)
    common = dict(nhead=nhead, e=e, ep=ep, scale=1.0 / math.sqrt(e // nhead), bt=bt)
    in_specs = [pl.BlockSpec((L, bt * 3 * ep), lambda i: (0, i)),
                pl.BlockSpec((bt, 1, L), lambda i: (i, 0, 0))]
    operands = [qkv2d, kpm]
    if causal_bias is None:
        kern = functools.partial(_self_attn_kernel, **common)
    else:
        kern = functools.partial(_self_attn_causal_kernel, **common)
        in_specs.append(pl.BlockSpec((L, L), lambda i: (0, 0)))   # resident
        operands.append(causal_bias)
    return pl.pallas_call(
        kern,
        out_shape=jax.ShapeDtypeStruct((L, n * ep), jnp.bfloat16),
        grid=(n // bt,),
        in_specs=in_specs,
        out_specs=pl.BlockSpec((L, bt * ep), lambda i: (0, i)),
        compiler_params=pltpu.CompilerParams(dimension_semantics=("parallel",)),
    )(*operands)


def cross_attention(q2d, kv2d, nhead, e, ep):
    """q2d: (T, N*ep) bf16, kv2d: (S, N*2*ep) bf16 (no masking).  Returns (T, N*ep)."""
    T, Wq = q2d.shape
    S, _ = kv2d.shape
    n = Wq // ep
    bt = _pick_bt(n, 2 * ep, max(T, S))
    return pl.pallas_call(
        functools.partial(_cross_attn_kernel, nhead=nhead, e=e, ep=ep,
                          scale=1.0 / math.sqrt(e // nhead), bt=bt),
        out_shape=jax.ShapeDtypeStruct((T, n * ep), jnp.bfloat16),
        grid=(n // bt,),
        in_specs=[pl.BlockSpec((T, bt * ep), lambda i: (0, i)),
                  pl.BlockSpec((S, bt * 2 * ep), lambda i: (0, i))],
        out_specs=pl.BlockSpec((T, bt * ep), lambda i: (0, i)),
        compiler_params=pltpu.CompilerParams(dimension_semantics=("parallel",)),
    )(q2d, kv2d)


# ----------------------------- cross-entropy + argmax -----------------------------

def _ce_kernel(logits_ref, tgt_ref, loss_ref, cnt_ref, am_ref, *,
               ignore_index, eps, v_true):
    logits = logits_ref[...].astype(jnp.float32)            # (tm, Vp)
    tgt = tgt_ref[...]                                       # (tm, 1) int32
    classes = jax.lax.broadcasted_iota(jnp.int32, logits.shape, 1)
    class_valid = classes < v_true
    logits = jnp.where(class_valid, logits, NEG_INF)         # mask padded vocab cols
    m = jnp.max(logits, axis=-1, keepdims=True)
    z = logits - m
    lse = jnp.log(jnp.sum(jnp.exp(z), axis=-1, keepdims=True))
    logp = z - lse
    onehot = (classes == tgt).astype(jnp.float32)
    nll = -jnp.sum(onehot * logp, axis=-1, keepdims=True)
    smooth = -jnp.sum(jnp.where(class_valid, logp, 0.0), axis=-1,
                      keepdims=True) / v_true
    per = (1.0 - eps) * nll + eps * smooth
    valid = (tgt != ignore_index).astype(jnp.float32)

    @pl.when(pl.program_id(0) == 0)
    def _():
        loss_ref[...] = jnp.zeros_like(loss_ref)
        cnt_ref[...] = jnp.zeros_like(cnt_ref)

    loss_ref[...] += jnp.sum(per * valid, keepdims=True)
    cnt_ref[...] += jnp.sum(valid, keepdims=True)

    is_max = logits == m
    am_ref[...] = jnp.min(jnp.where(is_max, classes, jnp.int32(logits.shape[-1])),
                          axis=-1, keepdims=True)


def cross_entropy_and_argmax(logits, targets, ignore_index, smoothing, v_true):
    """logits: (M, Vp) f32 (vocab padded to 128), targets: (M,).  Returns (loss, argmax)."""
    M, Vp = logits.shape
    cap = max(8, min(512, ((4 << 20) // (4 * Vp)) // 8 * 8))
    Mp, tm = _row_tiles(M, cap)
    logits_p = _pad_rows(logits, Mp)
    tgt = jnp.full((Mp, 1), ignore_index, jnp.int32)
    tgt = tgt.at[:M, 0].set(targets.astype(jnp.int32))
    loss_sum, cnt, am = pl.pallas_call(
        functools.partial(_ce_kernel, ignore_index=ignore_index, eps=smoothing,
                          v_true=v_true),
        out_shape=(jax.ShapeDtypeStruct((1, 1), jnp.float32),
                   jax.ShapeDtypeStruct((1, 1), jnp.float32),
                   jax.ShapeDtypeStruct((Mp, 1), jnp.int32)),
        grid=(Mp // tm,),
        in_specs=[pl.BlockSpec((tm, Vp), lambda i: (i, 0)),
                  pl.BlockSpec((tm, 1), lambda i: (i, 0))],
        out_specs=(pl.BlockSpec((1, 1), lambda i: (0, 0)),
                   pl.BlockSpec((1, 1), lambda i: (0, 0)),
                   pl.BlockSpec((tm, 1), lambda i: (i, 0))),
        compiler_params=pltpu.CompilerParams(dimension_semantics=("arbitrary",)),
    )(logits_p, tgt)
    return loss_sum[0, 0] / cnt[0, 0], am[:M, 0]


# ----------------------------- transformer glue -----------------------------

def encoder_layer(x2d, p, hp, src_kpm, S, N, Ep):
    E, H = hp["d_model"], hp["nhead"]
    qkv = linear(x2d, p["wqkv"], p["bqkv"])                       # (S*N, 3Ep) bf16
    a = self_attention(qkv.reshape(S, N * 3 * Ep), src_kpm, None, H, E, Ep)
    h = linear_add_ln(a.reshape(S * N, Ep), p["wo"], p["bo"], x2d,
                      p["norm1_g"], p["norm1_b"], E)
    ff = linear(h, p["w1"], p["b1"], activation="relu")
    h = linear_add_ln(ff, p["w2"], p["b2"], h, p["norm2_g"], p["norm2_b"], E)
    return h


def decoder_layer(x2d, mem2d, p, hp, tgt_kpm, causal, T, S, N, Ep):
    E, H = hp["d_model"], hp["nhead"]
    # masked self-attention (causal + key padding)
    qkv = linear(x2d, p["self_wqkv"], p["self_bqkv"])
    a = self_attention(qkv.reshape(T, N * 3 * Ep), tgt_kpm, causal, H, E, Ep)
    h = linear_add_ln(a.reshape(T * N, Ep), p["self_wo"], p["self_bo"], x2d,
                      p["norm1_g"], p["norm1_b"], E)
    # cross-attention (memory_key_padding_mask=None in the reference -> no mask)
    q = linear(h, p["cross_wq"], p["cross_bq"]).reshape(T, N * Ep)
    kv = linear(mem2d, p["cross_wkv"], p["cross_bkv"]).reshape(S, N * 2 * Ep)
    c = cross_attention(q, kv, H, E, Ep)
    h = linear_add_ln(c.reshape(T * N, Ep), p["cross_wo"], p["cross_bo"], h,
                      p["norm2_g"], p["norm2_b"], E)
    # FFN
    ff = linear(h, p["w1"], p["b1"], activation="relu")
    h = linear_add_ln(ff, p["w2"], p["b2"], h, p["norm3_g"], p["norm3_b"], E)
    return h


def pe_table(max_len, d_model, d_pad):
    pos = np.arange(max_len, dtype=np.float32)[:, None]
    i = np.arange(d_model // 2, dtype=np.float32)
    div = 10000.0 ** (2.0 * i / d_model)
    out = np.zeros((max_len, d_pad), np.float32)
    out[:, 0:d_model:2] = np.sin(pos / div)
    out[:, 1:d_model:2] = np.cos(pos / div)
    return jnp.asarray(out)


def forward(params, hp, x, y):
    """x: (src_len, N) int32, y: (tgt_len+1, N) int32. Returns (loss, argmax)."""
    E = hp["d_model"]
    Ep = _round_up(E, 128)
    src_len, N = x.shape
    sos_y, y_eos = y[:-1], y[1:]
    T = sos_y.shape[0]

    # embeddings + positional encodings, born feature-padded; bf16 activation stream
    src = (params["src_emb"][x] + params["src_pe"][:src_len][:, None, :]).astype(jnp.bfloat16)
    tgt = (params["tgt_emb"][sos_y] + params["tgt_pe"][:T][:, None, :]).astype(jnp.bfloat16)

    # tiny additive masks
    src_kpm = jnp.where(x == hp["SRC_PADDING_IDX"], NEG_INF, 0.0).astype(jnp.float32)
    src_kpm = src_kpm.T[:, None, :]                               # (N, 1, src_len)
    tgt_kpm = jnp.where(sos_y == hp["TGT_PADDING_IDX"], NEG_INF, 0.0).astype(jnp.float32)
    tgt_kpm = tgt_kpm.T[:, None, :]                               # (N, 1, T)
    causal = jnp.where(jnp.arange(T)[None, :] > jnp.arange(T)[:, None],
                       NEG_INF, 0.0).astype(jnp.float32)          # (T, T), resident

    mem = src.reshape(src_len * N, Ep)
    for lp in params["enc_layers"]:
        mem = encoder_layer(mem, lp, hp, src_kpm, src_len, N, Ep)
    mem = layernorm(mem, params["enc_norm_g"], params["enc_norm_b"], E)

    out = tgt.reshape(T * N, Ep)
    for lp in params["dec_layers"]:
        out = decoder_layer(out, mem, lp, hp, tgt_kpm, causal, T, src_len, N, Ep)
    out = layernorm(out, params["dec_norm_g"], params["dec_norm_b"], E)

    logits = linear(out, params["out_w"], params["out_b"], out_dtype=jnp.float32)
    loss, am = cross_entropy_and_argmax(
        logits, y_eos.reshape(-1), hp["TGT_PADDING_IDX"], hp["label_smoothing"],
        hp["TGT_VOCAB_SIZE"])
    return loss, am.reshape(T, N)


# ----------------------------- parameters -----------------------------

def init_params(key, hp):
    E, F = hp["d_model"], hp["d_ff"]
    Ep = _round_up(E, 128)
    Vs, Vt = hp["SRC_VOCAB_SIZE"], hp["TGT_VOCAB_SIZE"]
    keys = iter(jax.random.split(key, 1024))

    def dense(fan_in, fan_outs, scale=0.02):
        # stored (in, out); each output segment padded to its own 128-multiple so
        # q/k/v (and k/v) slices are lane-aligned inside the attention kernel.
        kin = _round_up(fan_in, 128)
        ws, bs = [], []
        for fo in fan_outs:
            fop = _round_up(fo, 128)
            w = scale * jax.random.normal(next(keys), (fan_in, fo), jnp.float32)
            ws.append(jnp.pad(w, ((0, kin - fan_in), (0, fop - fo))))
            bs.append(jnp.zeros((1, fop), jnp.float32))
        return (jnp.concatenate(ws, axis=1).astype(jnp.bfloat16),
                jnp.concatenate(bs, axis=1))

    def ln():
        g = jnp.pad(jnp.ones((1, E), jnp.float32), ((0, 0), (0, Ep - E)))
        b = jnp.zeros((1, Ep), jnp.float32)
        return g, b

    def emb(v):
        t = jax.random.normal(next(keys), (v, E), jnp.float32)
        return jnp.pad(t, ((0, 0), (0, Ep - E)))

    def enc_layer():
        wqkv, bqkv = dense(E, [E, E, E])
        wo, bo = dense(E, [E])
        w1, b1 = dense(E, [F])
        w2, b2 = dense(F, [E])
        n1g, n1b = ln(); n2g, n2b = ln()
        return dict(wqkv=wqkv, bqkv=bqkv, wo=wo, bo=bo,
                    w1=w1, b1=b1, w2=w2, b2=b2,
                    norm1_g=n1g, norm1_b=n1b, norm2_g=n2g, norm2_b=n2b)

    def dec_layer():
        wqkv, bqkv = dense(E, [E, E, E])
        wo, bo = dense(E, [E])
        cwq, cbq = dense(E, [E])
        cwkv, cbkv = dense(E, [E, E])
        cwo, cbo = dense(E, [E])
        w1, b1 = dense(E, [F])
        w2, b2 = dense(F, [E])
        n1g, n1b = ln(); n2g, n2b = ln(); n3g, n3b = ln()
        return dict(self_wqkv=wqkv, self_bqkv=bqkv, self_wo=wo, self_bo=bo,
                    cross_wq=cwq, cross_bq=cbq, cross_wkv=cwkv, cross_bkv=cbkv,
                    cross_wo=cwo, cross_bo=cbo,
                    w1=w1, b1=b1, w2=w2, b2=b2,
                    norm1_g=n1g, norm1_b=n1b, norm2_g=n2g, norm2_b=n2b,
                    norm3_g=n3g, norm3_b=n3b)

    out_w, out_b = dense(E, [Vt])
    eg, eb = ln()
    dg, db = ln()
    return {
        "src_emb": emb(Vs),
        "tgt_emb": emb(Vt),
        "enc_layers": [enc_layer() for _ in range(hp["nlayer"])],
        "dec_layers": [dec_layer() for _ in range(hp["nlayer"])],
        "enc_norm_g": eg, "enc_norm_b": eb,
        "dec_norm_g": dg, "dec_norm_b": db,
        "out_w": out_w, "out_b": out_b,
        "src_pe": pe_table(hp["SRC_MAX_SEQ_LEN"], E, Ep),
        "tgt_pe": pe_table(hp["TGT_MAX_SEQ_LEN"], E, Ep),
    }


# ----------------------------- main -----------------------------

if __name__ == "__main__":
    # Scaled-down hparams (reference defaults d_model=512, nlayer=6, nhead=8, d_ff=4*d_model).
    HP = dict(d_model=32, nhead=4, nlayer=2, d_ff=128,
              SRC_VOCAB_SIZE=50, TGT_VOCAB_SIZE=60,
              SRC_PADDING_IDX=1, TGT_PADDING_IDX=1,
              TGT_SOS_IDX=2, TGT_EOS_IDX=3,
              SRC_MAX_SEQ_LEN=16, TGT_MAX_SEQ_LEN=16,
              label_smoothing=0.1)

    key = jax.random.PRNGKey(0)
    kp, kx, ky = jax.random.split(key, 3)
    params = init_params(kp, HP)

    src_len, bz = 8, 2
    tgt_len_plus1 = 9
    x = jax.random.randint(kx, (src_len, bz), 4, HP["SRC_VOCAB_SIZE"], dtype=jnp.int32)
    y = jax.random.randint(ky, (tgt_len_plus1, bz), 4, HP["TGT_VOCAB_SIZE"], dtype=jnp.int32)
    # deterministic structure: SOS at start of y, some padding / EOS at the tails
    x = x.at[6:, 1].set(HP["SRC_PADDING_IDX"])
    y = y.at[0, :].set(HP["TGT_SOS_IDX"])
    y = y.at[6, 1].set(HP["TGT_EOS_IDX"])
    y = y.at[7:, 1].set(HP["TGT_PADDING_IDX"])

    fwd = jax.jit(lambda p, xx, yy: forward(p, HP, xx, yy))
    loss, pred = fwd(params, x, y)
    jax.block_until_ready((loss, pred))
    assert pred.shape == (tgt_len_plus1 - 1, bz)
    assert bool(jnp.isfinite(loss))
    print("KERNEL_OK")
</pallas_src>

<mosaic_0001>
module attributes {stable_mosaic.version = 11 : i64} {
  func.func @_linear_kernel(%arg0: i32, %arg1: i32, %arg2: i32, %arg3: memref<16x128xbf16, #tpu.memory_space<vmem>>, %arg4: memref<128x384xbf16, #tpu.memory_space<vmem>>, %arg5: memref<1x384xf32, #tpu.memory_space<vmem>>, %arg6: memref<16x384xbf16, #tpu.memory_space<vmem>>, %arg7: memref<16x384xf32, #tpu.memory_space<vmem>>) attributes {dimension_semantics = [#tpu.dimension_semantics<parallel>, #tpu.dimension_semantics<parallel>, #tpu.dimension_semantics<arbitrary>], iteration_bounds = array<i64: 1, 1, 1>, scalar_prefetch = 0 : i64, scratch_operands = 1 : i64, tpu.core_type = #tpu.core_type<tc>, window_params = [{transform_indices = @transform_0, window_bounds = array<i64: 16, 128>}, {transform_indices = @transform_1, window_bounds = array<i64: 128, 384>}, {transform_indices = @transform_2, window_bounds = array<i64: 1, 384>}, {transform_indices = @transform_3, window_bounds = array<i64: 16, 384>}]} {
    %c0_i32 = arith.constant 0 : i32
    %0 = arith.cmpi eq, %arg2, %c0_i32 : i32
    %1 = arith.extui %0 : i1 to i32
    %c0_i32_0 = arith.constant 0 : i32
    %2 = arith.cmpi ne, %1, %c0_i32_0 : i32
    scf.if %2 {
      %cst_10 = arith.constant 0.000000e+00 : f32
      %12 = vector.broadcast %cst_10 : f32 to vector<16x384xf32>
      %c0_11 = arith.constant 0 : index
      %c0_12 = arith.constant 0 : index
      %13 = vector.load %arg7[%c0_11, %c0_12] : memref<16x384xf32, #tpu.memory_space<vmem>>, vector<16x384xf32>
      tpu.vector_store %arg7[%c0_11, %c0_12], %12 {strides = array<i32>} : memref<16x384xf32, #tpu.memory_space<vmem>>, vector<16x384xf32>,
    } else {
    }
    %c0 = arith.constant 0 : index
    %c0_1 = arith.constant 0 : index
    %3 = vector.load %arg7[%c0, %c0_1] : memref<16x384xf32, #tpu.memory_space<vmem>>, vector<16x384xf32>
    %c0_2 = arith.constant 0 : index
    %c0_3 = arith.constant 0 : index
    %4 = vector.load %arg3[%c0_2, %c0_3] : memref<16x128xbf16, #tpu.memory_space<vmem>>, vector<16x128xbf16>
    %c0_4 = arith.constant 0 : index
    %c0_5 = arith.constant 0 : index
    %5 = vector.load %arg4[%c0_4, %c0_5] : memref<128x384xbf16, #tpu.memory_space<vmem>>, vector<128x384xbf16>
    %cst = arith.constant dense<0.000000e+00> : vector<16x384xf32>
    %6 = tpu.matmul %4, %5, %cst {dimension_numbers = #tpu.dot_dimension_numbers<[1], [0], [0], [1], [0, 0, 1, 1], [], []>} : vector<16x128xbf16>, vector<128x384xbf16>, vector<16x384xf32> -> vector<16x384xf32>
    %7 = arith.addf %3, %6 : vector<16x384xf32>
    %c0_6 = arith.constant 0 : index
    %c0_7 = arith.constant 0 : index
    %8 = vector.load %arg7[%c0_6, %c0_7] : memref<16x384xf32, #tpu.memory_space<vmem>>, vector<16x384xf32>
    tpu.vector_store %arg7[%c0_6, %c0_7], %7 {strides = array<i32>} : memref<16x384xf32, #tpu.memory_space<vmem>>, vector<16x384xf32>,
    %c0_i32_8 = arith.constant 0 : i32
    %9 = arith.cmpi eq, %arg2, %c0_i32_8 : i32
    %10 = arith.extui %9 : i1 to i32
    %c0_i32_9 = arith.constant 0 : i32
    %11 = arith.cmpi ne, %10, %c0_i32_9 : i32
    scf.if %11 {
      %c0_10 = arith.constant 0 : index
      %c0_11 = arith.constant 0 : index
      %12 = vector.load %arg7[%c0_10, %c0_11] : memref<16x384xf32, #tpu.memory_space<vmem>>, vector<16x384xf32>
      %c0_12 = arith.constant 0 : index
      %c0_13 = arith.constant 0 : index
      %13 = vector.load %arg5[%c0_12, %c0_13] : memref<1x384xf32, #tpu.memory_space<vmem>>, vector<1x384xf32>
      %14 = vector.broadcast %13 : vector<1x384xf32> to vector<16x384xf32>
      %15 = arith.addf %12, %14 : vector<16x384xf32>
      %16 = arith.truncf %15 : vector<16x384xf32> to vector<16x384xbf16>
      %c0_14 = arith.constant 0 : index
      %c0_15 = arith.constant 0 : index
      %17 = vector.load %arg6[%c0_14, %c0_15] : memref<16x384xbf16, #tpu.memory_space<vmem>>, vector<16x384xbf16>
      tpu.vector_store %arg6[%c0_14, %c0_15], %16 {strides = array<i32>} : memref<16x384xbf16, #tpu.memory_space<vmem>>, vector<16x384xbf16>,
    } else {
    }
    return
  }
  func.func @transform_0(%arg0: i32, %arg1: i32, %arg2: i32) -> (i32, i32) {
    %c0_i32 = arith.constant 0 : i32
    return %arg0, %arg2 : i32, i32
  }
  func.func @transform_1(%arg0: i32, %arg1: i32, %arg2: i32) -> (i32, i32) {
    %c0_i32 = arith.constant 0 : i32
    return %arg2, %arg1 : i32, i32
  }
  func.func @transform_2(%arg0: i32, %arg1: i32, %arg2: i32) -> (i32, i32) {
    %c0_i32 = arith.constant 0 : i32
    %c0_i32_0 = arith.constant 0 : i32
    return %c0_i32, %arg1 : i32, i32
  }
  func.func @transform_3(%arg0: i32, %arg1: i32, %arg2: i32) -> (i32, i32) {
    %c0_i32 = arith.constant 0 : i32
    return %arg0, %arg1 : i32, i32
  }
}

module attributes {stable_mosaic.version = 11 : i64} {
  func.func @_linear_kernel(%arg0: i32, %arg1: i32, %arg2: i32, %arg3: memref<16x128xbf16, #tpu.memory_space<vmem>>, %arg4: memref<128x128xbf16, #tpu.memory_space<vmem>>, %arg5: memref<1x128xf32, #tpu.memory_space<vmem>>, %arg6: memref<16x128xbf16, #tpu.memory_space<vmem>>, %arg7: memref<16x128xf32, #tpu.memory_space<vmem>>) attributes {dimension_semantics = [#tpu.dimension_semantics<parallel>, #tpu.dimension_semantics<parallel>, #tpu.dimension_semantics<arbitrary>], iteration_bounds = array<i64: 1, 1, 1>, scalar_prefetch = 0 : i64, scratch_operands = 1 : i64, tpu.core_type = #tpu.core_type<tc>, window_params = [{transform_indices = @transform_0, window_bounds = array<i64: 16, 128>}, {transform_indices = @transform_1, window_bounds = array<i64: 128, 128>}, {transform_indices = @transform_2, window_bounds = array<i64: 1, 128>}, {transform_indices = @transform_3, window_bounds = array<i64: 16, 128>}]} {
    %c0_i32 = arith.constant 0 : i32
    %0 = arith.cmpi eq, %arg2, %c0_i32 : i32
    %1 = arith.extui %0 : i1 to i32
    %c0_i32_0 = arith.constant 0 : i32
    %2 = arith.cmpi ne, %1, %c0_i32_0 : i32
    scf.if %2 {
      %cst_10 = arith.constant 0.000000e+00 : f32
      %12 = vector.broadcast %cst_10 : f32 to vector<16x128xf32>
      %c0_11 = arith.constant 0 : index
      %c0_12 = arith.constant 0 : index
      %13 = vector.load %arg7[%c0_11, %c0_12] : memref<16x128xf32, #tpu.memory_space<vmem>>, vector<16x128xf32>
      tpu.vector_store %arg7[%c0_11, %c0_12], %12 {strides = array<i32>} : memref<16x128xf32, #tpu.memory_space<vmem>>, vector<16x128xf32>,
    } else {
    }
    %c0 = arith.constant 0 : index
    %c0_1 = arith.constant 0 : index
    %3 = vector.load %arg7[%c0, %c0_1] : memref<16x128xf32, #tpu.memory_space<vmem>>, vector<16x128xf32>
    %c0_2 = arith.constant 0 : index
    %c0_3 = arith.constant 0 : index
    %4 = vector.load %arg3[%c0_2, %c0_3] : memref<16x128xbf16, #tpu.memory_space<vmem>>, vector<16x128xbf16>
    %c0_4 = arith.constant 0 : index
    %c0_5 = arith.constant 0 : index
    %5 = vector.load %arg4[%c0_4, %c0_5] : memref<128x128xbf16, #tpu.memory_space<vmem>>, vector<128x128xbf16>
    %cst = arith.constant dense<0.000000e+00> : vector<16x128xf32>
    %6 = tpu.matmul %4, %5, %cst {dimension_numbers = #tpu.dot_dimension_numbers<[1], [0], [0], [1], [0, 0, 1, 1], [], []>} : vector<16x128xbf16>, vector<128x128xbf16>, vector<16x128xf32> -> vector<16x128xf32>
    %7 = arith.addf %3, %6 : vector<16x128xf32>
    %c0_6 = arith.constant 0 : index
    %c0_7 = arith.constant 0 : index
    %8 = vector.load %arg7[%c0_6, %c0_7] : memref<16x128xf32, #tpu.memory_space<vmem>>, vector<16x128xf32>
    tpu.vector_store %arg7[%c0_6, %c0_7], %7 {strides = array<i32>} : memref<16x128xf32, #tpu.memory_space<vmem>>, vector<16x128xf32>,
    %c0_i32_8 = arith.constant 0 : i32
    %9 = arith.cmpi eq, %arg2, %c0_i32_8 : i32
    %10 = arith.extui %9 : i1 to i32
    %c0_i32_9 = arith.constant 0 : i32
    %11 = arith.cmpi ne, %10, %c0_i32_9 : i32
    scf.if %11 {
      %c0_10 = arith.constant 0 : index
      %c0_11 = arith.constant 0 : index
      %12 = vector.load %arg7[%c0_10, %c0_11] : memref<16x128xf32, #tpu.memory_space<vmem>>, vector<16x128xf32>
      %c0_12 = arith.constant 0 : index
      %c0_13 = arith.constant 0 : index
      %13 = vector.load %arg5[%c0_12, %c0_13] : memref<1x128xf32, #tpu.memory_space<vmem>>, vector<1x128xf32>
      %14 = vector.broadcast %13 : vector<1x128xf32> to vector<16x128xf32>
      %15 = arith.addf %12, %14 : vector<16x128xf32>
      %cst_14 = arith.constant 0.000000e+00 : f32
      %16 = vector.broadcast %cst_14 : f32 to vector<16x128xf32>
      %17 = arith.maximumf %15, %16 : vector<16x128xf32>
      %18 = arith.truncf %17 : vector<16x128xf32> to vector<16x128xbf16>
      %c0_15 = arith.constant 0 : index
      %c0_16 = arith.constant 0 : index
      %19 = vector.load %arg6[%c0_15, %c0_16] : memref<16x128xbf16, #tpu.memory_space<vmem>>, vector<16x128xbf16>
      tpu.vector_store %arg6[%c0_15, %c0_16], %18 {strides = array<i32>} : memref<16x128xbf16, #tpu.memory_space<vmem>>, vector<16x128xbf16>,
    } else {
    }
    return
  }
  func.func @transform_0(%arg0: i32, %arg1: i32, %arg2: i32) -> (i32, i32) {
    %c0_i32 = arith.constant 0 : i32
    return %arg0, %arg2 : i32, i32
  }
  func.func @transform_1(%arg0: i32, %arg1: i32, %arg2: i32) -> (i32, i32) {
    %c0_i32 = arith.constant 0 : i32
    return %arg2, %arg1 : i32, i32
  }
  func.func @transform_2(%arg0: i32, %arg1: i32, %arg2: i32) -> (i32, i32) {
    %c0_i32 = arith.constant 0 : i32
    %c0_i32_0 = arith.constant 0 : i32
    return %c0_i32, %arg1 : i32, i32
  }
  func.func @transform_3(%arg0: i32, %arg1: i32, %arg2: i32) -> (i32, i32) {
    %c0_i32 = arith.constant 0 : i32
    return %arg0, %arg1 : i32, i32
  }
}

module attributes {stable_mosaic.version = 11 : i64} {
  func.func @_linear_addln_kernel(%arg0: i32, %arg1: i32, %arg2: memref<16x128xbf16, #tpu.memory_space<vmem>>, %arg3: memref<128x128xbf16, #tpu.memory_space<vmem>>, %arg4: memref<1x128xf32, #tpu.memory_space<vmem>>, %arg5: memref<16x128xbf16, #tpu.memory_space<vmem>>, %arg6: memref<1x128xf32, #tpu.memory_space<vmem>>, %arg7: memref<1x128xf32, #tpu.memory_space<vmem>>, %arg8: memref<16x128xbf16, #tpu.memory_space<vmem>>, %arg9: memref<16x128xf32, #tpu.memory_space<vmem>>) attributes {dimension_semantics = [#tpu.dimension_semantics<parallel>, #tpu.dimension_semantics<arbitrary>], iteration_bounds = array<i64: 1, 1>, scalar_prefetch = 0 : i64, scratch_operands = 1 : i64, tpu.core_type = #tpu.core_type<tc>, window_params = [{transform_indices = @transform_0, window_bounds = array<i64: 16, 128>}, {transform_indices = @transform_1, window_bounds = array<i64: 128, 128>}, {pipeline_mode = #tpu.pipeline_mode<synchronous>, transform_indices = @transform_2, window_bounds = array<i64: 1, 128>}, {transform_indices = @transform_3, window_bounds = array<i64: 16, 128>}, {pipeline_mode = #tpu.pipeline_mode<synchronous>, transform_indices = @transform_4, window_bounds = array<i64: 1, 128>}, {pipeline_mode = #tpu.pipeline_mode<synchronous>, transform_indices = @transform_5, window_bounds = array<i64: 1, 128>}, {transform_indices = @transform_6, window_bounds = array<i64: 16, 128>}]} {
    %c0_i32 = arith.constant 0 : i32
    %0 = arith.cmpi eq, %arg1, %c0_i32 : i32
    %1 = arith.extui %0 : i1 to i32
    %c0_i32_0 = arith.constant 0 : i32
    %2 = arith.cmpi ne, %1, %c0_i32_0 : i32
    scf.if %2 {
      %cst_10 = arith.constant 0.000000e+00 : f32
      %12 = vector.broadcast %cst_10 : f32 to vector<16x128xf32>
      %c0_11 = arith.constant 0 : index
      %c0_12 = arith.constant 0 : index
      %13 = vector.load %arg9[%c0_11, %c0_12] : memref<16x128xf32, #tpu.memory_space<vmem>>, vector<16x128xf32>
      tpu.vector_store %arg9[%c0_11, %c0_12], %12 {strides = array<i32>} : memref<16x128xf32, #tpu.memory_space<vmem>>, vector<16x128xf32>,
    } else {
    }
    %c0 = arith.constant 0 : index
    %c0_1 = arith.constant 0 : index
    %3 = vector.load %arg9[%c0, %c0_1] : memref<16x128xf32, #tpu.memory_space<vmem>>, vector<16x128xf32>
    %c0_2 = arith.constant 0 : index
    %c0_3 = arith.constant 0 : index
    %4 = vector.load %arg2[%c0_2, %c0_3] : memref<16x128xbf16, #tpu.memory_space<vmem>>, vector<16x128xbf16>
    %c0_4 = arith.constant 0 : index
    %c0_5 = arith.constant 0 : index
    %5 = vector.load %arg3[%c0_4, %c0_5] : memref<128x128xbf16, #tpu.memory_space<vmem>>, vector<128x128xbf16>
    %cst = arith.constant dense<0.000000e+00> : vector<16x128xf32>
    %6 = tpu.matmul %4, %5, %cst {dimension_numbers = #tpu.dot_dimension_numbers<[1], [0], [0], [1], [0, 0, 1, 1], [], []>} : vector<16x128xbf16>, vector<128x128xbf16>, vector<16x128xf32> -> vector<16x128xf32>
    %7 = arith.addf %3, %6 : vector<16x128xf32>
    %c0_6 = arith.constant 0 : index
    %c0_7 = arith.constant 0 : index
    %8 = vector.load %arg9[%c0_6, %c0_7] : memref<16x128xf32, #tpu.memory_space<vmem>>, vector<16x128xf32>
    tpu.vector_store %arg9[%c0_6, %c0_7], %7 {strides = array<i32>} : memref<16x128xf32, #tpu.memory_space<vmem>>, vector<16x128xf32>,
    %c0_i32_8 = arith.constant 0 : i32
    %9 = arith.cmpi eq, %arg1, %c0_i32_8 : i32
    %10 = arith.extui %9 : i1 to i32
    %c0_i32_9 = arith.constant 0 : i32
    %11 = arith.cmpi ne, %10, %c0_i32_9 : i32
    scf.if %11 {
      %c0_10 = arith.constant 0 : index
      %c0_11 = arith.constant 0 : index
      %12 = vector.load %arg9[%c0_10, %c0_11] : memref<16x128xf32, #tpu.memory_space<vmem>>, vector<16x128xf32>
      %c0_12 = arith.constant 0 : index
      %c0_13 = arith.constant 0 : index
      %13 = vector.load %arg4[%c0_12, %c0_13] : memref<1x128xf32, #tpu.memory_space<vmem>>, vector<1x128xf32>
      %14 = vector.broadcast %13 : vector<1x128xf32> to vector<16x128xf32>
      %15 = arith.addf %12, %14 : vector<16x128xf32>
      %c0_14 = arith.constant 0 : index
      %c0_15 = arith.constant 0 : index
      %16 = vector.load %arg5[%c0_14, %c0_15] : memref<16x128xbf16, #tpu.memory_space<vmem>>, vector<16x128xbf16>
      %17 = arith.extf %16 : vector<16x128xbf16> to vector<16x128xf32>
      %18 = arith.addf %15, %17 : vector<16x128xf32>
      %c0_16 = arith.constant 0 : index
      %c0_17 = arith.constant 0 : index
      %19 = vector.load %arg6[%c0_16, %c0_17] : memref<1x128xf32, #tpu.memory_space<vmem>>, vector<1x128xf32>
      %c0_18 = arith.constant 0 : index
      %c0_19 = arith.constant 0 : index
      %20 = vector.load %arg7[%c0_18, %c0_19] : memref<1x128xf32, #tpu.memory_space<vmem>>, vector<1x128xf32>
      %cst_20 = arith.constant dense<0.000000e+00> : vector<16xf32>
      %21 = vector.multi_reduction <add>, %18, %cst_20 [1] : vector<16x128xf32> to vector<16xf32>
      %22 = vector.shape_cast %21 : vector<16xf32> to vector<16x1xf32>
      %cst_21 = arith.constant 3.125000e-02 : f32
      %23 = vector.broadcast %cst_21 : f32 to vector<16x1xf32>
      %24 = arith.mulf %22, %23 : vector<16x1xf32>
      %25 = arith.mulf %18, %18 : vector<16x128xf32>
      %cst_22 = arith.constant dense<0.000000e+00> : vector<16xf32>
      %26 = vector.multi_reduction <add>, %25, %cst_22 [1] : vector<16x128xf32> to vector<16xf32>
      %27 = vector.shape_cast %26 : vector<16xf32> to vector<16x1xf32>
      %cst_23 = arith.constant 3.125000e-02 : f32
      %28 = vector.broadcast %cst_23 : f32 to vector<16x1xf32>
      %29 = arith.mulf %27, %28 : vector<16x1xf32>
      %30 = arith.mulf %24, %24 : vector<16x1xf32>
      %31 = arith.subf %29, %30 : vector<16x1xf32>
      %cst_24 = arith.constant 0.000000e+00 : f32
      %32 = vector.broadcast %cst_24 : f32 to vector<16x1xf32>
      %33 = arith.maximumf %31, %32 : vector<16x1xf32>
      %34 = vector.broadcast %24 : vector<16x1xf32> to vector<16x128xf32>
      %35 = arith.subf %18, %34 : vector<16x128xf32>
      %cst_25 = arith.constant 9.99999974E-6 : f32
      %36 = vector.broadcast %cst_25 : f32 to vector<16x1xf32>
      %37 = arith.addf %33, %36 : vector<16x1xf32>
      %38 = math.rsqrt %37 : vector<16x1xf32>
      %39 = vector.broadcast %38 : vector<16x1xf32> to vector<16x128xf32>
      %40 = arith.mulf %35, %39 : vector<16x128xf32>
      %41 = vector.broadcast %19 : vector<1x128xf32> to vector<16x128xf32>
      %42 = arith.mulf %40, %41 : vector<16x128xf32>
      %43 = vector.broadcast %20 : vector<1x128xf32> to vector<16x128xf32>
      %44 = arith.addf %42, %43 : vector<16x128xf32>
      %45 = arith.truncf %44 : vector<16x128xf32> to vector<16x128xbf16>
      %c0_26 = arith.constant 0 : index
      %c0_27 = arith.constant 0 : index
      %46 = vector.load %arg8[%c0_26, %c0_27] : memref<16x128xbf16, #tpu.memory_space<vmem>>, vector<16x128xbf16>
      tpu.vector_store %arg8[%c0_26, %c0_27], %45 {strides = array<i32>} : memref<16x128xbf16, #tpu.memory_space<vmem>>, vector<16x128xbf16>,
    } else {
    }
    return
  }
  func.func @transform_0(%arg0: i32, %arg1: i32) -> (i32, i32) {
    %c0_i32 = arith.constant 0 : i32
    return %arg0, %arg1 : i32, i32
  }
  func.func @transform_1(%arg0: i32, %arg1: i32) -> (i32, i32) {
    %c0_i32 = arith.constant 0 : i32
    %c0_i32_0 = arith.constant 0 : i32
    return %arg1, %c0_i32 : i32, i32
  }
  func.func @transform_2(%arg0: i32, %arg1: i32) -> (i32, i32) {
    %c0_i32 = arith.constant 0 : i32
    %c0_i32_0 = arith.constant 0 : i32
    %c0_i32_1 = arith.constant 0 : i32
    return %c0_i32, %c0_i32_0 : i32, i32
  }
  func.func @transform_3(%arg0: i32, %arg1: i32) -> (i32, i32) {
    %c0_i32 = arith.constant 0 : i32
    %c0_i32_0 = arith.constant 0 : i32
    return %arg0, %c0_i32 : i32, i32
  }
  func.func @transform_4(%arg0: i32, %arg1: i32) -> (i32, i32) {
    %c0_i32 = arith.constant 0 : i32
    %c0_i32_0 = arith.constant 0 : i32
    %c0_i32_1 = arith.constant 0 : i32
    return %c0_i32, %c0_i32_0 : i32, i32
  }
  func.func @transform_5(%arg0: i32, %arg1: i32) -> (i32, i32) {
    %c0_i32 = arith.constant 0 : i32
    %c0_i32_0 = arith.constant 0 : i32
    %c0_i32_1 = arith.constant 0 : i32
    return %c0_i32, %c0_i32_0 : i32, i32
  }
  func.func @transform_6(%arg0: i32, %arg1: i32) -> (i32, i32) {
    %c0_i32 = arith.constant 0 : i32
    %c0_i32_0 = arith.constant 0 : i32
    return %arg0, %c0_i32 : i32, i32
  }
}

module attributes {stable_mosaic.version = 11 : i64} {
  func.func @_self_attn_kernel(%arg0: i32, %arg1: memref<8x768xbf16, #tpu.memory_space<vmem>>, %arg2: memref<2x1x8xf32, #tpu.memory_space<vmem>>, %arg3: memref<8x256xbf16, #tpu.memory_space<vmem>>) attributes {dimension_semantics = [#tpu.dimension_semantics<parallel>], iteration_bounds = array<i64: 1>, scalar_prefetch = 0 : i64, scratch_operands = 0 : i64, tpu.core_type = #tpu.core_type<tc>, window_params = [{transform_indices = @transform_0, window_bounds = array<i64: 8, 768>}, {transform_indices = @transform_1, window_bounds = array<i64: 2, 1, 8>}, {transform_indices = @transform_2, window_bounds = array<i64: 8, 256>}]} {
    %c0 = arith.constant 0 : index
    %c0_0 = arith.constant 0 : index
    %0 = vector.load %arg1[%c0, %c0_0] : memref<8x768xbf16, #tpu.memory_space<vmem>>, vector<8x32xbf16>
    %c0_1 = arith.constant 0 : index
    %c128 = arith.constant 128 : index
    %1 = vector.load %arg1[%c0_1, %c128] : memref<8x768xbf16, #tpu.memory_space<vmem>>, vector<8x32xbf16>
    %c0_2 = arith.constant 0 : index
    %c256 = arith.constant 256 : index
    %2 = vector.load %arg1[%c0_2, %c256] : memref<8x768xbf16, #tpu.memory_space<vmem>>, vector<8x32xbf16>
    %c0_3 = arith.constant 0 : index
    %c0_4 = arith.constant 0 : index
    %c0_5 = arith.constant 0 : index
    %3 = vector.load %arg2[%c0_3, %c0_4, %c0_5] : memref<2x1x8xf32, #tpu.memory_space<vmem>>, vector<1x1x8xf32>
    %4 = vector.shape_cast %3 : vector<1x1x8xf32> to vector<1x8xf32>
    %5 = vector.extract_strided_slice %0 {offsets = [0, 0], sizes = [8, 8], strides = [1, 1]} : vector<8x32xbf16> to vector<8x8xbf16>
    %6 = vector.extract_strided_slice %1 {offsets = [0, 0], sizes = [8, 8], strides = [1, 1]} : vector<8x32xbf16> to vector<8x8xbf16>
    %cst = arith.constant dense<0.000000e+00> : vector<8x8xf32>
    %7 = tpu.matmul %5, %6, %cst {dimension_numbers = #tpu.dot_dimension_numbers<[1], [1], [0], [0], [0, 0, 1, 0], [], []>} : vector<8x8xbf16>, vector<8x8xbf16>, vector<8x8xf32> -> vector<8x8xf32>
    %cst_6 = arith.constant 0.353553385 : f32
    %8 = vector.broadcast %cst_6 : f32 to vector<8x8xf32>
    %9 = arith.mulf %7, %8 : vector<8x8xf32>
    %10 = vector.broadcast %4 : vector<1x8xf32> to vector<8x8xf32>
    %11 = arith.addf %9, %10 : vector<8x8xf32>
    %cst_7 = arith.constant dense<0xFF800000> : vector<8xf32>
    %12 = vector.multi_reduction <maximumf>, %11, %cst_7 [1] : vector<8x8xf32> to vector<8xf32>
    %13 = vector.shape_cast %12 : vector<8xf32> to vector<8x1xf32>
    %14 = vector.broadcast %13 : vector<8x1xf32> to vector<8x8xf32>
    %15 = arith.subf %11, %14 : vector<8x8xf32>
    %16 = math.exp %15 : vector<8x8xf32>
    %cst_8 = arith.constant dense<0.000000e+00> : vector<8xf32>
    %17 = vector.multi_reduction <add>, %16, %cst_8 [1] : vector<8x8xf32> to vector<8xf32>
    %18 = vector.shape_cast %17 : vector<8xf32> to vector<8x1xf32>
    %19 = tpu.reciprocal %18 {approx = true} : vector<8x1xf32> -> vector<8x1xf32>
    %20 = vector.broadcast %19 : vector<8x1xf32> to vector<8x8xf32>
    %21 = arith.mulf %16, %20 : vector<8x8xf32>
    %22 = arith.truncf %21 : vector<8x8xf32> to vector<8x8xbf16>
    %23 = vector.extract_strided_slice %2 {offsets = [0, 0], sizes = [8, 8], strides = [1, 1]} : vector<8x32xbf16> to vector<8x8xbf16>
    %cst_9 = arith.constant dense<0.000000e+00> : vector<8x8xf32>
    %24 = tpu.matmul %22, %23, %cst_9 {dimension_numbers = #tpu.dot_dimension_numbers<[1], [0], [0], [1], [0, 0, 1, 1], [], []>} : vector<8x8xbf16>, vector<8x8xbf16>, vector<8x8xf32> -> vector<8x8xf32>
    %25 = arith.truncf %24 : vector<8x8xf32> to vector<8x8xbf16>
    %c0_10 = arith.constant 0 : index
    %c0_11 = arith.constant 0 : index
    %26 = vector.load %arg3[%c0_10, %c0_11] : memref<8x256xbf16, #tpu.memory_space<vmem>>, vector<8x8xbf16>
    tpu.vector_store %arg3[%c0_10, %c0_11], %25 {strides = array<i32>} : memref<8x256xbf16, #tpu.memory_space<vmem>>, vector<8x8xbf16>,
    %27 = vector.extract_strided_slice %0 {offsets = [0, 8], sizes = [8, 8], strides = [1, 1]} : vector<8x32xbf16> to vector<8x8xbf16>
    %28 = vector.extract_strided_slice %1 {offsets = [0, 8], sizes = [8, 8], strides = [1, 1]} : vector<8x32xbf16> to vector<8x8xbf16>
    %cst_12 = arith.constant dense<0.000000e+00> : vector<8x8xf32>
    %29 = tpu.matmul %27, %28, %cst_12 {dimension_numbers = #tpu.dot_dimension_numbers<[1], [1], [0], [0], [0, 0, 1, 0], [], []>} : vector<8x8xbf16>, vector<8x8xbf16>, vector<8x8xf32> -> vector<8x8xf32>
    %cst_13 = arith.constant 0.353553385 : f32
    %30 = vector.broadcast %cst_13 : f32 to vector<8x8xf32>
    %31 = arith.mulf %29, %30 : vector<8x8xf32>
    %32 = vector.broadcast %4 : vector<1x8xf32> to vector<8x8xf32>
    %33 = arith.addf %31, %32 : vector<8x8xf32>
    %cst_14 = arith.constant dense<0xFF800000> : vector<8xf32>
    %34 = vector.multi_reduction <maximumf>, %33, %cst_14 [1] : vector<8x8xf32> to vector<8xf32>
    %35 = vector.shape_cast %34 : vector<8xf32> to vector<8x1xf32>
    %36 = vector.broadcast %35 : vector<8x1xf32> to vector<8x8xf32>
    %37 = arith.subf %33, %36 : vector<8x8xf32>
    %38 = math.exp %37 : vector<8x8xf32>
    %cst_15 = arith.constant dense<0.000000e+00> : vector<8xf32>
    %39 = vector.multi_reduction <add>, %38, %cst_15 [1] : vector<8x8xf32> to vector<8xf32>
    %40 = vector.shape_cast %39 : vector<8xf32> to vector<8x1xf32>
    %41 = tpu.reciprocal %40 {approx = true} : vector<8x1xf32> -> vector<8x1xf32>
    %42 = vector.broadcast %41 : vector<8x1xf32> to vector<8x8xf32>
    %43 = arith.mulf %38, %42 : vector<8x8xf32>
    %44 = arith.truncf %43 : vector<8x8xf32> to vector<8x8xbf16>
    %45 = vector.extract_strided_slice %2 {offsets = [0, 8], sizes = [8, 8], strides = [1, 1]} : vector<8x32xbf16> to vector<8x8xbf16>
    %cst_16 = arith.constant dense<0.000000e+00> : vector<8x8xf32>
    %46 = tpu.matmul %44, %45, %cst_16 {dimension_numbers = #tpu.dot_dimension_numbers<[1], [0], [0], [1], [0, 0, 1, 1], [], []>} : vector<8x8xbf16>, vector<8x8xbf16>, vector<8x8xf32> -> vector<8x8xf32>
    %47 = arith.truncf %46 : vector<8x8xf32> to vector<8x8xbf16>
    %c0_17 = arith.constant 0 : index
    %c8 = arith.constant 8 : index
    %48 = vector.load %arg3[%c0_17, %c8] : memref<8x256xbf16, #tpu.memory_space<vmem>>, vector<8x8xbf16>
    tpu.vector_store %arg3[%c0_17, %c8], %47 {strides = array<i32>} : memref<8x256xbf16, #tpu.memory_space<vmem>>, vector<8x8xbf16>,
    %49 = vector.extract_strided_slice %0 {offsets = [0, 16], sizes = [8, 8], strides = [1, 1]} : vector<8x32xbf16> to vector<8x8xbf16>
    %50 = vector.extract_strided_slice %1 {offsets = [0, 16], sizes = [8, 8], strides = [1, 1]} : vector<8x32xbf16> to vector<8x8xbf16>
    %cst_18 = arith.constant dense<0.000000e+00> : vector<8x8xf32>
    %51 = tpu.matmul %49, %50, %cst_18 {dimension_numbers = #tpu.dot_dimension_numbers<[1], [1], [0], [0], [0, 0, 1, 0], [], []>} : vector<8x8xbf16>, vector<8x8xbf16>, vector<8x8xf32> -> vector<8x8xf32>
    %cst_19 = arith.constant 0.353553385 : f32
    %52 = vector.broadcast %cst_19 : f32 to vector<8x8xf32>
    %53 = arith.mulf %51, %52 : vector<8x8xf32>
    %54 = vector.broadcast %4 : vector<1x8xf32> to vector<8x8xf32>
    %55 = arith.addf %53, %54 : vector<8x8xf32>
    %cst_20 = arith.constant dense<0xFF800000> : vector<8xf32>
    %56 = vector.multi_reduction <maximumf>, %55, %cst_20 [1] : vector<8x8xf32> to vector<8xf32>
    %57 = vector.shape_cast %56 : vector<8xf32> to vector<8x1xf32>
    %58 = vector.broadcast %57 : vector<8x1xf32> to vector<8x8xf32>
    %59 = arith.subf %55, %58 : vector<8x8xf32>
    %60 = math.exp %59 : vector<8x8xf32>
    %cst_21 = arith.constant dense<0.000000e+00> : vector<8xf32>
    %61 = vector.multi_reduction <add>, %60, %cst_21 [1] : vector<8x8xf32> to vector<8xf32>
    %62 = vector.shape_cast %61 : vector<8xf32> to vector<8x1xf32>
    %63 = tpu.reciprocal %62 {approx = true} : vector<8x1xf32> -> vector<8x1xf32>
    %64 = vector.broadcast %63 : vector<8x1xf32> to vector<8x8xf32>
    %65 = arith.mulf %60, %64 : vector<8x8xf32>
    %66 = arith.truncf %65 : vector<8x8xf32> to vector<8x8xbf16>
    %67 = vector.extract_strided_slice %2 {offsets = [0, 16], sizes = [8, 8], strides = [1, 1]} : vector<8x32xbf16> to vector<8x8xbf16>
    %cst_22 = arith.constant dense<0.000000e+00> : vector<8x8xf32>
    %68 = tpu.matmul %66, %67, %cst_22 {dimension_numbers = #tpu.dot_dimension_numbers<[1], [0], [0], [1], [0, 0, 1, 1], [], []>} : vector<8x8xbf16>, vector<8x8xbf16>, vector<8x8xf32> -> vector<8x8xf32>
    %69 = arith.truncf %68 : vector<8x8xf32> to vector<8x8xbf16>
    %c0_23 = arith.constant 0 : index
    %c16 = arith.constant 16 : index
    %70 = vector.load %arg3[%c0_23, %c16] : memref<8x256xbf16, #tpu.memory_space<vmem>>, vector<8x8xbf16>
    tpu.vector_store %arg3[%c0_23, %c16], %69 {strides = array<i32>} : memref<8x256xbf16, #tpu.memory_space<vmem>>, vector<8x8xbf16>,
    %71 = vector.extract_strided_slice %0 {offsets = [0, 24], sizes = [8, 8], strides = [1, 1]} : vector<8x32xbf16> to vector<8x8xbf16>
    %72 = vector.extract_strided_slice %1 {offsets = [0, 24], sizes = [8, 8], strides = [1, 1]} : vector<8x32xbf16> to vector<8x8xbf16>
    %cst_24 = arith.constant dense<0.000000e+00> : vector<8x8xf32>
    %73 = tpu.matmul %71, %72, %cst_24 {dimension_numbers = #tpu.dot_dimension_numbers<[1], [1], [0], [0], [0, 0, 1, 0], [], []>} : vector<8x8xbf16>, vector<8x8xbf16>, vector<8x8xf32> -> vector<8x8xf32>
    %cst_25 = arith.constant 0.353553385 : f32
    %74 = vector.broadcast %cst_25 : f32 to vector<8x8xf32>
    %75 = arith.mulf %73, %74 : vector<8x8xf32>
    %76 = vector.broadcast %4 : vector<1x8xf32> to vector<8x8xf32>
    %77 = arith.addf %75, %76 : vector<8x8xf32>
    %cst_26 = arith.constant dense<0xFF800000> : vector<8xf32>
    %78 = vector.multi_reduction <maximumf>, %77, %cst_26 [1] : vector<8x8xf32> to vector<8xf32>
    %79 = vector.shape_cast %78 : vector<8xf32> to vector<8x1xf32>
    %80 = vector.broadcast %79 : vector<8x1xf32> to vector<8x8xf32>
    %81 = arith.subf %77, %80 : vector<8x8xf32>
    %82 = math.exp %81 : vector<8x8xf32>
    %cst_27 = arith.constant dense<0.000000e+00> : vector<8xf32>
    %83 = vector.multi_reduction <add>, %82, %cst_27 [1] : vector<8x8xf32> to vector<8xf32>
    %84 = vector.shape_cast %83 : vector<8xf32> to vector<8x1xf32>
    %85 = tpu.reciprocal %84 {approx = true} : vector<8x1xf32> -> vector<8x1xf32>
    %86 = vector.broadcast %85 : vector<8x1xf32> to vector<8x8xf32>
    %87 = arith.mulf %82, %86 : vector<8x8xf32>
    %88 = arith.truncf %87 : vector<8x8xf32> to vector<8x8xbf16>
    %89 = vector.extract_strided_slice %2 {offsets = [0, 24], sizes = [8, 8], strides = [1, 1]} : vector<8x32xbf16> to vector<8x8xbf16>
    %cst_28 = arith.constant dense<0.000000e+00> : vector<8x8xf32>
    %90 = tpu.matmul %88, %89, %cst_28 {dimension_numbers = #tpu.dot_dimension_numbers<[1], [0], [0], [1], [0, 0, 1, 1], [], []>} : vector<8x8xbf16>, vector<8x8xbf16>, vector<8x8xf32> -> vector<8x8xf32>
    %91 = arith.truncf %90 : vector<8x8xf32> to vector<8x8xbf16>
    %c0_29 = arith.constant 0 : index
    %c24 = arith.constant 24 : index
    %92 = vector.load %arg3[%c0_29, %c24] : memref<8x256xbf16, #tpu.memory_space<vmem>>, vector<8x8xbf16>
    tpu.vector_store %arg3[%c0_29, %c24], %91 {strides = array<i32>} : memref<8x256xbf16, #tpu.memory_space<vmem>>, vector<8x8xbf16>,
    %cst_30 = arith.constant 0.000000e+00 : bf16
    %93 = vector.broadcast %cst_30 : bf16 to vector<8x96xbf16>
    %c0_31 = arith.constant 0 : index
    %c32 = arith.constant 32 : index
    %94 = vector.load %arg3[%c0_31, %c32] : memref<8x256xbf16, #tpu.memory_space<vmem>>, vector<8x96xbf16>
    tpu.vector_store %arg3[%c0_31, %c32], %93 {strides = array<i32>} : memref<8x256xbf16, #tpu.memory_space<vmem>>, vector<8x96xbf16>,
    %c0_32 = arith.constant 0 : index
    %c384 = arith.constant 384 : index
    %95 = vector.load %arg1[%c0_32, %c384] : memref<8x768xbf16, #tpu.memory_space<vmem>>, vector<8x32xbf16>
    %c0_33 = arith.constant 0 : index
    %c512 = arith.constant 512 : index
    %96 = vector.load %arg1[%c0_33, %c512] : memref<8x768xbf16, #tpu.memory_space<vmem>>, vector<8x32xbf16>
    %c0_34 = arith.constant 0 : index
    %c640 = arith.constant 640 : index
    %97 = vector.load %arg1[%c0_34, %c640] : memref<8x768xbf16, #tpu.memory_space<vmem>>, vector<8x32xbf16>
    %c1 = arith.constant 1 : index
    %c0_35 = arith.constant 0 : index
    %c0_36 = arith.constant 0 : index
    %98 = vector.load %arg2[%c1, %c0_35, %c0_36] : memref<2x1x8xf32, #tpu.memory_space<vmem>>, vector<1x1x8xf32>
    %99 = vector.shape_cast %98 : vector<1x1x8xf32> to vector<1x8xf32>
    %100 = vector.extract_strided_slice %95 {offsets = [0, 0], sizes = [8, 8], strides = [1, 1]} : vector<8x32xbf16> to vector<8x8xbf16>
    %101 = vector.extract_strided_slice %96 {offsets = [0, 0], sizes = [8, 8], strides = [1, 1]} : vector<8x32xbf16> to vector<8x8xbf16>
    %cst_37 = arith.constant dense<0.000000e+00> : vector<8x8xf32>
    %102 = tpu.matmul %100, %101, %cst_37 {dimension_numbers = #tpu.dot_dimension_numbers<[1], [1], [0], [0], [0, 0, 1, 0], [], []>} : vector<8x8xbf16>, vector<8x8xbf16>, vector<8x8xf32> -> vector<8x8xf32>
    %cst_38 = arith.constant 0.353553385 : f32
    %103 = vector.broadcast %cst_38 : f32 to vector<8x8xf32>
    %104 = arith.mulf %102, %103 : vector<8x8xf32>
    %105 = vector.broadcast %99 : vector<1x8xf32> to vector<8x8xf32>
    %106 = arith.addf %104, %105 : vector<8x8xf32>
    %cst_39 = arith.constant dense<0xFF800000> : vector<8xf32>
    %107 = vector.multi_reduction <maximumf>, %106, %cst_39 [1] : vector<8x8xf32> to vector<8xf32>
    %108 = vector.shape_cast %107 : vector<8xf32> to vector<8x1xf32>
    %109 = vector.broadcast %108 : vector<8x1xf32> to vector<8x8xf32>
    %110 = arith.subf %106, %109 : vector<8x8xf32>
    %111 = math.exp %110 : vector<8x8xf32>
    %cst_40 = arith.constant dense<0.000000e+00> : vector<8xf32>
    %112 = vector.multi_reduction <add>, %111, %cst_40 [1] : vector<8x8xf32> to vector<8xf32>
    %113 = vector.shape_cast %112 : vector<8xf32> to vector<8x1xf32>
    %114 = tpu.reciprocal %113 {approx = true} : vector<8x1xf32> -> vector<8x1xf32>
    %115 = vector.broadcast %114 : vector<8x1xf32> to vector<8x8xf32>
    %116 = arith.mulf %111, %115 : vector<8x8xf32>
    %117 = arith.truncf %116 : vector<8x8xf32> to vector<8x8xbf16>
    %118 = vector.extract_strided_slice %97 {offsets = [0, 0], sizes = [8, 8], strides = [1, 1]} : vector<8x32xbf16> to vector<8x8xbf16>
    %cst_41 = arith.constant dense<0.000000e+00> : vector<8x8xf32>
    %119 = tpu.matmul %117, %118, %cst_41 {dimension_numbers = #tpu.dot_dimension_numbers<[1], [0], [0], [1], [0, 0, 1, 1], [], []>} : vector<8x8xbf16>, vector<8x8xbf16>, vector<8x8xf32> -> vector<8x8xf32>
    %120 = arith.truncf %119 : vector<8x8xf32> to vector<8x8xbf16>
    %c0_42 = arith.constant 0 : index
    %c128_43 = arith.constant 128 : index
    %121 = vector.load %arg3[%c0_42, %c128_43] : memref<8x256xbf16, #tpu.memory_space<vmem>>, vector<8x8xbf16>
    tpu.vector_store %arg3[%c0_42, %c128_43], %120 {strides = array<i32>} : memref<8x256xbf16, #tpu.memory_space<vmem>>, vector<8x8xbf16>,
    %122 = vector.extract_strided_slice %95 {offsets = [0, 8], sizes = [8, 8], strides = [1, 1]} : vector<8x32xbf16> to vector<8x8xbf16>
    %123 = vector.extract_strided_slice %96 {offsets = [0, 8], sizes = [8, 8], strides = [1, 1]} : vector<8x32xbf16> to vector<8x8xbf16>
    %cst_44 = arith.constant dense<0.000000e+00> : vector<8x8xf32>
    %124 = tpu.matmul %122, %123, %cst_44 {dimension_numbers = #tpu.dot_dimension_numbers<[1], [1], [0], [0], [0, 0, 1, 0], [], []>} : vector<8x8xbf16>, vector<8x8xbf16>, vector<8x8xf32> -> vector<8x8xf32>
    %cst_45 = arith.constant 0.353553385 : f32
    %125 = vector.broadcast %cst_45 : f32 to vector<8x8xf32>
    %126 = arith.mulf %124, %125 : vector<8x8xf32>
    %127 = vector.broadcast %99 : vector<1x8xf32> to vector<8x8xf32>
    %128 = arith.addf %126, %127 : vector<8x8xf32>
    %cst_46 = arith.constant dense<0xFF800000> : vector<8xf32>
    %129 = vector.multi_reduction <maximumf>, %128, %cst_46 [1] : vector<8x8xf32> to vector<8xf32>
    %130 = vector.shape_cast %129 : vector<8xf32> to vector<8x1xf32>
    %131 = vector.broadcast %130 : vector<8x1xf32> to vector<8x8xf32>
    %132 = arith.subf %128, %131 : vector<8x8xf32>
    %133 = math.exp %132 : vector<8x8xf32>
    %cst_47 = arith.constant dense<0.000000e+00> : vector<8xf32>
    %134 = vector.multi_reduction <add>, %133, %cst_47 [1] : vector<8x8xf32> to vector<8xf32>
    %135 = vector.shape_cast %134 : vector<8xf32> to vector<8x1xf32>
    %136 = tpu.reciprocal %135 {approx = true} : vector<8x1xf32> -> vector<8x1xf32>
    %137 = vector.broadcast %136 : vector<8x1xf32> to vector<8x8xf32>
    %138 = arith.mulf %133, %137 : vector<8x8xf32>
    %139 = arith.truncf %138 : vector<8x8xf32> to vector<8x8xbf16>
    %140 = vector.extract_strided_slice %97 {offsets = [0, 8], sizes = [8, 8], strides = [1, 1]} : vector<8x32xbf16> to vector<8x8xbf16>
    %cst_48 = arith.constant dense<0.000000e+00> : vector<8x8xf32>
    %141 = tpu.matmul %139, %140, %cst_48 {dimension_numbers = #tpu.dot_dimension_numbers<[1], [0], [0], [1], [0, 0, 1, 1], [], []>} : vector<8x8xbf16>, vector<8x8xbf16>, vector<8x8xf32> -> vector<8x8xf32>
    %142 = arith.truncf %141 : vector<8x8xf32> to vector<8x8xbf16>
    %c0_49 = arith.constant 0 : index
    %c136 = arith.constant 136 : index
    %143 = vector.load %arg3[%c0_49, %c136] : memref<8x256xbf16, #tpu.memory_space<vmem>>, vector<8x8xbf16>
    tpu.vector_store %arg3[%c0_49, %c136], %142 {strides = array<i32>} : memref<8x256xbf16, #tpu.memory_space<vmem>>, vector<8x8xbf16>,
    %144 = vector.extract_strided_slice %95 {offsets = [0, 16], sizes = [8, 8], strides = [1, 1]} : vector<8x32xbf16> to vector<8x8xbf16>
    %145 = vector.extract_strided_slice %96 {offsets = [0, 16], sizes = [8, 8], strides = [1, 1]} : vector<8x32xbf16> to vector<8x8xbf16>
    %cst_50 = arith.constant dense<0.000000e+00> : vector<8x8xf32>
    %146 = tpu.matmul %144, %145, %cst_50 {dimension_numbers = #tpu.dot_dimension_numbers<[1], [1], [0], [0], [0, 0, 1, 0], [], []>} : vector<8x8xbf16>, vector<8x8xbf16>, vector<8x8xf32> -> vector<8x8xf32>
    %cst_51 = arith.constant 0.353553385 : f32
    %147 = vector.broadcast %cst_51 : f32 to vector<8x8xf32>
    %148 = arith.mulf %146, %147 : vector<8x8xf32>
    %149 = vector.broadcast %99 : vector<1x8xf32> to vector<8x8xf32>
    %150 = arith.addf %148, %149 : vector<8x8xf32>
    %cst_52 = arith.constant dense<0xFF800000> : vector<8xf32>
    %151 = vector.multi_reduction <maximumf>, %150, %cst_52 [1] : vector<8x8xf32> to vector<8xf32>
    %152 = vector.shape_cast %151 : vector<8xf32> to vector<8x1xf32>
    %153 = vector.broadcast %152 : vector<8x1xf32> to vector<8x8xf32>
    %154 = arith.subf %150, %153 : vector<8x8xf32>
    %155 = math.exp %154 : vector<8x8xf32>
    %cst_53 = arith.constant dense<0.000000e+00> : vector<8xf32>
    %156 = vector.multi_reduction <add>, %155, %cst_53 [1] : vector<8x8xf32> to vector<8xf32>
    %157 = vector.shape_cast %156 : vector<8xf32> to vector<8x1xf32>
    %158 = tpu.reciprocal %157 {approx = true} : vector<8x1xf32> -> vector<8x1xf32>
    %159 = vector.broadcast %158 : vector<8x1xf32> to vector<8x8xf32>
    %160 = arith.mulf %155, %159 : vector<8x8xf32>
    %161 = arith.truncf %160 : vector<8x8xf32> to vector<8x8xbf16>
    %162 = vector.extract_strided_slice %97 {offsets = [0, 16], sizes = [8, 8], strides = [1, 1]} : vector<8x32xbf16> to vector<8x8xbf16>
    %cst_54 = arith.constant dense<0.000000e+00> : vector<8x8xf32>
    %163 = tpu.matmul %161, %162, %cst_54 {dimension_numbers = #tpu.dot_dimension_numbers<[1], [0], [0], [1], [0, 0, 1, 1], [], []>} : vector<8x8xbf16>, vector<8x8xbf16>, vector<8x8xf32> -> vector<8x8xf32>
    %164 = arith.truncf %163 : vector<8x8xf32> to vector<8x8xbf16>
    %c0_55 = arith.constant 0 : index
    %c144 = arith.constant 144 : index
    %165 = vector.load %arg3[%c0_55, %c144] : memref<8x256xbf16, #tpu.memory_space<vmem>>, vector<8x8xbf16>
    tpu.vector_store %arg3[%c0_55, %c144], %164 {strides = array<i32>} : memref<8x256xbf16, #tpu.memory_space<vmem>>, vector<8x8xbf16>,
    %166 = vector.extract_strided_slice %95 {offsets = [0, 24], sizes = [8, 8], strides = [1, 1]} : vector<8x32xbf16> to vector<8x8xbf16>
    %167 = vector.extract_strided_slice %96 {offsets = [0, 24], sizes = [8, 8], strides = [1, 1]} : vector<8x32xbf16> to vector<8x8xbf16>
    %cst_56 = arith.constant dense<0.000000e+00> : vector<8x8xf32>
    %168 = tpu.matmul %166, %167, %cst_56 {dimension_numbers = #tpu.dot_dimension_numbers<[1], [1], [0], [0], [0, 0, 1, 0], [], []>} : vector<8x8xbf16>, vector<8x8xbf16>, vector<8x8xf32> -> vector<8x8xf32>
    %cst_57 = arith.constant 0.353553385 : f32
    %169 = vector.broadcast %cst_57 : f32 to vector<8x8xf32>
    %170 = arith.mulf %168, %169 : vector<8x8xf32>
    %171 = vector.broadcast %99 : vector<1x8xf32> to vector<8x8xf32>
    %172 = arith.addf %170, %171 : vector<8x8xf32>
    %cst_58 = arith.constant dense<0xFF800000> : vector<8xf32>
    %173 = vector.multi_reduction <maximumf>, %172, %cst_58 [1] : vector<8x8xf32> to vector<8xf32>
    %174 = vector.shape_cast %173 : vector<8xf32> to vector<8x1xf32>
    %175 = vector.broadcast %174 : vector<8x1xf32> to vector<8x8xf32>
    %176 = arith.subf %172, %175 : vector<8x8xf32>
    %177 = math.exp %176 : vector<8x8xf32>
    %cst_59 = arith.constant dense<0.000000e+00> : vector<8xf32>
    %178 = vector.multi_reduction <add>, %177, %cst_59 [1] : vector<8x8xf32> to vector<8xf32>
    %179 = vector.shape_cast %178 : vector<8xf32> to vector<8x1xf32>
    %180 = tpu.reciprocal %179 {approx = true} : vector<8x1xf32> -> vector<8x1xf32>
    %181 = vector.broadcast %180 : vector<8x1xf32> to vector<8x8xf32>
    %182 = arith.mulf %177, %181 : vector<8x8xf32>
    %183 = arith.truncf %182 : vector<8x8xf32> to vector<8x8xbf16>
    %184 = vector.extract_strided_slice %97 {offsets = [0, 24], sizes = [8, 8], strides = [1, 1]} : vector<8x32xbf16> to vector<8x8xbf16>
    %cst_60 = arith.constant dense<0.000000e+00> : vector<8x8xf32>
    %185 = tpu.matmul %183, %184, %cst_60 {dimension_numbers = #tpu.dot_dimension_numbers<[1], [0], [0], [1], [0, 0, 1, 1], [], []>} : vector<8x8xbf16>, vector<8x8xbf16>, vector<8x8xf32> -> vector<8x8xf32>
    %186 = arith.truncf %185 : vector<8x8xf32> to vector<8x8xbf16>
    %c0_61 = arith.constant 0 : index
    %c152 = arith.constant 152 : index
    %187 = vector.load %arg3[%c0_61, %c152] : memref<8x256xbf16, #tpu.memory_space<vmem>>, vector<8x8xbf16>
    tpu.vector_store %arg3[%c0_61, %c152], %186 {strides = array<i32>} : memref<8x256xbf16, #tpu.memory_space<vmem>>, vector<8x8xbf16>,
    %cst_62 = arith.constant 0.000000e+00 : bf16
    %188 = vector.broadcast %cst_62 : bf16 to vector<8x96xbf16>
    %c0_63 = arith.constant 0 : index
    %c160 = arith.constant 160 : index
    %189 = vector.load %arg3[%c0_63, %c160] : memref<8x256xbf16, #tpu.memory_space<vmem>>, vector<8x96xbf16>
    tpu.vector_store %arg3[%c0_63, %c160], %188 {strides = array<i32>} : memref<8x256xbf16, #tpu.memory_space<vmem>>, vector<8x96xbf16>,
    return
  }
  func.func @transform_0(%arg0: i32) -> (i32, i32) {
    %c0_i32 = arith.constant 0 : i32
    %c0_i32_0 = arith.constant 0 : i32
    return %c0_i32, %arg0 : i32, i32
  }
  func.func @transform_1(%arg0: i32) -> (i32, i32, i32) {
    %c0_i32 = arith.constant 0 : i32
    %c0_i32_0 = arith.constant 0 : i32
    %c0_i32_1 = arith.constant 0 : i32
    return %arg0, %c0_i32, %c0_i32_0 : i32, i32, i32
  }
  func.func @transform_2(%arg0: i32) -> (i32, i32) {
    %c0_i32 = arith.constant 0 : i32
    %c0_i32_0 = arith.constant 0 : i32
    return %c0_i32, %arg0 : i32, i32
  }
}

module attributes {stable_mosaic.version = 11 : i64} {
  func.func @_linear_kernel(%arg0: i32, %arg1: i32, %arg2: i32, %arg3: memref<16x128xbf16, #tpu.memory_space<vmem>>, %arg4: memref<128x256xbf16, #tpu.memory_space<vmem>>, %arg5: memref<1x256xf32, #tpu.memory_space<vmem>>, %arg6: memref<16x256xbf16, #tpu.memory_space<vmem>>, %arg7: memref<16x256xf32, #tpu.memory_space<vmem>>) attributes {dimension_semantics = [#tpu.dimension_semantics<parallel>, #tpu.dimension_semantics<parallel>, #tpu.dimension_semantics<arbitrary>], iteration_bounds = array<i64: 1, 1, 1>, scalar_prefetch = 0 : i64, scratch_operands = 1 : i64, tpu.core_type = #tpu.core_type<tc>, window_params = [{transform_indices = @transform_0, window_bounds = array<i64: 16, 128>}, {transform_indices = @transform_1, window_bounds = array<i64: 128, 256>}, {transform_indices = @transform_2, window_bounds = array<i64: 1, 256>}, {transform_indices = @transform_3, window_bounds = array<i64: 16, 256>}]} {
    %c0_i32 = arith.constant 0 : i32
    %0 = arith.cmpi eq, %arg2, %c0_i32 : i32
    %1 = arith.extui %0 : i1 to i32
    %c0_i32_0 = arith.constant 0 : i32
    %2 = arith.cmpi ne, %1, %c0_i32_0 : i32
    scf.if %2 {
      %cst_10 = arith.constant 0.000000e+00 : f32
      %12 = vector.broadcast %cst_10 : f32 to vector<16x256xf32>
      %c0_11 = arith.constant 0 : index
      %c0_12 = arith.constant 0 : index
      %13 = vector.load %arg7[%c0_11, %c0_12] : memref<16x256xf32, #tpu.memory_space<vmem>>, vector<16x256xf32>
      tpu.vector_store %arg7[%c0_11, %c0_12], %12 {strides = array<i32>} : memref<16x256xf32, #tpu.memory_space<vmem>>, vector<16x256xf32>,
    } else {
    }
    %c0 = arith.constant 0 : index
    %c0_1 = arith.constant 0 : index
    %3 = vector.load %arg7[%c0, %c0_1] : memref<16x256xf32, #tpu.memory_space<vmem>>, vector<16x256xf32>
    %c0_2 = arith.constant 0 : index
    %c0_3 = arith.constant 0 : index
    %4 = vector.load %arg3[%c0_2, %c0_3] : memref<16x128xbf16, #tpu.memory_space<vmem>>, vector<16x128xbf16>
    %c0_4 = arith.constant 0 : index
    %c0_5 = arith.constant 0 : index
    %5 = vector.load %arg4[%c0_4, %c0_5] : memref<128x256xbf16, #tpu.memory_space<vmem>>, vector<128x256xbf16>
    %cst = arith.constant dense<0.000000e+00> : vector<16x256xf32>
    %6 = tpu.matmul %4, %5, %cst {dimension_numbers = #tpu.dot_dimension_numbers<[1], [0], [0], [1], [0, 0, 1, 1], [], []>} : vector<16x128xbf16>, vector<128x256xbf16>, vector<16x256xf32> -> vector<16x256xf32>
    %7 = arith.addf %3, %6 : vector<16x256xf32>
    %c0_6 = arith.constant 0 : index
    %c0_7 = arith.constant 0 : index
    %8 = vector.load %arg7[%c0_6, %c0_7] : memref<16x256xf32, #tpu.memory_space<vmem>>, vector<16x256xf32>
    tpu.vector_store %arg7[%c0_6, %c0_7], %7 {strides = array<i32>} : memref<16x256xf32, #tpu.memory_space<vmem>>, vector<16x256xf32>,
    %c0_i32_8 = arith.constant 0 : i32
    %9 = arith.cmpi eq, %arg2, %c0_i32_8 : i32
    %10 = arith.extui %9 : i1 to i32
    %c0_i32_9 = arith.constant 0 : i32
    %11 = arith.cmpi ne, %10, %c0_i32_9 : i32
    scf.if %11 {
      %c0_10 = arith.constant 0 : index
      %c0_11 = arith.constant 0 : index
      %12 = vector.load %arg7[%c0_10, %c0_11] : memref<16x256xf32, #tpu.memory_space<vmem>>, vector<16x256xf32>
      %c0_12 = arith.constant 0 : index
      %c0_13 = arith.constant 0 : index
      %13 = vector.load %arg5[%c0_12, %c0_13] : memref<1x256xf32, #tpu.memory_space<vmem>>, vector<1x256xf32>
      %14 = vector.broadcast %13 : vector<1x256xf32> to vector<16x256xf32>
      %15 = arith.addf %12, %14 : vector<16x256xf32>
      %16 = arith.truncf %15 : vector<16x256xf32> to vector<16x256xbf16>
      %c0_14 = arith.constant 0 : index
      %c0_15 = arith.constant 0 : index
      %17 = vector.load %arg6[%c0_14, %c0_15] : memref<16x256xbf16, #tpu.memory_space<vmem>>, vector<16x256xbf16>
      tpu.vector_store %arg6[%c0_14, %c0_15], %16 {strides = array<i32>} : memref<16x256xbf16, #tpu.memory_space<vmem>>, vector<16x256xbf16>,
    } else {
    }
    return
  }
  func.func @transform_0(%arg0: i32, %arg1: i32, %arg2: i32) -> (i32, i32) {
    %c0_i32 = arith.constant 0 : i32
    return %arg0, %arg2 : i32, i32
  }
  func.func @transform_1(%arg0: i32, %arg1: i32, %arg2: i32) -> (i32, i32) {
    %c0_i32 = arith.constant 0 : i32
    return %arg2, %arg1 : i32, i32
  }
  func.func @transform_2(%arg0: i32, %arg1: i32, %arg2: i32) -> (i32, i32) {
    %c0_i32 = arith.constant 0 : i32
    %c0_i32_0 = arith.constant 0 : i32
    return %c0_i32, %arg1 : i32, i32
  }
  func.func @transform_3(%arg0: i32, %arg1: i32, %arg2: i32) -> (i32, i32) {
    %c0_i32 = arith.constant 0 : i32
    return %arg0, %arg1 : i32, i32
  }
}

module attributes {stable_mosaic.version = 11 : i64} {
  func.func @_ln_kernel(%arg0: i32, %arg1: memref<16x128xbf16, #tpu.memory_space<vmem>>, %arg2: memref<1x128xf32, #tpu.memory_space<vmem>>, %arg3: memref<1x128xf32, #tpu.memory_space<vmem>>, %arg4: memref<16x128xbf16, #tpu.memory_space<vmem>>) attributes {dimension_semantics = [#tpu.dimension_semantics<parallel>], iteration_bounds = array<i64: 1>, scalar_prefetch = 0 : i64, scratch_operands = 0 : i64, tpu.core_type = #tpu.core_type<tc>, window_params = [{transform_indices = @transform_0, window_bounds = array<i64: 16, 128>}, {pipeline_mode = #tpu.pipeline_mode<synchronous>, transform_indices = @transform_1, window_bounds = array<i64: 1, 128>}, {pipeline_mode = #tpu.pipeline_mode<synchronous>, transform_indices = @transform_2, window_bounds = array<i64: 1, 128>}, {transform_indices = @transform_3, window_bounds = array<i64: 16, 128>}]} {
    %c0 = arith.constant 0 : index
    %c0_0 = arith.constant 0 : index
    %0 = vector.load %arg1[%c0, %c0_0] : memref<16x128xbf16, #tpu.memory_space<vmem>>, vector<16x128xbf16>
    %1 = arith.extf %0 : vector<16x128xbf16> to vector<16x128xf32>
    %c0_1 = arith.constant 0 : index
    %c0_2 = arith.constant 0 : index
    %2 = vector.load %arg2[%c0_1, %c0_2] : memref<1x128xf32, #tpu.memory_space<vmem>>, vector<1x128xf32>
    %c0_3 = arith.constant 0 : index
    %c0_4 = arith.constant 0 : index
    %3 = vector.load %arg3[%c0_3, %c0_4] : memref<1x128xf32, #tpu.memory_space<vmem>>, vector<1x128xf32>
    %cst = arith.constant dense<0.000000e+00> : vector<16xf32>
    %4 = vector.multi_reduction <add>, %1, %cst [1] : vector<16x128xf32> to vector<16xf32>
    %5 = vector.shape_cast %4 : vector<16xf32> to vector<16x1xf32>
    %cst_5 = arith.constant 3.125000e-02 : f32
    %6 = vector.broadcast %cst_5 : f32 to vector<16x1xf32>
    %7 = arith.mulf %5, %6 : vector<16x1xf32>
    %8 = arith.mulf %1, %1 : vector<16x128xf32>
    %cst_6 = arith.constant dense<0.000000e+00> : vector<16xf32>
    %9 = vector.multi_reduction <add>, %8, %cst_6 [1] : vector<16x128xf32> to vector<16xf32>
    %10 = vector.shape_cast %9 : vector<16xf32> to vector<16x1xf32>
    %cst_7 = arith.constant 3.125000e-02 : f32
    %11 = vector.broadcast %cst_7 : f32 to vector<16x1xf32>
    %12 = arith.mulf %10, %11 : vector<16x1xf32>
    %13 = arith.mulf %7, %7 : vector<16x1xf32>
    %14 = arith.subf %12, %13 : vector<16x1xf32>
    %cst_8 = arith.constant 0.000000e+00 : f32
    %15 = vector.broadcast %cst_8 : f32 to vector<16x1xf32>
    %16 = arith.maximumf %14, %15 : vector<16x1xf32>
    %17 = vector.broadcast %7 : vector<16x1xf32> to vector<16x128xf32>
    %18 = arith.subf %1, %17 : vector<16x128xf32>
    %cst_9 = arith.constant 9.99999974E-6 : f32
    %19 = vector.broadcast %cst_9 : f32 to vector<16x1xf32>
    %20 = arith.addf %16, %19 : vector<16x1xf32>
    %21 = math.rsqrt %20 : vector<16x1xf32>
    %22 = vector.broadcast %21 : vector<16x1xf32> to vector<16x128xf32>
    %23 = arith.mulf %18, %22 : vector<16x128xf32>
    %24 = vector.broadcast %2 : vector<1x128xf32> to vector<16x128xf32>
    %25 = arith.mulf %23, %24 : vector<16x128xf32>
    %26 = vector.broadcast %3 : vector<1x128xf32> to vector<16x128xf32>
    %27 = arith.addf %25, %26 : vector<16x128xf32>
    %28 = arith.truncf %27 : vector<16x128xf32> to vector<16x128xbf16>
    %c0_10 = arith.constant 0 : index
    %c0_11 = arith.constant 0 : index
    %29 = vector.load %arg4[%c0_10, %c0_11] : memref<16x128xbf16, #tpu.memory_space<vmem>>, vector<16x128xbf16>
    tpu.vector_store %arg4[%c0_10, %c0_11], %28 {strides = array<i32>} : memref<16x128xbf16, #tpu.memory_space<vmem>>, vector<16x128xbf16>,
    return
  }
  func.func @transform_0(%arg0: i32) -> (i32, i32) {
    %c0_i32 = arith.constant 0 : i32
    %c0_i32_0 = arith.constant 0 : i32
    return %arg0, %c0_i32 : i32, i32
  }
  func.func @transform_1(%arg0: i32) -> (i32, i32) {
    %c0_i32 = arith.constant 0 : i32
    %c0_i32_0 = arith.constant 0 : i32
    %c0_i32_1 = arith.constant 0 : i32
    return %c0_i32, %c0_i32_0 : i32, i32
  }
  func.func @transform_2(%arg0: i32) -> (i32, i32) {
    %c0_i32 = arith.constant 0 : i32
    %c0_i32_0 = arith.constant 0 : i32
    %c0_i32_1 = arith.constant 0 : i32
    return %c0_i32, %c0_i32_0 : i32, i32
  }
  func.func @transform_3(%arg0: i32) -> (i32, i32) {
    %c0_i32 = arith.constant 0 : i32
    %c0_i32_0 = arith.constant 0 : i32
    return %arg0, %c0_i32 : i32, i32
  }
}

module attributes {stable_mosaic.version = 11 : i64} {
  func.func @_self_attn_causal_kernel(%arg0: i32, %arg1: memref<8x768xbf16, #tpu.memory_space<vmem>>, %arg2: memref<2x1x8xf32, #tpu.memory_space<vmem>>, %arg3: memref<8x8xf32, #tpu.memory_space<vmem>>, %arg4: memref<8x256xbf16, #tpu.memory_space<vmem>>) attributes {dimension_semantics = [#tpu.dimension_semantics<parallel>], iteration_bounds = array<i64: 1>, scalar_prefetch = 0 : i64, scratch_operands = 0 : i64, tpu.core_type = #tpu.core_type<tc>, window_params = [{transform_indices = @transform_0, window_bounds = array<i64: 8, 768>}, {transform_indices = @transform_1, window_bounds = array<i64: 2, 1, 8>}, {pipeline_mode = #tpu.pipeline_mode<synchronous>, transform_indices = @transform_2, window_bounds = array<i64: 8, 8>}, {transform_indices = @transform_3, window_bounds = array<i64: 8, 256>}]} {
    %c0 = arith.constant 0 : index
    %c0_0 = arith.constant 0 : index
    %0 = vector.load %arg3[%c0, %c0_0] : memref<8x8xf32, #tpu.memory_space<vmem>>, vector<8x8xf32>
    %c0_1 = arith.constant 0 : index
    %c0_2 = arith.constant 0 : index
    %1 = vector.load %arg1[%c0_1, %c0_2] : memref<8x768xbf16, #tpu.memory_space<vmem>>, vector<8x32xbf16>
    %c0_3 = arith.constant 0 : index
    %c128 = arith.constant 128 : index
    %2 = vector.load %arg1[%c0_3, %c128] : memref<8x768xbf16, #tpu.memory_space<vmem>>, vector<8x32xbf16>
    %c0_4 = arith.constant 0 : index
    %c256 = arith.constant 256 : index
    %3 = vector.load %arg1[%c0_4, %c256] : memref<8x768xbf16, #tpu.memory_space<vmem>>, vector<8x32xbf16>
    %c0_5 = arith.constant 0 : index
    %c0_6 = arith.constant 0 : index
    %c0_7 = arith.constant 0 : index
    %4 = vector.load %arg2[%c0_5, %c0_6, %c0_7] : memref<2x1x8xf32, #tpu.memory_space<vmem>>, vector<1x1x8xf32>
    %5 = vector.shape_cast %4 : vector<1x1x8xf32> to vector<1x8xf32>
    %6 = vector.broadcast %5 : vector<1x8xf32> to vector<8x8xf32>
    %7 = arith.addf %6, %0 : vector<8x8xf32>
    %8 = vector.extract_strided_slice %1 {offsets = [0, 0], sizes = [8, 8], strides = [1, 1]} : vector<8x32xbf16> to vector<8x8xbf16>
    %9 = vector.extract_strided_slice %2 {offsets = [0, 0], sizes = [8, 8], strides = [1, 1]} : vector<8x32xbf16> to vector<8x8xbf16>
    %cst = arith.constant dense<0.000000e+00> : vector<8x8xf32>
    %10 = tpu.matmul %8, %9, %cst {dimension_numbers = #tpu.dot_dimension_numbers<[1], [1], [0], [0], [0, 0, 1, 0], [], []>} : vector<8x8xbf16>, vector<8x8xbf16>, vector<8x8xf32> -> vector<8x8xf32>
    %cst_8 = arith.constant 0.353553385 : f32
    %11 = vector.broadcast %cst_8 : f32 to vector<8x8xf32>
    %12 = arith.mulf %10, %11 : vector<8x8xf32>
    %13 = arith.addf %12, %7 : vector<8x8xf32>
    %cst_9 = arith.constant dense<0xFF800000> : vector<8xf32>
    %14 = vector.multi_reduction <maximumf>, %13, %cst_9 [1] : vector<8x8xf32> to vector<8xf32>
    %15 = vector.shape_cast %14 : vector<8xf32> to vector<8x1xf32>
    %16 = vector.broadcast %15 : vector<8x1xf32> to vector<8x8xf32>
    %17 = arith.subf %13, %16 : vector<8x8xf32>
    %18 = math.exp %17 : vector<8x8xf32>
    %cst_10 = arith.constant dense<0.000000e+00> : vector<8xf32>
    %19 = vector.multi_reduction <add>, %18, %cst_10 [1] : vector<8x8xf32> to vector<8xf32>
    %20 = vector.shape_cast %19 : vector<8xf32> to vector<8x1xf32>
    %21 = tpu.reciprocal %20 {approx = true} : vector<8x1xf32> -> vector<8x1xf32>
    %22 = vector.broadcast %21 : vector<8x1xf32> to vector<8x8xf32>
    %23 = arith.mulf %18, %22 : vector<8x8xf32>
    %24 = arith.truncf %23 : vector<8x8xf32> to vector<8x8xbf16>
    %25 = vector.extract_strided_slice %3 {offsets = [0, 0], sizes = [8, 8], strides = [1, 1]} : vector<8x32xbf16> to vector<8x8xbf16>
    %cst_11 = arith.constant dense<0.000000e+00> : vector<8x8xf32>
    %26 = tpu.matmul %24, %25, %cst_11 {dimension_numbers = #tpu.dot_dimension_numbers<[1], [0], [0], [1], [0, 0, 1, 1], [], []>} : vector<8x8xbf16>, vector<8x8xbf16>, vector<8x8xf32> -> vector<8x8xf32>
    %27 = arith.truncf %26 : vector<8x8xf32> to vector<8x8xbf16>
    %c0_12 = arith.constant 0 : index
    %c0_13 = arith.constant 0 : index
    %28 = vector.load %arg4[%c0_12, %c0_13] : memref<8x256xbf16, #tpu.memory_space<vmem>>, vector<8x8xbf16>
    tpu.vector_store %arg4[%c0_12, %c0_13], %27 {strides = array<i32>} : memref<8x256xbf16, #tpu.memory_space<vmem>>, vector<8x8xbf16>,
    %29 = vector.extract_strided_slice %1 {offsets = [0, 8], sizes = [8, 8], strides = [1, 1]} : vector<8x32xbf16> to vector<8x8xbf16>
    %30 = vector.extract_strided_slice %2 {offsets = [0, 8], sizes = [8, 8], strides = [1, 1]} : vector<8x32xbf16> to vector<8x8xbf16>
    %cst_14 = arith.constant dense<0.000000e+00> : vector<8x8xf32>
    %31 = tpu.matmul %29, %30, %cst_14 {dimension_numbers = #tpu.dot_dimension_numbers<[1], [1], [0], [0], [0, 0, 1, 0], [], []>} : vector<8x8xbf16>, vector<8x8xbf16>, vector<8x8xf32> -> vector<8x8xf32>
    %cst_15 = arith.constant 0.353553385 : f32
    %32 = vector.broadcast %cst_15 : f32 to vector<8x8xf32>
    %33 = arith.mulf %31, %32 : vector<8x8xf32>
    %34 = arith.addf %33, %7 : vector<8x8xf32>
    %cst_16 = arith.constant dense<0xFF800000> : vector<8xf32>
    %35 = vector.multi_reduction <maximumf>, %34, %cst_16 [1] : vector<8x8xf32> to vector<8xf32>
    %36 = vector.shape_cast %35 : vector<8xf32> to vector<8x1xf32>
    %37 = vector.broadcast %36 : vector<8x1xf32> to vector<8x8xf32>
    %38 = arith.subf %34, %37 : vector<8x8xf32>
    %39 = math.exp %38 : vector<8x8xf32>
    %cst_17 = arith.constant dense<0.000000e+00> : vector<8xf32>
    %40 = vector.multi_reduction <add>, %39, %cst_17 [1] : vector<8x8xf32> to vector<8xf32>
    %41 = vector.shape_cast %40 : vector<8xf32> to vector<8x1xf32>
    %42 = tpu.reciprocal %41 {approx = true} : vector<8x1xf32> -> vector<8x1xf32>
    %43 = vector.broadcast %42 : vector<8x1xf32> to vector<8x8xf32>
    %44 = arith.mulf %39, %43 : vector<8x8xf32>
    %45 = arith.truncf %44 : vector<8x8xf32> to vector<8x8xbf16>
    %46 = vector.extract_strided_slice %3 {offsets = [0, 8], sizes = [8, 8], strides = [1, 1]} : vector<8x32xbf16> to vector<8x8xbf16>
    %cst_18 = arith.constant dense<0.000000e+00> : vector<8x8xf32>
    %47 = tpu.matmul %45, %46, %cst_18 {dimension_numbers = #tpu.dot_dimension_numbers<[1], [0], [0], [1], [0, 0, 1, 1], [], []>} : vector<8x8xbf16>, vector<8x8xbf16>, vector<8x8xf32> -> vector<8x8xf32>
    %48 = arith.truncf %47 : vector<8x8xf32> to vector<8x8xbf16>
    %c0_19 = arith.constant 0 : index
    %c8 = arith.constant 8 : index
    %49 = vector.load %arg4[%c0_19, %c8] : memref<8x256xbf16, #tpu.memory_space<vmem>>, vector<8x8xbf16>
    tpu.vector_store %arg4[%c0_19, %c8], %48 {strides = array<i32>} : memref<8x256xbf16, #tpu.memory_space<vmem>>, vector<8x8xbf16>,
    %50 = vector.extract_strided_slice %1 {offsets = [0, 16], sizes = [8, 8], strides = [1, 1]} : vector<8x32xbf16> to vector<8x8xbf16>
    %51 = vector.extract_strided_slice %2 {offsets = [0, 16], sizes = [8, 8], strides = [1, 1]} : vector<8x32xbf16> to vector<8x8xbf16>
    %cst_20 = arith.constant dense<0.000000e+00> : vector<8x8xf32>
    %52 = tpu.matmul %50, %51, %cst_20 {dimension_numbers = #tpu.dot_dimension_numbers<[1], [1], [0], [0], [0, 0, 1, 0], [], []>} : vector<8x8xbf16>, vector<8x8xbf16>, vector<8x8xf32> -> vector<8x8xf32>
    %cst_21 = arith.constant 0.353553385 : f32
    %53 = vector.broadcast %cst_21 : f32 to vector<8x8xf32>
    %54 = arith.mulf %52, %53 : vector<8x8xf32>
    %55 = arith.addf %54, %7 : vector<8x8xf32>
    %cst_22 = arith.constant dense<0xFF800000> : vector<8xf32>
    %56 = vector.multi_reduction <maximumf>, %55, %cst_22 [1] : vector<8x8xf32> to vector<8xf32>
    %57 = vector.shape_cast %56 : vector<8xf32> to vector<8x1xf32>
    %58 = vector.broadcast %57 : vector<8x1xf32> to vector<8x8xf32>
    %59 = arith.subf %55, %58 : vector<8x8xf32>
    %60 = math.exp %59 : vector<8x8xf32>
    %cst_23 = arith.constant dense<0.000000e+00> : vector<8xf32>
    %61 = vector.multi_reduction <add>, %60, %cst_23 [1] : vector<8x8xf32> to vector<8xf32>
    %62 = vector.shape_cast %61 : vector<8xf32> to vector<8x1xf32>
    %63 = tpu.reciprocal %62 {approx = true} : vector<8x1xf32> -> vector<8x1xf32>
    %64 = vector.broadcast %63 : vector<8x1xf32> to vector<8x8xf32>
    %65 = arith.mulf %60, %64 : vector<8x8xf32>
    %66 = arith.truncf %65 : vector<8x8xf32> to vector<8x8xbf16>
    %67 = vector.extract_strided_slice %3 {offsets = [0, 16], sizes = [8, 8], strides = [1, 1]} : vector<8x32xbf16> to vector<8x8xbf16>
    %cst_24 = arith.constant dense<0.000000e+00> : vector<8x8xf32>
    %68 = tpu.matmul %66, %67, %cst_24 {dimension_numbers = #tpu.dot_dimension_numbers<[1], [0], [0], [1], [0, 0, 1, 1], [], []>} : vector<8x8xbf16>, vector<8x8xbf16>, vector<8x8xf32> -> vector<8x8xf32>
    %69 = arith.truncf %68 : vector<8x8xf32> to vector<8x8xbf16>
    %c0_25 = arith.constant 0 : index
    %c16 = arith.constant 16 : index
    %70 = vector.load %arg4[%c0_25, %c16] : memref<8x256xbf16, #tpu.memory_space<vmem>>, vector<8x8xbf16>
    tpu.vector_store %arg4[%c0_25, %c16], %69 {strides = array<i32>} : memref<8x256xbf16, #tpu.memory_space<vmem>>, vector<8x8xbf16>,
    %71 = vector.extract_strided_slice %1 {offsets = [0, 24], sizes = [8, 8], strides = [1, 1]} : vector<8x32xbf16> to vector<8x8xbf16>
    %72 = vector.extract_strided_slice %2 {offsets = [0, 24], sizes = [8, 8], strides = [1, 1]} : vector<8x32xbf16> to vector<8x8xbf16>
    %cst_26 = arith.constant dense<0.000000e+00> : vector<8x8xf32>
    %73 = tpu.matmul %71, %72, %cst_26 {dimension_numbers = #tpu.dot_dimension_numbers<[1], [1], [0], [0], [0, 0, 1, 0], [], []>} : vector<8x8xbf16>, vector<8x8xbf16>, vector<8x8xf32> -> vector<8x8xf32>
    %cst_27 = arith.constant 0.353553385 : f32
    %74 = vector.broadcast %cst_27 : f32 to vector<8x8xf32>
    %75 = arith.mulf %73, %74 : vector<8x8xf32>
    %76 = arith.addf %75, %7 : vector<8x8xf32>
    %cst_28 = arith.constant dense<0xFF800000> : vector<8xf32>
    %77 = vector.multi_reduction <maximumf>, %76, %cst_28 [1] : vector<8x8xf32> to vector<8xf32>
    %78 = vector.shape_cast %77 : vector<8xf32> to vector<8x1xf32>
    %79 = vector.broadcast %78 : vector<8x1xf32> to vector<8x8xf32>
    %80 = arith.subf %76, %79 : vector<8x8xf32>
    %81 = math.exp %80 : vector<8x8xf32>
    %cst_29 = arith.constant dense<0.000000e+00> : vector<8xf32>
    %82 = vector.multi_reduction <add>, %81, %cst_29 [1] : vector<8x8xf32> to vector<8xf32>
    %83 = vector.shape_cast %82 : vector<8xf32> to vector<8x1xf32>
    %84 = tpu.reciprocal %83 {approx = true} : vector<8x1xf32> -> vector<8x1xf32>
    %85 = vector.broadcast %84 : vector<8x1xf32> to vector<8x8xf32>
    %86 = arith.mulf %81, %85 : vector<8x8xf32>
    %87 = arith.truncf %86 : vector<8x8xf32> to vector<8x8xbf16>
    %88 = vector.extract_strided_slice %3 {offsets = [0, 24], sizes = [8, 8], strides = [1, 1]} : vector<8x32xbf16> to vector<8x8xbf16>
    %cst_30 = arith.constant dense<0.000000e+00> : vector<8x8xf32>
    %89 = tpu.matmul %87, %88, %cst_30 {dimension_numbers = #tpu.dot_dimension_numbers<[1], [0], [0], [1], [0, 0, 1, 1], [], []>} : vector<8x8xbf16>, vector<8x8xbf16>, vector<8x8xf32> -> vector<8x8xf32>
    %90 = arith.truncf %89 : vector<8x8xf32> to vector<8x8xbf16>
    %c0_31 = arith.constant 0 : index
    %c24 = arith.constant 24 : index
    %91 = vector.load %arg4[%c0_31, %c24] : memref<8x256xbf16, #tpu.memory_space<vmem>>, vector<8x8xbf16>
    tpu.vector_store %arg4[%c0_31, %c24], %90 {strides = array<i32>} : memref<8x256xbf16, #tpu.memory_space<vmem>>, vector<8x8xbf16>,
    %cst_32 = arith.constant 0.000000e+00 : bf16
    %92 = vector.broadcast %cst_32 : bf16 to vector<8x96xbf16>
    %c0_33 = arith.constant 0 : index
    %c32 = arith.constant 32 : index
    %93 = vector.load %arg4[%c0_33, %c32] : memref<8x256xbf16, #tpu.memory_space<vmem>>, vector<8x96xbf16>
    tpu.vector_store %arg4[%c0_33, %c32], %92 {strides = array<i32>} : memref<8x256xbf16, #tpu.memory_space<vmem>>, vector<8x96xbf16>,
    %c0_34 = arith.constant 0 : index
    %c384 = arith.constant 384 : index
    %94 = vector.load %arg1[%c0_34, %c384] : memref<8x768xbf16, #tpu.memory_space<vmem>>, vector<8x32xbf16>
    %c0_35 = arith.constant 0 : index
    %c512 = arith.constant 512 : index
    %95 = vector.load %arg1[%c0_35, %c512] : memref<8x768xbf16, #tpu.memory_space<vmem>>, vector<8x32xbf16>
    %c0_36 = arith.constant 0 : index
    %c640 = arith.constant 640 : index
    %96 = vector.load %arg1[%c0_36, %c640] : memref<8x768xbf16, #tpu.memory_space<vmem>>, vector<8x32xbf16>
    %c1 = arith.constant 1 : index
    %c0_37 = arith.constant 0 : index
    %c0_38 = arith.constant 0 : index
    %97 = vector.load %arg2[%c1, %c0_37, %c0_38] : memref<2x1x8xf32, #tpu.memory_space<vmem>>, vector<1x1x8xf32>
    %98 = vector.shape_cast %97 : vector<1x1x8xf32> to vector<1x8xf32>
    %99 = vector.broadcast %98 : vector<1x8xf32> to vector<8x8xf32>
    %100 = arith.addf %99, %0 : vector<8x8xf32>
    %101 = vector.extract_strided_slice %94 {offsets = [0, 0], sizes = [8, 8], strides = [1, 1]} : vector<8x32xbf16> to vector<8x8xbf16>
    %102 = vector.extract_strided_slice %95 {offsets = [0, 0], sizes = [8, 8], strides = [1, 1]} : vector<8x32xbf16> to vector<8x8xbf16>
    %cst_39 = arith.constant dense<0.000000e+00> : vector<8x8xf32>
    %103 = tpu.matmul %101, %102, %cst_39 {dimension_numbers = #tpu.dot_dimension_numbers<[1], [1], [0], [0], [0, 0, 1, 0], [], []>} : vector<8x8xbf16>, vector<8x8xbf16>, vector<8x8xf32> -> vector<8x8xf32>
    %cst_40 = arith.constant 0.353553385 : f32
    %104 = vector.broadcast %cst_40 : f32 to vector<8x8xf32>
    %105 = arith.mulf %103, %104 : vector<8x8xf32>
    %106 = arith.addf %105, %100 : vector<8x8xf32>
    %cst_41 = arith.constant dense<0xFF800000> : vector<8xf32>
    %107 = vector.multi_reduction <maximumf>, %106, %cst_41 [1] : vector<8x8xf32> to vector<8xf32>
    %108 = vector.shape_cast %107 : vector<8xf32> to vector<8x1xf32>
    %109 = vector.broadcast %108 : vector<8x1xf32> to vector<8x8xf32>
    %110 = arith.subf %106, %109 : vector<8x8xf32>
    %111 = math.exp %110 : vector<8x8xf32>
    %cst_42 = arith.constant dense<0.000000e+00> : vector<8xf32>
    %112 = vector.multi_reduction <add>, %111, %cst_42 [1] : vector<8x8xf32> to vector<8xf32>
    %113 = vector.shape_cast %112 : vector<8xf32> to vector<8x1xf32>
    %114 = tpu.reciprocal %113 {approx = true} : vector<8x1xf32> -> vector<8x1xf32>
    %115 = vector.broadcast %114 : vector<8x1xf32> to vector<8x8xf32>
    %116 = arith.mulf %111, %115 : vector<8x8xf32>
    %117 = arith.truncf %116 : vector<8x8xf32> to vector<8x8xbf16>
    %118 = vector.extract_strided_slice %96 {offsets = [0, 0], sizes = [8, 8], strides = [1, 1]} : vector<8x32xbf16> to vector<8x8xbf16>
    %cst_43 = arith.constant dense<0.000000e+00> : vector<8x8xf32>
    %119 = tpu.matmul %117, %118, %cst_43 {dimension_numbers = #tpu.dot_dimension_numbers<[1], [0], [0], [1], [0, 0, 1, 1], [], []>} : vector<8x8xbf16>, vector<8x8xbf16>, vector<8x8xf32> -> vector<8x8xf32>
    %120 = arith.truncf %119 : vector<8x8xf32> to vector<8x8xbf16>
    %c0_44 = arith.constant 0 : index
    %c128_45 = arith.constant 128 : index
    %121 = vector.load %arg4[%c0_44, %c128_45] : memref<8x256xbf16, #tpu.memory_space<vmem>>, vector<8x8xbf16>
    tpu.vector_store %arg4[%c0_44, %c128_45], %120 {strides = array<i32>} : memref<8x256xbf16, #tpu.memory_space<vmem>>, vector<8x8xbf16>,
    %122 = vector.extract_strided_slice %94 {offsets = [0, 8], sizes = [8, 8], strides = [1, 1]} : vector<8x32xbf16> to vector<8x8xbf16>
    %123 = vector.extract_strided_slice %95 {offsets = [0, 8], sizes = [8, 8], strides = [1, 1]} : vector<8x32xbf16> to vector<8x8xbf16>
    %cst_46 = arith.constant dense<0.000000e+00> : vector<8x8xf32>
    %124 = tpu.matmul %122, %123, %cst_46 {dimension_numbers = #tpu.dot_dimension_numbers<[1], [1], [0], [0], [0, 0, 1, 0], [], []>} : vector<8x8xbf16>, vector<8x8xbf16>, vector<8x8xf32> -> vector<8x8xf32>
    %cst_47 = arith.constant 0.353553385 : f32
    %125 = vector.broadcast %cst_47 : f32 to vector<8x8xf32>
    %126 = arith.mulf %124, %125 : vector<8x8xf32>
    %127 = arith.addf %126, %100 : vector<8x8xf32>
    %cst_48 = arith.constant dense<0xFF800000> : vector<8xf32>
    %128 = vector.multi_reduction <maximumf>, %127, %cst_48 [1] : vector<8x8xf32> to vector<8xf32>
    %129 = vector.shape_cast %128 : vector<8xf32> to vector<8x1xf32>
    %130 = vector.broadcast %129 : vector<8x1xf32> to vector<8x8xf32>
    %131 = arith.subf %127, %130 : vector<8x8xf32>
    %132 = math.exp %131 : vector<8x8xf32>
    %cst_49 = arith.constant dense<0.000000e+00> : vector<8xf32>
    %133 = vector.multi_reduction <add>, %132, %cst_49 [1] : vector<8x8xf32> to vector<8xf32>
    %134 = vector.shape_cast %133 : vector<8xf32> to vector<8x1xf32>
    %135 = tpu.reciprocal %134 {approx = true} : vector<8x1xf32> -> vector<8x1xf32>
    %136 = vector.broadcast %135 : vector<8x1xf32> to vector<8x8xf32>
    %137 = arith.mulf %132, %136 : vector<8x8xf32>
    %138 = arith.truncf %137 : vector<8x8xf32> to vector<8x8xbf16>
    %139 = vector.extract_strided_slice %96 {offsets = [0, 8], sizes = [8, 8], strides = [1, 1]} : vector<8x32xbf16> to vector<8x8xbf16>
    %cst_50 = arith.constant dense<0.000000e+00> : vector<8x8xf32>
    %140 = tpu.matmul %138, %139, %cst_50 {dimension_numbers = #tpu.dot_dimension_numbers<[1], [0], [0], [1], [0, 0, 1, 1], [], []>} : vector<8x8xbf16>, vector<8x8xbf16>, vector<8x8xf32> -> vector<8x8xf32>
    %141 = arith.truncf %140 : vector<8x8xf32> to vector<8x8xbf16>
    %c0_51 = arith.constant 0 : index
    %c136 = arith.constant 136 : index
    %142 = vector.load %arg4[%c0_51, %c136] : memref<8x256xbf16, #tpu.memory_space<vmem>>, vector<8x8xbf16>
    tpu.vector_store %arg4[%c0_51, %c136], %141 {strides = array<i32>} : memref<8x256xbf16, #tpu.memory_space<vmem>>, vector<8x8xbf16>,
    %143 = vector.extract_strided_slice %94 {offsets = [0, 16], sizes = [8, 8], strides = [1, 1]} : vector<8x32xbf16> to vector<8x8xbf16>
    %144 = vector.extract_strided_slice %95 {offsets = [0, 16], sizes = [8, 8], strides = [1, 1]} : vector<8x32xbf16> to vector<8x8xbf16>
    %cst_52 = arith.constant dense<0.000000e+00> : vector<8x8xf32>
    %145 = tpu.matmul %143, %144, %cst_52 {dimension_numbers = #tpu.dot_dimension_numbers<[1], [1], [0], [0], [0, 0, 1, 0], [], []>} : vector<8x8xbf16>, vector<8x8xbf16>, vector<8x8xf32> -> vector<8x8xf32>
    %cst_53 = arith.constant 0.353553385 : f32
    %146 = vector.broadcast %cst_53 : f32 to vector<8x8xf32>
    %147 = arith.mulf %145, %146 : vector<8x8xf32>
    %148 = arith.addf %147, %100 : vector<8x8xf32>
    %cst_54 = arith.constant dense<0xFF800000> : vector<8xf32>
    %149 = vector.multi_reduction <maximumf>, %148, %cst_54 [1] : vector<8x8xf32> to vector<8xf32>
    %150 = vector.shape_cast %149 : vector<8xf32> to vector<8x1xf32>
    %151 = vector.broadcast %150 : vector<8x1xf32> to vector<8x8xf32>
    %152 = arith.subf %148, %151 : vector<8x8xf32>
    %153 = math.exp %152 : vector<8x8xf32>
    %cst_55 = arith.constant dense<0.000000e+00> : vector<8xf32>
    %154 = vector.multi_reduction <add>, %153, %cst_55 [1] : vector<8x8xf32> to vector<8xf32>
    %155 = vector.shape_cast %154 : vector<8xf32> to vector<8x1xf32>
    %156 = tpu.reciprocal %155 {approx = true} : vector<8x1xf32> -> vector<8x1xf32>
    %157 = vector.broadcast %156 : vector<8x1xf32> to vector<8x8xf32>
    %158 = arith.mulf %153, %157 : vector<8x8xf32>
    %159 = arith.truncf %158 : vector<8x8xf32> to vector<8x8xbf16>
    %160 = vector.extract_strided_slice %96 {offsets = [0, 16], sizes = [8, 8], strides = [1, 1]} : vector<8x32xbf16> to vector<8x8xbf16>
    %cst_56 = arith.constant dense<0.000000e+00> : vector<8x8xf32>
    %161 = tpu.matmul %159, %160, %cst_56 {dimension_numbers = #tpu.dot_dimension_numbers<[1], [0], [0], [1], [0, 0, 1, 1], [], []>} : vector<8x8xbf16>, vector<8x8xbf16>, vector<8x8xf32> -> vector<8x8xf32>
    %162 = arith.truncf %161 : vector<8x8xf32> to vector<8x8xbf16>
    %c0_57 = arith.constant 0 : index
    %c144 = arith.constant 144 : index
    %163 = vector.load %arg4[%c0_57, %c144] : memref<8x256xbf16, #tpu.memory_space<vmem>>, vector<8x8xbf16>
    tpu.vector_store %arg4[%c0_57, %c144], %162 {strides = array<i32>} : memref<8x256xbf16, #tpu.memory_space<vmem>>, vector<8x8xbf16>,
    %164 = vector.extract_strided_slice %94 {offsets = [0, 24], sizes = [8, 8], strides = [1, 1]} : vector<8x32xbf16> to vector<8x8xbf16>
    %165 = vector.extract_strided_slice %95 {offsets = [0, 24], sizes = [8, 8], strides = [1, 1]} : vector<8x32xbf16> to vector<8x8xbf16>
    %cst_58 = arith.constant dense<0.000000e+00> : vector<8x8xf32>
    %166 = tpu.matmul %164, %165, %cst_58 {dimension_numbers = #tpu.dot_dimension_numbers<[1], [1], [0], [0], [0, 0, 1, 0], [], []>} : vector<8x8xbf16>, vector<8x8xbf16>, vector<8x8xf32> -> vector<8x8xf32>
    %cst_59 = arith.constant 0.353553385 : f32
    %167 = vector.broadcast %cst_59 : f32 to vector<8x8xf32>
    %168 = arith.mulf %166, %167 : vector<8x8xf32>
    %169 = arith.addf %168, %100 : vector<8x8xf32>
    %cst_60 = arith.constant dense<0xFF800000> : vector<8xf32>
    %170 = vector.multi_reduction <maximumf>, %169, %cst_60 [1] : vector<8x8xf32> to vector<8xf32>
    %171 = vector.shape_cast %170 : vector<8xf32> to vector<8x1xf32>
    %172 = vector.broadcast %171 : vector<8x1xf32> to vector<8x8xf32>
    %173 = arith.subf %169, %172 : vector<8x8xf32>
    %174 = math.exp %173 : vector<8x8xf32>
    %cst_61 = arith.constant dense<0.000000e+00> : vector<8xf32>
    %175 = vector.multi_reduction <add>, %174, %cst_61 [1] : vector<8x8xf32> to vector<8xf32>
    %176 = vector.shape_cast %175 : vector<8xf32> to vector<8x1xf32>
    %177 = tpu.reciprocal %176 {approx = true} : vector<8x1xf32> -> vector<8x1xf32>
    %178 = vector.broadcast %177 : vector<8x1xf32> to vector<8x8xf32>
    %179 = arith.mulf %174, %178 : vector<8x8xf32>
    %180 = arith.truncf %179 : vector<8x8xf32> to vector<8x8xbf16>
    %181 = vector.extract_strided_slice %96 {offsets = [0, 24], sizes = [8, 8], strides = [1, 1]} : vector<8x32xbf16> to vector<8x8xbf16>
    %cst_62 = arith.constant dense<0.000000e+00> : vector<8x8xf32>
    %182 = tpu.matmul %180, %181, %cst_62 {dimension_numbers = #tpu.dot_dimension_numbers<[1], [0], [0], [1], [0, 0, 1, 1], [], []>} : vector<8x8xbf16>, vector<8x8xbf16>, vector<8x8xf32> -> vector<8x8xf32>
    %183 = arith.truncf %182 : vector<8x8xf32> to vector<8x8xbf16>
    %c0_63 = arith.constant 0 : index
    %c152 = arith.constant 152 : index
    %184 = vector.load %arg4[%c0_63, %c152] : memref<8x256xbf16, #tpu.memory_space<vmem>>, vector<8x8xbf16>
    tpu.vector_store %arg4[%c0_63, %c152], %183 {strides = array<i32>} : memref<8x256xbf16, #tpu.memory_space<vmem>>, vector<8x8xbf16>,
    %cst_64 = arith.constant 0.000000e+00 : bf16
    %185 = vector.broadcast %cst_64 : bf16 to vector<8x96xbf16>
    %c0_65 = arith.constant 0 : index
    %c160 = arith.constant 160 : index
    %186 = vector.load %arg4[%c0_65, %c160] : memref<8x256xbf16, #tpu.memory_space<vmem>>, vector<8x96xbf16>
    tpu.vector_store %arg4[%c0_65, %c160], %185 {strides = array<i32>} : memref<8x256xbf16, #tpu.memory_space<vmem>>, vector<8x96xbf16>,
    return
  }
  func.func @transform_0(%arg0: i32) -> (i32, i32) {
    %c0_i32 = arith.constant 0 : i32
    %c0_i32_0 = arith.constant 0 : i32
    return %c0_i32, %arg0 : i32, i32
  }
  func.func @transform_1(%arg0: i32) -> (i32, i32, i32) {
    %c0_i32 = arith.constant 0 : i32
    %c0_i32_0 = arith.constant 0 : i32
    %c0_i32_1 = arith.constant 0 : i32
    return %arg0, %c0_i32, %c0_i32_0 : i32, i32, i32
  }
  func.func @transform_2(%arg0: i32) -> (i32, i32) {
    %c0_i32 = arith.constant 0 : i32
    %c0_i32_0 = arith.constant 0 : i32
    %c0_i32_1 = arith.constant 0 : i32
    return %c0_i32, %c0_i32_0 : i32, i32
  }
  func.func @transform_3(%arg0: i32) -> (i32, i32) {
    %c0_i32 = arith.constant 0 : i32
    %c0_i32_0 = arith.constant 0 : i32
    return %c0_i32, %arg0 : i32, i32
  }
}

module attributes {stable_mosaic.version = 11 : i64} {
  func.func @_linear_kernel(%arg0: i32, %arg1: i32, %arg2: i32, %arg3: memref<16x128xbf16, #tpu.memory_space<vmem>>, %arg4: memref<128x128xbf16, #tpu.memory_space<vmem>>, %arg5: memref<1x128xf32, #tpu.memory_space<vmem>>, %arg6: memref<16x128xbf16, #tpu.memory_space<vmem>>, %arg7: memref<16x128xf32, #tpu.memory_space<vmem>>) attributes {dimension_semantics = [#tpu.dimension_semantics<parallel>, #tpu.dimension_semantics<parallel>, #tpu.dimension_semantics<arbitrary>], iteration_bounds = array<i64: 1, 1, 1>, scalar_prefetch = 0 : i64, scratch_operands = 1 : i64, tpu.core_type = #tpu.core_type<tc>, window_params = [{transform_indices = @transform_0, window_bounds = array<i64: 16, 128>}, {transform_indices = @transform_1, window_bounds = array<i64: 128, 128>}, {transform_indices = @transform_2, window_bounds = array<i64: 1, 128>}, {transform_indices = @transform_3, window_bounds = array<i64: 16, 128>}]} {
    %c0_i32 = arith.constant 0 : i32
    %0 = arith.cmpi eq, %arg2, %c0_i32 : i32
    %1 = arith.extui %0 : i1 to i32
    %c0_i32_0 = arith.constant 0 : i32
    %2 = arith.cmpi ne, %1, %c0_i32_0 : i32
    scf.if %2 {
      %cst_10 = arith.constant 0.000000e+00 : f32
      %12 = vector.broadcast %cst_10 : f32 to vector<16x128xf32>
      %c0_11 = arith.constant 0 : index
      %c0_12 = arith.constant 0 : index
      %13 = vector.load %arg7[%c0_11, %c0_12] : memref<16x128xf32, #tpu.memory_space<vmem>>, vector<16x128xf32>
      tpu.vector_store %arg7[%c0_11, %c0_12], %12 {strides = array<i32>} : memref<16x128xf32, #tpu.memory_space<vmem>>, vector<16x128xf32>,
    } else {
    }
    %c0 = arith.constant 0 : index
    %c0_1 = arith.constant 0 : index
    %3 = vector.load %arg7[%c0, %c0_1] : memref<16x128xf32, #tpu.memory_space<vmem>>, vector<16x128xf32>
    %c0_2 = arith.constant 0 : index
    %c0_3 = arith.constant 0 : index
    %4 = vector.load %arg3[%c0_2, %c0_3] : memref<16x128xbf16, #tpu.memory_space<vmem>>, vector<16x128xbf16>
    %c0_4 = arith.constant 0 : index
    %c0_5 = arith.constant 0 : index
    %5 = vector.load %arg4[%c0_4, %c0_5] : memref<128x128xbf16, #tpu.memory_space<vmem>>, vector<128x128xbf16>
    %cst = arith.constant dense<0.000000e+00> : vector<16x128xf32>
    %6 = tpu.matmul %4, %5, %cst {dimension_numbers = #tpu.dot_dimension_numbers<[1], [0], [0], [1], [0, 0, 1, 1], [], []>} : vector<16x128xbf16>, vector<128x128xbf16>, vector<16x128xf32> -> vector<16x128xf32>
    %7 = arith.addf %3, %6 : vector<16x128xf32>
    %c0_6 = arith.constant 0 : index
    %c0_7 = arith.constant 0 : index
    %8 = vector.load %arg7[%c0_6, %c0_7] : memref<16x128xf32, #tpu.memory_space<vmem>>, vector<16x128xf32>
    tpu.vector_store %arg7[%c0_6, %c0_7], %7 {strides = array<i32>} : memref<16x128xf32, #tpu.memory_space<vmem>>, vector<16x128xf32>,
    %c0_i32_8 = arith.constant 0 : i32
    %9 = arith.cmpi eq, %arg2, %c0_i32_8 : i32
    %10 = arith.extui %9 : i1 to i32
    %c0_i32_9 = arith.constant 0 : i32
    %11 = arith.cmpi ne, %10, %c0_i32_9 : i32
    scf.if %11 {
      %c0_10 = arith.constant 0 : index
      %c0_11 = arith.constant 0 : index
      %12 = vector.load %arg7[%c0_10, %c0_11] : memref<16x128xf32, #tpu.memory_space<vmem>>, vector<16x128xf32>
      %c0_12 = arith.constant 0 : index
      %c0_13 = arith.constant 0 : index
      %13 = vector.load %arg5[%c0_12, %c0_13] : memref<1x128xf32, #tpu.memory_space<vmem>>, vector<1x128xf32>
      %14 = vector.broadcast %13 : vector<1x128xf32> to vector<16x128xf32>
      %15 = arith.addf %12, %14 : vector<16x128xf32>
      %16 = arith.truncf %15 : vector<16x128xf32> to vector<16x128xbf16>
      %c0_14 = arith.constant 0 : index
      %c0_15 = arith.constant 0 : index
      %17 = vector.load %arg6[%c0_14, %c0_15] : memref<16x128xbf16, #tpu.memory_space<vmem>>, vector<16x128xbf16>
      tpu.vector_store %arg6[%c0_14, %c0_15], %16 {strides = array<i32>} : memref<16x128xbf16, #tpu.memory_space<vmem>>, vector<16x128xbf16>,
    } else {
    }
    return
  }
  func.func @transform_0(%arg0: i32, %arg1: i32, %arg2: i32) -> (i32, i32) {
    %c0_i32 = arith.constant 0 : i32
    return %arg0, %arg2 : i32, i32
  }
  func.func @transform_1(%arg0: i32, %arg1: i32, %arg2: i32) -> (i32, i32) {
    %c0_i32 = arith.constant 0 : i32
    return %arg2, %arg1 : i32, i32
  }
  func.func @transform_2(%arg0: i32, %arg1: i32, %arg2: i32) -> (i32, i32) {
    %c0_i32 = arith.constant 0 : i32
    %c0_i32_0 = arith.constant 0 : i32
    return %c0_i32, %arg1 : i32, i32
  }
  func.func @transform_3(%arg0: i32, %arg1: i32, %arg2: i32) -> (i32, i32) {
    %c0_i32 = arith.constant 0 : i32
    return %arg0, %arg1 : i32, i32
  }
}

module attributes {stable_mosaic.version = 11 : i64} {
  func.func @_cross_attn_kernel(%arg0: i32, %arg1: memref<8x256xbf16, #tpu.memory_space<vmem>>, %arg2: memref<8x512xbf16, #tpu.memory_space<vmem>>, %arg3: memref<8x256xbf16, #tpu.memory_space<vmem>>) attributes {dimension_semantics = [#tpu.dimension_semantics<parallel>], iteration_bounds = array<i64: 1>, scalar_prefetch = 0 : i64, scratch_operands = 0 : i64, tpu.core_type = #tpu.core_type<tc>, window_params = [{transform_indices = @transform_0, window_bounds = array<i64: 8, 256>}, {transform_indices = @transform_1, window_bounds = array<i64: 8, 512>}, {transform_indices = @transform_2, window_bounds = array<i64: 8, 256>}]} {
    %c0 = arith.constant 0 : index
    %c0_0 = arith.constant 0 : index
    %0 = vector.load %arg1[%c0, %c0_0] : memref<8x256xbf16, #tpu.memory_space<vmem>>, vector<8x32xbf16>
    %c0_1 = arith.constant 0 : index
    %c0_2 = arith.constant 0 : index
    %1 = vector.load %arg2[%c0_1, %c0_2] : memref<8x512xbf16, #tpu.memory_space<vmem>>, vector<8x32xbf16>
    %c0_3 = arith.constant 0 : index
    %c128 = arith.constant 128 : index
    %2 = vector.load %arg2[%c0_3, %c128] : memref<8x512xbf16, #tpu.memory_space<vmem>>, vector<8x32xbf16>
    %3 = vector.extract_strided_slice %0 {offsets = [0, 0], sizes = [8, 8], strides = [1, 1]} : vector<8x32xbf16> to vector<8x8xbf16>
    %4 = vector.extract_strided_slice %1 {offsets = [0, 0], sizes = [8, 8], strides = [1, 1]} : vector<8x32xbf16> to vector<8x8xbf16>
    %cst = arith.constant dense<0.000000e+00> : vector<8x8xf32>
    %5 = tpu.matmul %3, %4, %cst {dimension_numbers = #tpu.dot_dimension_numbers<[1], [1], [0], [0], [0, 0, 1, 0], [], []>} : vector<8x8xbf16>, vector<8x8xbf16>, vector<8x8xf32> -> vector<8x8xf32>
    %cst_4 = arith.constant 0.353553385 : f32
    %6 = vector.broadcast %cst_4 : f32 to vector<8x8xf32>
    %7 = arith.mulf %5, %6 : vector<8x8xf32>
    %cst_5 = arith.constant dense<0xFF800000> : vector<8xf32>
    %8 = vector.multi_reduction <maximumf>, %7, %cst_5 [1] : vector<8x8xf32> to vector<8xf32>
    %9 = vector.shape_cast %8 : vector<8xf32> to vector<8x1xf32>
    %10 = vector.broadcast %9 : vector<8x1xf32> to vector<8x8xf32>
    %11 = arith.subf %7, %10 : vector<8x8xf32>
    %12 = math.exp %11 : vector<8x8xf32>
    %cst_6 = arith.constant dense<0.000000e+00> : vector<8xf32>
    %13 = vector.multi_reduction <add>, %12, %cst_6 [1] : vector<8x8xf32> to vector<8xf32>
    %14 = vector.shape_cast %13 : vector<8xf32> to vector<8x1xf32>
    %15 = tpu.reciprocal %14 {approx = true} : vector<8x1xf32> -> vector<8x1xf32>
    %16 = vector.broadcast %15 : vector<8x1xf32> to vector<8x8xf32>
    %17 = arith.mulf %12, %16 : vector<8x8xf32>
    %18 = arith.truncf %17 : vector<8x8xf32> to vector<8x8xbf16>
    %19 = vector.extract_strided_slice %2 {offsets = [0, 0], sizes = [8, 8], strides = [1, 1]} : vector<8x32xbf16> to vector<8x8xbf16>
    %cst_7 = arith.constant dense<0.000000e+00> : vector<8x8xf32>
    %20 = tpu.matmul %18, %19, %cst_7 {dimension_numbers = #tpu.dot_dimension_numbers<[1], [0], [0], [1], [0, 0, 1, 1], [], []>} : vector<8x8xbf16>, vector<8x8xbf16>, vector<8x8xf32> -> vector<8x8xf32>
    %21 = arith.truncf %20 : vector<8x8xf32> to vector<8x8xbf16>
    %c0_8 = arith.constant 0 : index
    %c0_9 = arith.constant 0 : index
    %22 = vector.load %arg3[%c0_8, %c0_9] : memref<8x256xbf16, #tpu.memory_space<vmem>>, vector<8x8xbf16>
    tpu.vector_store %arg3[%c0_8, %c0_9], %21 {strides = array<i32>} : memref<8x256xbf16, #tpu.memory_space<vmem>>, vector<8x8xbf16>,
    %23 = vector.extract_strided_slice %0 {offsets = [0, 8], sizes = [8, 8], strides = [1, 1]} : vector<8x32xbf16> to vector<8x8xbf16>
    %24 = vector.extract_strided_slice %1 {offsets = [0, 8], sizes = [8, 8], strides = [1, 1]} : vector<8x32xbf16> to vector<8x8xbf16>
    %cst_10 = arith.constant dense<0.000000e+00> : vector<8x8xf32>
    %25 = tpu.matmul %23, %24, %cst_10 {dimension_numbers = #tpu.dot_dimension_numbers<[1], [1], [0], [0], [0, 0, 1, 0], [], []>} : vector<8x8xbf16>, vector<8x8xbf16>, vector<8x8xf32> -> vector<8x8xf32>
    %cst_11 = arith.constant 0.353553385 : f32
    %26 = vector.broadcast %cst_11 : f32 to vector<8x8xf32>
    %27 = arith.mulf %25, %26 : vector<8x8xf32>
    %cst_12 = arith.constant dense<0xFF800000> : vector<8xf32>
    %28 = vector.multi_reduction <maximumf>, %27, %cst_12 [1] : vector<8x8xf32> to vector<8xf32>
    %29 = vector.shape_cast %28 : vector<8xf32> to vector<8x1xf32>
    %30 = vector.broadcast %29 : vector<8x1xf32> to vector<8x8xf32>
    %31 = arith.subf %27, %30 : vector<8x8xf32>
    %32 = math.exp %31 : vector<8x8xf32>
    %cst_13 = arith.constant dense<0.000000e+00> : vector<8xf32>
    %33 = vector.multi_reduction <add>, %32, %cst_13 [1] : vector<8x8xf32> to vector<8xf32>
    %34 = vector.shape_cast %33 : vector<8xf32> to vector<8x1xf32>
    %35 = tpu.reciprocal %34 {approx = true} : vector<8x1xf32> -> vector<8x1xf32>
    %36 = vector.broadcast %35 : vector<8x1xf32> to vector<8x8xf32>
    %37 = arith.mulf %32, %36 : vector<8x8xf32>
    %38 = arith.truncf %37 : vector<8x8xf32> to vector<8x8xbf16>
    %39 = vector.extract_strided_slice %2 {offsets = [0, 8], sizes = [8, 8], strides = [1, 1]} : vector<8x32xbf16> to vector<8x8xbf16>
    %cst_14 = arith.constant dense<0.000000e+00> : vector<8x8xf32>
    %40 = tpu.matmul %38, %39, %cst_14 {dimension_numbers = #tpu.dot_dimension_numbers<[1], [0], [0], [1], [0, 0, 1, 1], [], []>} : vector<8x8xbf16>, vector<8x8xbf16>, vector<8x8xf32> -> vector<8x8xf32>
    %41 = arith.truncf %40 : vector<8x8xf32> to vector<8x8xbf16>
    %c0_15 = arith.constant 0 : index
    %c8 = arith.constant 8 : index
    %42 = vector.load %arg3[%c0_15, %c8] : memref<8x256xbf16, #tpu.memory_space<vmem>>, vector<8x8xbf16>
    tpu.vector_store %arg3[%c0_15, %c8], %41 {strides = array<i32>} : memref<8x256xbf16, #tpu.memory_space<vmem>>, vector<8x8xbf16>,
    %43 = vector.extract_strided_slice %0 {offsets = [0, 16], sizes = [8, 8], strides = [1, 1]} : vector<8x32xbf16> to vector<8x8xbf16>
    %44 = vector.extract_strided_slice %1 {offsets = [0, 16], sizes = [8, 8], strides = [1, 1]} : vector<8x32xbf16> to vector<8x8xbf16>
    %cst_16 = arith.constant dense<0.000000e+00> : vector<8x8xf32>
    %45 = tpu.matmul %43, %44, %cst_16 {dimension_numbers = #tpu.dot_dimension_numbers<[1], [1], [0], [0], [0, 0, 1, 0], [], []>} : vector<8x8xbf16>, vector<8x8xbf16>, vector<8x8xf32> -> vector<8x8xf32>
    %cst_17 = arith.constant 0.353553385 : f32
    %46 = vector.broadcast %cst_17 : f32 to vector<8x8xf32>
    %47 = arith.mulf %45, %46 : vector<8x8xf32>
    %cst_18 = arith.constant dense<0xFF800000> : vector<8xf32>
    %48 = vector.multi_reduction <maximumf>, %47, %cst_18 [1] : vector<8x8xf32> to vector<8xf32>
    %49 = vector.shape_cast %48 : vector<8xf32> to vector<8x1xf32>
    %50 = vector.broadcast %49 : vector<8x1xf32> to vector<8x8xf32>
    %51 = arith.subf %47, %50 : vector<8x8xf32>
    %52 = math.exp %51 : vector<8x8xf32>
    %cst_19 = arith.constant dense<0.000000e+00> : vector<8xf32>
    %53 = vector.multi_reduction <add>, %52, %cst_19 [1] : vector<8x8xf32> to vector<8xf32>
    %54 = vector.shape_cast %53 : vector<8xf32> to vector<8x1xf32>
    %55 = tpu.reciprocal %54 {approx = true} : vector<8x1xf32> -> vector<8x1xf32>
    %56 = vector.broadcast %55 : vector<8x1xf32> to vector<8x8xf32>
    %57 = arith.mulf %52, %56 : vector<8x8xf32>
    %58 = arith.truncf %57 : vector<8x8xf32> to vector<8x8xbf16>
    %59 = vector.extract_strided_slice %2 {offsets = [0, 16], sizes = [8, 8], strides = [1, 1]} : vector<8x32xbf16> to vector<8x8xbf16>
    %cst_20 = arith.constant dense<0.000000e+00> : vector<8x8xf32>
    %60 = tpu.matmul %58, %59, %cst_20 {dimension_numbers = #tpu.dot_dimension_numbers<[1], [0], [0], [1], [0, 0, 1, 1], [], []>} : vector<8x8xbf16>, vector<8x8xbf16>, vector<8x8xf32> -> vector<8x8xf32>
    %61 = arith.truncf %60 : vector<8x8xf32> to vector<8x8xbf16>
    %c0_21 = arith.constant 0 : index
    %c16 = arith.constant 16 : index
    %62 = vector.load %arg3[%c0_21, %c16] : memref<8x256xbf16, #tpu.memory_space<vmem>>, vector<8x8xbf16>
    tpu.vector_store %arg3[%c0_21, %c16], %61 {strides = array<i32>} : memref<8x256xbf16, #tpu.memory_space<vmem>>, vector<8x8xbf16>,
    %63 = vector.extract_strided_slice %0 {offsets = [0, 24], sizes = [8, 8], strides = [1, 1]} : vector<8x32xbf16> to vector<8x8xbf16>
    %64 = vector.extract_strided_slice %1 {offsets = [0, 24], sizes = [8, 8], strides = [1, 1]} : vector<8x32xbf16> to vector<8x8xbf16>
    %cst_22 = arith.constant dense<0.000000e+00> : vector<8x8xf32>
    %65 = tpu.matmul %63, %64, %cst_22 {dimension_numbers = #tpu.dot_dimension_numbers<[1], [1], [0], [0], [0, 0, 1, 0], [], []>} : vector<8x8xbf16>, vector<8x8xbf16>, vector<8x8xf32> -> vector<8x8xf32>
    %cst_23 = arith.constant 0.353553385 : f32
    %66 = vector.broadcast %cst_23 : f32 to vector<8x8xf32>
    %67 = arith.mulf %65, %66 : vector<8x8xf32>
    %cst_24 = arith.constant dense<0xFF800000> : vector<8xf32>
    %68 = vector.multi_reduction <maximumf>, %67, %cst_24 [1] : vector<8x8xf32> to vector<8xf32>
    %69 = vector.shape_cast %68 : vector<8xf32> to vector<8x1xf32>
    %70 = vector.broadcast %69 : vector<8x1xf32> to vector<8x8xf32>
    %71 = arith.subf %67, %70 : vector<8x8xf32>
    %72 = math.exp %71 : vector<8x8xf32>
    %cst_25 = arith.constant dense<0.000000e+00> : vector<8xf32>
    %73 = vector.multi_reduction <add>, %72, %cst_25 [1] : vector<8x8xf32> to vector<8xf32>
    %74 = vector.shape_cast %73 : vector<8xf32> to vector<8x1xf32>
    %75 = tpu.reciprocal %74 {approx = true} : vector<8x1xf32> -> vector<8x1xf32>
    %76 = vector.broadcast %75 : vector<8x1xf32> to vector<8x8xf32>
    %77 = arith.mulf %72, %76 : vector<8x8xf32>
    %78 = arith.truncf %77 : vector<8x8xf32> to vector<8x8xbf16>
    %79 = vector.extract_strided_slice %2 {offsets = [0, 24], sizes = [8, 8], strides = [1, 1]} : vector<8x32xbf16> to vector<8x8xbf16>
    %cst_26 = arith.constant dense<0.000000e+00> : vector<8x8xf32>
    %80 = tpu.matmul %78, %79, %cst_26 {dimension_numbers = #tpu.dot_dimension_numbers<[1], [0], [0], [1], [0, 0, 1, 1], [], []>} : vector<8x8xbf16>, vector<8x8xbf16>, vector<8x8xf32> -> vector<8x8xf32>
    %81 = arith.truncf %80 : vector<8x8xf32> to vector<8x8xbf16>
    %c0_27 = arith.constant 0 : index
    %c24 = arith.constant 24 : index
    %82 = vector.load %arg3[%c0_27, %c24] : memref<8x256xbf16, #tpu.memory_space<vmem>>, vector<8x8xbf16>
    tpu.vector_store %arg3[%c0_27, %c24], %81 {strides = array<i32>} : memref<8x256xbf16, #tpu.memory_space<vmem>>, vector<8x8xbf16>,
    %cst_28 = arith.constant 0.000000e+00 : bf16
    %83 = vector.broadcast %cst_28 : bf16 to vector<8x96xbf16>
    %c0_29 = arith.constant 0 : index
    %c32 = arith.constant 32 : index
    %84 = vector.load %arg3[%c0_29, %c32] : memref<8x256xbf16, #tpu.memory_space<vmem>>, vector<8x96xbf16>
    tpu.vector_store %arg3[%c0_29, %c32], %83 {strides = array<i32>} : memref<8x256xbf16, #tpu.memory_space<vmem>>, vector<8x96xbf16>,
    %c0_30 = arith.constant 0 : index
    %c128_31 = arith.constant 128 : index
    %85 = vector.load %arg1[%c0_30, %c128_31] : memref<8x256xbf16, #tpu.memory_space<vmem>>, vector<8x32xbf16>
    %c0_32 = arith.constant 0 : index
    %c256 = arith.constant 256 : index
    %86 = vector.load %arg2[%c0_32, %c256] : memref<8x512xbf16, #tpu.memory_space<vmem>>, vector<8x32xbf16>
    %c0_33 = arith.constant 0 : index
    %c384 = arith.constant 384 : index
    %87 = vector.load %arg2[%c0_33, %c384] : memref<8x512xbf16, #tpu.memory_space<vmem>>, vector<8x32xbf16>
    %88 = vector.extract_strided_slice %85 {offsets = [0, 0], sizes = [8, 8], strides = [1, 1]} : vector<8x32xbf16> to vector<8x8xbf16>
    %89 = vector.extract_strided_slice %86 {offsets = [0, 0], sizes = [8, 8], strides = [1, 1]} : vector<8x32xbf16> to vector<8x8xbf16>
    %cst_34 = arith.constant dense<0.000000e+00> : vector<8x8xf32>
    %90 = tpu.matmul %88, %89, %cst_34 {dimension_numbers = #tpu.dot_dimension_numbers<[1], [1], [0], [0], [0, 0, 1, 0], [], []>} : vector<8x8xbf16>, vector<8x8xbf16>, vector<8x8xf32> -> vector<8x8xf32>
    %cst_35 = arith.constant 0.353553385 : f32
    %91 = vector.broadcast %cst_35 : f32 to vector<8x8xf32>
    %92 = arith.mulf %90, %91 : vector<8x8xf32>
    %cst_36 = arith.constant dense<0xFF800000> : vector<8xf32>
    %93 = vector.multi_reduction <maximumf>, %92, %cst_36 [1] : vector<8x8xf32> to vector<8xf32>
    %94 = vector.shape_cast %93 : vector<8xf32> to vector<8x1xf32>
    %95 = vector.broadcast %94 : vector<8x1xf32> to vector<8x8xf32>
    %96 = arith.subf %92, %95 : vector<8x8xf32>
    %97 = math.exp %96 : vector<8x8xf32>
    %cst_37 = arith.constant dense<0.000000e+00> : vector<8xf32>
    %98 = vector.multi_reduction <add>, %97, %cst_37 [1] : vector<8x8xf32> to vector<8xf32>
    %99 = vector.shape_cast %98 : vector<8xf32> to vector<8x1xf32>
    %100 = tpu.reciprocal %99 {approx = true} : vector<8x1xf32> -> vector<8x1xf32>
    %101 = vector.broadcast %100 : vector<8x1xf32> to vector<8x8xf32>
    %102 = arith.mulf %97, %101 : vector<8x8xf32>
    %103 = arith.truncf %102 : vector<8x8xf32> to vector<8x8xbf16>
    %104 = vector.extract_strided_slice %87 {offsets = [0, 0], sizes = [8, 8], strides = [1, 1]} : vector<8x32xbf16> to vector<8x8xbf16>
    %cst_38 = arith.constant dense<0.000000e+00> : vector<8x8xf32>
    %105 = tpu.matmul %103, %104, %cst_38 {dimension_numbers = #tpu.dot_dimension_numbers<[1], [0], [0], [1], [0, 0, 1, 1], [], []>} : vector<8x8xbf16>, vector<8x8xbf16>, vector<8x8xf32> -> vector<8x8xf32>
    %106 = arith.truncf %105 : vector<8x8xf32> to vector<8x8xbf16>
    %c0_39 = arith.constant 0 : index
    %c128_40 = arith.constant 128 : index
    %107 = vector.load %arg3[%c0_39, %c128_40] : memref<8x256xbf16, #tpu.memory_space<vmem>>, vector<8x8xbf16>
    tpu.vector_store %arg3[%c0_39, %c128_40], %106 {strides = array<i32>} : memref<8x256xbf16, #tpu.memory_space<vmem>>, vector<8x8xbf16>,
    %108 = vector.extract_strided_slice %85 {offsets = [0, 8], sizes = [8, 8], strides = [1, 1]} : vector<8x32xbf16> to vector<8x8xbf16>
    %109 = vector.extract_strided_slice %86 {offsets = [0, 8], sizes = [8, 8], strides = [1, 1]} : vector<8x32xbf16> to vector<8x8xbf16>
    %cst_41 = arith.constant dense<0.000000e+00> : vector<8x8xf32>
    %110 = tpu.matmul %108, %109, %cst_41 {dimension_numbers = #tpu.dot_dimension_numbers<[1], [1], [0], [0], [0, 0, 1, 0], [], []>} : vector<8x8xbf16>, vector<8x8xbf16>, vector<8x8xf32> -> vector<8x8xf32>
    %cst_42 = arith.constant 0.353553385 : f32
    %111 = vector.broadcast %cst_42 : f32 to vector<8x8xf32>
    %112 = arith.mulf %110, %111 : vector<8x8xf32>
    %cst_43 = arith.constant dense<0xFF800000> : vector<8xf32>
    %113 = vector.multi_reduction <maximumf>, %112, %cst_43 [1] : vector<8x8xf32> to vector<8xf32>
    %114 = vector.shape_cast %113 : vector<8xf32> to vector<8x1xf32>
    %115 = vector.broadcast %114 : vector<8x1xf32> to vector<8x8xf32>
    %116 = arith.subf %112, %115 : vector<8x8xf32>
    %117 = math.exp %116 : vector<8x8xf32>
    %cst_44 = arith.constant dense<0.000000e+00> : vector<8xf32>
    %118 = vector.multi_reduction <add>, %117, %cst_44 [1] : vector<8x8xf32> to vector<8xf32>
    %119 = vector.shape_cast %118 : vector<8xf32> to vector<8x1xf32>
    %120 = tpu.reciprocal %119 {approx = true} : vector<8x1xf32> -> vector<8x1xf32>
    %121 = vector.broadcast %120 : vector<8x1xf32> to vector<8x8xf32>
    %122 = arith.mulf %117, %121 : vector<8x8xf32>
    %123 = arith.truncf %122 : vector<8x8xf32> to vector<8x8xbf16>
    %124 = vector.extract_strided_slice %87 {offsets = [0, 8], sizes = [8, 8], strides = [1, 1]} : vector<8x32xbf16> to vector<8x8xbf16>
    %cst_45 = arith.constant dense<0.000000e+00> : vector<8x8xf32>
    %125 = tpu.matmul %123, %124, %cst_45 {dimension_numbers = #tpu.dot_dimension_numbers<[1], [0], [0], [1], [0, 0, 1, 1], [], []>} : vector<8x8xbf16>, vector<8x8xbf16>, vector<8x8xf32> -> vector<8x8xf32>
    %126 = arith.truncf %125 : vector<8x8xf32> to vector<8x8xbf16>
    %c0_46 = arith.constant 0 : index
    %c136 = arith.constant 136 : index
    %127 = vector.load %arg3[%c0_46, %c136] : memref<8x256xbf16, #tpu.memory_space<vmem>>, vector<8x8xbf16>
    tpu.vector_store %arg3[%c0_46, %c136], %126 {strides = array<i32>} : memref<8x256xbf16, #tpu.memory_space<vmem>>, vector<8x8xbf16>,
    %128 = vector.extract_strided_slice %85 {offsets = [0, 16], sizes = [8, 8], strides = [1, 1]} : vector<8x32xbf16> to vector<8x8xbf16>
    %129 = vector.extract_strided_slice %86 {offsets = [0, 16], sizes = [8, 8], strides = [1, 1]} : vector<8x32xbf16> to vector<8x8xbf16>
    %cst_47 = arith.constant dense<0.000000e+00> : vector<8x8xf32>
    %130 = tpu.matmul %128, %129, %cst_47 {dimension_numbers = #tpu.dot_dimension_numbers<[1], [1], [0], [0], [0, 0, 1, 0], [], []>} : vector<8x8xbf16>, vector<8x8xbf16>, vector<8x8xf32> -> vector<8x8xf32>
    %cst_48 = arith.constant 0.353553385 : f32
    %131 = vector.broadcast %cst_48 : f32 to vector<8x8xf32>
    %132 = arith.mulf %130, %131 : vector<8x8xf32>
    %cst_49 = arith.constant dense<0xFF800000> : vector<8xf32>
    %133 = vector.multi_reduction <maximumf>, %132, %cst_49 [1] : vector<8x8xf32> to vector<8xf32>
    %134 = vector.shape_cast %133 : vector<8xf32> to vector<8x1xf32>
    %135 = vector.broadcast %134 : vector<8x1xf32> to vector<8x8xf32>
    %136 = arith.subf %132, %135 : vector<8x8xf32>
    %137 = math.exp %136 : vector<8x8xf32>
    %cst_50 = arith.constant dense<0.000000e+00> : vector<8xf32>
    %138 = vector.multi_reduction <add>, %137, %cst_50 [1] : vector<8x8xf32> to vector<8xf32>
    %139 = vector.shape_cast %138 : vector<8xf32> to vector<8x1xf32>
    %140 = tpu.reciprocal %139 {approx = true} : vector<8x1xf32> -> vector<8x1xf32>
    %141 = vector.broadcast %140 : vector<8x1xf32> to vector<8x8xf32>
    %142 = arith.mulf %137, %141 : vector<8x8xf32>
    %143 = arith.truncf %142 : vector<8x8xf32> to vector<8x8xbf16>
    %144 = vector.extract_strided_slice %87 {offsets = [0, 16], sizes = [8, 8], strides = [1, 1]} : vector<8x32xbf16> to vector<8x8xbf16>
    %cst_51 = arith.constant dense<0.000000e+00> : vector<8x8xf32>
    %145 = tpu.matmul %143, %144, %cst_51 {dimension_numbers = #tpu.dot_dimension_numbers<[1], [0], [0], [1], [0, 0, 1, 1], [], []>} : vector<8x8xbf16>, vector<8x8xbf16>, vector<8x8xf32> -> vector<8x8xf32>
    %146 = arith.truncf %145 : vector<8x8xf32> to vector<8x8xbf16>
    %c0_52 = arith.constant 0 : index
    %c144 = arith.constant 144 : index
    %147 = vector.load %arg3[%c0_52, %c144] : memref<8x256xbf16, #tpu.memory_space<vmem>>, vector<8x8xbf16>
    tpu.vector_store %arg3[%c0_52, %c144], %146 {strides = array<i32>} : memref<8x256xbf16, #tpu.memory_space<vmem>>, vector<8x8xbf16>,
    %148 = vector.extract_strided_slice %85 {offsets = [0, 24], sizes = [8, 8], strides = [1, 1]} : vector<8x32xbf16> to vector<8x8xbf16>
    %149 = vector.extract_strided_slice %86 {offsets = [0, 24], sizes = [8, 8], strides = [1, 1]} : vector<8x32xbf16> to vector<8x8xbf16>
    %cst_53 = arith.constant dense<0.000000e+00> : vector<8x8xf32>
    %150 = tpu.matmul %148, %149, %cst_53 {dimension_numbers = #tpu.dot_dimension_numbers<[1], [1], [0], [0], [0, 0, 1, 0], [], []>} : vector<8x8xbf16>, vector<8x8xbf16>, vector<8x8xf32> -> vector<8x8xf32>
    %cst_54 = arith.constant 0.353553385 : f32
    %151 = vector.broadcast %cst_54 : f32 to vector<8x8xf32>
    %152 = arith.mulf %150, %151 : vector<8x8xf32>
    %cst_55 = arith.constant dense<0xFF800000> : vector<8xf32>
    %153 = vector.multi_reduction <maximumf>, %152, %cst_55 [1] : vector<8x8xf32> to vector<8xf32>
    %154 = vector.shape_cast %153 : vector<8xf32> to vector<8x1xf32>
    %155 = vector.broadcast %154 : vector<8x1xf32> to vector<8x8xf32>
    %156 = arith.subf %152, %155 : vector<8x8xf32>
    %157 = math.exp %156 : vector<8x8xf32>
    %cst_56 = arith.constant dense<0.000000e+00> : vector<8xf32>
    %158 = vector.multi_reduction <add>, %157, %cst_56 [1] : vector<8x8xf32> to vector<8xf32>
    %159 = vector.shape_cast %158 : vector<8xf32> to vector<8x1xf32>
    %160 = tpu.reciprocal %159 {approx = true} : vector<8x1xf32> -> vector<8x1xf32>
    %161 = vector.broadcast %160 : vector<8x1xf32> to vector<8x8xf32>
    %162 = arith.mulf %157, %161 : vector<8x8xf32>
    %163 = arith.truncf %162 : vector<8x8xf32> to vector<8x8xbf16>
    %164 = vector.extract_strided_slice %87 {offsets = [0, 24], sizes = [8, 8], strides = [1, 1]} : vector<8x32xbf16> to vector<8x8xbf16>
    %cst_57 = arith.constant dense<0.000000e+00> : vector<8x8xf32>
    %165 = tpu.matmul %163, %164, %cst_57 {dimension_numbers = #tpu.dot_dimension_numbers<[1], [0], [0], [1], [0, 0, 1, 1], [], []>} : vector<8x8xbf16>, vector<8x8xbf16>, vector<8x8xf32> -> vector<8x8xf32>
    %166 = arith.truncf %165 : vector<8x8xf32> to vector<8x8xbf16>
    %c0_58 = arith.constant 0 : index
    %c152 = arith.constant 152 : index
    %167 = vector.load %arg3[%c0_58, %c152] : memref<8x256xbf16, #tpu.memory_space<vmem>>, vector<8x8xbf16>
    tpu.vector_store %arg3[%c0_58, %c152], %166 {strides = array<i32>} : memref<8x256xbf16, #tpu.memory_space<vmem>>, vector<8x8xbf16>,
    %cst_59 = arith.constant 0.000000e+00 : bf16
    %168 = vector.broadcast %cst_59 : bf16 to vector<8x96xbf16>
    %c0_60 = arith.constant 0 : index
    %c160 = arith.constant 160 : index
    %169 = vector.load %arg3[%c0_60, %c160] : memref<8x256xbf16, #tpu.memory_space<vmem>>, vector<8x96xbf16>
    tpu.vector_store %arg3[%c0_60, %c160], %168 {strides = array<i32>} : memref<8x256xbf16, #tpu.memory_space<vmem>>, vector<8x96xbf16>,
    return
  }
  func.func @transform_0(%arg0: i32) -> (i32, i32) {
    %c0_i32 = arith.constant 0 : i32
    %c0_i32_0 = arith.constant 0 : i32
    return %c0_i32, %arg0 : i32, i32
  }
  func.func @transform_1(%arg0: i32) -> (i32, i32) {
    %c0_i32 = arith.constant 0 : i32
    %c0_i32_0 = arith.constant 0 : i32
    return %c0_i32, %arg0 : i32, i32
  }
  func.func @transform_2(%arg0: i32) -> (i32, i32) {
    %c0_i32 = arith.constant 0 : i32
    %c0_i32_0 = arith.constant 0 : i32
    return %c0_i32, %arg0 : i32, i32
  }
}

module attributes {stable_mosaic.version = 11 : i64} {
  func.func @_linear_kernel(%arg0: i32, %arg1: i32, %arg2: i32, %arg3: memref<16x128xbf16, #tpu.memory_space<vmem>>, %arg4: memref<128x128xbf16, #tpu.memory_space<vmem>>, %arg5: memref<1x128xf32, #tpu.memory_space<vmem>>, %arg6: memref<16x128xf32, #tpu.memory_space<vmem>>, %arg7: memref<16x128xf32, #tpu.memory_space<vmem>>) attributes {dimension_semantics = [#tpu.dimension_semantics<parallel>, #tpu.dimension_semantics<parallel>, #tpu.dimension_semantics<arbitrary>], iteration_bounds = array<i64: 1, 1, 1>, scalar_prefetch = 0 : i64, scratch_operands = 1 : i64, tpu.core_type = #tpu.core_type<tc>, window_params = [{transform_indices = @transform_0, window_bounds = array<i64: 16, 128>}, {transform_indices = @transform_1, window_bounds = array<i64: 128, 128>}, {transform_indices = @transform_2, window_bounds = array<i64: 1, 128>}, {transform_indices = @transform_3, window_bounds = array<i64: 16, 128>}]} {
    %c0_i32 = arith.constant 0 : i32
    %0 = arith.cmpi eq, %arg2, %c0_i32 : i32
    %1 = arith.extui %0 : i1 to i32
    %c0_i32_0 = arith.constant 0 : i32
    %2 = arith.cmpi ne, %1, %c0_i32_0 : i32
    scf.if %2 {
      %cst_10 = arith.constant 0.000000e+00 : f32
      %12 = vector.broadcast %cst_10 : f32 to vector<16x128xf32>
      %c0_11 = arith.constant 0 : index
      %c0_12 = arith.constant 0 : index
      %13 = vector.load %arg7[%c0_11, %c0_12] : memref<16x128xf32, #tpu.memory_space<vmem>>, vector<16x128xf32>
      tpu.vector_store %arg7[%c0_11, %c0_12], %12 {strides = array<i32>} : memref<16x128xf32, #tpu.memory_space<vmem>>, vector<16x128xf32>,
    } else {
    }
    %c0 = arith.constant 0 : index
    %c0_1 = arith.constant 0 : index
    %3 = vector.load %arg7[%c0, %c0_1] : memref<16x128xf32, #tpu.memory_space<vmem>>, vector<16x128xf32>
    %c0_2 = arith.constant 0 : index
    %c0_3 = arith.constant 0 : index
    %4 = vector.load %arg3[%c0_2, %c0_3] : memref<16x128xbf16, #tpu.memory_space<vmem>>, vector<16x128xbf16>
    %c0_4 = arith.constant 0 : index
    %c0_5 = arith.constant 0 : index
    %5 = vector.load %arg4[%c0_4, %c0_5] : memref<128x128xbf16, #tpu.memory_space<vmem>>, vector<128x128xbf16>
    %cst = arith.constant dense<0.000000e+00> : vector<16x128xf32>
    %6 = tpu.matmul %4, %5, %cst {dimension_numbers = #tpu.dot_dimension_numbers<[1], [0], [0], [1], [0, 0, 1, 1], [], []>} : vector<16x128xbf16>, vector<128x128xbf16>, vector<16x128xf32> -> vector<16x128xf32>
    %7 = arith.addf %3, %6 : vector<16x128xf32>
    %c0_6 = arith.constant 0 : index
    %c0_7 = arith.constant 0 : index
    %8 = vector.load %arg7[%c0_6, %c0_7] : memref<16x128xf32, #tpu.memory_space<vmem>>, vector<16x128xf32>
    tpu.vector_store %arg7[%c0_6, %c0_7], %7 {strides = array<i32>} : memref<16x128xf32, #tpu.memory_space<vmem>>, vector<16x128xf32>,
    %c0_i32_8 = arith.constant 0 : i32
    %9 = arith.cmpi eq, %arg2, %c0_i32_8 : i32
    %10 = arith.extui %9 : i1 to i32
    %c0_i32_9 = arith.constant 0 : i32
    %11 = arith.cmpi ne, %10, %c0_i32_9 : i32
    scf.if %11 {
      %c0_10 = arith.constant 0 : index
      %c0_11 = arith.constant 0 : index
      %12 = vector.load %arg7[%c0_10, %c0_11] : memref<16x128xf32, #tpu.memory_space<vmem>>, vector<16x128xf32>
      %c0_12 = arith.constant 0 : index
      %c0_13 = arith.constant 0 : index
      %13 = vector.load %arg5[%c0_12, %c0_13] : memref<1x128xf32, #tpu.memory_space<vmem>>, vector<1x128xf32>
      %14 = vector.broadcast %13 : vector<1x128xf32> to vector<16x128xf32>
      %15 = arith.addf %12, %14 : vector<16x128xf32>
      %c0_14 = arith.constant 0 : index
      %c0_15 = arith.constant 0 : index
      %16 = vector.load %arg6[%c0_14, %c0_15] : memref<16x128xf32, #tpu.memory_space<vmem>>, vector<16x128xf32>
      tpu.vector_store %arg6[%c0_14, %c0_15], %15 {strides = array<i32>} : memref<16x128xf32, #tpu.memory_space<vmem>>, vector<16x128xf32>,
    } else {
    }
    return
  }
  func.func @transform_0(%arg0: i32, %arg1: i32, %arg2: i32) -> (i32, i32) {
    %c0_i32 = arith.constant 0 : i32
    return %arg0, %arg2 : i32, i32
  }
  func.func @transform_1(%arg0: i32, %arg1: i32, %arg2: i32) -> (i32, i32) {
    %c0_i32 = arith.constant 0 : i32
    return %arg2, %arg1 : i32, i32
  }
  func.func @transform_2(%arg0: i32, %arg1: i32, %arg2: i32) -> (i32, i32) {
    %c0_i32 = arith.constant 0 : i32
    %c0_i32_0 = arith.constant 0 : i32
    return %c0_i32, %arg1 : i32, i32
  }
  func.func @transform_3(%arg0: i32, %arg1: i32, %arg2: i32) -> (i32, i32) {
    %c0_i32 = arith.constant 0 : i32
    return %arg0, %arg1 : i32, i32
  }
}

module attributes {stable_mosaic.version = 11 : i64} {
  func.func @_ce_kernel(%arg0: i32, %arg1: memref<16x128xf32, #tpu.memory_space<vmem>>, %arg2: memref<16x1xi32, #tpu.memory_space<vmem>>, %arg3: memref<1x1xf32, #tpu.memory_space<vmem>>, %arg4: memref<1x1xf32, #tpu.memory_space<vmem>>, %arg5: memref<16x1xi32, #tpu.memory_space<vmem>>) attributes {dimension_semantics = [#tpu.dimension_semantics<arbitrary>], iteration_bounds = array<i64: 1>, scalar_prefetch = 0 : i64, scratch_operands = 0 : i64, tpu.core_type = #tpu.core_type<tc>, window_params = [{transform_indices = @transform_0, window_bounds = array<i64: 16, 128>}, {transform_indices = @transform_1, window_bounds = array<i64: 16, 1>}, {pipeline_mode = #tpu.pipeline_mode<synchronous>, transform_indices = @transform_2, window_bounds = array<i64: 1, 1>}, {pipeline_mode = #tpu.pipeline_mode<synchronous>, transform_indices = @transform_3, window_bounds = array<i64: 1, 1>}, {transform_indices = @transform_4, window_bounds = array<i64: 16, 1>}]} {
    %c0 = arith.constant 0 : index
    %c0_0 = arith.constant 0 : index
    %0 = vector.load %arg1[%c0, %c0_0] : memref<16x128xf32, #tpu.memory_space<vmem>>, vector<16x128xf32>
    %c0_1 = arith.constant 0 : index
    %c0_2 = arith.constant 0 : index
    %1 = vector.load %arg2[%c0_1, %c0_2] : memref<16x1xi32, #tpu.memory_space<vmem>>, vector<16x1xi32>
    %2 = tpu.iota {dimensions = array<i32: 1>} : vector<16x128xi32>
    %c60_i32 = arith.constant 60 : i32
    %3 = vector.broadcast %c60_i32 : i32 to vector<16x128xi32>
    %4 = arith.cmpi slt, %2, %3 : vector<16x128xi32>
    %cst = arith.constant -1.000000e+09 : f32
    %5 = vector.broadcast %cst : f32 to vector<16x128xf32>
    %6 = arith.select %4, %0, %5 : vector<16x128xi1>, vector<16x128xf32>
    %cst_3 = arith.constant dense<0xFF800000> : vector<16xf32>
    %7 = vector.multi_reduction <maximumf>, %6, %cst_3 [1] : vector<16x128xf32> to vector<16xf32>
    %8 = vector.shape_cast %7 : vector<16xf32> to vector<16x1xf32>
    %9 = vector.broadcast %8 : vector<16x1xf32> to vector<16x128xf32>
    %10 = arith.subf %6, %9 : vector<16x128xf32>
    %11 = math.exp %10 : vector<16x128xf32>
    %cst_4 = arith.constant dense<0.000000e+00> : vector<16xf32>
    %12 = vector.multi_reduction <add>, %11, %cst_4 [1] : vector<16x128xf32> to vector<16xf32>
    %13 = vector.shape_cast %12 : vector<16xf32> to vector<16x1xf32>
    %14 = math.log %13 : vector<16x1xf32>
    %15 = vector.broadcast %14 : vector<16x1xf32> to vector<16x128xf32>
    %16 = arith.subf %10, %15 : vector<16x128xf32>
    %17 = vector.broadcast %1 : vector<16x1xi32> to vector<16x128xi32>
    %18 = arith.cmpi eq, %2, %17 : vector<16x128xi32>
    %19 = arith.extui %18 : vector<16x128xi1> to vector<16x128xi32>
    %20 = arith.sitofp %19 : vector<16x128xi32> to vector<16x128xf32>
    %21 = arith.mulf %20, %16 : vector<16x128xf32>
    %cst_5 = arith.constant dense<0.000000e+00> : vector<16xf32>
    %22 = vector.multi_reduction <add>, %21, %cst_5 [1] : vector<16x128xf32> to vector<16xf32>
    %23 = vector.shape_cast %22 : vector<16xf32> to vector<16x1xf32>
    %cst_6 = arith.constant 0.000000e+00 : f32
    %24 = vector.broadcast %cst_6 : f32 to vector<16x1xf32>
    %25 = arith.subf %24, %23 : vector<16x1xf32>
    %cst_7 = arith.constant 0.000000e+00 : f32
    %26 = vector.broadcast %cst_7 : f32 to vector<16x128xf32>
    %27 = arith.select %4, %16, %26 : vector<16x128xi1>, vector<16x128xf32>
    %cst_8 = arith.constant dense<0.000000e+00> : vector<16xf32>
    %28 = vector.multi_reduction <add>, %27, %cst_8 [1] : vector<16x128xf32> to vector<16xf32>
    %29 = vector.shape_cast %28 : vector<16xf32> to vector<16x1xf32>
    %cst_9 = arith.constant 0.000000e+00 : f32
    %30 = vector.broadcast %cst_9 : f32 to vector<16x1xf32>
    %31 = arith.subf %30, %29 : vector<16x1xf32>
    %cst_10 = arith.constant 6.000000e+01 : f32
    %32 = vector.broadcast %cst_10 : f32 to vector<16x1xf32>
    %33 = arith.divf %31, %32 : vector<16x1xf32>
    %cst_11 = arith.constant 0.899999976 : f32
    %34 = vector.broadcast %cst_11 : f32 to vector<16x1xf32>
    %35 = arith.mulf %34, %25 : vector<16x1xf32>
    %cst_12 = arith.constant 1.000000e-01 : f32
    %36 = vector.broadcast %cst_12 : f32 to vector<16x1xf32>
    %37 = arith.mulf %36, %33 : vector<16x1xf32>
    %38 = arith.addf %35, %37 : vector<16x1xf32>
    %c1_i32 = arith.constant 1 : i32
    %39 = vector.broadcast %c1_i32 : i32 to vector<16x1xi32>
    %40 = arith.cmpi ne, %1, %39 : vector<16x1xi32>
    %41 = arith.extui %40 : vector<16x1xi1> to vector<16x1xi32>
    %42 = arith.sitofp %41 : vector<16x1xi32> to vector<16x1xf32>
    %c0_i32 = arith.constant 0 : i32
    %43 = arith.cmpi eq, %arg0, %c0_i32 : i32
    %44 = arith.extui %43 : i1 to i32
    %c0_i32_13 = arith.constant 0 : i32
    %45 = arith.cmpi ne, %44, %c0_i32_13 : i32
    scf.if %45 {
      %cst_27 = arith.constant 0.000000e+00 : f32
      %70 = vector.broadcast %cst_27 : f32 to vector<1x1xf32>
      %c0_28 = arith.constant 0 : index
      %c0_29 = arith.constant 0 : index
      %71 = vector.load %arg3[%c0_28, %c0_29] : memref<1x1xf32, #tpu.memory_space<vmem>>, vector<1x1xf32>
      tpu.vector_store %arg3[%c0_28, %c0_29], %70 {strides = array<i32>} : memref<1x1xf32, #tpu.memory_space<vmem>>, vector<1x1xf32>,
      %cst_30 = arith.constant 0.000000e+00 : f32
      %72 = vector.broadcast %cst_30 : f32 to vector<1x1xf32>
      %c0_31 = arith.constant 0 : index
      %c0_32 = arith.constant 0 : index
      %73 = vector.load %arg4[%c0_31, %c0_32] : memref<1x1xf32, #tpu.memory_space<vmem>>, vector<1x1xf32>
      tpu.vector_store %arg4[%c0_31, %c0_32], %72 {strides = array<i32>} : memref<1x1xf32, #tpu.memory_space<vmem>>, vector<1x1xf32>,
    } else {
    }
    %c0_14 = arith.constant 0 : index
    %c0_15 = arith.constant 0 : index
    %46 = vector.load %arg3[%c0_14, %c0_15] : memref<1x1xf32, #tpu.memory_space<vmem>>, vector<1x1xf32>
    %47 = arith.mulf %38, %42 : vector<16x1xf32>
    %48 = vector.shape_cast %47 : vector<16x1xf32> to vector<1x16x1xf32>
    %cst_16 = arith.constant dense<0.000000e+00> : vector<1xf32>
    %49 = vector.multi_reduction <add>, %48, %cst_16 [1, 2] : vector<1x16x1xf32> to vector<1xf32>
    %50 = vector.shape_cast %49 : vector<1xf32> to vector<1x1x1xf32>
    %51 = vector.extract %50[0, 0, 0] : f32 from vector<1x1x1xf32>
    %52 = vector.broadcast %51 : f32 to vector<1x1xf32>
    %53 = arith.addf %46, %52 : vector<1x1xf32>
    %c0_17 = arith.constant 0 : index
    %c0_18 = arith.constant 0 : index
    %54 = vector.load %arg3[%c0_17, %c0_18] : memref<1x1xf32, #tpu.memory_space<vmem>>, vector<1x1xf32>
    tpu.vector_store %arg3[%c0_17, %c0_18], %53 {strides = array<i32>} : memref<1x1xf32, #tpu.memory_space<vmem>>, vector<1x1xf32>,
    %c0_19 = arith.constant 0 : index
    %c0_20 = arith.constant 0 : index
    %55 = vector.load %arg4[%c0_19, %c0_20] : memref<1x1xf32, #tpu.memory_space<vmem>>, vector<1x1xf32>
    %56 = vector.shape_cast %42 : vector<16x1xf32> to vector<1x16x1xf32>
    %cst_21 = arith.constant dense<0.000000e+00> : vector<1xf32>
    %57 = vector.multi_reduction <add>, %56, %cst_21 [1, 2] : vector<1x16x1xf32> to vector<1xf32>
    %58 = vector.shape_cast %57 : vector<1xf32> to vector<1x1x1xf32>
    %59 = vector.extract %58[0, 0, 0] : f32 from vector<1x1x1xf32>
    %60 = vector.broadcast %59 : f32 to vector<1x1xf32>
    %61 = arith.addf %55, %60 : vector<1x1xf32>
    %c0_22 = arith.constant 0 : index
    %c0_23 = arith.constant 0 : index
    %62 = vector.load %arg4[%c0_22, %c0_23] : memref<1x1xf32, #tpu.memory_space<vmem>>, vector<1x1xf32>
    tpu.vector_store %arg4[%c0_22, %c0_23], %61 {strides = array<i32>} : memref<1x1xf32, #tpu.memory_space<vmem>>, vector<1x1xf32>,
    %63 = vector.broadcast %8 : vector<16x1xf32> to vector<16x128xf32>
    %64 = arith.cmpf oeq, %6, %63 : vector<16x128xf32>
    %c128_i32 = arith.constant 128 : i32
    %65 = vector.broadcast %c128_i32 : i32 to vector<16x128xi32>
    %66 = arith.select %64, %2, %65 : vector<16x128xi1>, vector<16x128xi32>
    %cst_24 = arith.constant dense<2147483647> : vector<16xi32>
    %67 = vector.multi_reduction <minsi>, %66, %cst_24 [1] : vector<16x128xi32> to vector<16xi32>
    %68 = vector.shape_cast %67 : vector<16xi32> to vector<16x1xi32>
    %c0_25 = arith.constant 0 : index
    %c0_26 = arith.constant 0 : index
    %69 = vector.load %arg5[%c0_25, %c0_26] : memref<16x1xi32, #tpu.memory_space<vmem>>, vector<16x1xi32>
    tpu.vector_store %arg5[%c0_25, %c0_26], %68 {strides = array<i32>} : memref<16x1xi32, #tpu.memory_space<vmem>>, vector<16x1xi32>,
    return
  }
  func.func @transform_0(%arg0: i32) -> (i32, i32) {
    %c0_i32 = arith.constant 0 : i32
    %c0_i32_0 = arith.constant 0 : i32
    return %arg0, %c0_i32 : i32, i32
  }
  func.func @transform_1(%arg0: i32) -> (i32, i32) {
    %c0_i32 = arith.constant 0 : i32
    %c0_i32_0 = arith.constant 0 : i32
    return %arg0, %c0_i32 : i32, i32
  }
  func.func @transform_2(%arg0: i32) -> (i32, i32) {
    %c0_i32 = arith.constant 0 : i32
    %c0_i32_0 = arith.constant 0 : i32
    %c0_i32_1 = arith.constant 0 : i32
    return %c0_i32, %c0_i32_0 : i32, i32
  }
  func.func @transform_3(%arg0: i32) -> (i32, i32) {
    %c0_i32 = arith.constant 0 : i32
    %c0_i32_0 = arith.constant 0 : i32
    %c0_i32_1 = arith.constant 0 : i32
    return %c0_i32, %c0_i32_0 : i32, i32
  }
  func.func @transform_4(%arg0: i32) -> (i32, i32) {
    %c0_i32 = arith.constant 0 : i32
    %c0_i32_0 = arith.constant 0 : i32
    return %arg0, %c0_i32 : i32, i32
  }
}

</mosaic_0001>

<llo_original>
// kernel: _lambda_.35
$region0: #{_lambda_.35}
  #allocation0 [shape = 'u32[]', space=smem, size = 0x4, offset = 0x4, fixed_abs, tag = 'smem constant byte address 0x4 - core index']
  #allocation1 [shape = 'u32[144,128]{1,0:T(1,128)}', space=vmem, size = 0x12000, scoped, tag = 'internal scratch']
  #allocation2 [shape = 'f32[16,128]{1,0:T(8,128)}', space=vmem, size = 0x2000, scoped, tag = 'scratch operand']
  %s0 = inlined_call_operand.vmem [shape: bf16[16,128], index: 0, kind: input, shape index: {}]
  %s1 = inlined_call_operand.vmem [shape: bf16[128,128], index: 1, kind: input, shape index: {}]
  %s2 = inlined_call_operand.vmem [shape: f32[1,128], index: 2, kind: input, shape index: {}]
  %s3 = inlined_call_operand.vmem [shape: bf16[16,128], index: 3, kind: output, shape index: {}]
  %s4 = sld [smem:[#allocation0]]
  $region30: #{_lambda_.35} parent=0
    _
  %s6 = ssub.s32 1, %s4
  %s7 = scalar_select 0, %s6, %s4
  // Predicated region
  $region2: #{_lambda_.35} parent=0 // pred_check
    _
  $region3: #{_lambda_.35} parent=0 // pred_check_branch
    %9 = sbr.rel (0) target = $region5
  $region4: #{_lambda_.35} parent=0 // pred_region
    _
  $region5: #{_lambda_.35} parent=0 // pred_fallthru
    _
  // Predicated region
  $region6: #{_lambda_.35} parent=0 // pred_check
    _
  $region7: #{_lambda_.35} parent=0 // pred_check_branch
    %11 = sbr.rel (0) target = $region9
  $region8: #{_lambda_.35} parent=0 // pred_region
    _
  $region9: #{_lambda_.35} parent=0 // pred_fallthru
    _
  // Predicated region
  $region10: #{_lambda_.35} parent=0 // pred_check
    _
  $region11: #{_lambda_.35} parent=0 // pred_check_branch
    %13 = sbr.rel (0) target = $region13
  $region12: #{_lambda_.35} parent=0 // pred_region
    _
  $region13: #{_lambda_.35} parent=0 // pred_fallthru
    _
  %p15 = scmp.eq.s32.totalorder 0, 0
  // Predicated region
  $region14: #{_lambda_.35} parent=0 // pred_check
    %p16 = pneg %p15
  $region15: #{_lambda_.35} parent=0 // pred_check_branch
    %18 = sbr.rel (%p16) target = $region17
  $region16: #{_lambda_.35} parent=0 // pred_region
    %19 = vst [vmem:[#allocation2] sm:$0xff] 0.0
    %20 = vst [vmem:[#allocation2 + $0x8] sm:$0xff] 0.0
  $region17: #{_lambda_.35} parent=0 // pred_fallthru
    _
  %v21 = vld [vmem:[#allocation2] sm:$0xff]
  %v22 = vld [vmem:[#allocation2 + $0x8] sm:$0xff]
  %v23 = vld [vmem:[%s0] sm:$0xf]
  %v24 = vld [vmem:[%s0 + $0x4] sm:$0xf]
  %v25 = vld [vmem:[%s1] sm:$0xf]
  %v26 = vld [vmem:[%s1 + $0x4] sm:$0xf]
  %v27 = vld [vmem:[%s1 + $0x8] sm:$0xf]
  %v28 = vld [vmem:[%s1 + $0xc] sm:$0xf]
  %v29 = vld [vmem:[%s1 + $0x10] sm:$0xf]
  %v30 = vld [vmem:[%s1 + $0x14] sm:$0xf]
  %v31 = vld [vmem:[%s1 + $0x18] sm:$0xf]
  %v32 = vld [vmem:[%s1 + $0x1c] sm:$0xf]
  %v33 = vld [vmem:[%s1 + $0x20] sm:$0xf]
  %v34 = vld [vmem:[%s1 + $0x24] sm:$0xf]
  %v35 = vld [vmem:[%s1 + $0x28] sm:$0xf]
  %v36 = vld [vmem:[%s1 + $0x2c] sm:$0xf]
  %v37 = vld [vmem:[%s1 + $0x30] sm:$0xf]
  %v38 = vld [vmem:[%s1 + $0x34] sm:$0xf]
  %v39 = vld [vmem:[%s1 + $0x38] sm:$0xf]
  %v40 = vld [vmem:[%s1 + $0x3c] sm:$0xf]
  %v43 = vunpack.c.l.b16 %v23
  %v44 = vunpack.c.l.b16 %v24
  %v45 = vpack.c.b16 %v44, %v43
  %v63 = vunpack.c.l.b16 %v25
  %v64 = vunpack.c.l.b16 %v26
  %v65 = vunpack.c.l.b16 %v27
  %v66 = vunpack.c.l.b16 %v28
  %v67 = vunpack.c.l.b16 %v29
  %v68 = vunpack.c.l.b16 %v30
  %v69 = vunpack.c.l.b16 %v31
  %v70 = vunpack.c.l.b16 %v32
  %v71 = vunpack.c.l.b16 %v33
  %v72 = vunpack.c.l.b16 %v34
  %v73 = vunpack.c.l.b16 %v35
  %v74 = vunpack.c.l.b16 %v36
  %v75 = vunpack.c.l.b16 %v37
  %v76 = vunpack.c.l.b16 %v38
  %v77 = vunpack.c.l.b16 %v39
  %v78 = vunpack.c.l.b16 %v40
  %v79 = vpack.c.b16 %v64, %v63
  %v80 = vpack.c.b16 %v66, %v65
  %v81 = vpack.c.b16 %v68, %v67
  %v82 = vpack.c.b16 %v70, %v69
  %v83 = vpack.c.b16 %v72, %v71
  %v84 = vpack.c.b16 %v74, %v73
  %v85 = vpack.c.b16 %v76, %v75
  %v86 = vpack.c.b16 %v78, %v77
  %95 = vmatprep.subr.bf16.mxu0 0
  %96 = vmatpush1.bf16.msra.mxu0 %v79
  %97 = vmatprep.subr.bf16.mxu0 0
  %98 = vmatpush1.bf16.msra.mxu0 %v80
  %99 = vmatprep.subr.bf16.mxu0 0
  %100 = vmatpush1.bf16.msra.mxu0 %v81
  %101 = vmatprep.subr.bf16.mxu0 0
  %102 = vmatpush1.bf16.msra.mxu0 %v82
  %103 = vmatprep.subr.bf16.mxu0 0
  %104 = vmatpush1.bf16.msra.mxu0 %v83
  %105 = vmatprep.subr.bf16.mxu0 0
  %106 = vmatpush1.bf16.msra.mxu0 %v84
  %107 = vmatprep.subr.bf16.mxu0 0
  %108 = vmatpush1.bf16.msra.mxu0 %v85
  %109 = vmatprep.subr.bf16.mxu0 0
  %110 = vmatpush1.bf16.msra.mxu0 %v86
  %111 = vmatprep.subr.bf16.mxu0 0
  %112 = vmatpush1.bf16.msra.mxu0 0
  %113 = vmatprep.subr.bf16.mxu0 0
  %114 = vmatpush1.bf16.msra.mxu0 0
  %115 = vmatprep.subr.bf16.mxu0 0
  %116 = vmatpush1.bf16.msra.mxu0 0
  %117 = vmatprep.subr.bf16.mxu0 0
  %118 = vmatpush1.bf16.msra.mxu0 0
  %119 = vmatprep.subr.bf16.mxu0 0
  %120 = vmatpush1.bf16.msra.mxu0 0
  %121 = vmatprep.subr.bf16.mxu0 0
  %122 = vmatpush1.bf16.msra.mxu0 0
  %123 = vmatprep.subr.bf16.mxu0 0
  %124 = vmatpush1.bf16.msra.mxu0 0
  %125 = vmatprep.subr.bf16.mxu0 0
  %126 = vmatpush1.bf16.msra.mxu0 0
  %127 = vmatprep.mubr.bf16.mxu0 0
  %128 = vmatmul.mubr.bf16.gmra.mrb[0].mxu0 %v45
  %v129 = vpop.f32.mrb[0].mxu0
  %v130 = vadd.f32 0.0, %v129
  %v131 = vpop.f32.mrb[0].mxu0
  %v132 = vpop.f32.mrb[0].mxu0
  %v133 = vadd.f32 0.0, %v132
  %v134 = vpop.f32.mrb[0].mxu0
  %135 = vdwg.mxu0
  %v136 = vadd.f32 %v21, %v130
  %v137 = vadd.f32 %v22, %v133
  %138 = vst [vmem:[#allocation2] sm:$0xff] %v136
  %139 = vst [vmem:[#allocation2 + $0x8] sm:$0xff] %v137
  // Predicated region
  $region18: #{_lambda_.35} parent=0 // pred_check
    %p140 = pneg %p15
  $region19: #{_lambda_.35} parent=0 // pred_check_branch
    %142 = sbr.rel (%p140) target = $region21
  $region20: #{_lambda_.35} parent=0 // pred_region
    %v143 = vld [vmem:[#allocation2] sm:$0xff]
    %v144 = vld [vmem:[#allocation2 + $0x8] sm:$0xff]
    %v145 = vld [vmem:[%s2] sm:$0x1]
    %v147 = vlaneseq
    %v148 = vshrl.u32 %v147, 7
    %v149 = vsub.s32 0, %v148
    %v150 = vrot.slane %v145, %v149
    %v152 = vadd.f32 %v143, %v150
    %v153 = vadd.f32 %v144, %v150
    %v154 = vmax.f32 %v152, 0.0
    %v155 = vmax.f32 %v153, 0.0
    %v156 = vpack.c.bf16 %v155, %v154
    %v158 = vunpack.c.l.b16 %v156
    %v159 = vunpack.c.h.b16 %v156
    %v160 = vpack.c.b16 %v158, %v158
    %v161 = vpack.c.b16 %v159, %v159
    %164 = vst [vmem:[%s3] sm:$0xf] %v160
    %165 = vst [vmem:[%s3 + $0x4] sm:$0xf] %v161
  $region21: #{_lambda_.35} parent=0 // pred_fallthru
    _
  // Predicated region
  $region22: #{_lambda_.35} parent=0 // pred_check
    _
  $region23: #{_lambda_.35} parent=0 // pred_check_branch
    %167 = sbr.rel (0) target = $region25
  $region24: #{_lambda_.35} parent=0 // pred_region
    _
  $region25: #{_lambda_.35} parent=0 // pred_fallthru
    _
  // Predicated region
  $region26: #{_lambda_.35} parent=0 // pred_check
    _
  $region27: #{_lambda_.35} parent=0 // pred_check_branch
    %169 = sbr.rel (0) target = $region29
  $region28: #{_lambda_.35} parent=0 // pred_region
    _
  $region29: #{_lambda_.35} parent=0 // pred_fallthru
    _

// kernel: _lambda_.32
$region0: #{_lambda_.32}
  #allocation0 [shape = 'u32[]', space=smem, size = 0x4, offset = 0x4, fixed_abs, tag = 'smem constant byte address 0x4 - core index']
  #allocation1 [shape = 'u32[144,128]{1,0:T(1,128)}', space=vmem, size = 0x12000, scoped, tag = 'internal scratch']
  #allocation2 [shape = 'f32[16,384]{1,0:T(8,128)}', space=vmem, size = 0x6000, scoped, tag = 'scratch operand']
  %s0 = inlined_call_operand.vmem [shape: bf16[16,128], index: 0, kind: input, shape index: {}]
  %s1 = inlined_call_operand.vmem [shape: bf16[128,384], index: 1, kind: input, shape index: {}]
  %s2 = inlined_call_operand.vmem [shape: f32[1,384], index: 2, kind: input, shape index: {}]
  %s3 = inlined_call_operand.vmem [shape: bf16[16,384], index: 3, kind: output, shape index: {}]
  %s4 = sld [smem:[#allocation0]]
  $region30: #{_lambda_.32} parent=0
    _
  %s6 = ssub.s32 1, %s4
  %s7 = scalar_select 0, %s6, %s4
  // Predicated region
  $region2: #{_lambda_.32} parent=0 // pred_check
    _
  $region3: #{_lambda_.32} parent=0 // pred_check_branch
    %9 = sbr.rel (0) target = $region5
  $region4: #{_lambda_.32} parent=0 // pred_region
    _
  $region5: #{_lambda_.32} parent=0 // pred_fallthru
    _
  // Predicated region
  $region6: #{_lambda_.32} parent=0 // pred_check
    _
  $region7: #{_lambda_.32} parent=0 // pred_check_branch
    %11 = sbr.rel (0) target = $region9
  $region8: #{_lambda_.32} parent=0 // pred_region
    _
  $region9: #{_lambda_.32} parent=0 // pred_fallthru
    _
  // Predicated region
  $region10: #{_lambda_.32} parent=0 // pred_check
    _
  $region11: #{_lambda_.32} parent=0 // pred_check_branch
    %13 = sbr.rel (0) target = $region13
  $region12: #{_lambda_.32} parent=0 // pred_region
    _
  $region13: #{_lambda_.32} parent=0 // pred_fallthru
    _
  %p15 = scmp.eq.s32.totalorder 0, 0
  // Predicated region
  $region14: #{_lambda_.32} parent=0 // pred_check
    %p16 = pneg %p15
  $region15: #{_lambda_.32} parent=0 // pred_check_branch
    %18 = sbr.rel (%p16) target = $region17
  $region16: #{_lambda_.32} parent=0 // pred_region
    %19 = vst [vmem:[#allocation2] sm:$0xff] 0.0
    %20 = vst [vmem:[#allocation2 + $0x8] sm:$0xff] 0.0
    %21 = vst [vmem:[#allocation2 + $0x10] sm:$0xff] 0.0
    %22 = vst [vmem:[#allocation2 + $0x18] sm:$0xff] 0.0
    %23 = vst [vmem:[#allocation2 + $0x20] sm:$0xff] 0.0
    %24 = vst [vmem:[#allocation2 + $0x28] sm:$0xff] 0.0
  $region17: #{_lambda_.32} parent=0 // pred_fallthru
    _
  %v25 = vld [vmem:[#allocation2] sm:$0xff]
  %v26 = vld [vmem:[#allocation2 + $0x8] sm:$0xff]
  %v27 = vld [vmem:[#allocation2 + $0x10] sm:$0xff]
  %v28 = vld [vmem:[#allocation2 + $0x18] sm:$0xff]
  %v29 = vld [vmem:[#allocation2 + $0x20] sm:$0xff]
  %v30 = vld [vmem:[#allocation2 + $0x28] sm:$0xff]
  %v31 = vld [vmem:[%s0] sm:$0xf]
  %v32 = vld [vmem:[%s0 + $0x4] sm:$0xf]
  %v33 = vld [vmem:[%s1] sm:$0xff]
  %v34 = vld [vmem:[%s1 + $0x8] sm:$0xf]
  %v35 = vld [vmem:[%s1 + $0xc] sm:$0xff]
  %v36 = vld [vmem:[%s1 + $0x14] sm:$0xf]
  %v37 = vld [vmem:[%s1 + $0x18] sm:$0xff]
  %v38 = vld [vmem:[%s1 + $0x20] sm:$0xf]
  %v39 = vld [vmem:[%s1 + $0x24] sm:$0xff]
  %v40 = vld [vmem:[%s1 + $0x2c] sm:$0xf]
  %v41 = vld [vmem:[%s1 + $0x30] sm:$0xff]
  %v42 = vld [vmem:[%s1 + $0x38] sm:$0xf]
  %v43 = vld [vmem:[%s1 + $0x3c] sm:$0xff]
  %v44 = vld [vmem:[%s1 + $0x44] sm:$0xf]
  %v45 = vld [vmem:[%s1 + $0x48] sm:$0xff]
  %v46 = vld [vmem:[%s1 + $0x50] sm:$0xf]
  %v47 = vld [vmem:[%s1 + $0x54] sm:$0xff]
  %v48 = vld [vmem:[%s1 + $0x5c] sm:$0xf]
  %v49 = vld [vmem:[%s1 + $0x60] sm:$0xff]
  %v50 = vld [vmem:[%s1 + $0x68] sm:$0xf]
  %v51 = vld [vmem:[%s1 + $0x6c] sm:$0xff]
  %v52 = vld [vmem:[%s1 + $0x74] sm:$0xf]
  %v53 = vld [vmem:[%s1 + $0x78] sm:$0xff]
  %v54 = vld [vmem:[%s1 + $0x80] sm:$0xf]
  %v55 = vld [vmem:[%s1 + $0x84] sm:$0xff]
  %v56 = vld [vmem:[%s1 + $0x8c] sm:$0xf]
  %v57 = vld [vmem:[%s1 + $0x90] sm:$0xff]
  %v58 = vld [vmem:[%s1 + $0x98] sm:$0xf]
  %v59 = vld [vmem:[%s1 + $0x9c] sm:$0xff]
  %v60 = vld [vmem:[%s1 + $0xa4] sm:$0xf]
  %v61 = vld [vmem:[%s1 + $0xa8] sm:$0xff]
  %v62 = vld [vmem:[%s1 + $0xb0] sm:$0xf]
  %v63 = vld [vmem:[%s1 + $0xb4] sm:$0xff]
  %v64 = vld [vmem:[%s1 + $0xbc] sm:$0xf]
  %v67 = vunpack.c.l.b16 %v31
  %v68 = vunpack.c.l.b16 %v32
  %v69 = vpack.c.b16 %v68, %v67
  %v103 = vunpack.c.l.b16 %v33
  %v104 = vunpack.c.h.b16 %v33
  %v105 = vunpack.c.l.b16 %v34
  %v106 = vunpack.c.l.b16 %v35
  %v107 = vunpack.c.h.b16 %v35
  %v108 = vunpack.c.l.b16 %v36
  %v109 = vunpack.c.l.b16 %v37
  %v110 = vunpack.c.h.b16 %v37
  %v111 = vunpack.c.l.b16 %v38
  %v112 = vunpack.c.l.b16 %v39
  %v113 = vunpack.c.h.b16 %v39
  %v114 = vunpack.c.l.b16 %v40
  %v115 = vunpack.c.l.b16 %v41
  %v116 = vunpack.c.h.b16 %v41
  %v117 = vunpack.c.l.b16 %v42
  %v118 = vunpack.c.l.b16 %v43
  %v119 = vunpack.c.h.b16 %v43
  %v120 = vunpack.c.l.b16 %v44
  %v121 = vunpack.c.l.b16 %v45
  %v122 = vunpack.c.h.b16 %v45
  %v123 = vunpack.c.l.b16 %v46
  %v124 = vunpack.c.l.b16 %v47
  %v125 = vunpack.c.h.b16 %v47
  %v126 = vunpack.c.l.b16 %v48
  %v127 = vunpack.c.l.b16 %v49
  %v128 = vunpack.c.h.b16 %v49
  %v129 = vunpack.c.l.b16 %v50
  %v130 = vunpack.c.l.b16 %v51
  %v131 = vunpack.c.h.b16 %v51
  %v132 = vunpack.c.l.b16 %v52
  %v133 = vunpack.c.l.b16 %v53
  %v134 = vunpack.c.h.b16 %v53
  %v135 = vunpack.c.l.b16 %v54
  %v136 = vunpack.c.l.b16 %v55
  %v137 = vunpack.c.h.b16 %v55
  %v138 = vunpack.c.l.b16 %v56
  %v139 = vunpack.c.l.b16 %v57
  %v140 = vunpack.c.h.b16 %v57
  %v141 = vunpack.c.l.b16 %v58
  %v142 = vunpack.c.l.b16 %v59
  %v143 = vunpack.c.h.b16 %v59
  %v144 = vunpack.c.l.b16 %v60
  %v145 = vunpack.c.l.b16 %v61
  %v146 = vunpack.c.h.b16 %v61
  %v147 = vunpack.c.l.b16 %v62
  %v148 = vunpack.c.l.b16 %v63
  %v149 = vunpack.c.h.b16 %v63
  %v150 = vunpack.c.l.b16 %v64
  %v151 = vpack.c.b16 %v106, %v103
  %v152 = vpack.c.b16 %v107, %v104
  %v153 = vpack.c.b16 %v108, %v105
  %v154 = vpack.c.b16 %v112, %v109
  %v155 = vpack.c.b16 %v113, %v110
  %v156 = vpack.c.b16 %v114, %v111
  %v157 = vpack.c.b16 %v118, %v115
  %v158 = vpack.c.b16 %v119, %v116
  %v159 = vpack.c.b16 %v120, %v117
  %v160 = vpack.c.b16 %v124, %v121
  %v161 = vpack.c.b16 %v125, %v122
  %v162 = vpack.c.b16 %v126, %v123
  %v163 = vpack.c.b16 %v130, %v127
  %v164 = vpack.c.b16 %v131, %v128
  %v165 = vpack.c.b16 %v132, %v129
  %v166 = vpack.c.b16 %v136, %v133
  %v167 = vpack.c.b16 %v137, %v134
  %v168 = vpack.c.b16 %v138, %v135
  %v169 = vpack.c.b16 %v142, %v139
  %v170 = vpack.c.b16 %v143, %v140
  %v171 = vpack.c.b16 %v144, %v141
  %v172 = vpack.c.b16 %v148, %v145
  %v173 = vpack.c.b16 %v149, %v146
  %v174 = vpack.c.b16 %v150, %v147
  %199 = vmatprep.subr.bf16.mxu0 %v152
  %200 = vmatpush1.bf16.msra.mxu0 %v151
  %201 = vmatprep.subr.bf16.mxu0 %v155
  %202 = vmatpush1.bf16.msra.mxu0 %v154
  %203 = vmatprep.subr.bf16.mxu0 %v158
  %204 = vmatpush1.bf16.msra.mxu0 %v157
  %205 = vmatprep.subr.bf16.mxu0 %v161
  %206 = vmatpush1.bf16.msra.mxu0 %v160
  %207 = vmatprep.subr.bf16.mxu0 %v164
  %208 = vmatpush1.bf16.msra.mxu0 %v163
  %209 = vmatprep.subr.bf16.mxu0 %v167
  %210 = vmatpush1.bf16.msra.mxu0 %v166
  %211 = vmatprep.subr.bf16.mxu0 %v170
  %212 = vmatpush1.bf16.msra.mxu0 %v169
  %213 = vmatprep.subr.bf16.mxu0 %v173
  %214 = vmatpush1.bf16.msra.mxu0 %v172
  %215 = vmatprep.subr.bf16.mxu0 0
  %216 = vmatpush1.bf16.msra.mxu0 0
  %217 = vmatprep.subr.bf16.mxu0 0
  %218 = vmatpush1.bf16.msra.mxu0 0
  %219 = vmatprep.subr.bf16.mxu0 0
  %220 = vmatpush1.bf16.msra.mxu0 0
  %221 = vmatprep.subr.bf16.mxu0 0
  %222 = vmatpush1.bf16.msra.mxu0 0
  %223 = vmatprep.subr.bf16.mxu0 0
  %224 = vmatpush1.bf16.msra.mxu0 0
  %225 = vmatprep.subr.bf16.mxu0 0
  %226 = vmatpush1.bf16.msra.mxu0 0
  %227 = vmatprep.subr.bf16.mxu0 0
  %228 = vmatpush1.bf16.msra.mxu0 0
  %229 = vmatprep.subr.bf16.mxu0 0
  %230 = vmatpush1.bf16.msra.mxu0 0
  %231 = vmatprep.mubr.bf16.mxu0 0
  %232 = vmatmul.mubr.bf16.gmra.mrb[0].mxu0 %v69
  %v233 = vpop.f32.mrb[0].mxu0
  %v234 = vadd.f32 0.0, %v233
  %v235 = vpop.f32.mrb[0].mxu0
  %v236 = vadd.f32 0.0, %v235
  %v237 = vpop.f32.mrb[0].mxu0
  %v238 = vadd.f32 0.0, %v237
  %v239 = vpop.f32.mrb[0].mxu0
  %v240 = vadd.f32 0.0, %v239
  %241 = vdwg.mxu0
  %242 = vmatprep.subr.bf16.mxu0 0
  %243 = vmatpush1.bf16.msra.mxu0 %v153
  %244 = vmatprep.subr.bf16.mxu0 0
  %245 = vmatpush1.bf16.msra.mxu0 %v156
  %246 = vmatprep.subr.bf16.mxu0 0
  %247 = vmatpush1.bf16.msra.mxu0 %v159
  %248 = vmatprep.subr.bf16.mxu0 0
  %249 = vmatpush1.bf16.msra.mxu0 %v162
  %250 = vmatprep.subr.bf16.mxu0 0
  %251 = vmatpush1.bf16.msra.mxu0 %v165
  %252 = vmatprep.subr.bf16.mxu0 0
  %253 = vmatpush1.bf16.msra.mxu0 %v168
  %254 = vmatprep.subr.bf16.mxu0 0
  %255 = vmatpush1.bf16.msra.mxu0 %v171
  %256 = vmatprep.subr.bf16.mxu0 0
  %257 = vmatpush1.bf16.msra.mxu0 %v174
  %258 = vmatprep.subr.bf16.mxu0 0
  %259 = vmatpush1.bf16.msra.mxu0 0
  %260 = vmatprep.subr.bf16.mxu0 0
  %261 = vmatpush1.bf16.msra.mxu0 0
  %262 = vmatprep.subr.bf16.mxu0 0
  %263 = vmatpush1.bf16.msra.mxu0 0
  %264 = vmatprep.subr.bf16.mxu0 0
  %265 = vmatpush1.bf16.msra.mxu0 0
  %266 = vmatprep.subr.bf16.mxu0 0
  %267 = vmatpush1.bf16.msra.mxu0 0
  %268 = vmatprep.subr.bf16.mxu0 0
  %269 = vmatpush1.bf16.msra.mxu0 0
  %270 = vmatprep.subr.bf16.mxu0 0
  %271 = vmatpush1.bf16.msra.mxu0 0
  %272 = vmatprep.subr.bf16.mxu0 0
  %273 = vmatpush1.bf16.msra.mxu0 0
  %274 = vmatprep.mubr.bf16.mxu0 0
  %275 = vmatmul.mubr.bf16.gmra.mrb[0].mxu0 %v69
  %v276 = vpop.f32.mrb[0].mxu0
  %v277 = vadd.f32 0.0, %v276
  %v278 = vpop.f32.mrb[0].mxu0
  %v279 = vpop.f32.mrb[0].mxu0
  %v280 = vadd.f32 0.0, %v279
  %v281 = vpop.f32.mrb[0].mxu0
  %282 = vdwg.mxu0
  %v283 = vadd.f32 %v25, %v234
  %v284 = vadd.f32 %v26, %v236
  %v285 = vadd.f32 %v27, %v277
  %v286 = vadd.f32 %v28, %v238
  %v287 = vadd.f32 %v29, %v240
  %v288 = vadd.f32 %v30, %v280
  %289 = vst [vmem:[#allocation2] sm:$0xff] %v283
  %290 = vst [vmem:[#allocation2 + $0x8] sm:$0xff] %v284
  %291 = vst [vmem:[#allocation2 + $0x10] sm:$0xff] %v285
  %292 = vst [vmem:[#allocation2 + $0x18] sm:$0xff] %v286
  %293 = vst [vmem:[#allocation2 + $0x20] sm:$0xff] %v287
  %294 = vst [vmem:[#allocation2 + $0x28] sm:$0xff] %v288
  // Predicated region
  $region18: #{_lambda_.32} parent=0 // pred_check
    %p295 = pneg %p15
  $region19: #{_lambda_.32} parent=0 // pred_check_branch
    %297 = sbr.rel (%p295) target = $region21
  $region20: #{_lambda_.32} parent=0 // pred_region
    %v298 = vld [vmem:[#allocation2] sm:$0xff]
    %v299 = vld [vmem:[#allocation2 + $0x8] sm:$0xff]
    %v300 = vld [vmem:[#allocation2 + $0x10] sm:$0xff]
    %v301 = vld [vmem:[#allocation2 + $0x18] sm:$0xff]
    %v302 = vld [vmem:[#allocation2 + $0x20] sm:$0xff]
    %v303 = vld [vmem:[#allocation2 + $0x28] sm:$0xff]
    %v304 = vld [vmem:[%s2] sm:$0x7]
    %v306 = vlaneseq
    %v307 = vshrl.u32 %v306, 7
    %v308 = vsub.s32 0, %v307
    %v309 = vrot.slane %v304, %v308
    %v310 = vlaneseq
    %v311 = vshrl.u32 %v310, 7
    %v312 = vsub.s32 1, %v311
    %v313 = vrot.slane %v304, %v312
    %v314 = vlaneseq
    %v315 = vshrl.u32 %v314, 7
    %v316 = vsub.s32 2, %v315
    %v317 = vrot.slane %v304, %v316
    %v321 = vadd.f32 %v298, %v309
    %v322 = vadd.f32 %v299, %v313
    %v323 = vadd.f32 %v300, %v317
    %v324 = vadd.f32 %v301, %v309
    %v325 = vadd.f32 %v302, %v313
    %v326 = vadd.f32 %v303, %v317
    %v327 = vpack.c.bf16 %v324, %v321
    %v328 = vpack.c.bf16 %v325, %v322
    %v329 = vpack.c.bf16 %v326, %v323
    %v333 = vunpack.c.l.b16 %v327
    %v334 = vunpack.c.l.b16 %v328
    %v335 = vunpack.c.l.b16 %v329
    %v336 = vunpack.c.h.b16 %v327
    %v337 = vunpack.c.h.b16 %v328
    %v338 = vunpack.c.h.b16 %v329
    %v339 = vpack.c.b16 %v334, %v333
    %v340 = vpack.c.b16 %v335, %v335
    %v341 = vpack.c.b16 %v337, %v336
    %v342 = vpack.c.b16 %v338, %v338
    %347 = vst [vmem:[%s3] sm:$0xff] %v339
    %348 = vst [vmem:[%s3 + $0x8] sm:$0xf] %v340
    %349 = vst [vmem:[%s3 + $0xc] sm:$0xff] %v341
    %350 = vst [vmem:[%s3 + $0x14] sm:$0xf] %v342
  $region21: #{_lambda_.32} parent=0 // pred_fallthru
    _
  // Predicated region
  $region22: #{_lambda_.32} parent=0 // pred_check
    _
  $region23: #{_lambda_.32} parent=0 // pred_check_branch
    %352 = sbr.rel (0) target = $region25
  $region24: #{_lambda_.32} parent=0 // pred_region
    _
  $region25: #{_lambda_.32} parent=0 // pred_fallthru
    _
  // Predicated region
  $region26: #{_lambda_.32} parent=0 // pred_check
    _
  $region27: #{_lambda_.32} parent=0 // pred_check_branch
    %354 = sbr.rel (0) target = $region29
  $region28: #{_lambda_.32} parent=0 // pred_region
    _
  $region29: #{_lambda_.32} parent=0 // pred_fallthru
    _

// kernel: _lambda_.34
$region0: #{_lambda_.34}
  #allocation0 [shape = 'u32[]', space=smem, size = 0x4, offset = 0x4, fixed_abs, tag = 'smem constant byte address 0x4 - core index']
  #allocation1 [shape = 'u32[144,128]{1,0:T(1,128)}', space=vmem, size = 0x12000, scoped, tag = 'internal scratch']
  #allocation2 [shape = 'f32[16,128]{1,0:T(8,128)}', space=vmem, size = 0x2000, scoped, tag = 'scratch operand']
  %s0 = inlined_call_operand.vmem [shape: bf16[16,128], index: 0, kind: input, shape index: {}]
  %s1 = inlined_call_operand.vmem [shape: bf16[128,128], index: 1, kind: input, shape index: {}]
  %s2 = inlined_call_operand.vmem [shape: f32[1,128], index: 2, kind: input, shape index: {}]
  %s3 = inlined_call_operand.vmem [shape: bf16[16,128], index: 3, kind: input, shape index: {}]
  %s4 = inlined_call_operand.vmem [shape: f32[1,128], index: 4, kind: input, shape index: {}]
  %s5 = inlined_call_operand.vmem [shape: f32[1,128], index: 5, kind: input, shape index: {}]
  %s6 = inlined_call_operand.vmem [shape: bf16[16,128], index: 6, kind: output, shape index: {}]
  %s7 = sld [smem:[#allocation0]]
  $region42: #{_lambda_.34} parent=0
    _
  %s9 = ssub.s32 1, %s7
  %s10 = scalar_select 0, %s9, %s7
  // Predicated region
  $region2: #{_lambda_.34} parent=0 // pred_check
    _
  $region3: #{_lambda_.34} parent=0 // pred_check_branch
    %12 = sbr.rel (0) target = $region5
  $region4: #{_lambda_.34} parent=0 // pred_region
    _
  $region5: #{_lambda_.34} parent=0 // pred_fallthru
    _
  // Predicated region
  $region6: #{_lambda_.34} parent=0 // pred_check
    _
  $region7: #{_lambda_.34} parent=0 // pred_check_branch
    %14 = sbr.rel (0) target = $region9
  $region8: #{_lambda_.34} parent=0 // pred_region
    _
  $region9: #{_lambda_.34} parent=0 // pred_fallthru
    _
  // Predicated region
  $region10: #{_lambda_.34} parent=0 // pred_check
    _
  $region11: #{_lambda_.34} parent=0 // pred_check_branch
    %16 = sbr.rel (0) target = $region13
  $region12: #{_lambda_.34} parent=0 // pred_region
    _
  $region13: #{_lambda_.34} parent=0 // pred_fallthru
    _
  // Predicated region
  $region14: #{_lambda_.34} parent=0 // pred_check
    _
  $region15: #{_lambda_.34} parent=0 // pred_check_branch
    %18 = sbr.rel (0) target = $region17
  $region16: #{_lambda_.34} parent=0 // pred_region
    _
  $region17: #{_lambda_.34} parent=0 // pred_fallthru
    _
  // Predicated region
  $region18: #{_lambda_.34} parent=0 // pred_check
    _
  $region19: #{_lambda_.34} parent=0 // pred_check_branch
    %20 = sbr.rel (0) target = $region21
  $region20: #{_lambda_.34} parent=0 // pred_region
    _
  $region21: #{_lambda_.34} parent=0 // pred_fallthru
    _
  // Predicated region
  $region22: #{_lambda_.34} parent=0 // pred_check
    _
  $region23: #{_lambda_.34} parent=0 // pred_check_branch
    %22 = sbr.rel (0) target = $region25
  $region24: #{_lambda_.34} parent=0 // pred_region
    _
  $region25: #{_lambda_.34} parent=0 // pred_fallthru
    _
  %p24 = scmp.eq.s32.totalorder 0, 0
  // Predicated region
  $region26: #{_lambda_.34} parent=0 // pred_check
    %p25 = pneg %p24
  $region27: #{_lambda_.34} parent=0 // pred_check_branch
    %27 = sbr.rel (%p25) target = $region29
  $region28: #{_lambda_.34} parent=0 // pred_region
    %28 = vst [vmem:[#allocation2] sm:$0xff] 0.0
    %29 = vst [vmem:[#allocation2 + $0x8] sm:$0xff] 0.0
  $region29: #{_lambda_.34} parent=0 // pred_fallthru
    _
  %v30 = vld [vmem:[#allocation2] sm:$0xff]
  %v31 = vld [vmem:[#allocation2 + $0x8] sm:$0xff]
  %v32 = vld [vmem:[%s0] sm:$0xf]
  %v33 = vld [vmem:[%s0 + $0x4] sm:$0xf]
  %v34 = vld [vmem:[%s1] sm:$0xf]
  %v35 = vld [vmem:[%s1 + $0x4] sm:$0xf]
  %v36 = vld [vmem:[%s1 + $0x8] sm:$0xf]
  %v37 = vld [vmem:[%s1 + $0xc] sm:$0xf]
  %v38 = vld [vmem:[%s1 + $0x10] sm:$0xf]
  %v39 = vld [vmem:[%s1 + $0x14] sm:$0xf]
  %v40 = vld [vmem:[%s1 + $0x18] sm:$0xf]
  %v41 = vld [vmem:[%s1 + $0x1c] sm:$0xf]
  %v42 = vld [vmem:[%s1 + $0x20] sm:$0xf]
  %v43 = vld [vmem:[%s1 + $0x24] sm:$0xf]
  %v44 = vld [vmem:[%s1 + $0x28] sm:$0xf]
  %v45 = vld [vmem:[%s1 + $0x2c] sm:$0xf]
  %v46 = vld [vmem:[%s1 + $0x30] sm:$0xf]
  %v47 = vld [vmem:[%s1 + $0x34] sm:$0xf]
  %v48 = vld [vmem:[%s1 + $0x38] sm:$0xf]
  %v49 = vld [vmem:[%s1 + $0x3c] sm:$0xf]
  %v52 = vunpack.c.l.b16 %v32
  %v53 = vunpack.c.l.b16 %v33
  %v54 = vpack.c.b16 %v53, %v52
  %v72 = vunpack.c.l.b16 %v34
  %v73 = vunpack.c.l.b16 %v35
  %v74 = vunpack.c.l.b16 %v36
  %v75 = vunpack.c.l.b16 %v37
  %v76 = vunpack.c.l.b16 %v38
  %v77 = vunpack.c.l.b16 %v39
  %v78 = vunpack.c.l.b16 %v40
  %v79 = vunpack.c.l.b16 %v41
  %v80 = vunpack.c.l.b16 %v42
  %v81 = vunpack.c.l.b16 %v43
  %v82 = vunpack.c.l.b16 %v44
  %v83 = vunpack.c.l.b16 %v45
  %v84 = vunpack.c.l.b16 %v46
  %v85 = vunpack.c.l.b16 %v47
  %v86 = vunpack.c.l.b16 %v48
  %v87 = vunpack.c.l.b16 %v49
  %v88 = vpack.c.b16 %v73, %v72
  %v89 = vpack.c.b16 %v75, %v74
  %v90 = vpack.c.b16 %v77, %v76
  %v91 = vpack.c.b16 %v79, %v78
  %v92 = vpack.c.b16 %v81, %v80
  %v93 = vpack.c.b16 %v83, %v82
  %v94 = vpack.c.b16 %v85, %v84
  %v95 = vpack.c.b16 %v87, %v86
  %104 = vmatprep.subr.bf16.mxu0 0
  %105 = vmatpush1.bf16.msra.mxu0 %v88
  %106 = vmatprep.subr.bf16.mxu0 0
  %107 = vmatpush1.bf16.msra.mxu0 %v89
  %108 = vmatprep.subr.bf16.mxu0 0
  %109 = vmatpush1.bf16.msra.mxu0 %v90
  %110 = vmatprep.subr.bf16.mxu0 0
  %111 = vmatpush1.bf16.msra.mxu0 %v91
  %112 = vmatprep.subr.bf16.mxu0 0
  %113 = vmatpush1.bf16.msra.mxu0 %v92
  %114 = vmatprep.subr.bf16.mxu0 0
  %115 = vmatpush1.bf16.msra.mxu0 %v93
  %116 = vmatprep.subr.bf16.mxu0 0
  %117 = vmatpush1.bf16.msra.mxu0 %v94
  %118 = vmatprep.subr.bf16.mxu0 0
  %119 = vmatpush1.bf16.msra.mxu0 %v95
  %120 = vmatprep.subr.bf16.mxu0 0
  %121 = vmatpush1.bf16.msra.mxu0 0
  %122 = vmatprep.subr.bf16.mxu0 0
  %123 = vmatpush1.bf16.msra.mxu0 0
  %124 = vmatprep.subr.bf16.mxu0 0
  %125 = vmatpush1.bf16.msra.mxu0 0
  %126 = vmatprep.subr.bf16.mxu0 0
  %127 = vmatpush1.bf16.msra.mxu0 0
  %128 = vmatprep.subr.bf16.mxu0 0
  %129 = vmatpush1.bf16.msra.mxu0 0
  %130 = vmatprep.subr.bf16.mxu0 0
  %131 = vmatpush1.bf16.msra.mxu0 0
  %132 = vmatprep.subr.bf16.mxu0 0
  %133 = vmatpush1.bf16.msra.mxu0 0
  %134 = vmatprep.subr.bf16.mxu0 0
  %135 = vmatpush1.bf16.msra.mxu0 0
  %136 = vmatprep.mubr.bf16.mxu0 0
  %137 = vmatmul.mubr.bf16.gmra.mrb[0].mxu0 %v54
  %v138 = vpop.f32.mrb[0].mxu0
  %v139 = vadd.f32 0.0, %v138
  %v140 = vpop.f32.mrb[0].mxu0
  %v141 = vpop.f32.mrb[0].mxu0
  %v142 = vadd.f32 0.0, %v141
  %v143 = vpop.f32.mrb[0].mxu0
  %144 = vdwg.mxu0
  %v145 = vadd.f32 %v30, %v139
  %v146 = vadd.f32 %v31, %v142
  %147 = vst [vmem:[#allocation2] sm:$0xff] %v145
  %148 = vst [vmem:[#allocation2 + $0x8] sm:$0xff] %v146
  // Predicated region
  $region30: #{_lambda_.34} parent=0 // pred_check
    %p149 = pneg %p24
  $region31: #{_lambda_.34} parent=0 // pred_check_branch
    %151 = sbr.rel (%p149) target = $region33
  $region32: #{_lambda_.34} parent=0 // pred_region
    %v152 = vld [vmem:[#allocation2] sm:$0xff]
    %v153 = vld [vmem:[#allocation2 + $0x8] sm:$0xff]
    %v154 = vld [vmem:[%s2] sm:$0x1]
    %v156 = vlaneseq
    %v157 = vshrl.u32 %v156, 7
    %v158 = vsub.s32 0, %v157
    %v159 = vrot.slane %v154, %v158
    %v161 = vadd.f32 %v152, %v159
    %v162 = vadd.f32 %v153, %v159
    %v163 = vld [vmem:[%s3] sm:$0xf]
    %v164 = vld [vmem:[%s3 + $0x4] sm:$0xf]
    %v165 = vunpack.c.l.bf16 %v163
    %v166 = vunpack.c.l.bf16 %v164
    %v167 = vadd.f32 %v161, %v165
    %v168 = vadd.f32 %v162, %v166
    %v169 = vld [vmem:[%s4] sm:$0x1]
    %v170 = vld [vmem:[%s5] sm:$0x1]
    %171 = vadd.xlane.f32.xlu0 %v167
    %v172 = vpop.xlane.xlu0 %171
    %173 = vadd.xlane.f32.xlu0 %v168
    %v174 = vpop.xlane.xlu0 %173
    %v175 = vmul.f32 %v172, 0.03125
    %v176 = vmul.f32 %v174, 0.03125
    %v177 = vmul.f32 %v167, %v167
    %v178 = vmul.f32 %v168, %v168
    %179 = vadd.xlane.f32.xlu0 %v177
    %v180 = vpop.xlane.xlu0 %179
    %181 = vadd.xlane.f32.xlu0 %v178
    %v182 = vpop.xlane.xlu0 %181
    %v183 = vmul.f32 %v180, 0.03125
    %v184 = vmul.f32 %v182, 0.03125
    %v185 = vmul.f32 %v175, %v175
    %v186 = vmul.f32 %v176, %v176
    %v187 = vsub.f32 %v183, %v185
    %v188 = vsub.f32 %v184, %v186
    %v189 = vmax.f32 %v187, 0.0
    %v190 = vmax.f32 %v188, 0.0
    %v191 = vsub.f32 %v167, %v175
    %v192 = vsub.f32 %v168, %v176
    %v193 = vadd.f32 %v189, 1e-05
    %v194 = vadd.f32 %v190, 1e-05
    %v195 = vrsqrt.pop %v193
    %v196 = vrsqrt.pop %v194
    %v197 = vmul.f32 %v191, %v195
    %v198 = vmul.f32 %v192, %v196
    %v200 = vlaneseq
    %v201 = vshrl.u32 %v200, 7
    %v202 = vsub.s32 0, %v201
    %v203 = vrot.slane %v169, %v202
    %v205 = vmul.f32 %v197, %v203
    %v206 = vmul.f32 %v198, %v203
    %v208 = vlaneseq
    %v209 = vshrl.u32 %v208, 7
    %v210 = vsub.s32 0, %v209
    %v211 = vrot.slane %v170, %v210
    %v213 = vadd.f32 %v205, %v211
    %v214 = vadd.f32 %v206, %v211
    %v215 = vpack.c.bf16 %v214, %v213
    %v217 = vunpack.c.l.b16 %v215
    %v218 = vunpack.c.h.b16 %v215
    %v219 = vpack.c.b16 %v217, %v217
    %v220 = vpack.c.b16 %v218, %v218
    %223 = vst [vmem:[%s6] sm:$0xf] %v219
    %224 = vst [vmem:[%s6 + $0x4] sm:$0xf] %v220
  $region33: #{_lambda_.34} parent=0 // pred_fallthru
    _
  // Predicated region
  $region34: #{_lambda_.34} parent=0 // pred_check
    _
  $region35: #{_lambda_.34} parent=0 // pred_check_branch
    %226 = sbr.rel (0) target = $region37
  $region36: #{_lambda_.34} parent=0 // pred_region
    _
  $region37: #{_lambda_.34} parent=0 // pred_fallthru
    _
  // Predicated region
  $region38: #{_lambda_.34} parent=0 // pred_check
    _
  $region39: #{_lambda_.34} parent=0 // pred_check_branch
    %228 = sbr.rel (0) target = $region41
  $region40: #{_lambda_.34} parent=0 // pred_region
    _
  $region41: #{_lambda_.34} parent=0 // pred_fallthru
    _

// kernel: _lambda_.42
$region0: #{_lambda_.42}
  #allocation0 [shape = 'u32[]', space=smem, size = 0x4, offset = 0x4, fixed_abs, tag = 'smem constant byte address 0x4 - core index']
  #allocation1 [shape = 'u32[144,128]{1,0:T(1,128)}', space=vmem, size = 0x12000, scoped, tag = 'internal scratch']
  %s0 = inlined_call_operand.vmem [shape: bf16[16,128], index: 0, kind: input, shape index: {}]
  %s1 = inlined_call_operand.vmem [shape: f32[1,128], index: 1, kind: input, shape index: {}]
  %s2 = inlined_call_operand.vmem [shape: f32[1,128], index: 2, kind: input, shape index: {}]
  %s3 = inlined_call_operand.vmem [shape: bf16[16,128], index: 3, kind: output, shape index: {}]
  %s4 = sld [smem:[#allocation0]]
  $region22: #{_lambda_.42} parent=0
    _
  %s6 = ssub.s32 1, %s4
  %s7 = scalar_select 0, %s6, %s4
  // Predicated region
  $region2: #{_lambda_.42} parent=0 // pred_check
    _
  $region3: #{_lambda_.42} parent=0 // pred_check_branch
    %9 = sbr.rel (0) target = $region5
  $region4: #{_lambda_.42} parent=0 // pred_region
    _
  $region5: #{_lambda_.42} parent=0 // pred_fallthru
    _
  // Predicated region
  $region6: #{_lambda_.42} parent=0 // pred_check
    _
  $region7: #{_lambda_.42} parent=0 // pred_check_branch
    %11 = sbr.rel (0) target = $region9
  $region8: #{_lambda_.42} parent=0 // pred_region
    _
  $region9: #{_lambda_.42} parent=0 // pred_fallthru
    _
  // Predicated region
  $region10: #{_lambda_.42} parent=0 // pred_check
    _
  $region11: #{_lambda_.42} parent=0 // pred_check_branch
    %13 = sbr.rel (0) target = $region13
  $region12: #{_lambda_.42} parent=0 // pred_region
    _
  $region13: #{_lambda_.42} parent=0 // pred_fallthru
    _
  %v14 = vld [vmem:[%s0] sm:$0xf]
  %v15 = vld [vmem:[%s0 + $0x4] sm:$0xf]
  %v16 = vunpack.c.l.bf16 %v14
  %v17 = vunpack.c.l.bf16 %v15
  %v18 = vld [vmem:[%s1] sm:$0x1]
  %v19 = vld [vmem:[%s2] sm:$0x1]
  %20 = vadd.xlane.f32.xlu0 %v16
  %v21 = vpop.xlane.xlu0 %20
  %22 = vadd.xlane.f32.xlu0 %v17
  %v23 = vpop.xlane.xlu0 %22
  %v24 = vmul.f32 %v21, 0.03125
  %v25 = vmul.f32 %v23, 0.03125
  %v26 = vmul.f32 %v16, %v16
  %v27 = vmul.f32 %v17, %v17
  %28 = vadd.xlane.f32.xlu0 %v26
  %v29 = vpop.xlane.xlu0 %28
  %30 = vadd.xlane.f32.xlu0 %v27
  %v31 = vpop.xlane.xlu0 %30
  %v32 = vmul.f32 %v29, 0.03125
  %v33 = vmul.f32 %v31, 0.03125
  %v34 = vmul.f32 %v24, %v24
  %v35 = vmul.f32 %v25, %v25
  %v36 = vsub.f32 %v32, %v34
  %v37 = vsub.f32 %v33, %v35
  %v38 = vmax.f32 %v36, 0.0
  %v39 = vmax.f32 %v37, 0.0
  %v40 = vsub.f32 %v16, %v24
  %v41 = vsub.f32 %v17, %v25
  %v42 = vadd.f32 %v38, 1e-05
  %v43 = vadd.f32 %v39, 1e-05
  %v44 = vrsqrt.pop %v42
  %v45 = vrsqrt.pop %v43
  %v46 = vmul.f32 %v40, %v44
  %v47 = vmul.f32 %v41, %v45
  %v49 = vlaneseq
  %v50 = vshrl.u32 %v49, 7
  %v51 = vsub.s32 0, %v50
  %v52 = vrot.slane %v18, %v51
  %v54 = vmul.f32 %v46, %v52
  %v55 = vmul.f32 %v47, %v52
  %v57 = vlaneseq
  %v58 = vshrl.u32 %v57, 7
  %v59 = vsub.s32 0, %v58
  %v60 = vrot.slane %v19, %v59
  %v62 = vadd.f32 %v54, %v60
  %v63 = vadd.f32 %v55, %v60
  %v64 = vpack.c.bf16 %v63, %v62
  %v66 = vunpack.c.l.b16 %v64
  %v67 = vunpack.c.h.b16 %v64
  %v68 = vpack.c.b16 %v66, %v66
  %v69 = vpack.c.b16 %v67, %v67
  %72 = vst [vmem:[%s3] sm:$0xf] %v68
  %73 = vst [vmem:[%s3 + $0x4] sm:$0xf] %v69
  // Predicated region
  $region14: #{_lambda_.42} parent=0 // pred_check
    _
  $region15: #{_lambda_.42} parent=0 // pred_check_branch
    %75 = sbr.rel (0) target = $region17
  $region16: #{_lambda_.42} parent=0 // pred_region
    _
  $region17: #{_lambda_.42} parent=0 // pred_fallthru
    _
  // Predicated region
  $region18: #{_lambda_.42} parent=0 // pred_check
    _
  $region19: #{_lambda_.42} parent=0 // pred_check_branch
    %77 = sbr.rel (0) target = $region21
  $region20: #{_lambda_.42} parent=0 // pred_region
    _
  $region21: #{_lambda_.42} parent=0 // pred_fallthru
    _

// kernel: _lambda_.33
$region0: #{_lambda_.33}
  #allocation0 [shape = 'u32[]', space=smem, size = 0x4, offset = 0x4, fixed_abs, tag = 'smem constant byte address 0x4 - core index']
  #allocation1 [shape = 'u32[144,128]{1,0:T(1,128)}', space=vmem, size = 0x12000, scoped, tag = 'internal scratch']
  %s0 = inlined_call_operand.vmem [shape: bf16[8,768], index: 0, kind: input, shape index: {}]
  %s1 = inlined_call_operand.vmem [shape: f32[2,1,8], index: 1, kind: input, shape index: {}]
  %s2 = inlined_call_operand.vmem [shape: bf16[8,256], index: 2, kind: output, shape index: {}]
  %s3 = sld [smem:[#allocation0]]
  $region18: #{_lambda_.33} parent=0
    _
  %s5 = ssub.s32 1, %s3
  %s6 = scalar_select 0, %s5, %s3
  // Predicated region
  $region2: #{_lambda_.33} parent=0 // pred_check
    _
  $region3: #{_lambda_.33} parent=0 // pred_check_branch
    %8 = sbr.rel (0) target = $region5
  $region4: #{_lambda_.33} parent=0 // pred_region
    _
  $region5: #{_lambda_.33} parent=0 // pred_fallthru
    _
  // Predicated region
  $region6: #{_lambda_.33} parent=0 // pred_check
    _
  $region7: #{_lambda_.33} parent=0 // pred_check_branch
    %10 = sbr.rel (0) target = $region9
  $region8: #{_lambda_.33} parent=0 // pred_region
    _
  $region9: #{_lambda_.33} parent=0 // pred_fallthru
    _
  %v12 = vld [vmem:[%s0] sm:$0xf]
  %v13 = vld [vmem:[%s0 + $0x4] sm:$0xf]
  %v14 = vld [vmem:[%s0 + $0x8] sm:$0xf]
  %v15 = vld [vmem:[%s1] sm:$0x1]
  %vm16 = vcmask 64512
  %v18 = vsel %vm16, %v12, 0
  %v21 = vsel %vm16, %v13, 0
  %23 = vmatprep.subr.bf16.mxu0 0
  %24 = vmatpush1.bf16.xpose.msra.mxu0 %v21
  %25 = vmatprep.subr.bf16.mxu0 0
  %26 = vmatpush1.bf16.xpose.msra.mxu0 0
  %27 = vmatprep.subr.bf16.mxu0 0
  %28 = vmatpush1.bf16.xpose.msra.mxu0 0
  %29 = vmatprep.subr.bf16.mxu0 0
  %30 = vmatpush1.bf16.xpose.msra.mxu0 0
  %31 = vmatprep.subr.bf16.mxu0 0
  %32 = vmatpush1.bf16.xpose.msra.mxu0 0
  %33 = vmatprep.subr.bf16.mxu0 0
  %34 = vmatpush1.bf16.xpose.msra.mxu0 0
  %35 = vmatprep.subr.bf16.mxu0 0
  %36 = vmatpush1.bf16.xpose.msra.mxu0 0
  %37 = vmatprep.subr.bf16.mxu0 0
  %38 = vmatpush1.bf16.xpose.msra.mxu0 0
  %39 = vmatprep.subr.bf16.mxu0 0
  %40 = vmatpush1.bf16.xpose.msra.mxu0 0
  %41 = vmatprep.subr.bf16.mxu0 0
  %42 = vmatpush1.bf16.xpose.msra.mxu0 0
  %43 = vmatprep.subr.bf16.mxu0 0
  %44 = vmatpush1.bf16.xpose.msra.mxu0 0
  %45 = vmatprep.subr.bf16.mxu0 0
  %46 = vmatpush1.bf16.xpose.msra.mxu0 0
  %47 = vmatprep.subr.bf16.mxu0 0
  %48 = vmatpush1.bf16.xpose.msra.mxu0 0
  %49 = vmatprep.subr.bf16.mxu0 0
  %50 = vmatpush1.bf16.xpose.msra.mxu0 0
  %51 = vmatprep.subr.bf16.mxu0 0
  %52 = vmatpush1.bf16.xpose.msra.mxu0 0
  %53 = vmatprep.subr.bf16.mxu0 0
  %54 = vmatpush1.bf16.xpose.msra.mxu0 0
  %55 = vmatprep.mubr.bf16.mxu0 0
  %56 = vmatmul.mubr.bf16.gmra.mrb[0].mxu0 %v18
  %v57 = vpop.f32.mrb[0].mxu0
  %v58 = vadd.f32 0.0, %v57
  %v59 = vpop.f32.mrb[0].mxu0
  %v60 = vpop.f32.mrb[0].mxu0
  %v61 = vpop.f32.mrb[0].mxu0
  %62 = vdwg.mxu0
  %v63 = vmul.f32 %v58, 0.35355338
  %v65 = vlaneseq
  %v66 = vshrl.u32 %v65, 7
  %v67 = vsub.s32 0, %v66
  %v68 = vrot.slane %v15, %v67
  %v70 = vadd.f32 %v63, %v68
  %v71 = vsel %vm16, %v70, -inf
  %72 = vmax.xlane.f32.xlu0 %v71
  %v73 = vpop.xlane.xlu0 %72
  %v74 = vsub.f32 %v70, %v73
  %v75 = vmul.f32 %v74, 1.442695
  %v76 = vpow.pop %v75
  %v77 = vsel %vm16, %v76, 0.0
  %78 = vadd.xlane.f32.xlu0 %v77
  %v79 = vpop.xlane.xlu0 %78
  %v80 = vrcp.pop %v79
  %v81 = vmul.f32 %v76, %v80
  %v82 = vpack.c.bf16 %v81, %v81
  %v84 = vsel %vm16, %v82, 0
  %vm86 = vcmask 1043456
  %v88 = vsel %vm86, %v14, 0
  %90 = vmatprep.subr.bf16.mxu0 0
  %91 = vmatpush1.bf16.msra.mxu0 %v88
  %92 = vmatprep.subr.bf16.mxu0 0
  %93 = vmatpush1.bf16.msra.mxu0 0
  %94 = vmatprep.subr.bf16.mxu0 0
  %95 = vmatpush1.bf16.msra.mxu0 0
  %96 = vmatprep.subr.bf16.mxu0 0
  %97 = vmatpush1.bf16.msra.mxu0 0
  %98 = vmatprep.subr.bf16.mxu0 0
  %99 = vmatpush1.bf16.msra.mxu0 0
  %100 = vmatprep.subr.bf16.mxu0 0
  %101 = vmatpush1.bf16.msra.mxu0 0
  %102 = vmatprep.subr.bf16.mxu0 0
  %103 = vmatpush1.bf16.msra.mxu0 0
  %104 = vmatprep.subr.bf16.mxu0 0
  %105 = vmatpush1.bf16.msra.mxu0 0
  %106 = vmatprep.subr.bf16.mxu0 0
  %107 = vmatpush1.bf16.msra.mxu0 0
  %108 = vmatprep.subr.bf16.mxu0 0
  %109 = vmatpush1.bf16.msra.mxu0 0
  %110 = vmatprep.subr.bf16.mxu0 0
  %111 = vmatpush1.bf16.msra.mxu0 0
  %112 = vmatprep.subr.bf16.mxu0 0
  %113 = vmatpush1.bf16.msra.mxu0 0
  %114 = vmatprep.subr.bf16.mxu0 0
  %115 = vmatpush1.bf16.msra.mxu0 0
  %116 = vmatprep.subr.bf16.mxu0 0
  %117 = vmatpush1.bf16.msra.mxu0 0
  %118 = vmatprep.subr.bf16.mxu0 0
  %119 = vmatpush1.bf16.msra.mxu0 0
  %120 = vmatprep.subr.bf16.mxu0 0
  %121 = vmatpush1.bf16.msra.mxu0 0
  %122 = vmatprep.mubr.bf16.mxu0 0
  %123 = vmatmul.mubr.bf16.gmra.mrb[0].mxu0 %v84
  %v124 = vpop.f32.mrb[0].mxu0
  %v125 = vadd.f32 0.0, %v124
  %v126 = vpop.f32.mrb[0].mxu0
  %v127 = vpop.f32.mrb[0].mxu0
  %v128 = vpop.f32.mrb[0].mxu0
  %129 = vdwg.mxu0
  %v130 = vpack.c.bf16 %v125, %v125
  %vm131 = vcmask 60416
  %132 = vst.msk [vmem:[%s2] sm:$0xf] %vm131, %v130
  %v134 = vunpack.c.l.b16 %v12
  %v135 = vpack.c.b16 %v134, %v134
  %136 = vrot.lane.b32.xlu0 %v135, 120
  %v137 = vpop.permute.xlu0 %136
  %v139 = vunpack.c.l.b16 %v13
  %v140 = vpack.c.b16 %v139, %v139
  %141 = vrot.lane.b32.xlu0 %v140, 120
  %v142 = vpop.permute.xlu0 %141
  %v144 = vsel %vm16, %v137, 0
  %v147 = vsel %vm16, %v142, 0
  %149 = vmatprep.subr.bf16.mxu0 0
  %150 = vmatpush1.bf16.xpose.msra.mxu0 %v147
  %151 = vmatprep.subr.bf16.mxu0 0
  %152 = vmatpush1.bf16.xpose.msra.mxu0 0
  %153 = vmatprep.subr.bf16.mxu0 0
  %154 = vmatpush1.bf16.xpose.msra.mxu0 0
  %155 = vmatprep.subr.bf16.mxu0 0
  %156 = vmatpush1.bf16.xpose.msra.mxu0 0
  %157 = vmatprep.subr.bf16.mxu0 0
  %158 = vmatpush1.bf16.xpose.msra.mxu0 0
  %159 = vmatprep.subr.bf16.mxu0 0
  %160 = vmatpush1.bf16.xpose.msra.mxu0 0
  %161 = vmatprep.subr.bf16.mxu0 0
  %162 = vmatpush1.bf16.xpose.msra.mxu0 0
  %163 = vmatprep.subr.bf16.mxu0 0
  %164 = vmatpush1.bf16.xpose.msra.mxu0 0
  %165 = vmatprep.subr.bf16.mxu0 0
  %166 = vmatpush1.bf16.xpose.msra.mxu0 0
  %167 = vmatprep.subr.bf16.mxu0 0
  %168 = vmatpush1.bf16.xpose.msra.mxu0 0
  %169 = vmatprep.subr.bf16.mxu0 0
  %170 = vmatpush1.bf16.xpose.msra.mxu0 0
  %171 = vmatprep.subr.bf16.mxu0 0
  %172 = vmatpush1.bf16.xpose.msra.mxu0 0
  %173 = vmatprep.subr.bf16.mxu0 0
  %174 = vmatpush1.bf16.xpose.msra.mxu0 0
  %175 = vmatprep.subr.bf16.mxu0 0
  %176 = vmatpush1.bf16.xpose.msra.mxu0 0
  %177 = vmatprep.subr.bf16.mxu0 0
  %178 = vmatpush1.bf16.xpose.msra.mxu0 0
  %179 = vmatprep.subr.bf16.mxu0 0
  %180 = vmatpush1.bf16.xpose.msra.mxu0 0
  %181 = vmatprep.mubr.bf16.mxu0 0
  %182 = vmatmul.mubr.bf16.gmra.mrb[0].mxu0 %v144
  %v183 = vpop.f32.mrb[0].mxu0
  %v184 = vadd.f32 0.0, %v183
  %v185 = vpop.f32.mrb[0].mxu0
  %v186 = vpop.f32.mrb[0].mxu0
  %v187 = vpop.f32.mrb[0].mxu0
  %188 = vdwg.mxu0
  %v189 = vmul.f32 %v184, 0.35355338
  %v190 = vadd.f32 %v189, %v68
  %v191 = vsel %vm16, %v190, -inf
  %192 = vmax.xlane.f32.xlu0 %v191
  %v193 = vpop.xlane.xlu0 %192
  %v194 = vsub.f32 %v190, %v193
  %v195 = vmul.f32 %v194, 1.442695
  %v196 = vpow.pop %v195
  %v197 = vsel %vm16, %v196, 0.0
  %198 = vadd.xlane.f32.xlu0 %v197
  %v199 = vpop.xlane.xlu0 %198
  %v200 = vrcp.pop %v199
  %v201 = vmul.f32 %v196, %v200
  %v202 = vpack.c.bf16 %v201, %v201
  %v204 = vunpack.c.l.b16 %v14
  %v205 = vpack.c.b16 %v204, %v204
  %206 = vrot.lane.b32.xlu0 %v205, 120
  %v207 = vpop.permute.xlu0 %206
  %v209 = vsel %vm16, %v202, 0
  %v212 = vsel %vm86, %v207, 0
  %214 = vmatprep.subr.bf16.mxu0 0
  %215 = vmatpush1.bf16.msra.mxu0 %v212
  %216 = vmatprep.subr.bf16.mxu0 0
  %217 = vmatpush1.bf16.msra.mxu0 0
  %218 = vmatprep.subr.bf16.mxu0 0
  %219 = vmatpush1.bf16.msra.mxu0 0
  %220 = vmatprep.subr.bf16.mxu0 0
  %221 = vmatpush1.bf16.msra.mxu0 0
  %222 = vmatprep.subr.bf16.mxu0 0
  %223 = vmatpush1.bf16.msra.mxu0 0
  %224 = vmatprep.subr.bf16.mxu0 0
  %225 = vmatpush1.bf16.msra.mxu0 0
  %226 = vmatprep.subr.bf16.mxu0 0
  %227 = vmatpush1.bf16.msra.mxu0 0
  %228 = vmatprep.subr.bf16.mxu0 0
  %229 = vmatpush1.bf16.msra.mxu0 0
  %230 = vmatprep.subr.bf16.mxu0 0
  %231 = vmatpush1.bf16.msra.mxu0 0
  %232 = vmatprep.subr.bf16.mxu0 0
  %233 = vmatpush1.bf16.msra.mxu0 0
  %234 = vmatprep.subr.bf16.mxu0 0
  %235 = vmatpush1.bf16.msra.mxu0 0
  %236 = vmatprep.subr.bf16.mxu0 0
  %237 = vmatpush1.bf16.msra.mxu0 0
  %238 = vmatprep.subr.bf16.mxu0 0
  %239 = vmatpush1.bf16.msra.mxu0 0
  %240 = vmatprep.subr.bf16.mxu0 0
  %241 = vmatpush1.bf16.msra.mxu0 0
  %242 = vmatprep.subr.bf16.mxu0 0
  %243 = vmatpush1.bf16.msra.mxu0 0
  %244 = vmatprep.subr.bf16.mxu0 0
  %245 = vmatpush1.bf16.msra.mxu0 0
  %246 = vmatprep.mubr.bf16.mxu0 0
  %247 = vmatmul.mubr.bf16.gmra.mrb[0].mxu0 %v209
  %v248 = vpop.f32.mrb[0].mxu0
  %v249 = vadd.f32 0.0, %v248
  %v250 = vpop.f32.mrb[0].mxu0
  %v251 = vpop.f32.mrb[0].mxu0
  %v252 = vpop.f32.mrb[0].mxu0
  %253 = vdwg.mxu0
  %v254 = vpack.c.bf16 %v249, %v249
  %v256 = vunpack.c.l.b16 %v254
  %v257 = vpack.c.b16 %v256, %v256
  %258 = vrot.lane.b32.xlu0 %v257, 8
  %v259 = vpop.permute.xlu0 %258
  %vm261 = vcmask 126016
  %262 = vst.msk [vmem:[%s2] sm:$0xf] %vm261, %v259
  %263 = vrot.lane.b32.xlu0 %v135, 112
  %v264 = vpop.permute.xlu0 %263
  %265 = vrot.lane.b32.xlu0 %v140, 112
  %v266 = vpop.permute.xlu0 %265
  %v268 = vsel %vm16, %v264, 0
  %v271 = vsel %vm16, %v266, 0
  %273 = vmatprep.subr.bf16.mxu0 0
  %274 = vmatpush1.bf16.xpose.msra.mxu0 %v271
  %275 = vmatprep.subr.bf16.mxu0 0
  %276 = vmatpush1.bf16.xpose.msra.mxu0 0
  %277 = vmatprep.subr.bf16.mxu0 0
  %278 = vmatpush1.bf16.xpose.msra.mxu0 0
  %279 = vmatprep.subr.bf16.mxu0 0
  %280 = vmatpush1.bf16.xpose.msra.mxu0 0
  %281 = vmatprep.subr.bf16.mxu0 0
  %282 = vmatpush1.bf16.xpose.msra.mxu0 0
  %283 = vmatprep.subr.bf16.mxu0 0
  %284 = vmatpush1.bf16.xpose.msra.mxu0 0
  %285 = vmatprep.subr.bf16.mxu0 0
  %286 = vmatpush1.bf16.xpose.msra.mxu0 0
  %287 = vmatprep.subr.bf16.mxu0 0
  %288 = vmatpush1.bf16.xpose.msra.mxu0 0
  %289 = vmatprep.subr.bf16.mxu0 0
  %290 = vmatpush1.bf16.xpose.msra.mxu0 0
  %291 = vmatprep.subr.bf16.mxu0 0
  %292 = vmatpush1.bf16.xpose.msra.mxu0 0
  %293 = vmatprep.subr.bf16.mxu0 0
  %294 = vmatpush1.bf16.xpose.msra.mxu0 0
  %295 = vmatprep.subr.bf16.mxu0 0
  %296 = vmatpush1.bf16.xpose.msra.mxu0 0
  %297 = vmatprep.subr.bf16.mxu0 0
  %298 = vmatpush1.bf16.xpose.msra.mxu0 0
  %299 = vmatprep.subr.bf16.mxu0 0
  %300 = vmatpush1.bf16.xpose.msra.mxu0 0
  %301 = vmatprep.subr.bf16.mxu0 0
  %302 = vmatpush1.bf16.xpose.msra.mxu0 0
  %303 = vmatprep.subr.bf16.mxu0 0
  %304 = vmatpush1.bf16.xpose.msra.mxu0 0
  %305 = vmatprep.mubr.bf16.mxu0 0
  %306 = vmatmul.mubr.bf16.gmra.mrb[0].mxu0 %v268
  %v307 = vpop.f32.mrb[0].mxu0
  %v308 = vadd.f32 0.0, %v307
  %v309 = vpop.f32.mrb[0].mxu0
  %v310 = vpop.f32.mrb[0].mxu0
  %v311 = vpop.f32.mrb[0].mxu0
  %312 = vdwg.mxu0
  %v313 = vmul.f32 %v308, 0.35355338
  %v314 = vadd.f32 %v313, %v68
  %v315 = vsel %vm16, %v314, -inf
  %316 = vmax.xlane.f32.xlu0 %v315
  %v317 = vpop.xlane.xlu0 %316
  %v318 = vsub.f32 %v314, %v317
  %v319 = vmul.f32 %v318, 1.442695
  %v320 = vpow.pop %v319
  %v321 = vsel %vm16, %v320, 0.0
  %322 = vadd.xlane.f32.xlu0 %v321
  %v323 = vpop.xlane.xlu0 %322
  %v324 = vrcp.pop %v323
  %v325 = vmul.f32 %v320, %v324
  %v326 = vpack.c.bf16 %v325, %v325
  %327 = vrot.lane.b32.xlu0 %v205, 112
  %v328 = vpop.permute.xlu0 %327
  %v330 = vsel %vm16, %v326, 0
  %v333 = vsel %vm86, %v328, 0
  %335 = vmatprep.subr.bf16.mxu0 0
  %336 = vmatpush1.bf16.msra.mxu0 %v333
  %337 = vmatprep.subr.bf16.mxu0 0
  %338 = vmatpush1.bf16.msra.mxu0 0
  %339 = vmatprep.subr.bf16.mxu0 0
  %340 = vmatpush1.bf16.msra.mxu0 0
  %341 = vmatprep.subr.bf16.mxu0 0
  %342 = vmatpush1.bf16.msra.mxu0 0
  %343 = vmatprep.subr.bf16.mxu0 0
  %344 = vmatpush1.bf16.msra.mxu0 0
  %345 = vmatprep.subr.bf16.mxu0 0
  %346 = vmatpush1.bf16.msra.mxu0 0
  %347 = vmatprep.subr.bf16.mxu0 0
  %348 = vmatpush1.bf16.msra.mxu0 0
  %349 = vmatprep.subr.bf16.mxu0 0
  %350 = vmatpush1.bf16.msra.mxu0 0
  %351 = vmatprep.subr.bf16.mxu0 0
  %352 = vmatpush1.bf16.msra.mxu0 0
  %353 = vmatprep.subr.bf16.mxu0 0
  %354 = vmatpush1.bf16.msra.mxu0 0
  %355 = vmatprep.subr.bf16.mxu0 0
  %356 = vmatpush1.bf16.msra.mxu0 0
  %357 = vmatprep.subr.bf16.mxu0 0
  %358 = vmatpush1.bf16.msra.mxu0 0
  %359 = vmatprep.subr.bf16.mxu0 0
  %360 = vmatpush1.bf16.msra.mxu0 0
  %361 = vmatprep.subr.bf16.mxu0 0
  %362 = vmatpush1.bf16.msra.mxu0 0
  %363 = vmatprep.subr.bf16.mxu0 0
  %364 = vmatpush1.bf16.msra.mxu0 0
  %365 = vmatprep.subr.bf16.mxu0 0
  %366 = vmatpush1.bf16.msra.mxu0 0
  %367 = vmatprep.mubr.bf16.mxu0 0
  %368 = vmatmul.mubr.bf16.gmra.mrb[0].mxu0 %v330
  %v369 = vpop.f32.mrb[0].mxu0
  %v370 = vadd.f32 0.0, %v369
  %v371 = vpop.f32.mrb[0].mxu0
  %v372 = vpop.f32.mrb[0].mxu0
  %v373 = vpop.f32.mrb[0].mxu0
  %374 = vdwg.mxu0
  %v375 = vpack.c.bf16 %v370, %v370
  %v377 = vunpack.c.l.b16 %v375
  %v378 = vpack.c.b16 %v377, %v377
  %379 = vrot.lane.b32.xlu0 %v378, 16
  %v380 = vpop.permute.xlu0 %379
  %vm382 = vcmask 191616
  %383 = vst.msk [vmem:[%s2] sm:$0xf] %vm382, %v380
  %384 = vrot.lane.b32.xlu0 %v135, 104
  %v385 = vpop.permute.xlu0 %384
  %386 = vrot.lane.b32.xlu0 %v140, 104
  %v387 = vpop.permute.xlu0 %386
  %v389 = vsel %vm16, %v385, 0
  %v392 = vsel %vm16, %v387, 0
  %394 = vmatprep.subr.bf16.mxu0 0
  %395 = vmatpush1.bf16.xpose.msra.mxu0 %v392
  %396 = vmatprep.subr.bf16.mxu0 0
  %397 = vmatpush1.bf16.xpose.msra.mxu0 0
  %398 = vmatprep.subr.bf16.mxu0 0
  %399 = vmatpush1.bf16.xpose.msra.mxu0 0
  %400 = vmatprep.subr.bf16.mxu0 0
  %401 = vmatpush1.bf16.xpose.msra.mxu0 0
  %402 = vmatprep.subr.bf16.mxu0 0
  %403 = vmatpush1.bf16.xpose.msra.mxu0 0
  %404 = vmatprep.subr.bf16.mxu0 0
  %405 = vmatpush1.bf16.xpose.msra.mxu0 0
  %406 = vmatprep.subr.bf16.mxu0 0
  %407 = vmatpush1.bf16.xpose.msra.mxu0 0
  %408 = vmatprep.subr.bf16.mxu0 0
  %409 = vmatpush1.bf16.xpose.msra.mxu0 0
  %410 = vmatprep.subr.bf16.mxu0 0
  %411 = vmatpush1.bf16.xpose.msra.mxu0 0
  %412 = vmatprep.subr.bf16.mxu0 0
  %413 = vmatpush1.bf16.xpose.msra.mxu0 0
  %414 = vmatprep.subr.bf16.mxu0 0
  %415 = vmatpush1.bf16.xpose.msra.mxu0 0
  %416 = vmatprep.subr.bf16.mxu0 0
  %417 = vmatpush1.bf16.xpose.msra.mxu0 0
  %418 = vmatprep.subr.bf16.mxu0 0
  %419 = vmatpush1.bf16.xpose.msra.mxu0 0
  %420 = vmatprep.subr.bf16.mxu0 0
  %421 = vmatpush1.bf16.xpose.msra.mxu0 0
  %422 = vmatprep.subr.bf16.mxu0 0
  %423 = vmatpush1.bf16.xpose.msra.mxu0 0
  %424 = vmatprep.subr.bf16.mxu0 0
  %425 = vmatpush1.bf16.xpose.msra.mxu0 0
  %426 = vmatprep.mubr.bf16.mxu0 0
  %427 = vmatmul.mubr.bf16.gmra.mrb[0].mxu0 %v389
  %v428 = vpop.f32.mrb[0].mxu0
  %v429 = vadd.f32 0.0, %v428
  %v430 = vpop.f32.mrb[0].mxu0
  %v431 = vpop.f32.mrb[0].mxu0
  %v432 = vpop.f32.mrb[0].mxu0
  %433 = vdwg.mxu0
  %v434 = vmul.f32 %v429, 0.35355338
  %v435 = vadd.f32 %v434, %v68
  %v436 = vsel %vm16, %v435, -inf
  %437 = vmax.xlane.f32.xlu0 %v436
  %v438 = vpop.xlane.xlu0 %437
  %v439 = vsub.f32 %v435, %v438
  %v440 = vmul.f32 %v439, 1.442695
  %v441 = vpow.pop %v440
  %v442 = vsel %vm16, %v441, 0.0
  %443 = vadd.xlane.f32.xlu0 %v442
  %v444 = vpop.xlane.xlu0 %443
  %v445 = vrcp.pop %v444
  %v446 = vmul.f32 %v441, %v445
  %v447 = vpack.c.bf16 %v446, %v446
  %448 = vrot.lane.b32.xlu0 %v205, 104
  %v449 = vpop.permute.xlu0 %448
  %v451 = vsel %vm16, %v447, 0
  %v454 = vsel %vm86, %v449, 0
  %456 = vmatprep.subr.bf16.mxu0 0
  %457 = vmatpush1.bf16.msra.mxu0 %v454
  %458 = vmatprep.subr.bf16.mxu0 0
  %459 = vmatpush1.bf16.msra.mxu0 0
  %460 = vmatprep.subr.bf16.mxu0 0
  %461 = vmatpush1.bf16.msra.mxu0 0
  %462 = vmatprep.subr.bf16.mxu0 0
  %463 = vmatpush1.bf16.msra.mxu0 0
  %464 = vmatprep.subr.bf16.mxu0 0
  %465 = vmatpush1.bf16.msra.mxu0 0
  %466 = vmatprep.subr.bf16.mxu0 0
  %467 = vmatpush1.bf16.msra.mxu0 0
  %468 = vmatprep.subr.bf16.mxu0 0
  %469 = vmatpush1.bf16.msra.mxu0 0
  %470 = vmatprep.subr.bf16.mxu0 0
  %471 = vmatpush1.bf16.msra.mxu0 0
  %472 = vmatprep.subr.bf16.mxu0 0
  %473 = vmatpush1.bf16.msra.mxu0 0
  %474 = vmatprep.subr.bf16.mxu0 0
  %475 = vmatpush1.bf16.msra.mxu0 0
  %476 = vmatprep.subr.bf16.mxu0 0
  %477 = vmatpush1.bf16.msra.mxu0 0
  %478 = vmatprep.subr.bf16.mxu0 0
  %479 = vmatpush1.bf16.msra.mxu0 0
  %480 = vmatprep.subr.bf16.mxu0 0
  %481 = vmatpush1.bf16.msra.mxu0 0
  %482 = vmatprep.subr.bf16.mxu0 0
  %483 = vmatpush1.bf16.msra.mxu0 0
  %484 = vmatprep.subr.bf16.mxu0 0
  %485 = vmatpush1.bf16.msra.mxu0 0
  %486 = vmatprep.subr.bf16.mxu0 0
  %487 = vmatpush1.bf16.msra.mxu0 0
  %488 = vmatprep.mubr.bf16.mxu0 0
  %489 = vmatmul.mubr.bf16.gmra.mrb[0].mxu0 %v451
  %v490 = vpop.f32.mrb[0].mxu0
  %v491 = vadd.f32 0.0, %v490
  %v492 = vpop.f32.mrb[0].mxu0
  %v493 = vpop.f32.mrb[0].mxu0
  %v494 = vpop.f32.mrb[0].mxu0
  %495 = vdwg.mxu0
  %v496 = vpack.c.bf16 %v491, %v491
  %v498 = vunpack.c.l.b16 %v496
  %v499 = vpack.c.b16 %v498, %v498
  %500 = vrot.lane.b32.xlu0 %v499, 24
  %v501 = vpop.permute.xlu0 %500
  %vm503 = vcmask 257216
  %504 = vst.msk [vmem:[%s2] sm:$0xf] %vm503, %v501
  %vm505 = vcmask 1043712
  %506 = vst.msk [vmem:[%s2] sm:$0xf] %vm505, 0
  %v507 = vld [vmem:[%s0 + $0xc] sm:$0xf]
  %v508 = vld [vmem:[%s0 + $0x10] sm:$0xf]
  %v509 = vld [vmem:[%s0 + $0x14] sm:$0xf]
  %s510 = scalar_lea.vmem %s1, 1
  %v511 = vld [vmem:[%s510] sm:$0x1]
  %v513 = vsel %vm16, %v507, 0
  %v516 = vsel %vm16, %v508, 0
  %518 = vmatprep.subr.bf16.mxu0 0
  %519 = vmatpush1.bf16.xpose.msra.mxu0 %v516
  %520 = vmatprep.subr.bf16.mxu0 0
  %521 = vmatpush1.bf16.xpose.msra.mxu0 0
  %522 = vmatprep.subr.bf16.mxu0 0
  %523 = vmatpush1.bf16.xpose.msra.mxu0 0
  %524 = vmatprep.subr.bf16.mxu0 0
  %525 = vmatpush1.bf16.xpose.msra.mxu0 0
  %526 = vmatprep.subr.bf16.mxu0 0
  %527 = vmatpush1.bf16.xpose.msra.mxu0 0
  %528 = vmatprep.subr.bf16.mxu0 0
  %529 = vmatpush1.bf16.xpose.msra.mxu0 0
  %530 = vmatprep.subr.bf16.mxu0 0
  %531 = vmatpush1.bf16.xpose.msra.mxu0 0
  %532 = vmatprep.subr.bf16.mxu0 0
  %533 = vmatpush1.bf16.xpose.msra.mxu0 0
  %534 = vmatprep.subr.bf16.mxu0 0
  %535 = vmatpush1.bf16.xpose.msra.mxu0 0
  %536 = vmatprep.subr.bf16.mxu0 0
  %537 = vmatpush1.bf16.xpose.msra.mxu0 0
  %538 = vmatprep.subr.bf16.mxu0 0
  %539 = vmatpush1.bf16.xpose.msra.mxu0 0
  %540 = vmatprep.subr.bf16.mxu0 0
  %541 = vmatpush1.bf16.xpose.msra.mxu0 0
  %542 = vmatprep.subr.bf16.mxu0 0
  %543 = vmatpush1.bf16.xpose.msra.mxu0 0
  %544 = vmatprep.subr.bf16.mxu0 0
  %545 = vmatpush1.bf16.xpose.msra.mxu0 0
  %546 = vmatprep.subr.bf16.mxu0 0
  %547 = vmatpush1.bf16.xpose.msra.mxu0 0
  %548 = vmatprep.subr.bf16.mxu0 0
  %549 = vmatpush1.bf16.xpose.msra.mxu0 0
  %550 = vmatprep.mubr.bf16.mxu0 0
  %551 = vmatmul.mubr.bf16.gmra.mrb[0].mxu0 %v513
  %v552 = vpop.f32.mrb[0].mxu0
  %v553 = vadd.f32 0.0, %v552
  %v554 = vpop.f32.mrb[0].mxu0
  %v555 = vpop.f32.mrb[0].mxu0
  %v556 = vpop.f32.mrb[0].mxu0
  %557 = vdwg.mxu0
  %v558 = vmul.f32 %v553, 0.35355338
  %v560 = vlaneseq
  %v561 = vshrl.u32 %v560, 7
  %v562 = vsub.s32 0, %v561
  %v563 = vrot.slane %v511, %v562
  %v565 = vadd.f32 %v558, %v563
  %v566 = vsel %vm16, %v565, -inf
  %567 = vmax.xlane.f32.xlu0 %v566
  %v568 = vpop.xlane.xlu0 %567
  %v569 = vsub.f32 %v565, %v568
  %v570 = vmul.f32 %v569, 1.442695
  %v571 = vpow.pop %v570
  %v572 = vsel %vm16, %v571, 0.0
  %573 = vadd.xlane.f32.xlu0 %v572
  %v574 = vpop.xlane.xlu0 %573
  %v575 = vrcp.pop %v574
  %v576 = vmul.f32 %v571, %v575
  %v577 = vpack.c.bf16 %v576, %v576
  %v579 = vsel %vm16, %v577, 0
  %v582 = vsel %vm86, %v509, 0
  %584 = vmatprep.subr.bf16.mxu0 0
  %585 = vmatpush1.bf16.msra.mxu0 %v582
  %586 = vmatprep.subr.bf16.mxu0 0
  %587 = vmatpush1.bf16.msra.mxu0 0
  %588 = vmatprep.subr.bf16.mxu0 0
  %589 = vmatpush1.bf16.msra.mxu0 0
  %590 = vmatprep.subr.bf16.mxu0 0
  %591 = vmatpush1.bf16.msra.mxu0 0
  %592 = vmatprep.subr.bf16.mxu0 0
  %593 = vmatpush1.bf16.msra.mxu0 0
  %594 = vmatprep.subr.bf16.mxu0 0
  %595 = vmatpush1.bf16.msra.mxu0 0
  %596 = vmatprep.subr.bf16.mxu0 0
  %597 = vmatpush1.bf16.msra.mxu0 0
  %598 = vmatprep.subr.bf16.mxu0 0
  %599 = vmatpush1.bf16.msra.mxu0 0
  %600 = vmatprep.subr.bf16.mxu0 0
  %601 = vmatpush1.bf16.msra.mxu0 0
  %602 = vmatprep.subr.bf16.mxu0 0
  %603 = vmatpush1.bf16.msra.mxu0 0
  %604 = vmatprep.subr.bf16.mxu0 0
  %605 = vmatpush1.bf16.msra.mxu0 0
  %606 = vmatprep.subr.bf16.mxu0 0
  %607 = vmatpush1.bf16.msra.mxu0 0
  %608 = vmatprep.subr.bf16.mxu0 0
  %609 = vmatpush1.bf16.msra.mxu0 0
  %610 = vmatprep.subr.bf16.mxu0 0
  %611 = vmatpush1.bf16.msra.mxu0 0
  %612 = vmatprep.subr.bf16.mxu0 0
  %613 = vmatpush1.bf16.msra.mxu0 0
  %614 = vmatprep.subr.bf16.mxu0 0
  %615 = vmatpush1.bf16.msra.mxu0 0
  %616 = vmatprep.mubr.bf16.mxu0 0
  %617 = vmatmul.mubr.bf16.gmra.mrb[0].mxu0 %v579
  %v618 = vpop.f32.mrb[0].mxu0
  %v619 = vadd.f32 0.0, %v618
  %v620 = vpop.f32.mrb[0].mxu0
  %v621 = vpop.f32.mrb[0].mxu0
  %v622 = vpop.f32.mrb[0].mxu0
  %623 = vdwg.mxu0
  %v624 = vpack.c.bf16 %v619, %v619
  %625 = vst.msk [vmem:[%s2 + $0x4] sm:$0xf] %vm131, %v624
  %v627 = vunpack.c.l.b16 %v507
  %v628 = vpack.c.b16 %v627, %v627
  %629 = vrot.lane.b32.xlu0 %v628, 120
  %v630 = vpop.permute.xlu0 %629
  %v632 = vunpack.c.l.b16 %v508
  %v633 = vpack.c.b16 %v632, %v632
  %634 = vrot.lane.b32.xlu0 %v633, 120
  %v635 = vpop.permute.xlu0 %634
  %v637 = vsel %vm16, %v630, 0
  %v640 = vsel %vm16, %v635, 0
  %642 = vmatprep.subr.bf16.mxu0 0
  %643 = vmatpush1.bf16.xpose.msra.mxu0 %v640
  %644 = vmatprep.subr.bf16.mxu0 0
  %645 = vmatpush1.bf16.xpose.msra.mxu0 0
  %646 = vmatprep.subr.bf16.mxu0 0
  %647 = vmatpush1.bf16.xpose.msra.mxu0 0
  %648 = vmatprep.subr.bf16.mxu0 0
  %649 = vmatpush1.bf16.xpose.msra.mxu0 0
  %650 = vmatprep.subr.bf16.mxu0 0
  %651 = vmatpush1.bf16.xpose.msra.mxu0 0
  %652 = vmatprep.subr.bf16.mxu0 0
  %653 = vmatpush1.bf16.xpose.msra.mxu0 0
  %654 = vmatprep.subr.bf16.mxu0 0
  %655 = vmatpush1.bf16.xpose.msra.mxu0 0
  %656 = vmatprep.subr.bf16.mxu0 0
  %657 = vmatpush1.bf16.xpose.msra.mxu0 0
  %658 = vmatprep.subr.bf16.mxu0 0
  %659 = vmatpush1.bf16.xpose.msra.mxu0 0
  %660 = vmatprep.subr.bf16.mxu0 0
  %661 = vmatpush1.bf16.xpose.msra.mxu0 0
  %662 = vmatprep.subr.bf16.mxu0 0
  %663 = vmatpush1.bf16.xpose.msra.mxu0 0
  %664 = vmatprep.subr.bf16.mxu0 0
  %665 = vmatpush1.bf16.xpose.msra.mxu0 0
  %666 = vmatprep.subr.bf16.mxu0 0
  %667 = vmatpush1.bf16.xpose.msra.mxu0 0
  %668 = vmatprep.subr.bf16.mxu0 0
  %669 = vmatpush1.bf16.xpose.msra.mxu0 0
  %670 = vmatprep.subr.bf16.mxu0 0
  %671 = vmatpush1.bf16.xpose.msra.mxu0 0
  %672 = vmatprep.subr.bf16.mxu0 0
  %673 = vmatpush1.bf16.xpose.msra.mxu0 0
  %674 = vmatprep.mubr.bf16.mxu0 0
  %675 = vmatmul.mubr.bf16.gmra.mrb[0].mxu0 %v637
  %v676 = vpop.f32.mrb[0].mxu0
  %v677 = vadd.f32 0.0, %v676
  %v678 = vpop.f32.mrb[0].mxu0
  %v679 = vpop.f32.mrb[0].mxu0
  %v680 = vpop.f32.mrb[0].mxu0
  %681 = vdwg.mxu0
  %v682 = vmul.f32 %v677, 0.35355338
  %v683 = vadd.f32 %v682, %v563
  %v684 = vsel %vm16, %v683, -inf
  %685 = vmax.xlane.f32.xlu0 %v684
  %v686 = vpop.xlane.xlu0 %685
  %v687 = vsub.f32 %v683, %v686
  %v688 = vmul.f32 %v687, 1.442695
  %v689 = vpow.pop %v688
  %v690 = vsel %vm16, %v689, 0.0
  %691 = vadd.xlane.f32.xlu0 %v690
  %v692 = vpop.xlane.xlu0 %691
  %v693 = vrcp.pop %v692
  %v694 = vmul.f32 %v689, %v693
  %v695 = vpack.c.bf16 %v694, %v694
  %v697 = vunpack.c.l.b16 %v509
  %v698 = vpack.c.b16 %v697, %v697
  %699 = vrot.lane.b32.xlu0 %v698, 120
  %v700 = vpop.permute.xlu0 %699
  %v702 = vsel %vm16, %v695, 0
  %v705 = vsel %vm86, %v700, 0
  %707 = vmatprep.subr.bf16.mxu0 0
  %708 = vmatpush1.bf16.msra.mxu0 %v705
  %709 = vmatprep.subr.bf16.mxu0 0
  %710 = vmatpush1.bf16.msra.mxu0 0
  %711 = vmatprep.subr.bf16.mxu0 0
  %712 = vmatpush1.bf16.msra.mxu0 0
  %713 = vmatprep.subr.bf16.mxu0 0
  %714 = vmatpush1.bf16.msra.mxu0 0
  %715 = vmatprep.subr.bf16.mxu0 0
  %716 = vmatpush1.bf16.msra.mxu0 0
  %717 = vmatprep.subr.bf16.mxu0 0
  %718 = vmatpush1.bf16.msra.mxu0 0
  %719 = vmatprep.subr.bf16.mxu0 0
  %720 = vmatpush1.bf16.msra.mxu0 0
  %721 = vmatprep.subr.bf16.mxu0 0
  %722 = vmatpush1.bf16.msra.mxu0 0
  %723 = vmatprep.subr.bf16.mxu0 0
  %724 = vmatpush1.bf16.msra.mxu0 0
  %725 = vmatprep.subr.bf16.mxu0 0
  %726 = vmatpush1.bf16.msra.mxu0 0
  %727 = vmatprep.subr.bf16.mxu0 0
  %728 = vmatpush1.bf16.msra.mxu0 0
  %729 = vmatprep.subr.bf16.mxu0 0
  %730 = vmatpush1.bf16.msra.mxu0 0
  %731 = vmatprep.subr.bf16.mxu0 0
  %732 = vmatpush1.bf16.msra.mxu0 0
  %733 = vmatprep.subr.bf16.mxu0 0
  %734 = vmatpush1.bf16.msra.mxu0 0
  %735 = vmatprep.subr.bf16.mxu0 0
  %736 = vmatpush1.bf16.msra.mxu0 0
  %737 = vmatprep.subr.bf16.mxu0 0
  %738 = vmatpush1.bf16.msra.mxu0 0
  %739 = vmatprep.mubr.bf16.mxu0 0
  %740 = vmatmul.mubr.bf16.gmra.mrb[0].mxu0 %v702
  %v741 = vpop.f32.mrb[0].mxu0
  %v742 = vadd.f32 0.0, %v741
  %v743 = vpop.f32.mrb[0].mxu0
  %v744 = vpop.f32.mrb[0].mxu0
  %v745 = vpop.f32.mrb[0].mxu0
  %746 = vdwg.mxu0
  %v747 = vpack.c.bf16 %v742, %v742
  %v749 = vunpack.c.l.b16 %v747
  %v750 = vpack.c.b16 %v749, %v749
  %751 = vrot.lane.b32.xlu0 %v750, 8
  %v752 = vpop.permute.xlu0 %751
  %754 = vst.msk [vmem:[%s2 + $0x4] sm:$0xf] %vm261, %v752
  %755 = vrot.lane.b32.xlu0 %v628, 112
  %v756 = vpop.permute.xlu0 %755
  %757 = vrot.lane.b32.xlu0 %v633, 112
  %v758 = vpop.permute.xlu0 %757
  %v760 = vsel %vm16, %v756, 0
  %v763 = vsel %vm16, %v758, 0
  %765 = vmatprep.subr.bf16.mxu0 0
  %766 = vmatpush1.bf16.xpose.msra.mxu0 %v763
  %767 = vmatprep.subr.bf16.mxu0 0
  %768 = vmatpush1.bf16.xpose.msra.mxu0 0
  %769 = vmatprep.subr.bf16.mxu0 0
  %770 = vmatpush1.bf16.xpose.msra.mxu0 0
  %771 = vmatprep.subr.bf16.mxu0 0
  %772 = vmatpush1.bf16.xpose.msra.mxu0 0
  %773 = vmatprep.subr.bf16.mxu0 0
  %774 = vmatpush1.bf16.xpose.msra.mxu0 0
  %775 = vmatprep.subr.bf16.mxu0 0
  %776 = vmatpush1.bf16.xpose.msra.mxu0 0
  %777 = vmatprep.subr.bf16.mxu0 0
  %778 = vmatpush1.bf16.xpose.msra.mxu0 0
  %779 = vmatprep.subr.bf16.mxu0 0
  %780 = vmatpush1.bf16.xpose.msra.mxu0 0
  %781 = vmatprep.subr.bf16.mxu0 0
  %782 = vmatpush1.bf16.xpose.msra.mxu0 0
  %783 = vmatprep.subr.bf16.mxu0 0
  %784 = vmatpush1.bf16.xpose.msra.mxu0 0
  %785 = vmatprep.subr.bf16.mxu0 0
  %786 = vmatpush1.bf16.xpose.msra.mxu0 0
  %787 = vmatprep.subr.bf16.mxu0 0
  %788 = vmatpush1.bf16.xpose.msra.mxu0 0
  %789 = vmatprep.subr.bf16.mxu0 0
  %790 = vmatpush1.bf16.xpose.msra.mxu0 0
  %791 = vmatprep.subr.bf16.mxu0 0
  %792 = vmatpush1.bf16.xpose.msra.mxu0 0
  %793 = vmatprep.subr.bf16.mxu0 0
  %794 = vmatpush1.bf16.xpose.msra.mxu0 0
  %795 = vmatprep.subr.bf16.mxu0 0
  %796 = vmatpush1.bf16.xpose.msra.mxu0 0
  %797 = vmatprep.mubr.bf16.mxu0 0
  %798 = vmatmul.mubr.bf16.gmra.mrb[0].mxu0 %v760
  %v799 = vpop.f32.mrb[0].mxu0
  %v800 = vadd.f32 0.0, %v799
  %v801 = vpop.f32.mrb[0].mxu0
  %v802 = vpop.f32.mrb[0].mxu0
  %v803 = vpop.f32.mrb[0].mxu0
  %804 = vdwg.mxu0
  %v805 = vmul.f32 %v800, 0.35355338
  %v806 = vadd.f32 %v805, %v563
  %v807 = vsel %vm16, %v806, -inf
  %808 = vmax.xlane.f32.xlu0 %v807
  %v809 = vpop.xlane.xlu0 %808
  %v810 = vsub.f32 %v806, %v809
  %v811 = vmul.f32 %v810, 1.442695
  %v812 = vpow.pop %v811
  %v813 = vsel %vm16, %v812, 0.0
  %814 = vadd.xlane.f32.xlu0 %v813
  %v815 = vpop.xlane.xlu0 %814
  %v816 = vrcp.pop %v815
  %v817 = vmul.f32 %v812, %v816
  %v818 = vpack.c.bf16 %v817, %v817
  %819 = vrot.lane.b32.xlu0 %v698, 112
  %v820 = vpop.permute.xlu0 %819
  %v822 = vsel %vm16, %v818, 0
  %v825 = vsel %vm86, %v820, 0
  %827 = vmatprep.subr.bf16.mxu0 0
  %828 = vmatpush1.bf16.msra.mxu0 %v825
  %829 = vmatprep.subr.bf16.mxu0 0
  %830 = vmatpush1.bf16.msra.mxu0 0
  %831 = vmatprep.subr.bf16.mxu0 0
  %832 = vmatpush1.bf16.msra.mxu0 0
  %833 = vmatprep.subr.bf16.mxu0 0
  %834 = vmatpush1.bf16.msra.mxu0 0
  %835 = vmatprep.subr.bf16.mxu0 0
  %836 = vmatpush1.bf16.msra.mxu0 0
  %837 = vmatprep.subr.bf16.mxu0 0
  %838 = vmatpush1.bf16.msra.mxu0 0
  %839 = vmatprep.subr.bf16.mxu0 0
  %840 = vmatpush1.bf16.msra.mxu0 0
  %841 = vmatprep.subr.bf16.mxu0 0
  %842 = vmatpush1.bf16.msra.mxu0 0
  %843 = vmatprep.subr.bf16.mxu0 0
  %844 = vmatpush1.bf16.msra.mxu0 0
  %845 = vmatprep.subr.bf16.mxu0 0
  %846 = vmatpush1.bf16.msra.mxu0 0
  %847 = vmatprep.subr.bf16.mxu0 0
  %848 = vmatpush1.bf16.msra.mxu0 0
  %849 = vmatprep.subr.bf16.mxu0 0
  %850 = vmatpush1.bf16.msra.mxu0 0
  %851 = vmatprep.subr.bf16.mxu0 0
  %852 = vmatpush1.bf16.msra.mxu0 0
  %853 = vmatprep.subr.bf16.mxu0 0
  %854 = vmatpush1.bf16.msra.mxu0 0
  %855 = vmatprep.subr.bf16.mxu0 0
  %856 = vmatpush1.bf16.msra.mxu0 0
  %857 = vmatprep.subr.bf16.mxu0 0
  %858 = vmatpush1.bf16.msra.mxu0 0
  %859 = vmatprep.mubr.bf16.mxu0 0
  %860 = vmatmul.mubr.bf16.gmra.mrb[0].mxu0 %v822
  %v861 = vpop.f32.mrb[0].mxu0
  %v862 = vadd.f32 0.0, %v861
  %v863 = vpop.f32.mrb[0].mxu0
  %v864 = vpop.f32.mrb[0].mxu0
  %v865 = vpop.f32.mrb[0].mxu0
  %866 = vdwg.mxu0
  %v867 = vpack.c.bf16 %v862, %v862
  %v869 = vunpack.c.l.b16 %v867
  %v870 = vpack.c.b16 %v869, %v869
  %871 = vrot.lane.b32.xlu0 %v870, 16
  %v872 = vpop.permute.xlu0 %871
  %874 = vst.msk [vmem:[%s2 + $0x4] sm:$0xf] %vm382, %v872
  %875 = vrot.lane.b32.xlu0 %v628, 104
  %v876 = vpop.permute.xlu0 %875
  %877 = vrot.lane.b32.xlu0 %v633, 104
  %v878 = vpop.permute.xlu0 %877
  %v880 = vsel %vm16, %v876, 0
  %v883 = vsel %vm16, %v878, 0
  %885 = vmatprep.subr.bf16.mxu0 0
  %886 = vmatpush1.bf16.xpose.msra.mxu0 %v883
  %887 = vmatprep.subr.bf16.mxu0 0
  %888 = vmatpush1.bf16.xpose.msra.mxu0 0
  %889 = vmatprep.subr.bf16.mxu0 0
  %890 = vmatpush1.bf16.xpose.msra.mxu0 0
  %891 = vmatprep.subr.bf16.mxu0 0
  %892 = vmatpush1.bf16.xpose.msra.mxu0 0
  %893 = vmatprep.subr.bf16.mxu0 0
  %894 = vmatpush1.bf16.xpose.msra.mxu0 0
  %895 = vmatprep.subr.bf16.mxu0 0
  %896 = vmatpush1.bf16.xpose.msra.mxu0 0
  %897 = vmatprep.subr.bf16.mxu0 0
  %898 = vmatpush1.bf16.xpose.msra.mxu0 0
  %899 = vmatprep.subr.bf16.mxu0 0
  %900 = vmatpush1.bf16.xpose.msra.mxu0 0
  %901 = vmatprep.subr.bf16.mxu0 0
  %902 = vmatpush1.bf16.xpose.msra.mxu0 0
  %903 = vmatprep.subr.bf16.mxu0 0
  %904 = vmatpush1.bf16.xpose.msra.mxu0 0
  %905 = vmatprep.subr.bf16.mxu0 0
  %906 = vmatpush1.bf16.xpose.msra.mxu0 0
  %907 = vmatprep.subr.bf16.mxu0 0
  %908 = vmatpush1.bf16.xpose.msra.mxu0 0
  %909 = vmatprep.subr.bf16.mxu0 0
  %910 = vmatpush1.bf16.xpose.msra.mxu0 0
  %911 = vmatprep.subr.bf16.mxu0 0
  %912 = vmatpush1.bf16.xpose.msra.mxu0 0
  %913 = vmatprep.subr.bf16.mxu0 0
  %914 = vmatpush1.bf16.xpose.msra.mxu0 0
  %915 = vmatprep.subr.bf16.mxu0 0
  %916 = vmatpush1.bf16.xpose.msra.mxu0 0
  %917 = vmatprep.mubr.bf16.mxu0 0
  %918 = vmatmul.mubr.bf16.gmra.mrb[0].mxu0 %v880
  %v919 = vpop.f32.mrb[0].mxu0
  %v920 = vadd.f32 0.0, %v919
  %v921 = vpop.f32.mrb[0].mxu0
  %v922 = vpop.f32.mrb[0].mxu0
  %v923 = vpop.f32.mrb[0].mxu0
  %924 = vdwg.mxu0
  %v925 = vmul.f32 %v920, 0.35355338
  %v926 = vadd.f32 %v925, %v563
  %v927 = vsel %vm16, %v926, -inf
  %928 = vmax.xlane.f32.xlu0 %v927
  %v929 = vpop.xlane.xlu0 %928
  %v930 = vsub.f32 %v926, %v929
  %v931 = vmul.f32 %v930, 1.442695
  %v932 = vpow.pop %v931
  %v933 = vsel %vm16, %v932, 0.0
  %934 = vadd.xlane.f32.xlu0 %v933
  %v935 = vpop.xlane.xlu0 %934
  %v936 = vrcp.pop %v935
  %v937 = vmul.f32 %v932, %v936
  %v938 = vpack.c.bf16 %v937, %v937
  %939 = vrot.lane.b32.xlu0 %v698, 104
  %v940 = vpop.permute.xlu0 %939
  %v942 = vsel %vm16, %v938, 0
  %v945 = vsel %vm86, %v940, 0
  %947 = vmatprep.subr.bf16.mxu0 0
  %948 = vmatpush1.bf16.msra.mxu0 %v945
  %949 = vmatprep.subr.bf16.mxu0 0
  %950 = vmatpush1.bf16.msra.mxu0 0
  %951 = vmatprep.subr.bf16.mxu0 0
  %952 = vmatpush1.bf16.msra.mxu0 0
  %953 = vmatprep.subr.bf16.mxu0 0
  %954 = vmatpush1.bf16.msra.mxu0 0
  %955 = vmatprep.subr.bf16.mxu0 0
  %956 = vmatpush1.bf16.msra.mxu0 0
  %957 = vmatprep.subr.bf16.mxu0 0
  %958 = vmatpush1.bf16.msra.mxu0 0
  %959 = vmatprep.subr.bf16.mxu0 0
  %960 = vmatpush1.bf16.msra.mxu0 0
  %961 = vmatprep.subr.bf16.mxu0 0
  %962 = vmatpush1.bf16.msra.mxu0 0
  %963 = vmatprep.subr.bf16.mxu0 0
  %964 = vmatpush1.bf16.msra.mxu0 0
  %965 = vmatprep.subr.bf16.mxu0 0
  %966 = vmatpush1.bf16.msra.mxu0 0
  %967 = vmatprep.subr.bf16.mxu0 0
  %968 = vmatpush1.bf16.msra.mxu0 0
  %969 = vmatprep.subr.bf16.mxu0 0
  %970 = vmatpush1.bf16.msra.mxu0 0
  %971 = vmatprep.subr.bf16.mxu0 0
  %972 = vmatpush1.bf16.msra.mxu0 0
  %973 = vmatprep.subr.bf16.mxu0 0
  %974 = vmatpush1.bf16.msra.mxu0 0
  %975 = vmatprep.subr.bf16.mxu0 0
  %976 = vmatpush1.bf16.msra.mxu0 0
  %977 = vmatprep.subr.bf16.mxu0 0
  %978 = vmatpush1.bf16.msra.mxu0 0
  %979 = vmatprep.mubr.bf16.mxu0 0
  %980 = vmatmul.mubr.bf16.gmra.mrb[0].mxu0 %v942
  %v981 = vpop.f32.mrb[0].mxu0
  %v982 = vadd.f32 0.0, %v981
  %v983 = vpop.f32.mrb[0].mxu0
  %v984 = vpop.f32.mrb[0].mxu0
  %v985 = vpop.f32.mrb[0].mxu0
  %986 = vdwg.mxu0
  %v987 = vpack.c.bf16 %v982, %v982
  %v989 = vunpack.c.l.b16 %v987
  %v990 = vpack.c.b16 %v989, %v989
  %991 = vrot.lane.b32.xlu0 %v990, 24
  %v992 = vpop.permute.xlu0 %991
  %994 = vst.msk [vmem:[%s2 + $0x4] sm:$0xf] %vm503, %v992
  %995 = vst.msk [vmem:[%s2 + $0x4] sm:$0xf] %vm505, 0
  // Predicated region
  $region10: #{_lambda_.33} parent=0 // pred_check
    _
  $region11: #{_lambda_.33} parent=0 // pred_check_branch
    %997 = sbr.rel (0) target = $region13
  $region12: #{_lambda_.33} parent=0 // pred_region
    _
  $region13: #{_lambda_.33} parent=0 // pred_fallthru
    _
  // Predicated region
  $region14: #{_lambda_.33} parent=0 // pred_check
    _
  $region15: #{_lambda_.33} parent=0 // pred_check_branch
    %999 = sbr.rel (0) target = $region17
  $region16: #{_lambda_.33} parent=0 // pred_region
    _
  $region17: #{_lambda_.33} parent=0 // pred_fallthru
    _

// kernel: _lambda_.47
$region0: #{_lambda_.47}
  #allocation0 [shape = 'u32[]', space=smem, size = 0x4, offset = 0x4, fixed_abs, tag = 'smem constant byte address 0x4 - core index']
  #allocation1 [shape = 'u32[144,128]{1,0:T(1,128)}', space=vmem, size = 0x12000, scoped, tag = 'internal scratch']
  #allocation2 [shape = 'f32[16,256]{1,0:T(8,128)}', space=vmem, size = 0x4000, scoped, tag = 'scratch operand']
  %s0 = inlined_call_operand.vmem [shape: bf16[16,128], index: 0, kind: input, shape index: {}]
  %s1 = inlined_call_operand.vmem [shape: bf16[128,256], index: 1, kind: input, shape index: {}]
  %s2 = inlined_call_operand.vmem [shape: f32[1,256], index: 2, kind: input, shape index: {}]
  %s3 = inlined_call_operand.vmem [shape: bf16[16,256], index: 3, kind: output, shape index: {}]
  %s4 = sld [smem:[#allocation0]]
  $region30: #{_lambda_.47} parent=0
    _
  %s6 = ssub.s32 1, %s4
  %s7 = scalar_select 0, %s6, %s4
  // Predicated region
  $region2: #{_lambda_.47} parent=0 // pred_check
    _
  $region3: #{_lambda_.47} parent=0 // pred_check_branch
    %9 = sbr.rel (0) target = $region5
  $region4: #{_lambda_.47} parent=0 // pred_region
    _
  $region5: #{_lambda_.47} parent=0 // pred_fallthru
    _
  // Predicated region
  $region6: #{_lambda_.47} parent=0 // pred_check
    _
  $region7: #{_lambda_.47} parent=0 // pred_check_branch
    %11 = sbr.rel (0) target = $region9
  $region8: #{_lambda_.47} parent=0 // pred_region
    _
  $region9: #{_lambda_.47} parent=0 // pred_fallthru
    _
  // Predicated region
  $region10: #{_lambda_.47} parent=0 // pred_check
    _
  $region11: #{_lambda_.47} parent=0 // pred_check_branch
    %13 = sbr.rel (0) target = $region13
  $region12: #{_lambda_.47} parent=0 // pred_region
    _
  $region13: #{_lambda_.47} parent=0 // pred_fallthru
    _
  %p15 = scmp.eq.s32.totalorder 0, 0
  // Predicated region
  $region14: #{_lambda_.47} parent=0 // pred_check
    %p16 = pneg %p15
  $region15: #{_lambda_.47} parent=0 // pred_check_branch
    %18 = sbr.rel (%p16) target = $region17
  $region16: #{_lambda_.47} parent=0 // pred_region
    %19 = vst [vmem:[#allocation2] sm:$0xff] 0.0
    %20 = vst [vmem:[#allocation2 + $0x8] sm:$0xff] 0.0
    %21 = vst [vmem:[#allocation2 + $0x10] sm:$0xff] 0.0
    %22 = vst [vmem:[#allocation2 + $0x18] sm:$0xff] 0.0
  $region17: #{_lambda_.47} parent=0 // pred_fallthru
    _
  %v23 = vld [vmem:[#allocation2] sm:$0xff]
  %v24 = vld [vmem:[#allocation2 + $0x8] sm:$0xff]
  %v25 = vld [vmem:[#allocation2 + $0x10] sm:$0xff]
  %v26 = vld [vmem:[#allocation2 + $0x18] sm:$0xff]
  %v27 = vld [vmem:[%s0] sm:$0xf]
  %v28 = vld [vmem:[%s0 + $0x4] sm:$0xf]
  %v29 = vld [vmem:[%s1] sm:$0xff]
  %v30 = vld [vmem:[%s1 + $0x8] sm:$0xff]
  %v31 = vld [vmem:[%s1 + $0x10] sm:$0xff]
  %v32 = vld [vmem:[%s1 + $0x18] sm:$0xff]
  %v33 = vld [vmem:[%s1 + $0x20] sm:$0xff]
  %v34 = vld [vmem:[%s1 + $0x28] sm:$0xff]
  %v35 = vld [vmem:[%s1 + $0x30] sm:$0xff]
  %v36 = vld [vmem:[%s1 + $0x38] sm:$0xff]
  %v37 = vld [vmem:[%s1 + $0x40] sm:$0xff]
  %v38 = vld [vmem:[%s1 + $0x48] sm:$0xff]
  %v39 = vld [vmem:[%s1 + $0x50] sm:$0xff]
  %v40 = vld [vmem:[%s1 + $0x58] sm:$0xff]
  %v41 = vld [vmem:[%s1 + $0x60] sm:$0xff]
  %v42 = vld [vmem:[%s1 + $0x68] sm:$0xff]
  %v43 = vld [vmem:[%s1 + $0x70] sm:$0xff]
  %v44 = vld [vmem:[%s1 + $0x78] sm:$0xff]
  %v47 = vunpack.c.l.b16 %v27
  %v48 = vunpack.c.l.b16 %v28
  %v49 = vpack.c.b16 %v48, %v47
  %v67 = vunpack.c.l.b16 %v29
  %v68 = vunpack.c.h.b16 %v29
  %v69 = vunpack.c.l.b16 %v30
  %v70 = vunpack.c.h.b16 %v30
  %v71 = vunpack.c.l.b16 %v31
  %v72 = vunpack.c.h.b16 %v31
  %v73 = vunpack.c.l.b16 %v32
  %v74 = vunpack.c.h.b16 %v32
  %v75 = vunpack.c.l.b16 %v33
  %v76 = vunpack.c.h.b16 %v33
  %v77 = vunpack.c.l.b16 %v34
  %v78 = vunpack.c.h.b16 %v34
  %v79 = vunpack.c.l.b16 %v35
  %v80 = vunpack.c.h.b16 %v35
  %v81 = vunpack.c.l.b16 %v36
  %v82 = vunpack.c.h.b16 %v36
  %v83 = vunpack.c.l.b16 %v37
  %v84 = vunpack.c.h.b16 %v37
  %v85 = vunpack.c.l.b16 %v38
  %v86 = vunpack.c.h.b16 %v38
  %v87 = vunpack.c.l.b16 %v39
  %v88 = vunpack.c.h.b16 %v39
  %v89 = vunpack.c.l.b16 %v40
  %v90 = vunpack.c.h.b16 %v40
  %v91 = vunpack.c.l.b16 %v41
  %v92 = vunpack.c.h.b16 %v41
  %v93 = vunpack.c.l.b16 %v42
  %v94 = vunpack.c.h.b16 %v42
  %v95 = vunpack.c.l.b16 %v43
  %v96 = vunpack.c.h.b16 %v43
  %v97 = vunpack.c.l.b16 %v44
  %v98 = vunpack.c.h.b16 %v44
  %v99 = vpack.c.b16 %v69, %v67
  %v100 = vpack.c.b16 %v70, %v68
  %v101 = vpack.c.b16 %v73, %v71
  %v102 = vpack.c.b16 %v74, %v72
  %v103 = vpack.c.b16 %v77, %v75
  %v104 = vpack.c.b16 %v78, %v76
  %v105 = vpack.c.b16 %v81, %v79
  %v106 = vpack.c.b16 %v82, %v80
  %v107 = vpack.c.b16 %v85, %v83
  %v108 = vpack.c.b16 %v86, %v84
  %v109 = vpack.c.b16 %v89, %v87
  %v110 = vpack.c.b16 %v90, %v88
  %v111 = vpack.c.b16 %v93, %v91
  %v112 = vpack.c.b16 %v94, %v92
  %v113 = vpack.c.b16 %v97, %v95
  %v114 = vpack.c.b16 %v98, %v96
  %131 = vmatprep.subr.bf16.mxu0 %v100
  %132 = vmatpush1.bf16.msra.mxu0 %v99
  %133 = vmatprep.subr.bf16.mxu0 %v102
  %134 = vmatpush1.bf16.msra.mxu0 %v101
  %135 = vmatprep.subr.bf16.mxu0 %v104
  %136 = vmatpush1.bf16.msra.mxu0 %v103
  %137 = vmatprep.subr.bf16.mxu0 %v106
  %138 = vmatpush1.bf16.msra.mxu0 %v105
  %139 = vmatprep.subr.bf16.mxu0 %v108
  %140 = vmatpush1.bf16.msra.mxu0 %v107
  %141 = vmatprep.subr.bf16.mxu0 %v110
  %142 = vmatpush1.bf16.msra.mxu0 %v109
  %143 = vmatprep.subr.bf16.mxu0 %v112
  %144 = vmatpush1.bf16.msra.mxu0 %v111
  %145 = vmatprep.subr.bf16.mxu0 %v114
  %146 = vmatpush1.bf16.msra.mxu0 %v113
  %147 = vmatprep.subr.bf16.mxu0 0
  %148 = vmatpush1.bf16.msra.mxu0 0
  %149 = vmatprep.subr.bf16.mxu0 0
  %150 = vmatpush1.bf16.msra.mxu0 0
  %151 = vmatprep.subr.bf16.mxu0 0
  %152 = vmatpush1.bf16.msra.mxu0 0
  %153 = vmatprep.subr.bf16.mxu0 0
  %154 = vmatpush1.bf16.msra.mxu0 0
  %155 = vmatprep.subr.bf16.mxu0 0
  %156 = vmatpush1.bf16.msra.mxu0 0
  %157 = vmatprep.subr.bf16.mxu0 0
  %158 = vmatpush1.bf16.msra.mxu0 0
  %159 = vmatprep.subr.bf16.mxu0 0
  %160 = vmatpush1.bf16.msra.mxu0 0
  %161 = vmatprep.subr.bf16.mxu0 0
  %162 = vmatpush1.bf16.msra.mxu0 0
  %163 = vmatprep.mubr.bf16.mxu0 0
  %164 = vmatmul.mubr.bf16.gmra.mrb[0].mxu0 %v49
  %v165 = vpop.f32.mrb[0].mxu0
  %v166 = vadd.f32 0.0, %v165
  %v167 = vpop.f32.mrb[0].mxu0
  %v168 = vadd.f32 0.0, %v167
  %v169 = vpop.f32.mrb[0].mxu0
  %v170 = vadd.f32 0.0, %v169
  %v171 = vpop.f32.mrb[0].mxu0
  %v172 = vadd.f32 0.0, %v171
  %173 = vdwg.mxu0
  %v174 = vadd.f32 %v23, %v166
  %v175 = vadd.f32 %v24, %v168
  %v176 = vadd.f32 %v25, %v170
  %v177 = vadd.f32 %v26, %v172
  %178 = vst [vmem:[#allocation2] sm:$0xff] %v174
  %179 = vst [vmem:[#allocation2 + $0x8] sm:$0xff] %v175
  %180 = vst [vmem:[#allocation2 + $0x10] sm:$0xff] %v176
  %181 = vst [vmem:[#allocation2 + $0x18] sm:$0xff] %v177
  // Predicated region
  $region18: #{_lambda_.47} parent=0 // pred_check
    %p182 = pneg %p15
  $region19: #{_lambda_.47} parent=0 // pred_check_branch
    %184 = sbr.rel (%p182) target = $region21
  $region20: #{_lambda_.47} parent=0 // pred_region
    %v185 = vld [vmem:[#allocation2] sm:$0xff]
    %v186 = vld [vmem:[#allocation2 + $0x8] sm:$0xff]
    %v187 = vld [vmem:[#allocation2 + $0x10] sm:$0xff]
    %v188 = vld [vmem:[#allocation2 + $0x18] sm:$0xff]
    %v189 = vld [vmem:[%s2] sm:$0x3]
    %v191 = vlaneseq
    %v192 = vshrl.u32 %v191, 7
    %v193 = vsub.s32 0, %v192
    %v194 = vrot.slane %v189, %v193
    %v195 = vlaneseq
    %v196 = vshrl.u32 %v195, 7
    %v197 = vsub.s32 1, %v196
    %v198 = vrot.slane %v189, %v197
    %v201 = vadd.f32 %v185, %v194
    %v202 = vadd.f32 %v186, %v198
    %v203 = vadd.f32 %v187, %v194
    %v204 = vadd.f32 %v188, %v198
    %v205 = vpack.c.bf16 %v203, %v201
    %v206 = vpack.c.bf16 %v204, %v202
    %v209 = vunpack.c.l.b16 %v205
    %v210 = vunpack.c.l.b16 %v206
    %v211 = vunpack.c.h.b16 %v205
    %v212 = vunpack.c.h.b16 %v206
    %v213 = vpack.c.b16 %v210, %v209
    %v214 = vpack.c.b16 %v212, %v211
    %217 = vst [vmem:[%s3] sm:$0xff] %v213
    %218 = vst [vmem:[%s3 + $0x8] sm:$0xff] %v214
  $region21: #{_lambda_.47} parent=0 // pred_fallthru
    _
  // Predicated region
  $region22: #{_lambda_.47} parent=0 // pred_check
    _
  $region23: #{_lambda_.47} parent=0 // pred_check_branch
    %220 = sbr.rel (0) target = $region25
  $region24: #{_lambda_.47} parent=0 // pred_region
    _
  $region25: #{_lambda_.47} parent=0 // pred_fallthru
    _
  // Predicated region
  $region26: #{_lambda_.47} parent=0 // pred_check
    _
  $region27: #{_lambda_.47} parent=0 // pred_check_branch
    %222 = sbr.rel (0) target = $region29
  $region28: #{_lambda_.47} parent=0 // pred_region
    _
  $region29: #{_lambda_.47} parent=0 // pred_fallthru
    _

// kernel: _lambda_.46
$region0: #{_lambda_.46}
  #allocation0 [shape = 'u32[]', space=smem, size = 0x4, offset = 0x4, fixed_abs, tag = 'smem constant byte address 0x4 - core index']
  #allocation1 [shape = 'u32[144,128]{1,0:T(1,128)}', space=vmem, size = 0x12000, scoped, tag = 'internal scratch']
  #allocation2 [shape = 'f32[16,128]{1,0:T(8,128)}', space=vmem, size = 0x2000, scoped, tag = 'scratch operand']
  %s0 = inlined_call_operand.vmem [shape: bf16[16,128], index: 0, kind: input, shape index: {}]
  %s1 = inlined_call_operand.vmem [shape: bf16[128,128], index: 1, kind: input, shape index: {}]
  %s2 = inlined_call_operand.vmem [shape: f32[1,128], index: 2, kind: input, shape index: {}]
  %s3 = inlined_call_operand.vmem [shape: bf16[16,128], index: 3, kind: output, shape index: {}]
  %s4 = sld [smem:[#allocation0]]
  $region30: #{_lambda_.46} parent=0
    _
  %s6 = ssub.s32 1, %s4
  %s7 = scalar_select 0, %s6, %s4
  // Predicated region
  $region2: #{_lambda_.46} parent=0 // pred_check
    _
  $region3: #{_lambda_.46} parent=0 // pred_check_branch
    %9 = sbr.rel (0) target = $region5
  $region4: #{_lambda_.46} parent=0 // pred_region
    _
  $region5: #{_lambda_.46} parent=0 // pred_fallthru
    _
  // Predicated region
  $region6: #{_lambda_.46} parent=0 // pred_check
    _
  $region7: #{_lambda_.46} parent=0 // pred_check_branch
    %11 = sbr.rel (0) target = $region9
  $region8: #{_lambda_.46} parent=0 // pred_region
    _
  $region9: #{_lambda_.46} parent=0 // pred_fallthru
    _
  // Predicated region
  $region10: #{_lambda_.46} parent=0 // pred_check
    _
  $region11: #{_lambda_.46} parent=0 // pred_check_branch
    %13 = sbr.rel (0) target = $region13
  $region12: #{_lambda_.46} parent=0 // pred_region
    _
  $region13: #{_lambda_.46} parent=0 // pred_fallthru
    _
  %p15 = scmp.eq.s32.totalorder 0, 0
  // Predicated region
  $region14: #{_lambda_.46} parent=0 // pred_check
    %p16 = pneg %p15
  $region15: #{_lambda_.46} parent=0 // pred_check_branch
    %18 = sbr.rel (%p16) target = $region17
  $region16: #{_lambda_.46} parent=0 // pred_region
    %19 = vst [vmem:[#allocation2] sm:$0xff] 0.0
    %20 = vst [vmem:[#allocation2 + $0x8] sm:$0xff] 0.0
  $region17: #{_lambda_.46} parent=0 // pred_fallthru
    _
  %v21 = vld [vmem:[#allocation2] sm:$0xff]
  %v22 = vld [vmem:[#allocation2 + $0x8] sm:$0xff]
  %v23 = vld [vmem:[%s0] sm:$0xf]
  %v24 = vld [vmem:[%s0 + $0x4] sm:$0xf]
  %v25 = vld [vmem:[%s1] sm:$0xf]
  %v26 = vld [vmem:[%s1 + $0x4] sm:$0xf]
  %v27 = vld [vmem:[%s1 + $0x8] sm:$0xf]
  %v28 = vld [vmem:[%s1 + $0xc] sm:$0xf]
  %v29 = vld [vmem:[%s1 + $0x10] sm:$0xf]
  %v30 = vld [vmem:[%s1 + $0x14] sm:$0xf]
  %v31 = vld [vmem:[%s1 + $0x18] sm:$0xf]
  %v32 = vld [vmem:[%s1 + $0x1c] sm:$0xf]
  %v33 = vld [vmem:[%s1 + $0x20] sm:$0xf]
  %v34 = vld [vmem:[%s1 + $0x24] sm:$0xf]
  %v35 = vld [vmem:[%s1 + $0x28] sm:$0xf]
  %v36 = vld [vmem:[%s1 + $0x2c] sm:$0xf]
  %v37 = vld [vmem:[%s1 + $0x30] sm:$0xf]
  %v38 = vld [vmem:[%s1 + $0x34] sm:$0xf]
  %v39 = vld [vmem:[%s1 + $0x38] sm:$0xf]
  %v40 = vld [vmem:[%s1 + $0x3c] sm:$0xf]
  %v43 = vunpack.c.l.b16 %v23
  %v44 = vunpack.c.l.b16 %v24
  %v45 = vpack.c.b16 %v44, %v43
  %v63 = vunpack.c.l.b16 %v25
  %v64 = vunpack.c.l.b16 %v26
  %v65 = vunpack.c.l.b16 %v27
  %v66 = vunpack.c.l.b16 %v28
  %v67 = vunpack.c.l.b16 %v29
  %v68 = vunpack.c.l.b16 %v30
  %v69 = vunpack.c.l.b16 %v31
  %v70 = vunpack.c.l.b16 %v32
  %v71 = vunpack.c.l.b16 %v33
  %v72 = vunpack.c.l.b16 %v34
  %v73 = vunpack.c.l.b16 %v35
  %v74 = vunpack.c.l.b16 %v36
  %v75 = vunpack.c.l.b16 %v37
  %v76 = vunpack.c.l.b16 %v38
  %v77 = vunpack.c.l.b16 %v39
  %v78 = vunpack.c.l.b16 %v40
  %v79 = vpack.c.b16 %v64, %v63
  %v80 = vpack.c.b16 %v66, %v65
  %v81 = vpack.c.b16 %v68, %v67
  %v82 = vpack.c.b16 %v70, %v69
  %v83 = vpack.c.b16 %v72, %v71
  %v84 = vpack.c.b16 %v74, %v73
  %v85 = vpack.c.b16 %v76, %v75
  %v86 = vpack.c.b16 %v78, %v77
  %95 = vmatprep.subr.bf16.mxu0 0
  %96 = vmatpush1.bf16.msra.mxu0 %v79
  %97 = vmatprep.subr.bf16.mxu0 0
  %98 = vmatpush1.bf16.msra.mxu0 %v80
  %99 = vmatprep.subr.bf16.mxu0 0
  %100 = vmatpush1.bf16.msra.mxu0 %v81
  %101 = vmatprep.subr.bf16.mxu0 0
  %102 = vmatpush1.bf16.msra.mxu0 %v82
  %103 = vmatprep.subr.bf16.mxu0 0
  %104 = vmatpush1.bf16.msra.mxu0 %v83
  %105 = vmatprep.subr.bf16.mxu0 0
  %106 = vmatpush1.bf16.msra.mxu0 %v84
  %107 = vmatprep.subr.bf16.mxu0 0
  %108 = vmatpush1.bf16.msra.mxu0 %v85
  %109 = vmatprep.subr.bf16.mxu0 0
  %110 = vmatpush1.bf16.msra.mxu0 %v86
  %111 = vmatprep.subr.bf16.mxu0 0
  %112 = vmatpush1.bf16.msra.mxu0 0
  %113 = vmatprep.subr.bf16.mxu0 0
  %114 = vmatpush1.bf16.msra.mxu0 0
  %115 = vmatprep.subr.bf16.mxu0 0
  %116 = vmatpush1.bf16.msra.mxu0 0
  %117 = vmatprep.subr.bf16.mxu0 0
  %118 = vmatpush1.bf16.msra.mxu0 0
  %119 = vmatprep.subr.bf16.mxu0 0
  %120 = vmatpush1.bf16.msra.mxu0 0
  %121 = vmatprep.subr.bf16.mxu0 0
  %122 = vmatpush1.bf16.msra.mxu0 0
  %123 = vmatprep.subr.bf16.mxu0 0
  %124 = vmatpush1.bf16.msra.mxu0 0
  %125 = vmatprep.subr.bf16.mxu0 0
  %126 = vmatpush1.bf16.msra.mxu0 0
  %127 = vmatprep.mubr.bf16.mxu0 0
  %128 = vmatmul.mubr.bf16.gmra.mrb[0].mxu0 %v45
  %v129 = vpop.f32.mrb[0].mxu0
  %v130 = vadd.f32 0.0, %v129
  %v131 = vpop.f32.mrb[0].mxu0
  %v132 = vpop.f32.mrb[0].mxu0
  %v133 = vadd.f32 0.0, %v132
  %v134 = vpop.f32.mrb[0].mxu0
  %135 = vdwg.mxu0
  %v136 = vadd.f32 %v21, %v130
  %v137 = vadd.f32 %v22, %v133
  %138 = vst [vmem:[#allocation2] sm:$0xff] %v136
  %139 = vst [vmem:[#allocation2 + $0x8] sm:$0xff] %v137
  // Predicated region
  $region18: #{_lambda_.46} parent=0 // pred_check
    %p140 = pneg %p15
  $region19: #{_lambda_.46} parent=0 // pred_check_branch
    %142 = sbr.rel (%p140) target = $region21
  $region20: #{_lambda_.46} parent=0 // pred_region
    %v143 = vld [vmem:[#allocation2] sm:$0xff]
    %v144 = vld [vmem:[#allocation2 + $0x8] sm:$0xff]
    %v145 = vld [vmem:[%s2] sm:$0x1]
    %v147 = vlaneseq
    %v148 = vshrl.u32 %v147, 7
    %v149 = vsub.s32 0, %v148
    %v150 = vrot.slane %v145, %v149
    %v152 = vadd.f32 %v143, %v150
    %v153 = vadd.f32 %v144, %v150
    %v154 = vpack.c.bf16 %v153, %v152
    %v156 = vunpack.c.l.b16 %v154
    %v157 = vunpack.c.h.b16 %v154
    %v158 = vpack.c.b16 %v156, %v156
    %v159 = vpack.c.b16 %v157, %v157
    %162 = vst [vmem:[%s3] sm:$0xf] %v158
    %163 = vst [vmem:[%s3 + $0x4] sm:$0xf] %v159
  $region21: #{_lambda_.46} parent=0 // pred_fallthru
    _
  // Predicated region
  $region22: #{_lambda_.46} parent=0 // pred_check
    _
  $region23: #{_lambda_.46} parent=0 // pred_check_branch
    %165 = sbr.rel (0) target = $region25
  $region24: #{_lambda_.46} parent=0 // pred_region
    _
  $region25: #{_lambda_.46} parent=0 // pred_fallthru
    _
  // Predicated region
  $region26: #{_lambda_.46} parent=0 // pred_check
    _
  $region27: #{_lambda_.46} parent=0 // pred_check_branch
    %167 = sbr.rel (0) target = $region29
  $region28: #{_lambda_.46} parent=0 // pred_region
    _
  $region29: #{_lambda_.46} parent=0 // pred_fallthru
    _

// kernel: _lambda_.62
$region0: #{_lambda_.62}
  #allocation0 [shape = 'u32[]', space=smem, size = 0x4, offset = 0x4, fixed_abs, tag = 'smem constant byte address 0x4 - core index']
  #allocation1 [shape = 'u32[144,128]{1,0:T(1,128)}', space=vmem, size = 0x12000, scoped, tag = 'internal scratch']
  #allocation2 [shape = 'f32[16,128]{1,0:T(8,128)}', space=vmem, size = 0x2000, scoped, tag = 'scratch operand']
  %s0 = inlined_call_operand.vmem [shape: bf16[16,128], index: 0, kind: input, shape index: {}]
  %s1 = inlined_call_operand.vmem [shape: bf16[128,128], index: 1, kind: input, shape index: {}]
  %s2 = inlined_call_operand.vmem [shape: f32[1,128], index: 2, kind: input, shape index: {}]
  %s3 = inlined_call_operand.vmem [shape: f32[16,128], index: 3, kind: output, shape index: {}]
  %s4 = sld [smem:[#allocation0]]
  $region30: #{_lambda_.62} parent=0
    _
  %s6 = ssub.s32 1, %s4
  %s7 = scalar_select 0, %s6, %s4
  // Predicated region
  $region2: #{_lambda_.62} parent=0 // pred_check
    _
  $region3: #{_lambda_.62} parent=0 // pred_check_branch
    %9 = sbr.rel (0) target = $region5
  $region4: #{_lambda_.62} parent=0 // pred_region
    _
  $region5: #{_lambda_.62} parent=0 // pred_fallthru
    _
  // Predicated region
  $region6: #{_lambda_.62} parent=0 // pred_check
    _
  $region7: #{_lambda_.62} parent=0 // pred_check_branch
    %11 = sbr.rel (0) target = $region9
  $region8: #{_lambda_.62} parent=0 // pred_region
    _
  $region9: #{_lambda_.62} parent=0 // pred_fallthru
    _
  // Predicated region
  $region10: #{_lambda_.62} parent=0 // pred_check
    _
  $region11: #{_lambda_.62} parent=0 // pred_check_branch
    %13 = sbr.rel (0) target = $region13
  $region12: #{_lambda_.62} parent=0 // pred_region
    _
  $region13: #{_lambda_.62} parent=0 // pred_fallthru
    _
  %p15 = scmp.eq.s32.totalorder 0, 0
  // Predicated region
  $region14: #{_lambda_.62} parent=0 // pred_check
    %p16 = pneg %p15
  $region15: #{_lambda_.62} parent=0 // pred_check_branch
    %18 = sbr.rel (%p16) target = $region17
  $region16: #{_lambda_.62} parent=0 // pred_region
    %19 = vst [vmem:[#allocation2] sm:$0xff] 0.0
    %20 = vst [vmem:[#allocation2 + $0x8] sm:$0xff] 0.0
  $region17: #{_lambda_.62} parent=0 // pred_fallthru
    _
  %v21 = vld [vmem:[#allocation2] sm:$0xff]
  %v22 = vld [vmem:[#allocation2 + $0x8] sm:$0xff]
  %v23 = vld [vmem:[%s0] sm:$0xf]
  %v24 = vld [vmem:[%s0 + $0x4] sm:$0xf]
  %v25 = vld [vmem:[%s1] sm:$0xf]
  %v26 = vld [vmem:[%s1 + $0x4] sm:$0xf]
  %v27 = vld [vmem:[%s1 + $0x8] sm:$0xf]
  %v28 = vld [vmem:[%s1 + $0xc] sm:$0xf]
  %v29 = vld [vmem:[%s1 + $0x10] sm:$0xf]
  %v30 = vld [vmem:[%s1 + $0x14] sm:$0xf]
  %v31 = vld [vmem:[%s1 + $0x18] sm:$0xf]
  %v32 = vld [vmem:[%s1 + $0x1c] sm:$0xf]
  %v33 = vld [vmem:[%s1 + $0x20] sm:$0xf]
  %v34 = vld [vmem:[%s1 + $0x24] sm:$0xf]
  %v35 = vld [vmem:[%s1 + $0x28] sm:$0xf]
  %v36 = vld [vmem:[%s1 + $0x2c] sm:$0xf]
  %v37 = vld [vmem:[%s1 + $0x30] sm:$0xf]
  %v38 = vld [vmem:[%s1 + $0x34] sm:$0xf]
  %v39 = vld [vmem:[%s1 + $0x38] sm:$0xf]
  %v40 = vld [vmem:[%s1 + $0x3c] sm:$0xf]
  %v43 = vunpack.c.l.b16 %v23
  %v44 = vunpack.c.l.b16 %v24
  %v45 = vpack.c.b16 %v44, %v43
  %v63 = vunpack.c.l.b16 %v25
  %v64 = vunpack.c.l.b16 %v26
  %v65 = vunpack.c.l.b16 %v27
  %v66 = vunpack.c.l.b16 %v28
  %v67 = vunpack.c.l.b16 %v29
  %v68 = vunpack.c.l.b16 %v30
  %v69 = vunpack.c.l.b16 %v31
  %v70 = vunpack.c.l.b16 %v32
  %v71 = vunpack.c.l.b16 %v33
  %v72 = vunpack.c.l.b16 %v34
  %v73 = vunpack.c.l.b16 %v35
  %v74 = vunpack.c.l.b16 %v36
  %v75 = vunpack.c.l.b16 %v37
  %v76 = vunpack.c.l.b16 %v38
  %v77 = vunpack.c.l.b16 %v39
  %v78 = vunpack.c.l.b16 %v40
  %v79 = vpack.c.b16 %v64, %v63
  %v80 = vpack.c.b16 %v66, %v65
  %v81 = vpack.c.b16 %v68, %v67
  %v82 = vpack.c.b16 %v70, %v69
  %v83 = vpack.c.b16 %v72, %v71
  %v84 = vpack.c.b16 %v74, %v73
  %v85 = vpack.c.b16 %v76, %v75
  %v86 = vpack.c.b16 %v78, %v77
  %95 = vmatprep.subr.bf16.mxu0 0
  %96 = vmatpush1.bf16.msra.mxu0 %v79
  %97 = vmatprep.subr.bf16.mxu0 0
  %98 = vmatpush1.bf16.msra.mxu0 %v80
  %99 = vmatprep.subr.bf16.mxu0 0
  %100 = vmatpush1.bf16.msra.mxu0 %v81
  %101 = vmatprep.subr.bf16.mxu0 0
  %102 = vmatpush1.bf16.msra.mxu0 %v82
  %103 = vmatprep.subr.bf16.mxu0 0
  %104 = vmatpush1.bf16.msra.mxu0 %v83
  %105 = vmatprep.subr.bf16.mxu0 0
  %106 = vmatpush1.bf16.msra.mxu0 %v84
  %107 = vmatprep.subr.bf16.mxu0 0
  %108 = vmatpush1.bf16.msra.mxu0 %v85
  %109 = vmatprep.subr.bf16.mxu0 0
  %110 = vmatpush1.bf16.msra.mxu0 %v86
  %111 = vmatprep.subr.bf16.mxu0 0
  %112 = vmatpush1.bf16.msra.mxu0 0
  %113 = vmatprep.subr.bf16.mxu0 0
  %114 = vmatpush1.bf16.msra.mxu0 0
  %115 = vmatprep.subr.bf16.mxu0 0
  %116 = vmatpush1.bf16.msra.mxu0 0
  %117 = vmatprep.subr.bf16.mxu0 0
  %118 = vmatpush1.bf16.msra.mxu0 0
  %119 = vmatprep.subr.bf16.mxu0 0
  %120 = vmatpush1.bf16.msra.mxu0 0
  %121 = vmatprep.subr.bf16.mxu0 0
  %122 = vmatpush1.bf16.msra.mxu0 0
  %123 = vmatprep.subr.bf16.mxu0 0
  %124 = vmatpush1.bf16.msra.mxu0 0
  %125 = vmatprep.subr.bf16.mxu0 0
  %126 = vmatpush1.bf16.msra.mxu0 0
  %127 = vmatprep.mubr.bf16.mxu0 0
  %128 = vmatmul.mubr.bf16.gmra.mrb[0].mxu0 %v45
  %v129 = vpop.f32.mrb[0].mxu0
  %v130 = vadd.f32 0.0, %v129
  %v131 = vpop.f32.mrb[0].mxu0
  %v132 = vpop.f32.mrb[0].mxu0
  %v133 = vadd.f32 0.0, %v132
  %v134 = vpop.f32.mrb[0].mxu0
  %135 = vdwg.mxu0
  %v136 = vadd.f32 %v21, %v130
  %v137 = vadd.f32 %v22, %v133
  %138 = vst [vmem:[#allocation2] sm:$0xff] %v136
  %139 = vst [vmem:[#allocation2 + $0x8] sm:$0xff] %v137
  // Predicated region
  $region18: #{_lambda_.62} parent=0 // pred_check
    %p140 = pneg %p15
  $region19: #{_lambda_.62} parent=0 // pred_check_branch
    %142 = sbr.rel (%p140) target = $region21
  $region20: #{_lambda_.62} parent=0 // pred_region
    %v143 = vld [vmem:[#allocation2] sm:$0xff]
    %v144 = vld [vmem:[#allocation2 + $0x8] sm:$0xff]
    %v145 = vld [vmem:[%s2] sm:$0x1]
    %v147 = vlaneseq
    %v148 = vshrl.u32 %v147, 7
    %v149 = vsub.s32 0, %v148
    %v150 = vrot.slane %v145, %v149
    %v152 = vadd.f32 %v143, %v150
    %v153 = vadd.f32 %v144, %v150
    %154 = vst [vmem:[%s3] sm:$0xff] %v152
    %155 = vst [vmem:[%s3 + $0x8] sm:$0xff] %v153
  $region21: #{_lambda_.62} parent=0 // pred_fallthru
    _
  // Predicated region
  $region22: #{_lambda_.62} parent=0 // pred_check
    _
  $region23: #{_lambda_.62} parent=0 // pred_check_branch
    %157 = sbr.rel (0) target = $region25
  $region24: #{_lambda_.62} parent=0 // pred_region
    _
  $region25: #{_lambda_.62} parent=0 // pred_fallthru
    _
  // Predicated region
  $region26: #{_lambda_.62} parent=0 // pred_check
    _
  $region27: #{_lambda_.62} parent=0 // pred_check_branch
    %159 = sbr.rel (0) target = $region29
  $region28: #{_lambda_.62} parent=0 // pred_region
    _
  $region29: #{_lambda_.62} parent=0 // pred_fallthru
    _

// kernel: squeeze.5
$region0: #{squeeze.5}
  %s0 = inlined_call_operand.vmem [shape: s32[16], index: 0, kind: input, shape index: {}]
  %s1 = inlined_call_operand.vmem [shape: s32[8,2], index: 1, kind: output, shape index: {}]
  $region1: #{squeeze.5} parent=0
    #allocation0 [shape = 'u8[4096]{0}', space=vmem, size = 0x1000, scoped, tag = 'scoped mem for input reshape']
    %s3 = sshllo.u32 0, 1
    %v4 = vld [vmem:[%s0] sm:%s3]
    %5 = vst [vmem:[#allocation0] sm:%s3] %v4
    %v6 = vld [vmem:[#allocation0] sm:$0x1]
    %vm7 = vcmask 15360
    %8 = vst.msk [vmem:[%s1] sm:$0x1] %vm7, %v6
    %v9 = vld [vmem:[#allocation0] sm:$0x1]
    %10 = vrot.lane.b32.xlu0 %v9, 126
    %v11 = vpop.permute.xlu0 %10
    %vm12 = vcmask 15360
    %s13 = scalar_lea.vmem %s1, 1
    %14 = vst.msk [vmem:[%s13] sm:$0x1] %vm12, %v11
    %v15 = vld [vmem:[#allocation0] sm:$0x1]
    %16 = vrot.lane.b32.xlu0 %v15, 124
    %v17 = vpop.permute.xlu0 %16
    %vm18 = vcmask 15360
    %s19 = scalar_lea.vmem %s1, 2
    %20 = vst.msk [vmem:[%s19] sm:$0x1] %vm18, %v17
    %v21 = vld [vmem:[#allocation0] sm:$0x1]
    %22 = vrot.lane.b32.xlu0 %v21, 122
    %v23 = vpop.permute.xlu0 %22
    %vm24 = vcmask 15360
    %s25 = scalar_lea.vmem %s1, 3
    %26 = vst.msk [vmem:[%s25] sm:$0x1] %vm24, %v23
    %v27 = vld [vmem:[#allocation0] sm:$0x1]
    %28 = vrot.lane.b32.xlu0 %v27, 120
    %v29 = vpop.permute.xlu0 %28
    %vm30 = vcmask 15360
    %s31 = scalar_lea.vmem %s1, 4
    %32 = vst.msk [vmem:[%s31] sm:$0x1] %vm30, %v29
    %v33 = vld [vmem:[#allocation0] sm:$0x1]
    %34 = vrot.lane.b32.xlu0 %v33, 118
    %v35 = vpop.permute.xlu0 %34
    %vm36 = vcmask 15360
    %s37 = scalar_lea.vmem %s1, 5
    %38 = vst.msk [vmem:[%s37] sm:$0x1] %vm36, %v35
    %v39 = vld [vmem:[#allocation0] sm:$0x1]
    %40 = vrot.lane.b32.xlu0 %v39, 116
    %v41 = vpop.permute.xlu0 %40
    %vm42 = vcmask 15360
    %s43 = scalar_lea.vmem %s1, 6
    %44 = vst.msk [vmem:[%s43] sm:$0x1] %vm42, %v41
    %v45 = vld [vmem:[#allocation0] sm:$0x1]
    %46 = vrot.lane.b32.xlu0 %v45, 114
    %v47 = vpop.permute.xlu0 %46
    %vm48 = vcmask 15360
    %s49 = scalar_lea.vmem %s1, 7
    %50 = vst.msk [vmem:[%s49] sm:$0x1] %vm48, %v47

// kernel: _lambda_.44
$region0: #{_lambda_.44}
  #allocation0 [shape = 'u32[]', space=smem, size = 0x4, offset = 0x4, fixed_abs, tag = 'smem constant byte address 0x4 - core index']
  #allocation1 [shape = 'u32[144,128]{1,0:T(1,128)}', space=vmem, size = 0x12000, scoped, tag = 'internal scratch']
  %s0 = inlined_call_operand.vmem [shape: bf16[8,768], index: 0, kind: input, shape index: {}]
  %s1 = inlined_call_operand.vmem [shape: f32[2,1,8], index: 1, kind: input, shape index: {}]
  %s2 = inlined_call_operand.vmem [shape: f32[8,8], index: 2, kind: input, shape index: {}]
  %s3 = inlined_call_operand.vmem [shape: bf16[8,256], index: 3, kind: output, shape index: {}]
  %s4 = sld [smem:[#allocation0]]
  $region22: #{_lambda_.44} parent=0
    _
  %s6 = ssub.s32 1, %s4
  %s7 = scalar_select 0, %s6, %s4
  // Predicated region
  $region2: #{_lambda_.44} parent=0 // pred_check
    _
  $region3: #{_lambda_.44} parent=0 // pred_check_branch
    %9 = sbr.rel (0) target = $region5
  $region4: #{_lambda_.44} parent=0 // pred_region
    _
  $region5: #{_lambda_.44} parent=0 // pred_fallthru
    _
  // Predicated region
  $region6: #{_lambda_.44} parent=0 // pred_check
    _
  $region7: #{_lambda_.44} parent=0 // pred_check_branch
    %11 = sbr.rel (0) target = $region9
  $region8: #{_lambda_.44} parent=0 // pred_region
    _
  $region9: #{_lambda_.44} parent=0 // pred_fallthru
    _
  // Predicated region
  $region10: #{_lambda_.44} parent=0 // pred_check
    _
  $region11: #{_lambda_.44} parent=0 // pred_check_branch
    %13 = sbr.rel (0) target = $region13
  $region12: #{_lambda_.44} parent=0 // pred_region
    _
  $region13: #{_lambda_.44} parent=0 // pred_fallthru
    _
  %v15 = vld [vmem:[%s2] sm:$0xff]
  %v16 = vld [vmem:[%s0] sm:$0xf]
  %v17 = vld [vmem:[%s0 + $0x4] sm:$0xf]
  %v18 = vld [vmem:[%s0 + $0x8] sm:$0xf]
  %v19 = vld [vmem:[%s1] sm:$0x1]
  %v21 = vlaneseq
  %v22 = vshrl.u32 %v21, 7
  %v23 = vsub.s32 0, %v22
  %v24 = vrot.slane %v19, %v23
  %v26 = vadd.f32 %v24, %v15
  %vm27 = vcmask 64512
  %v29 = vsel %vm27, %v16, 0
  %v32 = vsel %vm27, %v17, 0
  %34 = vmatprep.subr.bf16.mxu0 0
  %35 = vmatpush1.bf16.xpose.msra.mxu0 %v32
  %36 = vmatprep.subr.bf16.mxu0 0
  %37 = vmatpush1.bf16.xpose.msra.mxu0 0
  %38 = vmatprep.subr.bf16.mxu0 0
  %39 = vmatpush1.bf16.xpose.msra.mxu0 0
  %40 = vmatprep.subr.bf16.mxu0 0
  %41 = vmatpush1.bf16.xpose.msra.mxu0 0
  %42 = vmatprep.subr.bf16.mxu0 0
  %43 = vmatpush1.bf16.xpose.msra.mxu0 0
  %44 = vmatprep.subr.bf16.mxu0 0
  %45 = vmatpush1.bf16.xpose.msra.mxu0 0
  %46 = vmatprep.subr.bf16.mxu0 0
  %47 = vmatpush1.bf16.xpose.msra.mxu0 0
  %48 = vmatprep.subr.bf16.mxu0 0
  %49 = vmatpush1.bf16.xpose.msra.mxu0 0
  %50 = vmatprep.subr.bf16.mxu0 0
  %51 = vmatpush1.bf16.xpose.msra.mxu0 0
  %52 = vmatprep.subr.bf16.mxu0 0
  %53 = vmatpush1.bf16.xpose.msra.mxu0 0
  %54 = vmatprep.subr.bf16.mxu0 0
  %55 = vmatpush1.bf16.xpose.msra.mxu0 0
  %56 = vmatprep.subr.bf16.mxu0 0
  %57 = vmatpush1.bf16.xpose.msra.mxu0 0
  %58 = vmatprep.subr.bf16.mxu0 0
  %59 = vmatpush1.bf16.xpose.msra.mxu0 0
  %60 = vmatprep.subr.bf16.mxu0 0
  %61 = vmatpush1.bf16.xpose.msra.mxu0 0
  %62 = vmatprep.subr.bf16.mxu0 0
  %63 = vmatpush1.bf16.xpose.msra.mxu0 0
  %64 = vmatprep.subr.bf16.mxu0 0
  %65 = vmatpush1.bf16.xpose.msra.mxu0 0
  %66 = vmatprep.mubr.bf16.mxu0 0
  %67 = vmatmul.mubr.bf16.gmra.mrb[0].mxu0 %v29
  %v68 = vpop.f32.mrb[0].mxu0
  %v69 = vadd.f32 0.0, %v68
  %v70 = vpop.f32.mrb[0].mxu0
  %v71 = vpop.f32.mrb[0].mxu0
  %v72 = vpop.f32.mrb[0].mxu0
  %73 = vdwg.mxu0
  %v74 = vmul.f32 %v69, 0.35355338
  %v75 = vadd.f32 %v74, %v26
  %v76 = vsel %vm27, %v75, -inf
  %77 = vmax.xlane.f32.xlu0 %v76
  %v78 = vpop.xlane.xlu0 %77
  %v79 = vsub.f32 %v75, %v78
  %v80 = vmul.f32 %v79, 1.442695
  %v81 = vpow.pop %v80
  %v82 = vsel %vm27, %v81, 0.0
  %83 = vadd.xlane.f32.xlu0 %v82
  %v84 = vpop.xlane.xlu0 %83
  %v85 = vrcp.pop %v84
  %v86 = vmul.f32 %v81, %v85
  %v87 = vpack.c.bf16 %v86, %v86
  %v89 = vsel %vm27, %v87, 0
  %vm91 = vcmask 1043456
  %v93 = vsel %vm91, %v18, 0
  %95 = vmatprep.subr.bf16.mxu0 0
  %96 = vmatpush1.bf16.msra.mxu0 %v93
  %97 = vmatprep.subr.bf16.mxu0 0
  %98 = vmatpush1.bf16.msra.mxu0 0
  %99 = vmatprep.subr.bf16.mxu0 0
  %100 = vmatpush1.bf16.msra.mxu0 0
  %101 = vmatprep.subr.bf16.mxu0 0
  %102 = vmatpush1.bf16.msra.mxu0 0
  %103 = vmatprep.subr.bf16.mxu0 0
  %104 = vmatpush1.bf16.msra.mxu0 0
  %105 = vmatprep.subr.bf16.mxu0 0
  %106 = vmatpush1.bf16.msra.mxu0 0
  %107 = vmatprep.subr.bf16.mxu0 0
  %108 = vmatpush1.bf16.msra.mxu0 0
  %109 = vmatprep.subr.bf16.mxu0 0
  %110 = vmatpush1.bf16.msra.mxu0 0
  %111 = vmatprep.subr.bf16.mxu0 0
  %112 = vmatpush1.bf16.msra.mxu0 0
  %113 = vmatprep.subr.bf16.mxu0 0
  %114 = vmatpush1.bf16.msra.mxu0 0
  %115 = vmatprep.subr.bf16.mxu0 0
  %116 = vmatpush1.bf16.msra.mxu0 0
  %117 = vmatprep.subr.bf16.mxu0 0
  %118 = vmatpush1.bf16.msra.mxu0 0
  %119 = vmatprep.subr.bf16.mxu0 0
  %120 = vmatpush1.bf16.msra.mxu0 0
  %121 = vmatprep.subr.bf16.mxu0 0
  %122 = vmatpush1.bf16.msra.mxu0 0
  %123 = vmatprep.subr.bf16.mxu0 0
  %124 = vmatpush1.bf16.msra.mxu0 0
  %125 = vmatprep.subr.bf16.mxu0 0
  %126 = vmatpush1.bf16.msra.mxu0 0
  %127 = vmatprep.mubr.bf16.mxu0 0
  %128 = vmatmul.mubr.bf16.gmra.mrb[0].mxu0 %v89
  %v129 = vpop.f32.mrb[0].mxu0
  %v130 = vadd.f32 0.0, %v129
  %v131 = vpop.f32.mrb[0].mxu0
  %v132 = vpop.f32.mrb[0].mxu0
  %v133 = vpop.f32.mrb[0].mxu0
  %134 = vdwg.mxu0
  %v135 = vpack.c.bf16 %v130, %v130
  %vm136 = vcmask 60416
  %137 = vst.msk [vmem:[%s3] sm:$0xf] %vm136, %v135
  %v139 = vunpack.c.l.b16 %v16
  %v140 = vpack.c.b16 %v139, %v139
  %141 = vrot.lane.b32.xlu0 %v140, 120
  %v142 = vpop.permute.xlu0 %141
  %v144 = vunpack.c.l.b16 %v17
  %v145 = vpack.c.b16 %v144, %v144
  %146 = vrot.lane.b32.xlu0 %v145, 120
  %v147 = vpop.permute.xlu0 %146
  %v149 = vsel %vm27, %v142, 0
  %v152 = vsel %vm27, %v147, 0
  %154 = vmatprep.subr.bf16.mxu0 0
  %155 = vmatpush1.bf16.xpose.msra.mxu0 %v152
  %156 = vmatprep.subr.bf16.mxu0 0
  %157 = vmatpush1.bf16.xpose.msra.mxu0 0
  %158 = vmatprep.subr.bf16.mxu0 0
  %159 = vmatpush1.bf16.xpose.msra.mxu0 0
  %160 = vmatprep.subr.bf16.mxu0 0
  %161 = vmatpush1.bf16.xpose.msra.mxu0 0
  %162 = vmatprep.subr.bf16.mxu0 0
  %163 = vmatpush1.bf16.xpose.msra.mxu0 0
  %164 = vmatprep.subr.bf16.mxu0 0
  %165 = vmatpush1.bf16.xpose.msra.mxu0 0
  %166 = vmatprep.subr.bf16.mxu0 0
  %167 = vmatpush1.bf16.xpose.msra.mxu0 0
  %168 = vmatprep.subr.bf16.mxu0 0
  %169 = vmatpush1.bf16.xpose.msra.mxu0 0
  %170 = vmatprep.subr.bf16.mxu0 0
  %171 = vmatpush1.bf16.xpose.msra.mxu0 0
  %172 = vmatprep.subr.bf16.mxu0 0
  %173 = vmatpush1.bf16.xpose.msra.mxu0 0
  %174 = vmatprep.subr.bf16.mxu0 0
  %175 = vmatpush1.bf16.xpose.msra.mxu0 0
  %176 = vmatprep.subr.bf16.mxu0 0
  %177 = vmatpush1.bf16.xpose.msra.mxu0 0
  %178 = vmatprep.subr.bf16.mxu0 0
  %179 = vmatpush1.bf16.xpose.msra.mxu0 0
  %180 = vmatprep.subr.bf16.mxu0 0
  %181 = vmatpush1.bf16.xpose.msra.mxu0 0
  %182 = vmatprep.subr.bf16.mxu0 0
  %183 = vmatpush1.bf16.xpose.msra.mxu0 0
  %184 = vmatprep.subr.bf16.mxu0 0
  %185 = vmatpush1.bf16.xpose.msra.mxu0 0
  %186 = vmatprep.mubr.bf16.mxu0 0
  %187 = vmatmul.mubr.bf16.gmra.mrb[0].mxu0 %v149
  %v188 = vpop.f32.mrb[0].mxu0
  %v189 = vadd.f32 0.0, %v188
  %v190 = vpop.f32.mrb[0].mxu0
  %v191 = vpop.f32.mrb[0].mxu0
  %v192 = vpop.f32.mrb[0].mxu0
  %193 = vdwg.mxu0
  %v194 = vmul.f32 %v189, 0.35355338
  %v195 = vadd.f32 %v194, %v26
  %v196 = vsel %vm27, %v195, -inf
  %197 = vmax.xlane.f32.xlu0 %v196
  %v198 = vpop.xlane.xlu0 %197
  %v199 = vsub.f32 %v195, %v198
  %v200 = vmul.f32 %v199, 1.442695
  %v201 = vpow.pop %v200
  %v202 = vsel %vm27, %v201, 0.0
  %203 = vadd.xlane.f32.xlu0 %v202
  %v204 = vpop.xlane.xlu0 %203
  %v205 = vrcp.pop %v204
  %v206 = vmul.f32 %v201, %v205
  %v207 = vpack.c.bf16 %v206, %v206
  %v209 = vunpack.c.l.b16 %v18
  %v210 = vpack.c.b16 %v209, %v209
  %211 = vrot.lane.b32.xlu0 %v210, 120
  %v212 = vpop.permute.xlu0 %211
  %v214 = vsel %vm27, %v207, 0
  %v217 = vsel %vm91, %v212, 0
  %219 = vmatprep.subr.bf16.mxu0 0
  %220 = vmatpush1.bf16.msra.mxu0 %v217
  %221 = vmatprep.subr.bf16.mxu0 0
  %222 = vmatpush1.bf16.msra.mxu0 0
  %223 = vmatprep.subr.bf16.mxu0 0
  %224 = vmatpush1.bf16.msra.mxu0 0
  %225 = vmatprep.subr.bf16.mxu0 0
  %226 = vmatpush1.bf16.msra.mxu0 0
  %227 = vmatprep.subr.bf16.mxu0 0
  %228 = vmatpush1.bf16.msra.mxu0 0
  %229 = vmatprep.subr.bf16.mxu0 0
  %230 = vmatpush1.bf16.msra.mxu0 0
  %231 = vmatprep.subr.bf16.mxu0 0
  %232 = vmatpush1.bf16.msra.mxu0 0
  %233 = vmatprep.subr.bf16.mxu0 0
  %234 = vmatpush1.bf16.msra.mxu0 0
  %235 = vmatprep.subr.bf16.mxu0 0
  %236 = vmatpush1.bf16.msra.mxu0 0
  %237 = vmatprep.subr.bf16.mxu0 0
  %238 = vmatpush1.bf16.msra.mxu0 0
  %239 = vmatprep.subr.bf16.mxu0 0
  %240 = vmatpush1.bf16.msra.mxu0 0
  %241 = vmatprep.subr.bf16.mxu0 0
  %242 = vmatpush1.bf16.msra.mxu0 0
  %243 = vmatprep.subr.bf16.mxu0 0
  %244 = vmatpush1.bf16.msra.mxu0 0
  %245 = vmatprep.subr.bf16.mxu0 0
  %246 = vmatpush1.bf16.msra.mxu0 0
  %247 = vmatprep.subr.bf16.mxu0 0
  %248 = vmatpush1.bf16.msra.mxu0 0
  %249 = vmatprep.subr.bf16.mxu0 0
  %250 = vmatpush1.bf16.msra.mxu0 0
  %251 = vmatprep.mubr.bf16.mxu0 0
  %252 = vmatmul.mubr.bf16.gmra.mrb[0].mxu0 %v214
  %v253 = vpop.f32.mrb[0].mxu0
  %v254 = vadd.f32 0.0, %v253
  %v255 = vpop.f32.mrb[0].mxu0
  %v256 = vpop.f32.mrb[0].mxu0
  %v257 = vpop.f32.mrb[0].mxu0
  %258 = vdwg.mxu0
  %v259 = vpack.c.bf16 %v254, %v254
  %v261 = vunpack.c.l.b16 %v259
  %v262 = vpack.c.b16 %v261, %v261
  %263 = vrot.lane.b32.xlu0 %v262, 8
  %v264 = vpop.permute.xlu0 %263
  %vm266 = vcmask 126016
  %267 = vst.msk [vmem:[%s3] sm:$0xf] %vm266, %v264
  %268 = vrot.lane.b32.xlu0 %v140, 112
  %v269 = vpop.permute.xlu0 %268
  %270 = vrot.lane.b32.xlu0 %v145, 112
  %v271 = vpop.permute.xlu0 %270
  %v273 = vsel %vm27, %v269, 0
  %v276 = vsel %vm27, %v271, 0
  %278 = vmatprep.subr.bf16.mxu0 0
  %279 = vmatpush1.bf16.xpose.msra.mxu0 %v276
  %280 = vmatprep.subr.bf16.mxu0 0
  %281 = vmatpush1.bf16.xpose.msra.mxu0 0
  %282 = vmatprep.subr.bf16.mxu0 0
  %283 = vmatpush1.bf16.xpose.msra.mxu0 0
  %284 = vmatprep.subr.bf16.mxu0 0
  %285 = vmatpush1.bf16.xpose.msra.mxu0 0
  %286 = vmatprep.subr.bf16.mxu0 0
  %287 = vmatpush1.bf16.xpose.msra.mxu0 0
  %288 = vmatprep.subr.bf16.mxu0 0
  %289 = vmatpush1.bf16.xpose.msra.mxu0 0
  %290 = vmatprep.subr.bf16.mxu0 0
  %291 = vmatpush1.bf16.xpose.msra.mxu0 0
  %292 = vmatprep.subr.bf16.mxu0 0
  %293 = vmatpush1.bf16.xpose.msra.mxu0 0
  %294 = vmatprep.subr.bf16.mxu0 0
  %295 = vmatpush1.bf16.xpose.msra.mxu0 0
  %296 = vmatprep.subr.bf16.mxu0 0
  %297 = vmatpush1.bf16.xpose.msra.mxu0 0
  %298 = vmatprep.subr.bf16.mxu0 0
  %299 = vmatpush1.bf16.xpose.msra.mxu0 0
  %300 = vmatprep.subr.bf16.mxu0 0
  %301 = vmatpush1.bf16.xpose.msra.mxu0 0
  %302 = vmatprep.subr.bf16.mxu0 0
  %303 = vmatpush1.bf16.xpose.msra.mxu0 0
  %304 = vmatprep.subr.bf16.mxu0 0
  %305 = vmatpush1.bf16.xpose.msra.mxu0 0
  %306 = vmatprep.subr.bf16.mxu0 0
  %307 = vmatpush1.bf16.xpose.msra.mxu0 0
  %308 = vmatprep.subr.bf16.mxu0 0
  %309 = vmatpush1.bf16.xpose.msra.mxu0 0
  %310 = vmatprep.mubr.bf16.mxu0 0
  %311 = vmatmul.mubr.bf16.gmra.mrb[0].mxu0 %v273
  %v312 = vpop.f32.mrb[0].mxu0
  %v313 = vadd.f32 0.0, %v312
  %v314 = vpop.f32.mrb[0].mxu0
  %v315 = vpop.f32.mrb[0].mxu0
  %v316 = vpop.f32.mrb[0].mxu0
  %317 = vdwg.mxu0
  %v318 = vmul.f32 %v313, 0.35355338
  %v319 = vadd.f32 %v318, %v26
  %v320 = vsel %vm27, %v319, -inf
  %321 = vmax.xlane.f32.xlu0 %v320
  %v322 = vpop.xlane.xlu0 %321
  %v323 = vsub.f32 %v319, %v322
  %v324 = vmul.f32 %v323, 1.442695
  %v325 = vpow.pop %v324
  %v326 = vsel %vm27, %v325, 0.0
  %327 = vadd.xlane.f32.xlu0 %v326
  %v328 = vpop.xlane.xlu0 %327
  %v329 = vrcp.pop %v328
  %v330 = vmul.f32 %v325, %v329
  %v331 = vpack.c.bf16 %v330, %v330
  %332 = vrot.lane.b32.xlu0 %v210, 112
  %v333 = vpop.permute.xlu0 %332
  %v335 = vsel %vm27, %v331, 0
  %v338 = vsel %vm91, %v333, 0
  %340 = vmatprep.subr.bf16.mxu0 0
  %341 = vmatpush1.bf16.msra.mxu0 %v338
  %342 = vmatprep.subr.bf16.mxu0 0
  %343 = vmatpush1.bf16.msra.mxu0 0
  %344 = vmatprep.subr.bf16.mxu0 0
  %345 = vmatpush1.bf16.msra.mxu0 0
  %346 = vmatprep.subr.bf16.mxu0 0
  %347 = vmatpush1.bf16.msra.mxu0 0
  %348 = vmatprep.subr.bf16.mxu0 0
  %349 = vmatpush1.bf16.msra.mxu0 0
  %350 = vmatprep.subr.bf16.mxu0 0
  %351 = vmatpush1.bf16.msra.mxu0 0
  %352 = vmatprep.subr.bf16.mxu0 0
  %353 = vmatpush1.bf16.msra.mxu0 0
  %354 = vmatprep.subr.bf16.mxu0 0
  %355 = vmatpush1.bf16.msra.mxu0 0
  %356 = vmatprep.subr.bf16.mxu0 0
  %357 = vmatpush1.bf16.msra.mxu0 0
  %358 = vmatprep.subr.bf16.mxu0 0
  %359 = vmatpush1.bf16.msra.mxu0 0
  %360 = vmatprep.subr.bf16.mxu0 0
  %361 = vmatpush1.bf16.msra.mxu0 0
  %362 = vmatprep.subr.bf16.mxu0 0
  %363 = vmatpush1.bf16.msra.mxu0 0
  %364 = vmatprep.subr.bf16.mxu0 0
  %365 = vmatpush1.bf16.msra.mxu0 0
  %366 = vmatprep.subr.bf16.mxu0 0
  %367 = vmatpush1.bf16.msra.mxu0 0
  %368 = vmatprep.subr.bf16.mxu0 0
  %369 = vmatpush1.bf16.msra.mxu0 0
  %370 = vmatprep.subr.bf16.mxu0 0
  %371 = vmatpush1.bf16.msra.mxu0 0
  %372 = vmatprep.mubr.bf16.mxu0 0
  %373 = vmatmul.mubr.bf16.gmra.mrb[0].mxu0 %v335
  %v374 = vpop.f32.mrb[0].mxu0
  %v375 = vadd.f32 0.0, %v374
  %v376 = vpop.f32.mrb[0].mxu0
  %v377 = vpop.f32.mrb[0].mxu0
  %v378 = vpop.f32.mrb[0].mxu0
  %379 = vdwg.mxu0
  %v380 = vpack.c.bf16 %v375, %v375
  %v382 = vunpack.c.l.b16 %v380
  %v383 = vpack.c.b16 %v382, %v382
  %384 = vrot.lane.b32.xlu0 %v383, 16
  %v385 = vpop.permute.xlu0 %384
  %vm387 = vcmask 191616
  %388 = vst.msk [vmem:[%s3] sm:$0xf] %vm387, %v385
  %389 = vrot.lane.b32.xlu0 %v140, 104
  %v390 = vpop.permute.xlu0 %389
  %391 = vrot.lane.b32.xlu0 %v145, 104
  %v392 = vpop.permute.xlu0 %391
  %v394 = vsel %vm27, %v390, 0
  %v397 = vsel %vm27, %v392, 0
  %399 = vmatprep.subr.bf16.mxu0 0
  %400 = vmatpush1.bf16.xpose.msra.mxu0 %v397
  %401 = vmatprep.subr.bf16.mxu0 0
  %402 = vmatpush1.bf16.xpose.msra.mxu0 0
  %403 = vmatprep.subr.bf16.mxu0 0
  %404 = vmatpush1.bf16.xpose.msra.mxu0 0
  %405 = vmatprep.subr.bf16.mxu0 0
  %406 = vmatpush1.bf16.xpose.msra.mxu0 0
  %407 = vmatprep.subr.bf16.mxu0 0
  %408 = vmatpush1.bf16.xpose.msra.mxu0 0
  %409 = vmatprep.subr.bf16.mxu0 0
  %410 = vmatpush1.bf16.xpose.msra.mxu0 0
  %411 = vmatprep.subr.bf16.mxu0 0
  %412 = vmatpush1.bf16.xpose.msra.mxu0 0
  %413 = vmatprep.subr.bf16.mxu0 0
  %414 = vmatpush1.bf16.xpose.msra.mxu0 0
  %415 = vmatprep.subr.bf16.mxu0 0
  %416 = vmatpush1.bf16.xpose.msra.mxu0 0
  %417 = vmatprep.subr.bf16.mxu0 0
  %418 = vmatpush1.bf16.xpose.msra.mxu0 0
  %419 = vmatprep.subr.bf16.mxu0 0
  %420 = vmatpush1.bf16.xpose.msra.mxu0 0
  %421 = vmatprep.subr.bf16.mxu0 0
  %422 = vmatpush1.bf16.xpose.msra.mxu0 0
  %423 = vmatprep.subr.bf16.mxu0 0
  %424 = vmatpush1.bf16.xpose.msra.mxu0 0
  %425 = vmatprep.subr.bf16.mxu0 0
  %426 = vmatpush1.bf16.xpose.msra.mxu0 0
  %427 = vmatprep.subr.bf16.mxu0 0
  %428 = vmatpush1.bf16.xpose.msra.mxu0 0
  %429 = vmatprep.subr.bf16.mxu0 0
  %430 = vmatpush1.bf16.xpose.msra.mxu0 0
  %431 = vmatprep.mubr.bf16.mxu0 0
  %432 = vmatmul.mubr.bf16.gmra.mrb[0].mxu0 %v394
  %v433 = vpop.f32.mrb[0].mxu0
  %v434 = vadd.f32 0.0, %v433
  %v435 = vpop.f32.mrb[0].mxu0
  %v436 = vpop.f32.mrb[0].mxu0
  %v437 = vpop.f32.mrb[0].mxu0
  %438 = vdwg.mxu0
  %v439 = vmul.f32 %v434, 0.35355338
  %v440 = vadd.f32 %v439, %v26
  %v441 = vsel %vm27, %v440, -inf
  %442 = vmax.xlane.f32.xlu0 %v441
  %v443 = vpop.xlane.xlu0 %442
  %v444 = vsub.f32 %v440, %v443
  %v445 = vmul.f32 %v444, 1.442695
  %v446 = vpow.pop %v445
  %v447 = vsel %vm27, %v446, 0.0
  %448 = vadd.xlane.f32.xlu0 %v447
  %v449 = vpop.xlane.xlu0 %448
  %v450 = vrcp.pop %v449
  %v451 = vmul.f32 %v446, %v450
  %v452 = vpack.c.bf16 %v451, %v451
  %453 = vrot.lane.b32.xlu0 %v210, 104
  %v454 = vpop.permute.xlu0 %453
  %v456 = vsel %vm27, %v452, 0
  %v459 = vsel %vm91, %v454, 0
  %461 = vmatprep.subr.bf16.mxu0 0
  %462 = vmatpush1.bf16.msra.mxu0 %v459
  %463 = vmatprep.subr.bf16.mxu0 0
  %464 = vmatpush1.bf16.msra.mxu0 0
  %465 = vmatprep.subr.bf16.mxu0 0
  %466 = vmatpush1.bf16.msra.mxu0 0
  %467 = vmatprep.subr.bf16.mxu0 0
  %468 = vmatpush1.bf16.msra.mxu0 0
  %469 = vmatprep.subr.bf16.mxu0 0
  %470 = vmatpush1.bf16.msra.mxu0 0
  %471 = vmatprep.subr.bf16.mxu0 0
  %472 = vmatpush1.bf16.msra.mxu0 0
  %473 = vmatprep.subr.bf16.mxu0 0
  %474 = vmatpush1.bf16.msra.mxu0 0
  %475 = vmatprep.subr.bf16.mxu0 0
  %476 = vmatpush1.bf16.msra.mxu0 0
  %477 = vmatprep.subr.bf16.mxu0 0
  %478 = vmatpush1.bf16.msra.mxu0 0
  %479 = vmatprep.subr.bf16.mxu0 0
  %480 = vmatpush1.bf16.msra.mxu0 0
  %481 = vmatprep.subr.bf16.mxu0 0
  %482 = vmatpush1.bf16.msra.mxu0 0
  %483 = vmatprep.subr.bf16.mxu0 0
  %484 = vmatpush1.bf16.msra.mxu0 0
  %485 = vmatprep.subr.bf16.mxu0 0
  %486 = vmatpush1.bf16.msra.mxu0 0
  %487 = vmatprep.subr.bf16.mxu0 0
  %488 = vmatpush1.bf16.msra.mxu0 0
  %489 = vmatprep.subr.bf16.mxu0 0
  %490 = vmatpush1.bf16.msra.mxu0 0
  %491 = vmatprep.subr.bf16.mxu0 0
  %492 = vmatpush1.bf16.msra.mxu0 0
  %493 = vmatprep.mubr.bf16.mxu0 0
  %494 = vmatmul.mubr.bf16.gmra.mrb[0].mxu0 %v456
  %v495 = vpop.f32.mrb[0].mxu0
  %v496 = vadd.f32 0.0, %v495
  %v497 = vpop.f32.mrb[0].mxu0
  %v498 = vpop.f32.mrb[0].mxu0
  %v499 = vpop.f32.mrb[0].mxu0
  %500 = vdwg.mxu0
  %v501 = vpack.c.bf16 %v496, %v496
  %v503 = vunpack.c.l.b16 %v501
  %v504 = vpack.c.b16 %v503, %v503
  %505 = vrot.lane.b32.xlu0 %v504, 24
  %v506 = vpop.permute.xlu0 %505
  %vm508 = vcmask 257216
  %509 = vst.msk [vmem:[%s3] sm:$0xf] %vm508, %v506
  %vm510 = vcmask 1043712
  %511 = vst.msk [vmem:[%s3] sm:$0xf] %vm510, 0
  %v512 = vld [vmem:[%s0 + $0xc] sm:$0xf]
  %v513 = vld [vmem:[%s0 + $0x10] sm:$0xf]
  %v514 = vld [vmem:[%s0 + $0x14] sm:$0xf]
  %s515 = scalar_lea.vmem %s1, 1
  %v516 = vld [vmem:[%s515] sm:$0x1]
  %v518 = vlaneseq
  %v519 = vshrl.u32 %v518, 7
  %v520 = vsub.s32 0, %v519
  %v521 = vrot.slane %v516, %v520
  %v523 = vadd.f32 %v521, %v15
  %v525 = vsel %vm27, %v512, 0
  %v528 = vsel %vm27, %v513, 0
  %530 = vmatprep.subr.bf16.mxu0 0
  %531 = vmatpush1.bf16.xpose.msra.mxu0 %v528
  %532 = vmatprep.subr.bf16.mxu0 0
  %533 = vmatpush1.bf16.xpose.msra.mxu0 0
  %534 = vmatprep.subr.bf16.mxu0 0
  %535 = vmatpush1.bf16.xpose.msra.mxu0 0
  %536 = vmatprep.subr.bf16.mxu0 0
  %537 = vmatpush1.bf16.xpose.msra.mxu0 0
  %538 = vmatprep.subr.bf16.mxu0 0
  %539 = vmatpush1.bf16.xpose.msra.mxu0 0
  %540 = vmatprep.subr.bf16.mxu0 0
  %541 = vmatpush1.bf16.xpose.msra.mxu0 0
  %542 = vmatprep.subr.bf16.mxu0 0
  %543 = vmatpush1.bf16.xpose.msra.mxu0 0
  %544 = vmatprep.subr.bf16.mxu0 0
  %545 = vmatpush1.bf16.xpose.msra.mxu0 0
  %546 = vmatprep.subr.bf16.mxu0 0
  %547 = vmatpush1.bf16.xpose.msra.mxu0 0
  %548 = vmatprep.subr.bf16.mxu0 0
  %549 = vmatpush1.bf16.xpose.msra.mxu0 0
  %550 = vmatprep.subr.bf16.mxu0 0
  %551 = vmatpush1.bf16.xpose.msra.mxu0 0
  %552 = vmatprep.subr.bf16.mxu0 0
  %553 = vmatpush1.bf16.xpose.msra.mxu0 0
  %554 = vmatprep.subr.bf16.mxu0 0
  %555 = vmatpush1.bf16.xpose.msra.mxu0 0
  %556 = vmatprep.subr.bf16.mxu0 0
  %557 = vmatpush1.bf16.xpose.msra.mxu0 0
  %558 = vmatprep.subr.bf16.mxu0 0
  %559 = vmatpush1.bf16.xpose.msra.mxu0 0
  %560 = vmatprep.subr.bf16.mxu0 0
  %561 = vmatpush1.bf16.xpose.msra.mxu0 0
  %562 = vmatprep.mubr.bf16.mxu0 0
  %563 = vmatmul.mubr.bf16.gmra.mrb[0].mxu0 %v525
  %v564 = vpop.f32.mrb[0].mxu0
  %v565 = vadd.f32 0.0, %v564
  %v566 = vpop.f32.mrb[0].mxu0
  %v567 = vpop.f32.mrb[0].mxu0
  %v568 = vpop.f32.mrb[0].mxu0
  %569 = vdwg.mxu0
  %v570 = vmul.f32 %v565, 0.35355338
  %v571 = vadd.f32 %v570, %v523
  %v572 = vsel %vm27, %v571, -inf
  %573 = vmax.xlane.f32.xlu0 %v572
  %v574 = vpop.xlane.xlu0 %573
  %v575 = vsub.f32 %v571, %v574
  %v576 = vmul.f32 %v575, 1.442695
  %v577 = vpow.pop %v576
  %v578 = vsel %vm27, %v577, 0.0
  %579 = vadd.xlane.f32.xlu0 %v578
  %v580 = vpop.xlane.xlu0 %579
  %v581 = vrcp.pop %v580
  %v582 = vmul.f32 %v577, %v581
  %v583 = vpack.c.bf16 %v582, %v582
  %v585 = vsel %vm27, %v583, 0
  %v588 = vsel %vm91, %v514, 0
  %590 = vmatprep.subr.bf16.mxu0 0
  %591 = vmatpush1.bf16.msra.mxu0 %v588
  %592 = vmatprep.subr.bf16.mxu0 0
  %593 = vmatpush1.bf16.msra.mxu0 0
  %594 = vmatprep.subr.bf16.mxu0 0
  %595 = vmatpush1.bf16.msra.mxu0 0
  %596 = vmatprep.subr.bf16.mxu0 0
  %597 = vmatpush1.bf16.msra.mxu0 0
  %598 = vmatprep.subr.bf16.mxu0 0
  %599 = vmatpush1.bf16.msra.mxu0 0
  %600 = vmatprep.subr.bf16.mxu0 0
  %601 = vmatpush1.bf16.msra.mxu0 0
  %602 = vmatprep.subr.bf16.mxu0 0
  %603 = vmatpush1.bf16.msra.mxu0 0
  %604 = vmatprep.subr.bf16.mxu0 0
  %605 = vmatpush1.bf16.msra.mxu0 0
  %606 = vmatprep.subr.bf16.mxu0 0
  %607 = vmatpush1.bf16.msra.mxu0 0
  %608 = vmatprep.subr.bf16.mxu0 0
  %609 = vmatpush1.bf16.msra.mxu0 0
  %610 = vmatprep.subr.bf16.mxu0 0
  %611 = vmatpush1.bf16.msra.mxu0 0
  %612 = vmatprep.subr.bf16.mxu0 0
  %613 = vmatpush1.bf16.msra.mxu0 0
  %614 = vmatprep.subr.bf16.mxu0 0
  %615 = vmatpush1.bf16.msra.mxu0 0
  %616 = vmatprep.subr.bf16.mxu0 0
  %617 = vmatpush1.bf16.msra.mxu0 0
  %618 = vmatprep.subr.bf16.mxu0 0
  %619 = vmatpush1.bf16.msra.mxu0 0
  %620 = vmatprep.subr.bf16.mxu0 0
  %621 = vmatpush1.bf16.msra.mxu0 0
  %622 = vmatprep.mubr.bf16.mxu0 0
  %623 = vmatmul.mubr.bf16.gmra.mrb[0].mxu0 %v585
  %v624 = vpop.f32.mrb[0].mxu0
  %v625 = vadd.f32 0.0, %v624
  %v626 = vpop.f32.mrb[0].mxu0
  %v627 = vpop.f32.mrb[0].mxu0
  %v628 = vpop.f32.mrb[0].mxu0
  %629 = vdwg.mxu0
  %v630 = vpack.c.bf16 %v625, %v625
  %631 = vst.msk [vmem:[%s3 + $0x4] sm:$0xf] %vm136, %v630
  %v633 = vunpack.c.l.b16 %v512
  %v634 = vpack.c.b16 %v633, %v633
  %635 = vrot.lane.b32.xlu0 %v634, 120
  %v636 = vpop.permute.xlu0 %635
  %v638 = vunpack.c.l.b16 %v513
  %v639 = vpack.c.b16 %v638, %v638
  %640 = vrot.lane.b32.xlu0 %v639, 120
  %v641 = vpop.permute.xlu0 %640
  %v643 = vsel %vm27, %v636, 0
  %v646 = vsel %vm27, %v641, 0
  %648 = vmatprep.subr.bf16.mxu0 0
  %649 = vmatpush1.bf16.xpose.msra.mxu0 %v646
  %650 = vmatprep.subr.bf16.mxu0 0
  %651 = vmatpush1.bf16.xpose.msra.mxu0 0
  %652 = vmatprep.subr.bf16.mxu0 0
  %653 = vmatpush1.bf16.xpose.msra.mxu0 0
  %654 = vmatprep.subr.bf16.mxu0 0
  %655 = vmatpush1.bf16.xpose.msra.mxu0 0
  %656 = vmatprep.subr.bf16.mxu0 0
  %657 = vmatpush1.bf16.xpose.msra.mxu0 0
  %658 = vmatprep.subr.bf16.mxu0 0
  %659 = vmatpush1.bf16.xpose.msra.mxu0 0
  %660 = vmatprep.subr.bf16.mxu0 0
  %661 = vmatpush1.bf16.xpose.msra.mxu0 0
  %662 = vmatprep.subr.bf16.mxu0 0
  %663 = vmatpush1.bf16.xpose.msra.mxu0 0
  %664 = vmatprep.subr.bf16.mxu0 0
  %665 = vmatpush1.bf16.xpose.msra.mxu0 0
  %666 = vmatprep.subr.bf16.mxu0 0
  %667 = vmatpush1.bf16.xpose.msra.mxu0 0
  %668 = vmatprep.subr.bf16.mxu0 0
  %669 = vmatpush1.bf16.xpose.msra.mxu0 0
  %670 = vmatprep.subr.bf16.mxu0 0
  %671 = vmatpush1.bf16.xpose.msra.mxu0 0
  %672 = vmatprep.subr.bf16.mxu0 0
  %673 = vmatpush1.bf16.xpose.msra.mxu0 0
  %674 = vmatprep.subr.bf16.mxu0 0
  %675 = vmatpush1.bf16.xpose.msra.mxu0 0
  %676 = vmatprep.subr.bf16.mxu0 0
  %677 = vmatpush1.bf16.xpose.msra.mxu0 0
  %678 = vmatprep.subr.bf16.mxu0 0
  %679 = vmatpush1.bf16.xpose.msra.mxu0 0
  %680 = vmatprep.mubr.bf16.mxu0 0
  %681 = vmatmul.mubr.bf16.gmra.mrb[0].mxu0 %v643
  %v682 = vpop.f32.mrb[0].mxu0
  %v683 = vadd.f32 0.0, %v682
  %v684 = vpop.f32.mrb[0].mxu0
  %v685 = vpop.f32.mrb[0].mxu0
  %v686 = vpop.f32.mrb[0].mxu0
  %687 = vdwg.mxu0
  %v688 = vmul.f32 %v683, 0.35355338
  %v689 = vadd.f32 %v688, %v523
  %v690 = vsel %vm27, %v689, -inf
  %691 = vmax.xlane.f32.xlu0 %v690
  %v692 = vpop.xlane.xlu0 %691
  %v693 = vsub.f32 %v689, %v692
  %v694 = vmul.f32 %v693, 1.442695
  %v695 = vpow.pop %v694
  %v696 = vsel %vm27, %v695, 0.0
  %697 = vadd.xlane.f32.xlu0 %v696
  %v698 = vpop.xlane.xlu0 %697
  %v699 = vrcp.pop %v698
  %v700 = vmul.f32 %v695, %v699
  %v701 = vpack.c.bf16 %v700, %v700
  %v703 = vunpack.c.l.b16 %v514
  %v704 = vpack.c.b16 %v703, %v703
  %705 = vrot.lane.b32.xlu0 %v704, 120
  %v706 = vpop.permute.xlu0 %705
  %v708 = vsel %vm27, %v701, 0
  %v711 = vsel %vm91, %v706, 0
  %713 = vmatprep.subr.bf16.mxu0 0
  %714 = vmatpush1.bf16.msra.mxu0 %v711
  %715 = vmatprep.subr.bf16.mxu0 0
  %716 = vmatpush1.bf16.msra.mxu0 0
  %717 = vmatprep.subr.bf16.mxu0 0
  %718 = vmatpush1.bf16.msra.mxu0 0
  %719 = vmatprep.subr.bf16.mxu0 0
  %720 = vmatpush1.bf16.msra.mxu0 0
  %721 = vmatprep.subr.bf16.mxu0 0
  %722 = vmatpush1.bf16.msra.mxu0 0
  %723 = vmatprep.subr.bf16.mxu0 0
  %724 = vmatpush1.bf16.msra.mxu0 0
  %725 = vmatprep.subr.bf16.mxu0 0
  %726 = vmatpush1.bf16.msra.mxu0 0
  %727 = vmatprep.subr.bf16.mxu0 0
  %728 = vmatpush1.bf16.msra.mxu0 0
  %729 = vmatprep.subr.bf16.mxu0 0
  %730 = vmatpush1.bf16.msra.mxu0 0
  %731 = vmatprep.subr.bf16.mxu0 0
  %732 = vmatpush1.bf16.msra.mxu0 0
  %733 = vmatprep.subr.bf16.mxu0 0
  %734 = vmatpush1.bf16.msra.mxu0 0
  %735 = vmatprep.subr.bf16.mxu0 0
  %736 = vmatpush1.bf16.msra.mxu0 0
  %737 = vmatprep.subr.bf16.mxu0 0
  %738 = vmatpush1.bf16.msra.mxu0 0
  %739 = vmatprep.subr.bf16.mxu0 0
  %740 = vmatpush1.bf16.msra.mxu0 0
  %741 = vmatprep.subr.bf16.mxu0 0
  %742 = vmatpush1.bf16.msra.mxu0 0
  %743 = vmatprep.subr.bf16.mxu0 0
  %744 = vmatpush1.bf16.msra.mxu0 0
  %745 = vmatprep.mubr.bf16.mxu0 0
  %746 = vmatmul.mubr.bf16.gmra.mrb[0].mxu0 %v708
  %v747 = vpop.f32.mrb[0].mxu0
  %v748 = vadd.f32 0.0, %v747
  %v749 = vpop.f32.mrb[0].mxu0
  %v750 = vpop.f32.mrb[0].mxu0
  %v751 = vpop.f32.mrb[0].mxu0
  %752 = vdwg.mxu0
  %v753 = vpack.c.bf16 %v748, %v748
  %v755 = vunpack.c.l.b16 %v753
  %v756 = vpack.c.b16 %v755, %v755
  %757 = vrot.lane.b32.xlu0 %v756, 8
  %v758 = vpop.permute.xlu0 %757
  %760 = vst.msk [vmem:[%s3 + $0x4] sm:$0xf] %vm266, %v758
  %761 = vrot.lane.b32.xlu0 %v634, 112
  %v762 = vpop.permute.xlu0 %761
  %763 = vrot.lane.b32.xlu0 %v639, 112
  %v764 = vpop.permute.xlu0 %763
  %v766 = vsel %vm27, %v762, 0
  %v769 = vsel %vm27, %v764, 0
  %771 = vmatprep.subr.bf16.mxu0 0
  %772 = vmatpush1.bf16.xpose.msra.mxu0 %v769
  %773 = vmatprep.subr.bf16.mxu0 0
  %774 = vmatpush1.bf16.xpose.msra.mxu0 0
  %775 = vmatprep.subr.bf16.mxu0 0
  %776 = vmatpush1.bf16.xpose.msra.mxu0 0
  %777 = vmatprep.subr.bf16.mxu0 0
  %778 = vmatpush1.bf16.xpose.msra.mxu0 0
  %779 = vmatprep.subr.bf16.mxu0 0
  %780 = vmatpush1.bf16.xpose.msra.mxu0 0
  %781 = vmatprep.subr.bf16.mxu0 0
  %782 = vmatpush1.bf16.xpose.msra.mxu0 0
  %783 = vmatprep.subr.bf16.mxu0 0
  %784 = vmatpush1.bf16.xpose.msra.mxu0 0
  %785 = vmatprep.subr.bf16.mxu0 0
  %786 = vmatpush1.bf16.xpose.msra.mxu0 0
  %787 = vmatprep.subr.bf16.mxu0 0
  %788 = vmatpush1.bf16.xpose.msra.mxu0 0
  %789 = vmatprep.subr.bf16.mxu0 0
  %790 = vmatpush1.bf16.xpose.msra.mxu0 0
  %791 = vmatprep.subr.bf16.mxu0 0
  %792 = vmatpush1.bf16.xpose.msra.mxu0 0
  %793 = vmatprep.subr.bf16.mxu0 0
  %794 = vmatpush1.bf16.xpose.msra.mxu0 0
  %795 = vmatprep.subr.bf16.mxu0 0
  %796 = vmatpush1.bf16.xpose.msra.mxu0 0
  %797 = vmatprep.subr.bf16.mxu0 0
  %798 = vmatpush1.bf16.xpose.msra.mxu0 0
  %799 = vmatprep.subr.bf16.mxu0 0
  %800 = vmatpush1.bf16.xpose.msra.mxu0 0
  %801 = vmatprep.subr.bf16.mxu0 0
  %802 = vmatpush1.bf16.xpose.msra.mxu0 0
  %803 = vmatprep.mubr.bf16.mxu0 0
  %804 = vmatmul.mubr.bf16.gmra.mrb[0].mxu0 %v766
  %v805 = vpop.f32.mrb[0].mxu0
  %v806 = vadd.f32 0.0, %v805
  %v807 = vpop.f32.mrb[0].mxu0
  %v808 = vpop.f32.mrb[0].mxu0
  %v809 = vpop.f32.mrb[0].mxu0
  %810 = vdwg.mxu0
  %v811 = vmul.f32 %v806, 0.35355338
  %v812 = vadd.f32 %v811, %v523
  %v813 = vsel %vm27, %v812, -inf
  %814 = vmax.xlane.f32.xlu0 %v813
  %v815 = vpop.xlane.xlu0 %814
  %v816 = vsub.f32 %v812, %v815
  %v817 = vmul.f32 %v816, 1.442695
  %v818 = vpow.pop %v817
  %v819 = vsel %vm27, %v818, 0.0
  %820 = vadd.xlane.f32.xlu0 %v819
  %v821 = vpop.xlane.xlu0 %820
  %v822 = vrcp.pop %v821
  %v823 = vmul.f32 %v818, %v822
  %v824 = vpack.c.bf16 %v823, %v823
  %825 = vrot.lane.b32.xlu0 %v704, 112
  %v826 = vpop.permute.xlu0 %825
  %v828 = vsel %vm27, %v824, 0
  %v831 = vsel %vm91, %v826, 0
  %833 = vmatprep.subr.bf16.mxu0 0
  %834 = vmatpush1.bf16.msra.mxu0 %v831
  %835 = vmatprep.subr.bf16.mxu0 0
  %836 = vmatpush1.bf16.msra.mxu0 0
  %837 = vmatprep.subr.bf16.mxu0 0
  %838 = vmatpush1.bf16.msra.mxu0 0
  %839 = vmatprep.subr.bf16.mxu0 0
  %840 = vmatpush1.bf16.msra.mxu0 0
  %841 = vmatprep.subr.bf16.mxu0 0
  %842 = vmatpush1.bf16.msra.mxu0 0
  %843 = vmatprep.subr.bf16.mxu0 0
  %844 = vmatpush1.bf16.msra.mxu0 0
  %845 = vmatprep.subr.bf16.mxu0 0
  %846 = vmatpush1.bf16.msra.mxu0 0
  %847 = vmatprep.subr.bf16.mxu0 0
  %848 = vmatpush1.bf16.msra.mxu0 0
  %849 = vmatprep.subr.bf16.mxu0 0
  %850 = vmatpush1.bf16.msra.mxu0 0
  %851 = vmatprep.subr.bf16.mxu0 0
  %852 = vmatpush1.bf16.msra.mxu0 0
  %853 = vmatprep.subr.bf16.mxu0 0
  %854 = vmatpush1.bf16.msra.mxu0 0
  %855 = vmatprep.subr.bf16.mxu0 0
  %856 = vmatpush1.bf16.msra.mxu0 0
  %857 = vmatprep.subr.bf16.mxu0 0
  %858 = vmatpush1.bf16.msra.mxu0 0
  %859 = vmatprep.subr.bf16.mxu0 0
  %860 = vmatpush1.bf16.msra.mxu0 0
  %861 = vmatprep.subr.bf16.mxu0 0
  %862 = vmatpush1.bf16.msra.mxu0 0
  %863 = vmatprep.subr.bf16.mxu0 0
  %864 = vmatpush1.bf16.msra.mxu0 0
  %865 = vmatprep.mubr.bf16.mxu0 0
  %866 = vmatmul.mubr.bf16.gmra.mrb[0].mxu0 %v828
  %v867 = vpop.f32.mrb[0].mxu0
  %v868 = vadd.f32 0.0, %v867
  %v869 = vpop.f32.mrb[0].mxu0
  %v870 = vpop.f32.mrb[0].mxu0
  %v871 = vpop.f32.mrb[0].mxu0
  %872 = vdwg.mxu0
  %v873 = vpack.c.bf16 %v868, %v868
  %v875 = vunpack.c.l.b16 %v873
  %v876 = vpack.c.b16 %v875, %v875
  %877 = vrot.lane.b32.xlu0 %v876, 16
  %v878 = vpop.permute.xlu0 %877
  %880 = vst.msk [vmem:[%s3 + $0x4] sm:$0xf] %vm387, %v878
  %881 = vrot.lane.b32.xlu0 %v634, 104
  %v882 = vpop.permute.xlu0 %881
  %883 = vrot.lane.b32.xlu0 %v639, 104
  %v884 = vpop.permute.xlu0 %883
  %v886 = vsel %vm27, %v882, 0
  %v889 = vsel %vm27, %v884, 0
  %891 = vmatprep.subr.bf16.mxu0 0
  %892 = vmatpush1.bf16.xpose.msra.mxu0 %v889
  %893 = vmatprep.subr.bf16.mxu0 0
  %894 = vmatpush1.bf16.xpose.msra.mxu0 0
  %895 = vmatprep.subr.bf16.mxu0 0
  %896 = vmatpush1.bf16.xpose.msra.mxu0 0
  %897 = vmatprep.subr.bf16.mxu0 0
  %898 = vmatpush1.bf16.xpose.msra.mxu0 0
  %899 = vmatprep.subr.bf16.mxu0 0
  %900 = vmatpush1.bf16.xpose.msra.mxu0 0
  %901 = vmatprep.subr.bf16.mxu0 0
  %902 = vmatpush1.bf16.xpose.msra.mxu0 0
  %903 = vmatprep.subr.bf16.mxu0 0
  %904 = vmatpush1.bf16.xpose.msra.mxu0 0
  %905 = vmatprep.subr.bf16.mxu0 0
  %906 = vmatpush1.bf16.xpose.msra.mxu0 0
  %907 = vmatprep.subr.bf16.mxu0 0
  %908 = vmatpush1.bf16.xpose.msra.mxu0 0
  %909 = vmatprep.subr.bf16.mxu0 0
  %910 = vmatpush1.bf16.xpose.msra.mxu0 0
  %911 = vmatprep.subr.bf16.mxu0 0
  %912 = vmatpush1.bf16.xpose.msra.mxu0 0
  %913 = vmatprep.subr.bf16.mxu0 0
  %914 = vmatpush1.bf16.xpose.msra.mxu0 0
  %915 = vmatprep.subr.bf16.mxu0 0
  %916 = vmatpush1.bf16.xpose.msra.mxu0 0
  %917 = vmatprep.subr.bf16.mxu0 0
  %918 = vmatpush1.bf16.xpose.msra.mxu0 0
  %919 = vmatprep.subr.bf16.mxu0 0
  %920 = vmatpush1.bf16.xpose.msra.mxu0 0
  %921 = vmatprep.subr.bf16.mxu0 0
  %922 = vmatpush1.bf16.xpose.msra.mxu0 0
  %923 = vmatprep.mubr.bf16.mxu0 0
  %924 = vmatmul.mubr.bf16.gmra.mrb[0].mxu0 %v886
  %v925 = vpop.f32.mrb[0].mxu0
  %v926 = vadd.f32 0.0, %v925
  %v927 = vpop.f32.mrb[0].mxu0
  %v928 = vpop.f32.mrb[0].mxu0
  %v929 = vpop.f32.mrb[0].mxu0
  %930 = vdwg.mxu0
  %v931 = vmul.f32 %v926, 0.35355338
  %v932 = vadd.f32 %v931, %v523
  %v933 = vsel %vm27, %v932, -inf
  %934 = vmax.xlane.f32.xlu0 %v933
  %v935 = vpop.xlane.xlu0 %934
  %v936 = vsub.f32 %v932, %v935
  %v937 = vmul.f32 %v936, 1.442695
  %v938 = vpow.pop %v937
  %v939 = vsel %vm27, %v938, 0.0
  %940 = vadd.xlane.f32.xlu0 %v939
  %v941 = vpop.xlane.xlu0 %940
  %v942 = vrcp.pop %v941
  %v943 = vmul.f32 %v938, %v942
  %v944 = vpack.c.bf16 %v943, %v943
  %945 = vrot.lane.b32.xlu0 %v704, 104
  %v946 = vpop.permute.xlu0 %945
  %v948 = vsel %vm27, %v944, 0
  %v951 = vsel %vm91, %v946, 0
  %953 = vmatprep.subr.bf16.mxu0 0
  %954 = vmatpush1.bf16.msra.mxu0 %v951
  %955 = vmatprep.subr.bf16.mxu0 0
  %956 = vmatpush1.bf16.msra.mxu0 0
  %957 = vmatprep.subr.bf16.mxu0 0
  %958 = vmatpush1.bf16.msra.mxu0 0
  %959 = vmatprep.subr.bf16.mxu0 0
  %960 = vmatpush1.bf16.msra.mxu0 0
  %961 = vmatprep.subr.bf16.mxu0 0
  %962 = vmatpush1.bf16.msra.mxu0 0
  %963 = vmatprep.subr.bf16.mxu0 0
  %964 = vmatpush1.bf16.msra.mxu0 0
  %965 = vmatprep.subr.bf16.mxu0 0
  %966 = vmatpush1.bf16.msra.mxu0 0
  %967 = vmatprep.subr.bf16.mxu0 0
  %968 = vmatpush1.bf16.msra.mxu0 0
  %969 = vmatprep.subr.bf16.mxu0 0
  %970 = vmatpush1.bf16.msra.mxu0 0
  %971 = vmatprep.subr.bf16.mxu0 0
  %972 = vmatpush1.bf16.msra.mxu0 0
  %973 = vmatprep.subr.bf16.mxu0 0
  %974 = vmatpush1.bf16.msra.mxu0 0
  %975 = vmatprep.subr.bf16.mxu0 0
  %976 = vmatpush1.bf16.msra.mxu0 0
  %977 = vmatprep.subr.bf16.mxu0 0
  %978 = vmatpush1.bf16.msra.mxu0 0
  %979 = vmatprep.subr.bf16.mxu0 0
  %980 = vmatpush1.bf16.msra.mxu0 0
  %981 = vmatprep.subr.bf16.mxu0 0
  %982 = vmatpush1.bf16.msra.mxu0 0
  %983 = vmatprep.subr.bf16.mxu0 0
  %984 = vmatpush1.bf16.msra.mxu0 0
  %985 = vmatprep.mubr.bf16.mxu0 0
  %986 = vmatmul.mubr.bf16.gmra.mrb[0].mxu0 %v948
  %v987 = vpop.f32.mrb[0].mxu0
  %v988 = vadd.f32 0.0, %v987
  %v989 = vpop.f32.mrb[0].mxu0
  %v990 = vpop.f32.mrb[0].mxu0
  %v991 = vpop.f32.mrb[0].mxu0
  %992 = vdwg.mxu0
  %v993 = vpack.c.bf16 %v988, %v988
  %v995 = vunpack.c.l.b16 %v993
  %v996 = vpack.c.b16 %v995, %v995
  %997 = vrot.lane.b32.xlu0 %v996, 24
  %v998 = vpop.permute.xlu0 %997
  %1000 = vst.msk [vmem:[%s3 + $0x4] sm:$0xf] %vm508, %v998
  %1001 = vst.msk [vmem:[%s3 + $0x4] sm:$0xf] %vm510, 0
  // Predicated region
  $region14: #{_lambda_.44} parent=0 // pred_check
    _
  $region15: #{_lambda_.44} parent=0 // pred_check_branch
    %1003 = sbr.rel (0) target = $region17
  $region16: #{_lambda_.44} parent=0 // pred_region
    _
  $region17: #{_lambda_.44} parent=0 // pred_fallthru
    _
  // Predicated region
  $region18: #{_lambda_.44} parent=0 // pred_check
    _
  $region19: #{_lambda_.44} parent=0 // pred_check_branch
    %1005 = sbr.rel (0) target = $region21
  $region20: #{_lambda_.44} parent=0 // pred_region
    _
  $region21: #{_lambda_.44} parent=0 // pred_fallthru
    _

// kernel: _lambda_.48
$region0: #{_lambda_.48}
  #allocation0 [shape = 'u32[]', space=smem, size = 0x4, offset = 0x4, fixed_abs, tag = 'smem constant byte address 0x4 - core index']
  #allocation1 [shape = 'u32[144,128]{1,0:T(1,128)}', space=vmem, size = 0x12000, scoped, tag = 'internal scratch']
  %s0 = inlined_call_operand.vmem [shape: bf16[8,256], index: 0, kind: input, shape index: {}]
  %s1 = inlined_call_operand.vmem [shape: bf16[8,512], index: 1, kind: input, shape index: {}]
  %s2 = inlined_call_operand.vmem [shape: bf16[8,256], index: 2, kind: output, shape index: {}]
  %s3 = sld [smem:[#allocation0]]
  $region18: #{_lambda_.48} parent=0
    _
  %s5 = ssub.s32 1, %s3
  %s6 = scalar_select 0, %s5, %s3
  // Predicated region
  $region2: #{_lambda_.48} parent=0 // pred_check
    _
  $region3: #{_lambda_.48} parent=0 // pred_check_branch
    %8 = sbr.rel (0) target = $region5
  $region4: #{_lambda_.48} parent=0 // pred_region
    _
  $region5: #{_lambda_.48} parent=0 // pred_fallthru
    _
  // Predicated region
  $region6: #{_lambda_.48} parent=0 // pred_check
    _
  $region7: #{_lambda_.48} parent=0 // pred_check_branch
    %10 = sbr.rel (0) target = $region9
  $region8: #{_lambda_.48} parent=0 // pred_region
    _
  $region9: #{_lambda_.48} parent=0 // pred_fallthru
    _
  %v12 = vld [vmem:[%s0] sm:$0xf]
  %v13 = vld [vmem:[%s1] sm:$0xf]
  %v14 = vld [vmem:[%s1 + $0x4] sm:$0xf]
  %vm15 = vcmask 64512
  %v17 = vsel %vm15, %v12, 0
  %v20 = vsel %vm15, %v13, 0
  %22 = vmatprep.subr.bf16.mxu0 0
  %23 = vmatpush1.bf16.xpose.msra.mxu0 %v20
  %24 = vmatprep.subr.bf16.mxu0 0
  %25 = vmatpush1.bf16.xpose.msra.mxu0 0
  %26 = vmatprep.subr.bf16.mxu0 0
  %27 = vmatpush1.bf16.xpose.msra.mxu0 0
  %28 = vmatprep.subr.bf16.mxu0 0
  %29 = vmatpush1.bf16.xpose.msra.mxu0 0
  %30 = vmatprep.subr.bf16.mxu0 0
  %31 = vmatpush1.bf16.xpose.msra.mxu0 0
  %32 = vmatprep.subr.bf16.mxu0 0
  %33 = vmatpush1.bf16.xpose.msra.mxu0 0
  %34 = vmatprep.subr.bf16.mxu0 0
  %35 = vmatpush1.bf16.xpose.msra.mxu0 0
  %36 = vmatprep.subr.bf16.mxu0 0
  %37 = vmatpush1.bf16.xpose.msra.mxu0 0
  %38 = vmatprep.subr.bf16.mxu0 0
  %39 = vmatpush1.bf16.xpose.msra.mxu0 0
  %40 = vmatprep.subr.bf16.mxu0 0
  %41 = vmatpush1.bf16.xpose.msra.mxu0 0
  %42 = vmatprep.subr.bf16.mxu0 0
  %43 = vmatpush1.bf16.xpose.msra.mxu0 0
  %44 = vmatprep.subr.bf16.mxu0 0
  %45 = vmatpush1.bf16.xpose.msra.mxu0 0
  %46 = vmatprep.subr.bf16.mxu0 0
  %47 = vmatpush1.bf16.xpose.msra.mxu0 0
  %48 = vmatprep.subr.bf16.mxu0 0
  %49 = vmatpush1.bf16.xpose.msra.mxu0 0
  %50 = vmatprep.subr.bf16.mxu0 0
  %51 = vmatpush1.bf16.xpose.msra.mxu0 0
  %52 = vmatprep.subr.bf16.mxu0 0
  %53 = vmatpush1.bf16.xpose.msra.mxu0 0
  %54 = vmatprep.mubr.bf16.mxu0 0
  %55 = vmatmul.mubr.bf16.gmra.mrb[0].mxu0 %v17
  %v56 = vpop.f32.mrb[0].mxu0
  %v57 = vadd.f32 0.0, %v56
  %v58 = vpop.f32.mrb[0].mxu0
  %v59 = vpop.f32.mrb[0].mxu0
  %v60 = vpop.f32.mrb[0].mxu0
  %61 = vdwg.mxu0
  %v62 = vmul.f32 %v57, 0.35355338
  %v63 = vsel %vm15, %v62, -inf
  %64 = vmax.xlane.f32.xlu0 %v63
  %v65 = vpop.xlane.xlu0 %64
  %v66 = vsub.f32 %v62, %v65
  %v67 = vmul.f32 %v66, 1.442695
  %v68 = vpow.pop %v67
  %v69 = vsel %vm15, %v68, 0.0
  %70 = vadd.xlane.f32.xlu0 %v69
  %v71 = vpop.xlane.xlu0 %70
  %v72 = vrcp.pop %v71
  %v73 = vmul.f32 %v68, %v72
  %v74 = vpack.c.bf16 %v73, %v73
  %v76 = vsel %vm15, %v74, 0
  %vm78 = vcmask 1043456
  %v80 = vsel %vm78, %v14, 0
  %82 = vmatprep.subr.bf16.mxu0 0
  %83 = vmatpush1.bf16.msra.mxu0 %v80
  %84 = vmatprep.subr.bf16.mxu0 0
  %85 = vmatpush1.bf16.msra.mxu0 0
  %86 = vmatprep.subr.bf16.mxu0 0
  %87 = vmatpush1.bf16.msra.mxu0 0
  %88 = vmatprep.subr.bf16.mxu0 0
  %89 = vmatpush1.bf16.msra.mxu0 0
  %90 = vmatprep.subr.bf16.mxu0 0
  %91 = vmatpush1.bf16.msra.mxu0 0
  %92 = vmatprep.subr.bf16.mxu0 0
  %93 = vmatpush1.bf16.msra.mxu0 0
  %94 = vmatprep.subr.bf16.mxu0 0
  %95 = vmatpush1.bf16.msra.mxu0 0
  %96 = vmatprep.subr.bf16.mxu0 0
  %97 = vmatpush1.bf16.msra.mxu0 0
  %98 = vmatprep.subr.bf16.mxu0 0
  %99 = vmatpush1.bf16.msra.mxu0 0
  %100 = vmatprep.subr.bf16.mxu0 0
  %101 = vmatpush1.bf16.msra.mxu0 0
  %102 = vmatprep.subr.bf16.mxu0 0
  %103 = vmatpush1.bf16.msra.mxu0 0
  %104 = vmatprep.subr.bf16.mxu0 0
  %105 = vmatpush1.bf16.msra.mxu0 0
  %106 = vmatprep.subr.bf16.mxu0 0
  %107 = vmatpush1.bf16.msra.mxu0 0
  %108 = vmatprep.subr.bf16.mxu0 0
  %109 = vmatpush1.bf16.msra.mxu0 0
  %110 = vmatprep.subr.bf16.mxu0 0
  %111 = vmatpush1.bf16.msra.mxu0 0
  %112 = vmatprep.subr.bf16.mxu0 0
  %113 = vmatpush1.bf16.msra.mxu0 0
  %114 = vmatprep.mubr.bf16.mxu0 0
  %115 = vmatmul.mubr.bf16.gmra.mrb[0].mxu0 %v76
  %v116 = vpop.f32.mrb[0].mxu0
  %v117 = vadd.f32 0.0, %v116
  %v118 = vpop.f32.mrb[0].mxu0
  %v119 = vpop.f32.mrb[0].mxu0
  %v120 = vpop.f32.mrb[0].mxu0
  %121 = vdwg.mxu0
  %v122 = vpack.c.bf16 %v117, %v117
  %vm123 = vcmask 60416
  %124 = vst.msk [vmem:[%s2] sm:$0xf] %vm123, %v122
  %v126 = vunpack.c.l.b16 %v12
  %v127 = vpack.c.b16 %v126, %v126
  %128 = vrot.lane.b32.xlu0 %v127, 120
  %v129 = vpop.permute.xlu0 %128
  %v131 = vunpack.c.l.b16 %v13
  %v132 = vpack.c.b16 %v131, %v131
  %133 = vrot.lane.b32.xlu0 %v132, 120
  %v134 = vpop.permute.xlu0 %133
  %v136 = vsel %vm15, %v129, 0
  %v139 = vsel %vm15, %v134, 0
  %141 = vmatprep.subr.bf16.mxu0 0
  %142 = vmatpush1.bf16.xpose.msra.mxu0 %v139
  %143 = vmatprep.subr.bf16.mxu0 0
  %144 = vmatpush1.bf16.xpose.msra.mxu0 0
  %145 = vmatprep.subr.bf16.mxu0 0
  %146 = vmatpush1.bf16.xpose.msra.mxu0 0
  %147 = vmatprep.subr.bf16.mxu0 0
  %148 = vmatpush1.bf16.xpose.msra.mxu0 0
  %149 = vmatprep.subr.bf16.mxu0 0
  %150 = vmatpush1.bf16.xpose.msra.mxu0 0
  %151 = vmatprep.subr.bf16.mxu0 0
  %152 = vmatpush1.bf16.xpose.msra.mxu0 0
  %153 = vmatprep.subr.bf16.mxu0 0
  %154 = vmatpush1.bf16.xpose.msra.mxu0 0
  %155 = vmatprep.subr.bf16.mxu0 0
  %156 = vmatpush1.bf16.xpose.msra.mxu0 0
  %157 = vmatprep.subr.bf16.mxu0 0
  %158 = vmatpush1.bf16.xpose.msra.mxu0 0
  %159 = vmatprep.subr.bf16.mxu0 0
  %160 = vmatpush1.bf16.xpose.msra.mxu0 0
  %161 = vmatprep.subr.bf16.mxu0 0
  %162 = vmatpush1.bf16.xpose.msra.mxu0 0
  %163 = vmatprep.subr.bf16.mxu0 0
  %164 = vmatpush1.bf16.xpose.msra.mxu0 0
  %165 = vmatprep.subr.bf16.mxu0 0
  %166 = vmatpush1.bf16.xpose.msra.mxu0 0
  %167 = vmatprep.subr.bf16.mxu0 0
  %168 = vmatpush1.bf16.xpose.msra.mxu0 0
  %169 = vmatprep.subr.bf16.mxu0 0
  %170 = vmatpush1.bf16.xpose.msra.mxu0 0
  %171 = vmatprep.subr.bf16.mxu0 0
  %172 = vmatpush1.bf16.xpose.msra.mxu0 0
  %173 = vmatprep.mubr.bf16.mxu0 0
  %174 = vmatmul.mubr.bf16.gmra.mrb[0].mxu0 %v136
  %v175 = vpop.f32.mrb[0].mxu0
  %v176 = vadd.f32 0.0, %v175
  %v177 = vpop.f32.mrb[0].mxu0
  %v178 = vpop.f32.mrb[0].mxu0
  %v179 = vpop.f32.mrb[0].mxu0
  %180 = vdwg.mxu0
  %v181 = vmul.f32 %v176, 0.35355338
  %v182 = vsel %vm15, %v181, -inf
  %183 = vmax.xlane.f32.xlu0 %v182
  %v184 = vpop.xlane.xlu0 %183
  %v185 = vsub.f32 %v181, %v184
  %v186 = vmul.f32 %v185, 1.442695
  %v187 = vpow.pop %v186
  %v188 = vsel %vm15, %v187, 0.0
  %189 = vadd.xlane.f32.xlu0 %v188
  %v190 = vpop.xlane.xlu0 %189
  %v191 = vrcp.pop %v190
  %v192 = vmul.f32 %v187, %v191
  %v193 = vpack.c.bf16 %v192, %v192
  %v195 = vunpack.c.l.b16 %v14
  %v196 = vpack.c.b16 %v195, %v195
  %197 = vrot.lane.b32.xlu0 %v196, 120
  %v198 = vpop.permute.xlu0 %197
  %v200 = vsel %vm15, %v193, 0
  %v203 = vsel %vm78, %v198, 0
  %205 = vmatprep.subr.bf16.mxu0 0
  %206 = vmatpush1.bf16.msra.mxu0 %v203
  %207 = vmatprep.subr.bf16.mxu0 0
  %208 = vmatpush1.bf16.msra.mxu0 0
  %209 = vmatprep.subr.bf16.mxu0 0
  %210 = vmatpush1.bf16.msra.mxu0 0
  %211 = vmatprep.subr.bf16.mxu0 0
  %212 = vmatpush1.bf16.msra.mxu0 0
  %213 = vmatprep.subr.bf16.mxu0 0
  %214 = vmatpush1.bf16.msra.mxu0 0
  %215 = vmatprep.subr.bf16.mxu0 0
  %216 = vmatpush1.bf16.msra.mxu0 0
  %217 = vmatprep.subr.bf16.mxu0 0
  %218 = vmatpush1.bf16.msra.mxu0 0
  %219 = vmatprep.subr.bf16.mxu0 0
  %220 = vmatpush1.bf16.msra.mxu0 0
  %221 = vmatprep.subr.bf16.mxu0 0
  %222 = vmatpush1.bf16.msra.mxu0 0
  %223 = vmatprep.subr.bf16.mxu0 0
  %224 = vmatpush1.bf16.msra.mxu0 0
  %225 = vmatprep.subr.bf16.mxu0 0
  %226 = vmatpush1.bf16.msra.mxu0 0
  %227 = vmatprep.subr.bf16.mxu0 0
  %228 = vmatpush1.bf16.msra.mxu0 0
  %229 = vmatprep.subr.bf16.mxu0 0
  %230 = vmatpush1.bf16.msra.mxu0 0
  %231 = vmatprep.subr.bf16.mxu0 0
  %232 = vmatpush1.bf16.msra.mxu0 0
  %233 = vmatprep.subr.bf16.mxu0 0
  %234 = vmatpush1.bf16.msra.mxu0 0
  %235 = vmatprep.subr.bf16.mxu0 0
  %236 = vmatpush1.bf16.msra.mxu0 0
  %237 = vmatprep.mubr.bf16.mxu0 0
  %238 = vmatmul.mubr.bf16.gmra.mrb[0].mxu0 %v200
  %v239 = vpop.f32.mrb[0].mxu0
  %v240 = vadd.f32 0.0, %v239
  %v241 = vpop.f32.mrb[0].mxu0
  %v242 = vpop.f32.mrb[0].mxu0
  %v243 = vpop.f32.mrb[0].mxu0
  %244 = vdwg.mxu0
  %v245 = vpack.c.bf16 %v240, %v240
  %v247 = vunpack.c.l.b16 %v245
  %v248 = vpack.c.b16 %v247, %v247
  %249 = vrot.lane.b32.xlu0 %v248, 8
  %v250 = vpop.permute.xlu0 %249
  %vm252 = vcmask 126016
  %253 = vst.msk [vmem:[%s2] sm:$0xf] %vm252, %v250
  %254 = vrot.lane.b32.xlu0 %v127, 112
  %v255 = vpop.permute.xlu0 %254
  %256 = vrot.lane.b32.xlu0 %v132, 112
  %v257 = vpop.permute.xlu0 %256
  %v259 = vsel %vm15, %v255, 0
  %v262 = vsel %vm15, %v257, 0
  %264 = vmatprep.subr.bf16.mxu0 0
  %265 = vmatpush1.bf16.xpose.msra.mxu0 %v262
  %266 = vmatprep.subr.bf16.mxu0 0
  %267 = vmatpush1.bf16.xpose.msra.mxu0 0
  %268 = vmatprep.subr.bf16.mxu0 0
  %269 = vmatpush1.bf16.xpose.msra.mxu0 0
  %270 = vmatprep.subr.bf16.mxu0 0
  %271 = vmatpush1.bf16.xpose.msra.mxu0 0
  %272 = vmatprep.subr.bf16.mxu0 0
  %273 = vmatpush1.bf16.xpose.msra.mxu0 0
  %274 = vmatprep.subr.bf16.mxu0 0
  %275 = vmatpush1.bf16.xpose.msra.mxu0 0
  %276 = vmatprep.subr.bf16.mxu0 0
  %277 = vmatpush1.bf16.xpose.msra.mxu0 0
  %278 = vmatprep.subr.bf16.mxu0 0
  %279 = vmatpush1.bf16.xpose.msra.mxu0 0
  %280 = vmatprep.subr.bf16.mxu0 0
  %281 = vmatpush1.bf16.xpose.msra.mxu0 0
  %282 = vmatprep.subr.bf16.mxu0 0
  %283 = vmatpush1.bf16.xpose.msra.mxu0 0
  %284 = vmatprep.subr.bf16.mxu0 0
  %285 = vmatpush1.bf16.xpose.msra.mxu0 0
  %286 = vmatprep.subr.bf16.mxu0 0
  %287 = vmatpush1.bf16.xpose.msra.mxu0 0
  %288 = vmatprep.subr.bf16.mxu0 0
  %289 = vmatpush1.bf16.xpose.msra.mxu0 0
  %290 = vmatprep.subr.bf16.mxu0 0
  %291 = vmatpush1.bf16.xpose.msra.mxu0 0
  %292 = vmatprep.subr.bf16.mxu0 0
  %293 = vmatpush1.bf16.xpose.msra.mxu0 0
  %294 = vmatprep.subr.bf16.mxu0 0
  %295 = vmatpush1.bf16.xpose.msra.mxu0 0
  %296 = vmatprep.mubr.bf16.mxu0 0
  %297 = vmatmul.mubr.bf16.gmra.mrb[0].mxu0 %v259
  %v298 = vpop.f32.mrb[0].mxu0
  %v299 = vadd.f32 0.0, %v298
  %v300 = vpop.f32.mrb[0].mxu0
  %v301 = vpop.f32.mrb[0].mxu0
  %v302 = vpop.f32.mrb[0].mxu0
  %303 = vdwg.mxu0
  %v304 = vmul.f32 %v299, 0.35355338
  %v305 = vsel %vm15, %v304, -inf
  %306 = vmax.xlane.f32.xlu0 %v305
  %v307 = vpop.xlane.xlu0 %306
  %v308 = vsub.f32 %v304, %v307
  %v309 = vmul.f32 %v308, 1.442695
  %v310 = vpow.pop %v309
  %v311 = vsel %vm15, %v310, 0.0
  %312 = vadd.xlane.f32.xlu0 %v311
  %v313 = vpop.xlane.xlu0 %312
  %v314 = vrcp.pop %v313
  %v315 = vmul.f32 %v310, %v314
  %v316 = vpack.c.bf16 %v315, %v315
  %317 = vrot.lane.b32.xlu0 %v196, 112
  %v318 = vpop.permute.xlu0 %317
  %v320 = vsel %vm15, %v316, 0
  %v323 = vsel %vm78, %v318, 0
  %325 = vmatprep.subr.bf16.mxu0 0
  %326 = vmatpush1.bf16.msra.mxu0 %v323
  %327 = vmatprep.subr.bf16.mxu0 0
  %328 = vmatpush1.bf16.msra.mxu0 0
  %329 = vmatprep.subr.bf16.mxu0 0
  %330 = vmatpush1.bf16.msra.mxu0 0
  %331 = vmatprep.subr.bf16.mxu0 0
  %332 = vmatpush1.bf16.msra.mxu0 0
  %333 = vmatprep.subr.bf16.mxu0 0
  %334 = vmatpush1.bf16.msra.mxu0 0
  %335 = vmatprep.subr.bf16.mxu0 0
  %336 = vmatpush1.bf16.msra.mxu0 0
  %337 = vmatprep.subr.bf16.mxu0 0
  %338 = vmatpush1.bf16.msra.mxu0 0
  %339 = vmatprep.subr.bf16.mxu0 0
  %340 = vmatpush1.bf16.msra.mxu0 0
  %341 = vmatprep.subr.bf16.mxu0 0
  %342 = vmatpush1.bf16.msra.mxu0 0
  %343 = vmatprep.subr.bf16.mxu0 0
  %344 = vmatpush1.bf16.msra.mxu0 0
  %345 = vmatprep.subr.bf16.mxu0 0
  %346 = vmatpush1.bf16.msra.mxu0 0
  %347 = vmatprep.subr.bf16.mxu0 0
  %348 = vmatpush1.bf16.msra.mxu0 0
  %349 = vmatprep.subr.bf16.mxu0 0
  %350 = vmatpush1.bf16.msra.mxu0 0
  %351 = vmatprep.subr.bf16.mxu0 0
  %352 = vmatpush1.bf16.msra.mxu0 0
  %353 = vmatprep.subr.bf16.mxu0 0
  %354 = vmatpush1.bf16.msra.mxu0 0
  %355 = vmatprep.subr.bf16.mxu0 0
  %356 = vmatpush1.bf16.msra.mxu0 0
  %357 = vmatprep.mubr.bf16.mxu0 0
  %358 = vmatmul.mubr.bf16.gmra.mrb[0].mxu0 %v320
  %v359 = vpop.f32.mrb[0].mxu0
  %v360 = vadd.f32 0.0, %v359
  %v361 = vpop.f32.mrb[0].mxu0
  %v362 = vpop.f32.mrb[0].mxu0
  %v363 = vpop.f32.mrb[0].mxu0
  %364 = vdwg.mxu0
  %v365 = vpack.c.bf16 %v360, %v360
  %v367 = vunpack.c.l.b16 %v365
  %v368 = vpack.c.b16 %v367, %v367
  %369 = vrot.lane.b32.xlu0 %v368, 16
  %v370 = vpop.permute.xlu0 %369
  %vm372 = vcmask 191616
  %373 = vst.msk [vmem:[%s2] sm:$0xf] %vm372, %v370
  %374 = vrot.lane.b32.xlu0 %v127, 104
  %v375 = vpop.permute.xlu0 %374
  %376 = vrot.lane.b32.xlu0 %v132, 104
  %v377 = vpop.permute.xlu0 %376
  %v379 = vsel %vm15, %v375, 0
  %v382 = vsel %vm15, %v377, 0
  %384 = vmatprep.subr.bf16.mxu0 0
  %385 = vmatpush1.bf16.xpose.msra.mxu0 %v382
  %386 = vmatprep.subr.bf16.mxu0 0
  %387 = vmatpush1.bf16.xpose.msra.mxu0 0
  %388 = vmatprep.subr.bf16.mxu0 0
  %389 = vmatpush1.bf16.xpose.msra.mxu0 0
  %390 = vmatprep.subr.bf16.mxu0 0
  %391 = vmatpush1.bf16.xpose.msra.mxu0 0
  %392 = vmatprep.subr.bf16.mxu0 0
  %393 = vmatpush1.bf16.xpose.msra.mxu0 0
  %394 = vmatprep.subr.bf16.mxu0 0
  %395 = vmatpush1.bf16.xpose.msra.mxu0 0
  %396 = vmatprep.subr.bf16.mxu0 0
  %397 = vmatpush1.bf16.xpose.msra.mxu0 0
  %398 = vmatprep.subr.bf16.mxu0 0
  %399 = vmatpush1.bf16.xpose.msra.mxu0 0
  %400 = vmatprep.subr.bf16.mxu0 0
  %401 = vmatpush1.bf16.xpose.msra.mxu0 0
  %402 = vmatprep.subr.bf16.mxu0 0
  %403 = vmatpush1.bf16.xpose.msra.mxu0 0
  %404 = vmatprep.subr.bf16.mxu0 0
  %405 = vmatpush1.bf16.xpose.msra.mxu0 0
  %406 = vmatprep.subr.bf16.mxu0 0
  %407 = vmatpush1.bf16.xpose.msra.mxu0 0
  %408 = vmatprep.subr.bf16.mxu0 0
  %409 = vmatpush1.bf16.xpose.msra.mxu0 0
  %410 = vmatprep.subr.bf16.mxu0 0
  %411 = vmatpush1.bf16.xpose.msra.mxu0 0
  %412 = vmatprep.subr.bf16.mxu0 0
  %413 = vmatpush1.bf16.xpose.msra.mxu0 0
  %414 = vmatprep.subr.bf16.mxu0 0
  %415 = vmatpush1.bf16.xpose.msra.mxu0 0
  %416 = vmatprep.mubr.bf16.mxu0 0
  %417 = vmatmul.mubr.bf16.gmra.mrb[0].mxu0 %v379
  %v418 = vpop.f32.mrb[0].mxu0
  %v419 = vadd.f32 0.0, %v418
  %v420 = vpop.f32.mrb[0].mxu0
  %v421 = vpop.f32.mrb[0].mxu0
  %v422 = vpop.f32.mrb[0].mxu0
  %423 = vdwg.mxu0
  %v424 = vmul.f32 %v419, 0.35355338
  %v425 = vsel %vm15, %v424, -inf
  %426 = vmax.xlane.f32.xlu0 %v425
  %v427 = vpop.xlane.xlu0 %426
  %v428 = vsub.f32 %v424, %v427
  %v429 = vmul.f32 %v428, 1.442695
  %v430 = vpow.pop %v429
  %v431 = vsel %vm15, %v430, 0.0
  %432 = vadd.xlane.f32.xlu0 %v431
  %v433 = vpop.xlane.xlu0 %432
  %v434 = vrcp.pop %v433
  %v435 = vmul.f32 %v430, %v434
  %v436 = vpack.c.bf16 %v435, %v435
  %437 = vrot.lane.b32.xlu0 %v196, 104
  %v438 = vpop.permute.xlu0 %437
  %v440 = vsel %vm15, %v436, 0
  %v443 = vsel %vm78, %v438, 0
  %445 = vmatprep.subr.bf16.mxu0 0
  %446 = vmatpush1.bf16.msra.mxu0 %v443
  %447 = vmatprep.subr.bf16.mxu0 0
  %448 = vmatpush1.bf16.msra.mxu0 0
  %449 = vmatprep.subr.bf16.mxu0 0
  %450 = vmatpush1.bf16.msra.mxu0 0
  %451 = vmatprep.subr.bf16.mxu0 0
  %452 = vmatpush1.bf16.msra.mxu0 0
  %453 = vmatprep.subr.bf16.mxu0 0
  %454 = vmatpush1.bf16.msra.mxu0 0
  %455 = vmatprep.subr.bf16.mxu0 0
  %456 = vmatpush1.bf16.msra.mxu0 0
  %457 = vmatprep.subr.bf16.mxu0 0
  %458 = vmatpush1.bf16.msra.mxu0 0
  %459 = vmatprep.subr.bf16.mxu0 0
  %460 = vmatpush1.bf16.msra.mxu0 0
  %461 = vmatprep.subr.bf16.mxu0 0
  %462 = vmatpush1.bf16.msra.mxu0 0
  %463 = vmatprep.subr.bf16.mxu0 0
  %464 = vmatpush1.bf16.msra.mxu0 0
  %465 = vmatprep.subr.bf16.mxu0 0
  %466 = vmatpush1.bf16.msra.mxu0 0
  %467 = vmatprep.subr.bf16.mxu0 0
  %468 = vmatpush1.bf16.msra.mxu0 0
  %469 = vmatprep.subr.bf16.mxu0 0
  %470 = vmatpush1.bf16.msra.mxu0 0
  %471 = vmatprep.subr.bf16.mxu0 0
  %472 = vmatpush1.bf16.msra.mxu0 0
  %473 = vmatprep.subr.bf16.mxu0 0
  %474 = vmatpush1.bf16.msra.mxu0 0
  %475 = vmatprep.subr.bf16.mxu0 0
  %476 = vmatpush1.bf16.msra.mxu0 0
  %477 = vmatprep.mubr.bf16.mxu0 0
  %478 = vmatmul.mubr.bf16.gmra.mrb[0].mxu0 %v440
  %v479 = vpop.f32.mrb[0].mxu0
  %v480 = vadd.f32 0.0, %v479
  %v481 = vpop.f32.mrb[0].mxu0
  %v482 = vpop.f32.mrb[0].mxu0
  %v483 = vpop.f32.mrb[0].mxu0
  %484 = vdwg.mxu0
  %v485 = vpack.c.bf16 %v480, %v480
  %v487 = vunpack.c.l.b16 %v485
  %v488 = vpack.c.b16 %v487, %v487
  %489 = vrot.lane.b32.xlu0 %v488, 24
  %v490 = vpop.permute.xlu0 %489
  %vm492 = vcmask 257216
  %493 = vst.msk [vmem:[%s2] sm:$0xf] %vm492, %v490
  %vm494 = vcmask 1043712
  %495 = vst.msk [vmem:[%s2] sm:$0xf] %vm494, 0
  %v496 = vld [vmem:[%s0 + $0x4] sm:$0xf]
  %v497 = vld [vmem:[%s1 + $0x8] sm:$0xf]
  %v498 = vld [vmem:[%s1 + $0xc] sm:$0xf]
  %v500 = vsel %vm15, %v496, 0
  %v503 = vsel %vm15, %v497, 0
  %505 = vmatprep.subr.bf16.mxu0 0
  %506 = vmatpush1.bf16.xpose.msra.mxu0 %v503
  %507 = vmatprep.subr.bf16.mxu0 0
  %508 = vmatpush1.bf16.xpose.msra.mxu0 0
  %509 = vmatprep.subr.bf16.mxu0 0
  %510 = vmatpush1.bf16.xpose.msra.mxu0 0
  %511 = vmatprep.subr.bf16.mxu0 0
  %512 = vmatpush1.bf16.xpose.msra.mxu0 0
  %513 = vmatprep.subr.bf16.mxu0 0
  %514 = vmatpush1.bf16.xpose.msra.mxu0 0
  %515 = vmatprep.subr.bf16.mxu0 0
  %516 = vmatpush1.bf16.xpose.msra.mxu0 0
  %517 = vmatprep.subr.bf16.mxu0 0
  %518 = vmatpush1.bf16.xpose.msra.mxu0 0
  %519 = vmatprep.subr.bf16.mxu0 0
  %520 = vmatpush1.bf16.xpose.msra.mxu0 0
  %521 = vmatprep.subr.bf16.mxu0 0
  %522 = vmatpush1.bf16.xpose.msra.mxu0 0
  %523 = vmatprep.subr.bf16.mxu0 0
  %524 = vmatpush1.bf16.xpose.msra.mxu0 0
  %525 = vmatprep.subr.bf16.mxu0 0
  %526 = vmatpush1.bf16.xpose.msra.mxu0 0
  %527 = vmatprep.subr.bf16.mxu0 0
  %528 = vmatpush1.bf16.xpose.msra.mxu0 0
  %529 = vmatprep.subr.bf16.mxu0 0
  %530 = vmatpush1.bf16.xpose.msra.mxu0 0
  %531 = vmatprep.subr.bf16.mxu0 0
  %532 = vmatpush1.bf16.xpose.msra.mxu0 0
  %533 = vmatprep.subr.bf16.mxu0 0
  %534 = vmatpush1.bf16.xpose.msra.mxu0 0
  %535 = vmatprep.subr.bf16.mxu0 0
  %536 = vmatpush1.bf16.xpose.msra.mxu0 0
  %537 = vmatprep.mubr.bf16.mxu0 0
  %538 = vmatmul.mubr.bf16.gmra.mrb[0].mxu0 %v500
  %v539 = vpop.f32.mrb[0].mxu0
  %v540 = vadd.f32 0.0, %v539
  %v541 = vpop.f32.mrb[0].mxu0
  %v542 = vpop.f32.mrb[0].mxu0
  %v543 = vpop.f32.mrb[0].mxu0
  %544 = vdwg.mxu0
  %v545 = vmul.f32 %v540, 0.35355338
  %v546 = vsel %vm15, %v545, -inf
  %547 = vmax.xlane.f32.xlu0 %v546
  %v548 = vpop.xlane.xlu0 %547
  %v549 = vsub.f32 %v545, %v548
  %v550 = vmul.f32 %v549, 1.442695
  %v551 = vpow.pop %v550
  %v552 = vsel %vm15, %v551, 0.0
  %553 = vadd.xlane.f32.xlu0 %v552
  %v554 = vpop.xlane.xlu0 %553
  %v555 = vrcp.pop %v554
  %v556 = vmul.f32 %v551, %v555
  %v557 = vpack.c.bf16 %v556, %v556
  %v559 = vsel %vm15, %v557, 0
  %v562 = vsel %vm78, %v498, 0
  %564 = vmatprep.subr.bf16.mxu0 0
  %565 = vmatpush1.bf16.msra.mxu0 %v562
  %566 = vmatprep.subr.bf16.mxu0 0
  %567 = vmatpush1.bf16.msra.mxu0 0
  %568 = vmatprep.subr.bf16.mxu0 0
  %569 = vmatpush1.bf16.msra.mxu0 0
  %570 = vmatprep.subr.bf16.mxu0 0
  %571 = vmatpush1.bf16.msra.mxu0 0
  %572 = vmatprep.subr.bf16.mxu0 0
  %573 = vmatpush1.bf16.msra.mxu0 0
  %574 = vmatprep.subr.bf16.mxu0 0
  %575 = vmatpush1.bf16.msra.mxu0 0
  %576 = vmatprep.subr.bf16.mxu0 0
  %577 = vmatpush1.bf16.msra.mxu0 0
  %578 = vmatprep.subr.bf16.mxu0 0
  %579 = vmatpush1.bf16.msra.mxu0 0
  %580 = vmatprep.subr.bf16.mxu0 0
  %581 = vmatpush1.bf16.msra.mxu0 0
  %582 = vmatprep.subr.bf16.mxu0 0
  %583 = vmatpush1.bf16.msra.mxu0 0
  %584 = vmatprep.subr.bf16.mxu0 0
  %585 = vmatpush1.bf16.msra.mxu0 0
  %586 = vmatprep.subr.bf16.mxu0 0
  %587 = vmatpush1.bf16.msra.mxu0 0
  %588 = vmatprep.subr.bf16.mxu0 0
  %589 = vmatpush1.bf16.msra.mxu0 0
  %590 = vmatprep.subr.bf16.mxu0 0
  %591 = vmatpush1.bf16.msra.mxu0 0
  %592 = vmatprep.subr.bf16.mxu0 0
  %593 = vmatpush1.bf16.msra.mxu0 0
  %594 = vmatprep.subr.bf16.mxu0 0
  %595 = vmatpush1.bf16.msra.mxu0 0
  %596 = vmatprep.mubr.bf16.mxu0 0
  %597 = vmatmul.mubr.bf16.gmra.mrb[0].mxu0 %v559
  %v598 = vpop.f32.mrb[0].mxu0
  %v599 = vadd.f32 0.0, %v598
  %v600 = vpop.f32.mrb[0].mxu0
  %v601 = vpop.f32.mrb[0].mxu0
  %v602 = vpop.f32.mrb[0].mxu0
  %603 = vdwg.mxu0
  %v604 = vpack.c.bf16 %v599, %v599
  %605 = vst.msk [vmem:[%s2 + $0x4] sm:$0xf] %vm123, %v604
  %v607 = vunpack.c.l.b16 %v496
  %v608 = vpack.c.b16 %v607, %v607
  %609 = vrot.lane.b32.xlu0 %v608, 120
  %v610 = vpop.permute.xlu0 %609
  %v612 = vunpack.c.l.b16 %v497
  %v613 = vpack.c.b16 %v612, %v612
  %614 = vrot.lane.b32.xlu0 %v613, 120
  %v615 = vpop.permute.xlu0 %614
  %v617 = vsel %vm15, %v610, 0
  %v620 = vsel %vm15, %v615, 0
  %622 = vmatprep.subr.bf16.mxu0 0
  %623 = vmatpush1.bf16.xpose.msra.mxu0 %v620
  %624 = vmatprep.subr.bf16.mxu0 0
  %625 = vmatpush1.bf16.xpose.msra.mxu0 0
  %626 = vmatprep.subr.bf16.mxu0 0
  %627 = vmatpush1.bf16.xpose.msra.mxu0 0
  %628 = vmatprep.subr.bf16.mxu0 0
  %629 = vmatpush1.bf16.xpose.msra.mxu0 0
  %630 = vmatprep.subr.bf16.mxu0 0
  %631 = vmatpush1.bf16.xpose.msra.mxu0 0
  %632 = vmatprep.subr.bf16.mxu0 0
  %633 = vmatpush1.bf16.xpose.msra.mxu0 0
  %634 = vmatprep.subr.bf16.mxu0 0
  %635 = vmatpush1.bf16.xpose.msra.mxu0 0
  %636 = vmatprep.subr.bf16.mxu0 0
  %637 = vmatpush1.bf16.xpose.msra.mxu0 0
  %638 = vmatprep.subr.bf16.mxu0 0
  %639 = vmatpush1.bf16.xpose.msra.mxu0 0
  %640 = vmatprep.subr.bf16.mxu0 0
  %641 = vmatpush1.bf16.xpose.msra.mxu0 0
  %642 = vmatprep.subr.bf16.mxu0 0
  %643 = vmatpush1.bf16.xpose.msra.mxu0 0
  %644 = vmatprep.subr.bf16.mxu0 0
  %645 = vmatpush1.bf16.xpose.msra.mxu0 0
  %646 = vmatprep.subr.bf16.mxu0 0
  %647 = vmatpush1.bf16.xpose.msra.mxu0 0
  %648 = vmatprep.subr.bf16.mxu0 0
  %649 = vmatpush1.bf16.xpose.msra.mxu0 0
  %650 = vmatprep.subr.bf16.mxu0 0
  %651 = vmatpush1.bf16.xpose.msra.mxu0 0
  %652 = vmatprep.subr.bf16.mxu0 0
  %653 = vmatpush1.bf16.xpose.msra.mxu0 0
  %654 = vmatprep.mubr.bf16.mxu0 0
  %655 = vmatmul.mubr.bf16.gmra.mrb[0].mxu0 %v617
  %v656 = vpop.f32.mrb[0].mxu0
  %v657 = vadd.f32 0.0, %v656
  %v658 = vpop.f32.mrb[0].mxu0
  %v659 = vpop.f32.mrb[0].mxu0
  %v660 = vpop.f32.mrb[0].mxu0
  %661 = vdwg.mxu0
  %v662 = vmul.f32 %v657, 0.35355338
  %v663 = vsel %vm15, %v662, -inf
  %664 = vmax.xlane.f32.xlu0 %v663
  %v665 = vpop.xlane.xlu0 %664
  %v666 = vsub.f32 %v662, %v665
  %v667 = vmul.f32 %v666, 1.442695
  %v668 = vpow.pop %v667
  %v669 = vsel %vm15, %v668, 0.0
  %670 = vadd.xlane.f32.xlu0 %v669
  %v671 = vpop.xlane.xlu0 %670
  %v672 = vrcp.pop %v671
  %v673 = vmul.f32 %v668, %v672
  %v674 = vpack.c.bf16 %v673, %v673
  %v676 = vunpack.c.l.b16 %v498
  %v677 = vpack.c.b16 %v676, %v676
  %678 = vrot.lane.b32.xlu0 %v677, 120
  %v679 = vpop.permute.xlu0 %678
  %v681 = vsel %vm15, %v674, 0
  %v684 = vsel %vm78, %v679, 0
  %686 = vmatprep.subr.bf16.mxu0 0
  %687 = vmatpush1.bf16.msra.mxu0 %v684
  %688 = vmatprep.subr.bf16.mxu0 0
  %689 = vmatpush1.bf16.msra.mxu0 0
  %690 = vmatprep.subr.bf16.mxu0 0
  %691 = vmatpush1.bf16.msra.mxu0 0
  %692 = vmatprep.subr.bf16.mxu0 0
  %693 = vmatpush1.bf16.msra.mxu0 0
  %694 = vmatprep.subr.bf16.mxu0 0
  %695 = vmatpush1.bf16.msra.mxu0 0
  %696 = vmatprep.subr.bf16.mxu0 0
  %697 = vmatpush1.bf16.msra.mxu0 0
  %698 = vmatprep.subr.bf16.mxu0 0
  %699 = vmatpush1.bf16.msra.mxu0 0
  %700 = vmatprep.subr.bf16.mxu0 0
  %701 = vmatpush1.bf16.msra.mxu0 0
  %702 = vmatprep.subr.bf16.mxu0 0
  %703 = vmatpush1.bf16.msra.mxu0 0
  %704 = vmatprep.subr.bf16.mxu0 0
  %705 = vmatpush1.bf16.msra.mxu0 0
  %706 = vmatprep.subr.bf16.mxu0 0
  %707 = vmatpush1.bf16.msra.mxu0 0
  %708 = vmatprep.subr.bf16.mxu0 0
  %709 = vmatpush1.bf16.msra.mxu0 0
  %710 = vmatprep.subr.bf16.mxu0 0
  %711 = vmatpush1.bf16.msra.mxu0 0
  %712 = vmatprep.subr.bf16.mxu0 0
  %713 = vmatpush1.bf16.msra.mxu0 0
  %714 = vmatprep.subr.bf16.mxu0 0
  %715 = vmatpush1.bf16.msra.mxu0 0
  %716 = vmatprep.subr.bf16.mxu0 0
  %717 = vmatpush1.bf16.msra.mxu0 0
  %718 = vmatprep.mubr.bf16.mxu0 0
  %719 = vmatmul.mubr.bf16.gmra.mrb[0].mxu0 %v681
  %v720 = vpop.f32.mrb[0].mxu0
  %v721 = vadd.f32 0.0, %v720
  %v722 = vpop.f32.mrb[0].mxu0
  %v723 = vpop.f32.mrb[0].mxu0
  %v724 = vpop.f32.mrb[0].mxu0
  %725 = vdwg.mxu0
  %v726 = vpack.c.bf16 %v721, %v721
  %v728 = vunpack.c.l.b16 %v726
  %v729 = vpack.c.b16 %v728, %v728
  %730 = vrot.lane.b32.xlu0 %v729, 8
  %v731 = vpop.permute.xlu0 %730
  %733 = vst.msk [vmem:[%s2 + $0x4] sm:$0xf] %vm252, %v731
  %734 = vrot.lane.b32.xlu0 %v608, 112
  %v735 = vpop.permute.xlu0 %734
  %736 = vrot.lane.b32.xlu0 %v613, 112
  %v737 = vpop.permute.xlu0 %736
  %v739 = vsel %vm15, %v735, 0
  %v742 = vsel %vm15, %v737, 0
  %744 = vmatprep.subr.bf16.mxu0 0
  %745 = vmatpush1.bf16.xpose.msra.mxu0 %v742
  %746 = vmatprep.subr.bf16.mxu0 0
  %747 = vmatpush1.bf16.xpose.msra.mxu0 0
  %748 = vmatprep.subr.bf16.mxu0 0
  %749 = vmatpush1.bf16.xpose.msra.mxu0 0
  %750 = vmatprep.subr.bf16.mxu0 0
  %751 = vmatpush1.bf16.xpose.msra.mxu0 0
  %752 = vmatprep.subr.bf16.mxu0 0
  %753 = vmatpush1.bf16.xpose.msra.mxu0 0
  %754 = vmatprep.subr.bf16.mxu0 0
  %755 = vmatpush1.bf16.xpose.msra.mxu0 0
  %756 = vmatprep.subr.bf16.mxu0 0
  %757 = vmatpush1.bf16.xpose.msra.mxu0 0
  %758 = vmatprep.subr.bf16.mxu0 0
  %759 = vmatpush1.bf16.xpose.msra.mxu0 0
  %760 = vmatprep.subr.bf16.mxu0 0
  %761 = vmatpush1.bf16.xpose.msra.mxu0 0
  %762 = vmatprep.subr.bf16.mxu0 0
  %763 = vmatpush1.bf16.xpose.msra.mxu0 0
  %764 = vmatprep.subr.bf16.mxu0 0
  %765 = vmatpush1.bf16.xpose.msra.mxu0 0
  %766 = vmatprep.subr.bf16.mxu0 0
  %767 = vmatpush1.bf16.xpose.msra.mxu0 0
  %768 = vmatprep.subr.bf16.mxu0 0
  %769 = vmatpush1.bf16.xpose.msra.mxu0 0
  %770 = vmatprep.subr.bf16.mxu0 0
  %771 = vmatpush1.bf16.xpose.msra.mxu0 0
  %772 = vmatprep.subr.bf16.mxu0 0
  %773 = vmatpush1.bf16.xpose.msra.mxu0 0
  %774 = vmatprep.subr.bf16.mxu0 0
  %775 = vmatpush1.bf16.xpose.msra.mxu0 0
  %776 = vmatprep.mubr.bf16.mxu0 0
  %777 = vmatmul.mubr.bf16.gmra.mrb[0].mxu0 %v739
  %v778 = vpop.f32.mrb[0].mxu0
  %v779 = vadd.f32 0.0, %v778
  %v780 = vpop.f32.mrb[0].mxu0
  %v781 = vpop.f32.mrb[0].mxu0
  %v782 = vpop.f32.mrb[0].mxu0
  %783 = vdwg.mxu0
  %v784 = vmul.f32 %v779, 0.35355338
  %v785 = vsel %vm15, %v784, -inf
  %786 = vmax.xlane.f32.xlu0 %v785
  %v787 = vpop.xlane.xlu0 %786
  %v788 = vsub.f32 %v784, %v787
  %v789 = vmul.f32 %v788, 1.442695
  %v790 = vpow.pop %v789
  %v791 = vsel %vm15, %v790, 0.0
  %792 = vadd.xlane.f32.xlu0 %v791
  %v793 = vpop.xlane.xlu0 %792
  %v794 = vrcp.pop %v793
  %v795 = vmul.f32 %v790, %v794
  %v796 = vpack.c.bf16 %v795, %v795
  %797 = vrot.lane.b32.xlu0 %v677, 112
  %v798 = vpop.permute.xlu0 %797
  %v800 = vsel %vm15, %v796, 0
  %v803 = vsel %vm78, %v798, 0
  %805 = vmatprep.subr.bf16.mxu0 0
  %806 = vmatpush1.bf16.msra.mxu0 %v803
  %807 = vmatprep.subr.bf16.mxu0 0
  %808 = vmatpush1.bf16.msra.mxu0 0
  %809 = vmatprep.subr.bf16.mxu0 0
  %810 = vmatpush1.bf16.msra.mxu0 0
  %811 = vmatprep.subr.bf16.mxu0 0
  %812 = vmatpush1.bf16.msra.mxu0 0
  %813 = vmatprep.subr.bf16.mxu0 0
  %814 = vmatpush1.bf16.msra.mxu0 0
  %815 = vmatprep.subr.bf16.mxu0 0
  %816 = vmatpush1.bf16.msra.mxu0 0
  %817 = vmatprep.subr.bf16.mxu0 0
  %818 = vmatpush1.bf16.msra.mxu0 0
  %819 = vmatprep.subr.bf16.mxu0 0
  %820 = vmatpush1.bf16.msra.mxu0 0
  %821 = vmatprep.subr.bf16.mxu0 0
  %822 = vmatpush1.bf16.msra.mxu0 0
  %823 = vmatprep.subr.bf16.mxu0 0
  %824 = vmatpush1.bf16.msra.mxu0 0
  %825 = vmatprep.subr.bf16.mxu0 0
  %826 = vmatpush1.bf16.msra.mxu0 0
  %827 = vmatprep.subr.bf16.mxu0 0
  %828 = vmatpush1.bf16.msra.mxu0 0
  %829 = vmatprep.subr.bf16.mxu0 0
  %830 = vmatpush1.bf16.msra.mxu0 0
  %831 = vmatprep.subr.bf16.mxu0 0
  %832 = vmatpush1.bf16.msra.mxu0 0
  %833 = vmatprep.subr.bf16.mxu0 0
  %834 = vmatpush1.bf16.msra.mxu0 0
  %835 = vmatprep.subr.bf16.mxu0 0
  %836 = vmatpush1.bf16.msra.mxu0 0
  %837 = vmatprep.mubr.bf16.mxu0 0
  %838 = vmatmul.mubr.bf16.gmra.mrb[0].mxu0 %v800
  %v839 = vpop.f32.mrb[0].mxu0
  %v840 = vadd.f32 0.0, %v839
  %v841 = vpop.f32.mrb[0].mxu0
  %v842 = vpop.f32.mrb[0].mxu0
  %v843 = vpop.f32.mrb[0].mxu0
  %844 = vdwg.mxu0
  %v845 = vpack.c.bf16 %v840, %v840
  %v847 = vunpack.c.l.b16 %v845
  %v848 = vpack.c.b16 %v847, %v847
  %849 = vrot.lane.b32.xlu0 %v848, 16
  %v850 = vpop.permute.xlu0 %849
  %852 = vst.msk [vmem:[%s2 + $0x4] sm:$0xf] %vm372, %v850
  %853 = vrot.lane.b32.xlu0 %v608, 104
  %v854 = vpop.permute.xlu0 %853
  %855 = vrot.lane.b32.xlu0 %v613, 104
  %v856 = vpop.permute.xlu0 %855
  %v858 = vsel %vm15, %v854, 0
  %v861 = vsel %vm15, %v856, 0
  %863 = vmatprep.subr.bf16.mxu0 0
  %864 = vmatpush1.bf16.xpose.msra.mxu0 %v861
  %865 = vmatprep.subr.bf16.mxu0 0
  %866 = vmatpush1.bf16.xpose.msra.mxu0 0
  %867 = vmatprep.subr.bf16.mxu0 0
  %868 = vmatpush1.bf16.xpose.msra.mxu0 0
  %869 = vmatprep.subr.bf16.mxu0 0
  %870 = vmatpush1.bf16.xpose.msra.mxu0 0
  %871 = vmatprep.subr.bf16.mxu0 0
  %872 = vmatpush1.bf16.xpose.msra.mxu0 0
  %873 = vmatprep.subr.bf16.mxu0 0
  %874 = vmatpush1.bf16.xpose.msra.mxu0 0
  %875 = vmatprep.subr.bf16.mxu0 0
  %876 = vmatpush1.bf16.xpose.msra.mxu0 0
  %877 = vmatprep.subr.bf16.mxu0 0
  %878 = vmatpush1.bf16.xpose.msra.mxu0 0
  %879 = vmatprep.subr.bf16.mxu0 0
  %880 = vmatpush1.bf16.xpose.msra.mxu0 0
  %881 = vmatprep.subr.bf16.mxu0 0
  %882 = vmatpush1.bf16.xpose.msra.mxu0 0
  %883 = vmatprep.subr.bf16.mxu0 0
  %884 = vmatpush1.bf16.xpose.msra.mxu0 0
  %885 = vmatprep.subr.bf16.mxu0 0
  %886 = vmatpush1.bf16.xpose.msra.mxu0 0
  %887 = vmatprep.subr.bf16.mxu0 0
  %888 = vmatpush1.bf16.xpose.msra.mxu0 0
  %889 = vmatprep.subr.bf16.mxu0 0
  %890 = vmatpush1.bf16.xpose.msra.mxu0 0
  %891 = vmatprep.subr.bf16.mxu0 0
  %892 = vmatpush1.bf16.xpose.msra.mxu0 0
  %893 = vmatprep.subr.bf16.mxu0 0
  %894 = vmatpush1.bf16.xpose.msra.mxu0 0
  %895 = vmatprep.mubr.bf16.mxu0 0
  %896 = vmatmul.mubr.bf16.gmra.mrb[0].mxu0 %v858
  %v897 = vpop.f32.mrb[0].mxu0
  %v898 = vadd.f32 0.0, %v897
  %v899 = vpop.f32.mrb[0].mxu0
  %v900 = vpop.f32.mrb[0].mxu0
  %v901 = vpop.f32.mrb[0].mxu0
  %902 = vdwg.mxu0
  %v903 = vmul.f32 %v898, 0.35355338
  %v904 = vsel %vm15, %v903, -inf
  %905 = vmax.xlane.f32.xlu0 %v904
  %v906 = vpop.xlane.xlu0 %905
  %v907 = vsub.f32 %v903, %v906
  %v908 = vmul.f32 %v907, 1.442695
  %v909 = vpow.pop %v908
  %v910 = vsel %vm15, %v909, 0.0
  %911 = vadd.xlane.f32.xlu0 %v910
  %v912 = vpop.xlane.xlu0 %911
  %v913 = vrcp.pop %v912
  %v914 = vmul.f32 %v909, %v913
  %v915 = vpack.c.bf16 %v914, %v914
  %916 = vrot.lane.b32.xlu0 %v677, 104
  %v917 = vpop.permute.xlu0 %916
  %v919 = vsel %vm15, %v915, 0
  %v922 = vsel %vm78, %v917, 0
  %924 = vmatprep.subr.bf16.mxu0 0
  %925 = vmatpush1.bf16.msra.mxu0 %v922
  %926 = vmatprep.subr.bf16.mxu0 0
  %927 = vmatpush1.bf16.msra.mxu0 0
  %928 = vmatprep.subr.bf16.mxu0 0
  %929 = vmatpush1.bf16.msra.mxu0 0
  %930 = vmatprep.subr.bf16.mxu0 0
  %931 = vmatpush1.bf16.msra.mxu0 0
  %932 = vmatprep.subr.bf16.mxu0 0
  %933 = vmatpush1.bf16.msra.mxu0 0
  %934 = vmatprep.subr.bf16.mxu0 0
  %935 = vmatpush1.bf16.msra.mxu0 0
  %936 = vmatprep.subr.bf16.mxu0 0
  %937 = vmatpush1.bf16.msra.mxu0 0
  %938 = vmatprep.subr.bf16.mxu0 0
  %939 = vmatpush1.bf16.msra.mxu0 0
  %940 = vmatprep.subr.bf16.mxu0 0
  %941 = vmatpush1.bf16.msra.mxu0 0
  %942 = vmatprep.subr.bf16.mxu0 0
  %943 = vmatpush1.bf16.msra.mxu0 0
  %944 = vmatprep.subr.bf16.mxu0 0
  %945 = vmatpush1.bf16.msra.mxu0 0
  %946 = vmatprep.subr.bf16.mxu0 0
  %947 = vmatpush1.bf16.msra.mxu0 0
  %948 = vmatprep.subr.bf16.mxu0 0
  %949 = vmatpush1.bf16.msra.mxu0 0
  %950 = vmatprep.subr.bf16.mxu0 0
  %951 = vmatpush1.bf16.msra.mxu0 0
  %952 = vmatprep.subr.bf16.mxu0 0
  %953 = vmatpush1.bf16.msra.mxu0 0
  %954 = vmatprep.subr.bf16.mxu0 0
  %955 = vmatpush1.bf16.msra.mxu0 0
  %956 = vmatprep.mubr.bf16.mxu0 0
  %957 = vmatmul.mubr.bf16.gmra.mrb[0].mxu0 %v919
  %v958 = vpop.f32.mrb[0].mxu0
  %v959 = vadd.f32 0.0, %v958
  %v960 = vpop.f32.mrb[0].mxu0
  %v961 = vpop.f32.mrb[0].mxu0
  %v962 = vpop.f32.mrb[0].mxu0
  %963 = vdwg.mxu0
  %v964 = vpack.c.bf16 %v959, %v959
  %v966 = vunpack.c.l.b16 %v964
  %v967 = vpack.c.b16 %v966, %v966
  %968 = vrot.lane.b32.xlu0 %v967, 24
  %v969 = vpop.permute.xlu0 %968
  %971 = vst.msk [vmem:[%s2 + $0x4] sm:$0xf] %vm492, %v969
  %972 = vst.msk [vmem:[%s2 + $0x4] sm:$0xf] %vm494, 0
  // Predicated region
  $region10: #{_lambda_.48} parent=0 // pred_check
    _
  $region11: #{_lambda_.48} parent=0 // pred_check_branch
    %974 = sbr.rel (0) target = $region13
  $region12: #{_lambda_.48} parent=0 // pred_region
    _
  $region13: #{_lambda_.48} parent=0 // pred_fallthru
    _
  // Predicated region
  $region14: #{_lambda_.48} parent=0 // pred_check
    _
  $region15: #{_lambda_.48} parent=0 // pred_check_branch
    %976 = sbr.rel (0) target = $region17
  $region16: #{_lambda_.48} parent=0 // pred_region
    _
  $region17: #{_lambda_.48} parent=0 // pred_fallthru
    _

// kernel: _lambda_.63
$region0: #{_lambda_.63}
  #allocation0 [shape = 'u32[]', space=smem, size = 0x4, offset = 0x4, fixed_abs, tag = 'smem constant byte address 0x4 - core index']
  #allocation1 [shape = 'u32[144,128]{1,0:T(1,128)}', space=vmem, size = 0x12000, scoped, tag = 'internal scratch']
  %s0 = inlined_call_operand.vmem [shape: f32[16,128], index: 0, kind: input, shape index: {}]
  %s1 = inlined_call_operand.vmem [shape: s32[16,1], index: 1, kind: input, shape index: {}]
  %s2 = inlined_call_operand.hbm [shape: f32[1,1], index: 2, kind: output, shape index: {0}]
  %s3 = inlined_call_operand.hbm [shape: f32[1,1], index: 3, kind: output, shape index: {1}]
  %s4 = inlined_call_operand.vmem [shape: s32[16,1], index: 4, kind: output, shape index: {2}]
  %5 = xla_tuple %s2, %s3, %s4
  %s6 = sld [smem:[#allocation0]]
  $region38: #{_lambda_.63} parent=0
    _
  %s8 = ssub.s32 1, %s6
  %s9 = scalar_select 0, %s8, %s6
  $region1: #{_lambda_.63} parent=0
    #allocation2 [shape = 'u8[512]{0}', space=vmem, size = 0x400, scoped, tag = 'output window, operand 0, single buffered']
    #allocation3 [shape = 's32[1]{0}', space=sflag, size = 0x4, scoped, tag = 'scoped memory for _lambda_.63']
    #allocation4 [shape = 'u8[512]{0}', space=vmem, size = 0x400, scoped, tag = 'output window, operand 1, single buffered']
    #allocation5 [shape = 's32[1]{0}', space=sflag, size = 0x4, scoped, tag = 'scoped memory for _lambda_.63']
    %10 = vsyncpa [#allocation3], 0
    %11 = vsyncpa [#allocation5], 0
    // Predicated region
    $region2: #{_lambda_.63} parent=1 // pred_check
      _
    $region3: #{_lambda_.63} parent=1 // pred_check_branch
      %13 = sbr.rel (0) target = $region5
    $region4: #{_lambda_.63} parent=1 // pred_region
      _
    $region5: #{_lambda_.63} parent=1 // pred_fallthru
      _
    // Predicated region
    $region6: #{_lambda_.63} parent=1 // pred_check
      _
    $region7: #{_lambda_.63} parent=1 // pred_check_branch
      %15 = sbr.rel (0) target = $region9
    $region8: #{_lambda_.63} parent=1 // pred_region
      _
    $region9: #{_lambda_.63} parent=1 // pred_fallthru
      _
    %v16 = vld [vmem:[%s0] sm:$0xff]
    %v17 = vld [vmem:[%s0 + $0x8] sm:$0xff]
    %v18 = vld [vmem:[%s1] sm:$0xff]
    %v19 = vld [vmem:[%s1 + $0x8] sm:$0xff]
    %v20 = vlaneseq
    %v21 = vand.u32 %v20, 127
    %vm22 = vcmp.lt.s32.totalorder %v21, 60
    %v23 = vsel %vm22, %v16, -1e+09
    %v24 = vsel %vm22, %v17, -1e+09
    %25 = vmax.xlane.f32.xlu0 %v23
    %v26 = vpop.xlane.xlu0 %25
    %27 = vmax.xlane.f32.xlu0 %v24
    %v28 = vpop.xlane.xlu0 %27
    %v29 = vsub.f32 %v23, %v26
    %v30 = vsub.f32 %v24, %v28
    %v31 = vmul.f32 %v29, 1.442695
    %v32 = vpow.pop %v31
    %v33 = vmul.f32 %v30, 1.442695
    %v34 = vpow.pop %v33
    %35 = vadd.xlane.f32.xlu0 %v32
    %v36 = vpop.xlane.xlu0 %35
    %37 = vadd.xlane.f32.xlu0 %v34
    %v38 = vpop.xlane.xlu0 %37
    %v39 = vlog2.pop %v36
    %v40 = vmul.f32 %v39, 0.6931472
    %v41 = vlog2.pop %v38
    %v42 = vmul.f32 %v41, 0.6931472
    %v43 = vsub.f32 %v29, %v40
    %v44 = vsub.f32 %v30, %v42
    %45 = vset.pattern.permute.xlu0 0
    %46 = vperm.xlu0 %45, %v18
    %v47 = vpop.permute.xlu0 %46
    %48 = vset.pattern.permute.xlu0 0
    %49 = vperm.xlu0 %48, %v19
    %v50 = vpop.permute.xlu0 %49
    %vm51 = vcmp.eq.s32.totalorder %v21, %v47
    %vm52 = vcmp.eq.s32.totalorder %v21, %v50
    %v53 = vsel %vm51, 1, 0
    %v54 = vsel %vm52, 1, 0
    %v55 = vcvt.s32.f32 %v53
    %v56 = vcvt.s32.f32 %v54
    %v57 = vmul.f32 %v55, %v43
    %v58 = vmul.f32 %v56, %v44
    %59 = vadd.xlane.f32.xlu0 %v57
    %v60 = vpop.xlane.xlu0 %59
    %61 = vadd.xlane.f32.xlu0 %v58
    %v62 = vpop.xlane.xlu0 %61
    %v63 = vsub.f32 0.0, %v60
    %v64 = vsub.f32 0.0, %v62
    %v65 = vsel %vm22, %v43, 0.0
    %v66 = vsel %vm22, %v44, 0.0
    %67 = vadd.xlane.f32.xlu0 %v65
    %v68 = vpop.xlane.xlu0 %67
    %69 = vadd.xlane.f32.xlu0 %v66
    %v70 = vpop.xlane.xlu0 %69
    %v71 = vsub.f32 0.0, %v68
    %v72 = vsub.f32 0.0, %v70
    %v73 = vrcp.pop 60.0
    %v74 = vmul.f32 %v71, %v73
    %v75 = vmul.f32 %v72, %v73
    %v76 = vmul.f32 %v63, 0.9
    %v77 = vmul.f32 %v64, 0.9
    %v78 = vmul.f32 %v74, 0.1
    %v79 = vmul.f32 %v75, 0.1
    %v80 = vadd.f32 %v76, %v78
    %v81 = vadd.f32 %v77, %v79
    %vm82 = vcmp.ne.s32.totalorder %v18, 1
    %vm83 = vcmp.ne.s32.totalorder %v19, 1
    %v84 = vsel %vm82, 1, 0
    %v85 = vsel %vm83, 1, 0
    %v86 = vcvt.s32.f32 %v84
    %v87 = vcvt.s32.f32 %v85
    %p88 = scmp.eq.s32.totalorder 0, 0
    // Predicated region
    $region10: #{_lambda_.63} parent=1 // pred_check
      %p89 = pneg %p88
    $region11: #{_lambda_.63} parent=1 // pred_check_branch
      %91 = sbr.rel (%p89) target = $region13
    $region12: #{_lambda_.63} parent=1 // pred_region
      %vm92 = vcmask 0
      %93 = vst.msk [vmem:[#allocation2] sm:$0x1] %vm92, 0.0
      %94 = vst.msk [vmem:[#allocation4] sm:$0x1] %vm92, 0.0
    $region13: #{_lambda_.63} parent=1 // pred_fallthru
      _
    %v95 = vld [vmem:[#allocation2] sm:$0x1]
    %v96 = vmul.f32 %v80, %v86
    %v97 = vmul.f32 %v81, %v87
    %vm98 = vcmask 7168
    %v99 = vsel %vm98, %v96, 0.0
    %v100 = vsel %vm98, %v97, 0.0
    %v101 = vadd.f32 %v99, %v100
    %102 = vadd.xlane.f32.xlu0 %v101
    %v103 = vpop.xlane.xlu0 %102
    %v104 = vrot.slane %v103, 4
    %v105 = vadd.f32 %v103, %v104
    %v106 = vrot.slane %v105, 2
    %v107 = vadd.f32 %v105, %v106
    %v108 = vrot.slane %v107, 1
    %v109 = vadd.f32 %v107, %v108
    %s110 = vtos %v109
    %v111 = vstv %s110
    %v112 = vadd.f32 %v95, %v111
    %vm113 = vcmask 0
    %114 = vst.msk [vmem:[#allocation2] sm:$0x1] %vm113, %v112
    %v115 = vld [vmem:[#allocation4] sm:$0x1]
    %v116 = vsel %vm98, %v86, 0.0
    %v117 = vsel %vm98, %v87, 0.0
    %v118 = vadd.f32 %v116, %v117
    %119 = vadd.xlane.f32.xlu0 %v118
    %v120 = vpop.xlane.xlu0 %119
    %v121 = vrot.slane %v120, 4
    %v122 = vadd.f32 %v120, %v121
    %v123 = vrot.slane %v122, 2
    %v124 = vadd.f32 %v122, %v123
    %v125 = vrot.slane %v124, 1
    %v126 = vadd.f32 %v124, %v125
    %s127 = vtos %v126
    %v128 = vstv %s127
    %v129 = vadd.f32 %v115, %v128
    %130 = vst.msk [vmem:[#allocation4] sm:$0x1] %vm113, %v129
    %vm131 = vcmp.eq.f32.partialorder %v23, %v26
    %vm132 = vcmp.eq.f32.partialorder %v24, %v28
    %v133 = vsel %vm131, %v21, 128
    %v134 = vsel %vm132, %v21, 128
    %v135 = vand.u32 %v133, 65535
    %v136 = vshra.s32 %v133, 16
    %v137 = vcvt.s32.f32 %v135
    %v138 = vcvt.s32.f32 %v136
    %139 = vmin.xlane.f32.xlu0 %v138
    %v140 = vpop.xlane.xlu0 %139
    %vm141 = vcmp.eq.f32.partialorder %v138, %v140
    %v142 = vsel %vm141, %v137, inf
    %143 = vmin.xlane.f32.xlu0 %v142
    %v144 = vpop.xlane.xlu0 %143
    %v145 = vcvt.f32.s32 %v144
    %v146 = vcvt.f32.s32 %v140
    %v147 = vshll.u32 %v146, 16
    %v148 = vadd.s32 %v147, %v145
    %v149 = vand.u32 %v134, 65535
    %v150 = vshra.s32 %v134, 16
    %v151 = vcvt.s32.f32 %v149
    %v152 = vcvt.s32.f32 %v150
    %153 = vmin.xlane.f32.xlu0 %v152
    %v154 = vpop.xlane.xlu0 %153
    %vm155 = vcmp.eq.f32.partialorder %v152, %v154
    %v156 = vsel %vm155, %v151, inf
    %157 = vmin.xlane.f32.xlu0 %v156
    %v158 = vpop.xlane.xlu0 %157
    %v159 = vcvt.f32.s32 %v158
    %v160 = vcvt.f32.s32 %v154
    %v161 = vshll.u32 %v160, 16
    %v162 = vadd.s32 %v161, %v159
    %163 = vst.msk [vmem:[%s4] sm:$0xff] %vm98, %v148
    %164 = vst.msk [vmem:[%s4 + $0x8] sm:$0xff] %vm98, %v162
    // Predicated region
    $region14: #{_lambda_.63} parent=1 // pred_check
      _
    $region15: #{_lambda_.63} parent=1 // pred_check_branch
      %166 = sbr.rel (0) target = $region17
    $region16: #{_lambda_.63} parent=1 // pred_region
      %s168 = ssub.s32 16, 16
      %169 = vsyncadd [#allocation3], %s168
      %s171 = sshll.u32 [#allocation2], 4
      %s172 = int_to_ptr.vmem [resolvable:$true] %s171
      %174 = dma.vmem_to_hbm [thread:$0]  %s172, 16, %s2, [#allocation3]
    $region17: #{_lambda_.63} parent=1 // pred_fallthru
      _
    // Predicated region
    $region18: #{_lambda_.63} parent=1 // pred_check
      _
    $region19: #{_lambda_.63} parent=1 // pred_check_branch
      %176 = sbr.rel (0) target = $region21
    $region20: #{_lambda_.63} parent=1 // pred_region
      %s178 = ssub.s32 16, 16
      %179 = vsyncadd [#allocation5], %s178
      %s181 = sshll.u32 [#allocation4], 4
      %s182 = int_to_ptr.vmem [resolvable:$true] %s181
      %184 = dma.vmem_to_hbm [thread:$0]  %s182, 16, %s3, [#allocation5]
    $region21: #{_lambda_.63} parent=1 // pred_fallthru
      _
    // Predicated region
    $region22: #{_lambda_.63} parent=1 // pred_check
      _
    $region23: #{_lambda_.63} parent=1 // pred_check_branch
      %186 = sbr.rel (0) target = $region25
    $region24: #{_lambda_.63} parent=1 // pred_region
      _
    $region25: #{_lambda_.63} parent=1 // pred_fallthru
      _
    // Predicated region
    $region26: #{_lambda_.63} parent=1 // pred_check
      _
    $region27: #{_lambda_.63} parent=1 // pred_check_branch
      %188 = sbr.rel (0) target = $region29
    $region28: #{_lambda_.63} parent=1 // pred_region
      %189 = dma.done [#allocation3], 16
    $region29: #{_lambda_.63} parent=1 // pred_fallthru
      _
    // Predicated region
    $region30: #{_lambda_.63} parent=1 // pred_check
      _
    $region31: #{_lambda_.63} parent=1 // pred_check_branch
      %191 = sbr.rel (0) target = $region33
    $region32: #{_lambda_.63} parent=1 // pred_region
      %192 = dma.done [#allocation5], 16
    $region33: #{_lambda_.63} parent=1 // pred_fallthru
      _
    // Predicated region
    $region34: #{_lambda_.63} parent=1 // pred_check
      _
    $region35: #{_lambda_.63} parent=1 // pred_check_branch
      %194 = sbr.rel (0) target = $region37
    $region36: #{_lambda_.63} parent=1 // pred_region
      _
    $region37: #{_lambda_.63} parent=1 // pred_fallthru
      _
    %195 = vsyncpa [#allocation3], 1
    %196 = vsyncpa [#allocation5], 1

</llo_original>
